<compile_context>
chip_gen: v7x
topology: tpu7x:2x2x1
jax: 0.10.0
libtpu: 0.0.40
codegen_flags: <defaults>
</compile_context>

<pallas_src>
import functools

import jax
import jax.numpy as jnp
from jax.experimental import pallas as pl
from jax.experimental.pallas import tpu as pltpu


_VMEM_LIMIT = 48 * 1024 * 1024  # < 64 MiB physical VMEM on v7x; fine on v5e/v6e.


# --------------------------------------------------------------------------
# Small helpers: padding / tile selection
# --------------------------------------------------------------------------
def _round_up(x, m):
    return ((x + m - 1) // m) * m


def _pick_tile(size, unit, cap):
    """Largest multiple of `unit` dividing round_up(size, unit), capped at `cap`.

    Returns (tile, padded_size); tile always divides padded_size exactly.
    """
    padded = _round_up(size, unit)
    best = unit
    t = unit
    limit = min(cap, padded)
    while t <= limit:
        if padded % t == 0:
            best = t
        t += unit
    return best, padded


# --------------------------------------------------------------------------
# Pallas kernels
# --------------------------------------------------------------------------
def _mm_bn_kernel(a_ref, w_ref, s_ref, b_ref, o_ref, acc_ref, *, relu):
    """Tiled matmul + folded BN (+ReLU). Grid = (M tiles, N tiles, K tiles)."""
    @pl.when(pl.program_id(2) == 0)
    def _():
        acc_ref[...] = jnp.zeros_like(acc_ref)

    acc_ref[...] += jnp.dot(a_ref[...], w_ref[...],
                            preferred_element_type=jnp.float32)

    @pl.when(pl.program_id(2) == pl.num_programs(2) - 1)
    def _():
        y = acc_ref[...] * s_ref[...] + b_ref[...]
        if relu:
            y = jnp.maximum(y, 0.0)
        o_ref[...] = y.astype(o_ref.dtype)


def _mm_bn_res_relu_kernel(a_ref, w_ref, s_ref, b_ref, r_ref, o_ref, acc_ref):
    """Tiled matmul + folded BN + residual add + ReLU, all fused."""
    @pl.when(pl.program_id(2) == 0)
    def _():
        acc_ref[...] = jnp.zeros_like(acc_ref)

    acc_ref[...] += jnp.dot(a_ref[...], w_ref[...],
                            preferred_element_type=jnp.float32)

    @pl.when(pl.program_id(2) == pl.num_programs(2) - 1)
    def _():
        y = acc_ref[...] * s_ref[...] + b_ref[...] + r_ref[...].astype(jnp.float32)
        o_ref[...] = jnp.maximum(y, 0.0).astype(o_ref.dtype)


def _maxpool_kernel(ee_ref, eo_ref, oe_ref, oo_ref, o_ref):
    """3x3 / stride-2 / pad-1 max-pool from 4 even/odd parity planes.

    Each plane ref is [1, Ho+1, Wo+1, C]; the 3x3/stride-2 window becomes 9
    unit-stride shifted views of the parity planes.
    """
    ho = o_ref.shape[1]
    wo = o_ref.shape[2]
    ee = ee_ref[0].astype(jnp.float32)
    eo = eo_ref[0].astype(jnp.float32)
    oe = oe_ref[0].astype(jnp.float32)
    oo = oo_ref[0].astype(jnp.float32)

    m = jnp.maximum(ee[:ho, :wo], ee[:ho, 1:wo + 1])
    m = jnp.maximum(m, ee[1:ho + 1, :wo])
    m = jnp.maximum(m, ee[1:ho + 1, 1:wo + 1])
    m = jnp.maximum(m, eo[:ho, :wo])
    m = jnp.maximum(m, eo[1:ho + 1, :wo])
    m = jnp.maximum(m, oe[:ho, :wo])
    m = jnp.maximum(m, oe[:ho, 1:wo + 1])
    m = jnp.maximum(m, oo[:ho, :wo])
    o_ref[0] = m.astype(o_ref.dtype)


# --------------------------------------------------------------------------
# JAX glue: im2col, conv+BN(+residual)(+ReLU), maxpool
# --------------------------------------------------------------------------
def _im2col(x_nhwc, kh, kw, stride, padding):
    """Returns patches [N, Ho, Wo, kh*kw, C] and output spatial dims (bf16 in, bf16 out)."""
    N, H, W, C = x_nhwc.shape
    xp = jnp.pad(x_nhwc, ((0, 0), (padding, padding), (padding, padding), (0, 0)))
    Ho = (H + 2 * padding - kh) // stride + 1
    Wo = (W + 2 * padding - kw) // stride + 1
    cols = []
    for ki in range(kh):
        for kj in range(kw):
            sl = xp[:,
                    ki: ki + stride * (Ho - 1) + 1: stride,
                    kj: kj + stride * (Wo - 1) + 1: stride,
                    :]
            cols.append(sl)
    patches = jnp.stack(cols, axis=3)  # [N, Ho, Wo, kh*kw, C]
    return patches, Ho, Wo


def conv_bn(x, p, stride, padding, relu, residual=None):
    """Conv2d(bias=False) + folded BN + optional residual add + optional ReLU.

    x:        [N, H, W, Cin] bf16 (NHWC)
    p:        dict with pre-laid-out bf16 weight matrix [Kp, Np] and f32 scale/shift
    residual: [N, Ho, Wo, Cout] bf16 (fused add + ReLU when given)
    returns:  [N, Ho, Wo, Cout] bf16
    """
    N, H, W, Cin = x.shape
    kh, kw, K, cout = p["kh"], p["kw"], p["kin"], p["cout"]
    assert K == kh * kw * Cin, (K, kh, kw, Cin)

    patches, Ho, Wo = _im2col(x, kh, kw, stride, padding)
    M = N * Ho * Wo
    a = patches.reshape(M, K)                       # bf16 [M, K]

    Kp, Np = p["w"].shape                           # pre-padded at init
    tm, Mp = _pick_tile(M, 16, 256)                 # bf16 sublane-safe
    tk, _ = _pick_tile(Kp, 128, 512)
    tn, _ = _pick_tile(Np, 128, 512)

    a = jnp.pad(a, ((0, Mp - M), (0, Kp - K)))      # zero pads contribute nothing

    grid = (Mp // tm, Np // tn, Kp // tk)
    in_specs = [
        pl.BlockSpec((tm, tk), lambda i, j, k: (i, k)),
        pl.BlockSpec((tk, tn), lambda i, j, k: (k, j)),
        pl.BlockSpec((1, tn), lambda i, j, k: (0, j)),
        pl.BlockSpec((1, tn), lambda i, j, k: (0, j)),
    ]
    args = [a, p["w"], p["s"], p["b"]]

    if residual is None:
        kernel = functools.partial(_mm_bn_kernel, relu=relu)
    else:
        r = residual.reshape(M, cout).astype(jnp.bfloat16)
        r = jnp.pad(r, ((0, Mp - M), (0, Np - cout)))
        in_specs.append(pl.BlockSpec((tm, tn), lambda i, j, k: (i, j)))
        args.append(r)
        kernel = _mm_bn_res_relu_kernel

    out = pl.pallas_call(
        kernel,
        out_shape=jax.ShapeDtypeStruct((Mp, Np), jnp.bfloat16),
        grid_spec=pltpu.PrefetchScalarGridSpec(
            num_scalar_prefetch=0,
            grid=grid,
            in_specs=in_specs,
            out_specs=pl.BlockSpec((tm, tn), lambda i, j, k: (i, j)),
            scratch_shapes=[pltpu.VMEM((tm, tn), jnp.float32)],
        ),
        compiler_params=pltpu.CompilerParams(
            dimension_semantics=("parallel", "parallel", "arbitrary"),
            vmem_limit_bytes=_VMEM_LIMIT,
        ),
    )(*args)

    return out[:M, :cout].reshape(N, Ho, Wo, cout)


def maxpool_3x3_s2_p1(x):
    """MaxPool2d(kernel=3, stride=2, padding=1) on NHWC bf16 input."""
    N, H, W, C = x.shape
    Ho = (H + 2 - 3) // 2 + 1
    Wo = (W + 2 - 3) // 2 + 1
    neg = -1e30  # input is post-ReLU (>= 0), so pads never win the max
    xp = jnp.pad(x, ((0, 0), (1, 2), (1, 2), (0, 0)), constant_values=neg)

    # Even/odd parity planes (total bytes == input bytes; no 9x blow-up).
    ee = xp[:, 0::2, 0::2, :][:, : Ho + 1, : Wo + 1, :]
    eo = xp[:, 0::2, 1::2, :][:, : Ho + 1, : Wo + 1, :]
    oe = xp[:, 1::2, 0::2, :][:, : Ho + 1, : Wo + 1, :]
    oo = xp[:, 1::2, 1::2, :][:, : Ho + 1, : Wo + 1, :]

    spec_in = pl.BlockSpec((1, Ho + 1, Wo + 1, C), lambda n: (n, 0, 0, 0))
    return pl.pallas_call(
        _maxpool_kernel,
        out_shape=jax.ShapeDtypeStruct((N, Ho, Wo, C), x.dtype),
        grid=(N,),
        in_specs=[spec_in, spec_in, spec_in, spec_in],
        out_specs=pl.BlockSpec((1, Ho, Wo, C), lambda n: (n, 0, 0, 0)),
        compiler_params=pltpu.CompilerParams(
            dimension_semantics=("parallel",),
            vmem_limit_bytes=_VMEM_LIMIT,
        ),
    )(ee, eo, oe, oo)


# --------------------------------------------------------------------------
# Deterministic parameter construction (Conv weight + folded BN affine),
# pre-laid-out for the Pallas matmul (hoisted out of the forward pass).
# --------------------------------------------------------------------------
def _init_conv_bn(key, cin, cout, k):
    kw_, kg, kb, km, kv = jax.random.split(key, 5)
    std = (2.0 / (cin * k * k)) ** 0.5
    w = jax.random.normal(kw_, (cout, cin, k, k), jnp.float32) * std
    gamma = jax.random.uniform(kg, (cout,), jnp.float32, 0.8, 1.2)
    beta = jax.random.normal(kb, (cout,), jnp.float32) * 0.1
    mean = jax.random.normal(km, (cout,), jnp.float32) * 0.1
    var = jax.random.uniform(kv, (cout,), jnp.float32, 0.5, 1.5)
    eps = 1e-5
    scale = gamma / jnp.sqrt(var + eps)
    shift = beta - mean * scale

    # [K, Cout] with K in im2col (ki, kj, cin) order, bf16, padded to lane multiples
    # so the kernel's output stores are lane-dense (Cout=64 -> padded to 128).
    K = cin * k * k
    Kp = _round_up(K, 128)
    Np = _round_up(cout, 128)
    w_mat = jnp.transpose(w, (2, 3, 1, 0)).reshape(K, cout).astype(jnp.bfloat16)
    w_mat = jnp.pad(w_mat, ((0, Kp - K), (0, Np - cout)))
    s_p = jnp.pad(scale.reshape(1, cout).astype(jnp.float32), ((0, 0), (0, Np - cout)))
    b_p = jnp.pad(shift.reshape(1, cout).astype(jnp.float32), ((0, 0), (0, Np - cout)))
    return {"w": w_mat, "s": s_p, "b": b_p, "cout": cout, "kh": k, "kw": k, "kin": K}


def _init_residual_layer(key, cin, hid, downsample):
    k1, k2, k3 = jax.random.split(key, 3)
    p = {
        "w1": _init_conv_bn(k1, cin, hid, 3),
        "w2": _init_conv_bn(k2, hid, hid, 3),
        "downsample": downsample,
    }
    if downsample:
        p["down"] = _init_conv_bn(k3, cin, hid, 1)
    return p


def _init_residual_block(key, cin, hid, layers, method):
    keys = jax.random.split(key, layers)
    params = {"method": method, "layers": []}
    for i in range(layers):
        if method == "conv":
            if i == 0:
                params["layers"].append(_init_residual_layer(keys[i], cin, hid, True))
            else:
                params["layers"].append(_init_residual_layer(keys[i], hid, hid, False))
        else:  # 'pool'
            lc_in = cin if i == 0 else hid
            params["layers"].append(_init_residual_layer(keys[i], lc_in, hid, False))
    return params


def init_resnet_encoder(key, configs):
    assert len(configs) == 4
    k1, k2, k3, k4, k5 = jax.random.split(key, 5)
    return {
        "conv1": _init_conv_bn(k1, 3, 64, 7),
        "conv2": _init_residual_block(k2, 64, 64, configs[0], "pool"),
        "conv3": _init_residual_block(k3, 64, 128, configs[1], "conv"),
        "conv4": _init_residual_block(k4, 128, 256, configs[2], "conv"),
        "conv5": _init_residual_block(k5, 256, 512, configs[3], "conv"),
    }


# --------------------------------------------------------------------------
# Forward pass (mirrors ResNetEncoder.forward with bottleneck=False)
# --------------------------------------------------------------------------
def _residual_layer_fwd(x, p):
    identity = x
    stride1 = 2 if p["downsample"] else 1
    h = conv_bn(x, p["w1"], stride=stride1, padding=1, relu=True)
    if p["downsample"]:
        identity = conv_bn(x, p["down"], stride=2, padding=0, relu=False)
    # conv -> BN -> (+identity) -> ReLU, fused into one Pallas kernel.
    return conv_bn(h, p["w2"], stride=1, padding=1, relu=True, residual=identity)


def _residual_block_fwd(x, block):
    if block["method"] == "pool":
        x = maxpool_3x3_s2_p1(x)
    for p in block["layers"]:
        x = _residual_layer_fwd(x, p)
    return x


def resnet_encoder_forward(x_nchw, params):
    # NCHW (PyTorch convention) -> NHWC so channels map to TPU lanes; bf16 activations.
    x = jnp.transpose(x_nchw, (0, 2, 3, 1)).astype(jnp.bfloat16)
    x = conv_bn(x, params["conv1"], stride=2, padding=3, relu=True)
    x = _residual_block_fwd(x, params["conv2"])
    x = _residual_block_fwd(x, params["conv3"])
    x = _residual_block_fwd(x, params["conv4"])
    x = _residual_block_fwd(x, params["conv5"])
    # back to NCHW / f32 to match the PyTorch module's output.
    return jnp.transpose(x, (0, 3, 1, 2)).astype(jnp.float32)


# --------------------------------------------------------------------------
if __name__ == "__main__":
    key = jax.random.PRNGKey(0)
    k_param, k_x = jax.random.split(key)

    configs = [1, 1, 1, 1]  # one residual layer per block (small / fast)
    params = init_resnet_encoder(k_param, configs)

    # Small input: batch=2, channels=3 (fixed by conv1), spatial=16x16.
    x = jax.random.normal(k_x, (2, 3, 16, 16), jnp.float32)

    fwd = jax.jit(lambda inp: resnet_encoder_forward(inp, params))
    out = jax.block_until_ready(fwd(x))

    assert out.shape == (2, 512, 1, 1), out.shape
    assert bool(jnp.all(jnp.isfinite(out)))
    print("KERNEL_OK")
</pallas_src>

<mosaic_0001>
module attributes {stable_mosaic.version = 11 : i64} {
  func.func @_mm_bn_kernel(%arg0: i32, %arg1: i32, %arg2: i32, %arg3: memref<128x256xbf16, #tpu.memory_space<vmem>>, %arg4: memref<256x128xbf16, #tpu.memory_space<vmem>>, %arg5: memref<1x128xf32, #tpu.memory_space<vmem>>, %arg6: memref<1x128xf32, #tpu.memory_space<vmem>>, %arg7: memref<128x128xbf16, #tpu.memory_space<vmem>>, %arg8: memref<128x128xf32, #tpu.memory_space<vmem>>) attributes {dimension_semantics = [#tpu.dimension_semantics<parallel>, #tpu.dimension_semantics<parallel>, #tpu.dimension_semantics<arbitrary>], iteration_bounds = array<i64: 1, 1, 1>, scalar_prefetch = 0 : i64, scratch_operands = 1 : i64, tpu.core_type = #tpu.core_type<tc>, window_params = [{transform_indices = @transform_0, window_bounds = array<i64: 128, 256>}, {transform_indices = @transform_1, window_bounds = array<i64: 256, 128>}, {transform_indices = @transform_2, window_bounds = array<i64: 1, 128>}, {transform_indices = @transform_3, window_bounds = array<i64: 1, 128>}, {transform_indices = @transform_4, window_bounds = array<i64: 128, 128>}]} {
    %c0_i32 = arith.constant 0 : i32
    %0 = arith.cmpi eq, %arg2, %c0_i32 : i32
    %1 = arith.extui %0 : i1 to i32
    %c0_i32_0 = arith.constant 0 : i32
    %2 = arith.cmpi ne, %1, %c0_i32_0 : i32
    scf.if %2 {
      %cst_10 = arith.constant 0.000000e+00 : f32
      %12 = vector.broadcast %cst_10 : f32 to vector<128x128xf32>
      %c0_11 = arith.constant 0 : index
      %c0_12 = arith.constant 0 : index
      %13 = vector.load %arg8[%c0_11, %c0_12] : memref<128x128xf32, #tpu.memory_space<vmem>>, vector<128x128xf32>
      tpu.vector_store %arg8[%c0_11, %c0_12], %12 {strides = array<i32>} : memref<128x128xf32, #tpu.memory_space<vmem>>, vector<128x128xf32>,
    } else {
    }
    %c0 = arith.constant 0 : index
    %c0_1 = arith.constant 0 : index
    %3 = vector.load %arg8[%c0, %c0_1] : memref<128x128xf32, #tpu.memory_space<vmem>>, vector<128x128xf32>
    %c0_2 = arith.constant 0 : index
    %c0_3 = arith.constant 0 : index
    %4 = vector.load %arg3[%c0_2, %c0_3] : memref<128x256xbf16, #tpu.memory_space<vmem>>, vector<128x256xbf16>
    %c0_4 = arith.constant 0 : index
    %c0_5 = arith.constant 0 : index
    %5 = vector.load %arg4[%c0_4, %c0_5] : memref<256x128xbf16, #tpu.memory_space<vmem>>, vector<256x128xbf16>
    %cst = arith.constant dense<0.000000e+00> : vector<128x128xf32>
    %6 = tpu.matmul %4, %5, %cst {dimension_numbers = #tpu.dot_dimension_numbers<[1], [0], [0], [1], [0, 0, 1, 1], [], []>} : vector<128x256xbf16>, vector<256x128xbf16>, vector<128x128xf32> -> vector<128x128xf32>
    %7 = arith.addf %3, %6 : vector<128x128xf32>
    %c0_6 = arith.constant 0 : index
    %c0_7 = arith.constant 0 : index
    %8 = vector.load %arg8[%c0_6, %c0_7] : memref<128x128xf32, #tpu.memory_space<vmem>>, vector<128x128xf32>
    tpu.vector_store %arg8[%c0_6, %c0_7], %7 {strides = array<i32>} : memref<128x128xf32, #tpu.memory_space<vmem>>, vector<128x128xf32>,
    %c0_i32_8 = arith.constant 0 : i32
    %9 = arith.cmpi eq, %arg2, %c0_i32_8 : i32
    %10 = arith.extui %9 : i1 to i32
    %c0_i32_9 = arith.constant 0 : i32
    %11 = arith.cmpi ne, %10, %c0_i32_9 : i32
    scf.if %11 {
      %c0_10 = arith.constant 0 : index
      %c0_11 = arith.constant 0 : index
      %12 = vector.load %arg8[%c0_10, %c0_11] : memref<128x128xf32, #tpu.memory_space<vmem>>, vector<128x128xf32>
      %c0_12 = arith.constant 0 : index
      %c0_13 = arith.constant 0 : index
      %13 = vector.load %arg5[%c0_12, %c0_13] : memref<1x128xf32, #tpu.memory_space<vmem>>, vector<1x128xf32>
      %14 = vector.broadcast %13 : vector<1x128xf32> to vector<128x128xf32>
      %15 = arith.mulf %12, %14 : vector<128x128xf32>
      %c0_14 = arith.constant 0 : index
      %c0_15 = arith.constant 0 : index
      %16 = vector.load %arg6[%c0_14, %c0_15] : memref<1x128xf32, #tpu.memory_space<vmem>>, vector<1x128xf32>
      %17 = vector.broadcast %16 : vector<1x128xf32> to vector<128x128xf32>
      %18 = arith.addf %15, %17 : vector<128x128xf32>
      %cst_16 = arith.constant 0.000000e+00 : f32
      %19 = vector.broadcast %cst_16 : f32 to vector<128x128xf32>
      %20 = arith.maximumf %18, %19 : vector<128x128xf32>
      %21 = arith.truncf %20 : vector<128x128xf32> to vector<128x128xbf16>
      %c0_17 = arith.constant 0 : index
      %c0_18 = arith.constant 0 : index
      %22 = vector.load %arg7[%c0_17, %c0_18] : memref<128x128xbf16, #tpu.memory_space<vmem>>, vector<128x128xbf16>
      tpu.vector_store %arg7[%c0_17, %c0_18], %21 {strides = array<i32>} : memref<128x128xbf16, #tpu.memory_space<vmem>>, vector<128x128xbf16>,
    } else {
    }
    return
  }
  func.func @transform_0(%arg0: i32, %arg1: i32, %arg2: i32) -> (i32, i32) {
    %c0_i32 = arith.constant 0 : i32
    return %arg0, %arg2 : i32, i32
  }
  func.func @transform_1(%arg0: i32, %arg1: i32, %arg2: i32) -> (i32, i32) {
    %c0_i32 = arith.constant 0 : i32
    return %arg2, %arg1 : i32, i32
  }
  func.func @transform_2(%arg0: i32, %arg1: i32, %arg2: i32) -> (i32, i32) {
    %c0_i32 = arith.constant 0 : i32
    %c0_i32_0 = arith.constant 0 : i32
    return %c0_i32, %arg1 : i32, i32
  }
  func.func @transform_3(%arg0: i32, %arg1: i32, %arg2: i32) -> (i32, i32) {
    %c0_i32 = arith.constant 0 : i32
    %c0_i32_0 = arith.constant 0 : i32
    return %c0_i32, %arg1 : i32, i32
  }
  func.func @transform_4(%arg0: i32, %arg1: i32, %arg2: i32) -> (i32, i32) {
    %c0_i32 = arith.constant 0 : i32
    return %arg0, %arg1 : i32, i32
  }
}

module attributes {stable_mosaic.version = 11 : i64} {
  func.func @_maxpool_kernel(%arg0: i32, %arg1: memref<1x5x5x64xbf16, #tpu.memory_space<vmem>>, %arg2: memref<1x5x5x64xbf16, #tpu.memory_space<vmem>>, %arg3: memref<1x5x5x64xbf16, #tpu.memory_space<vmem>>, %arg4: memref<1x5x5x64xbf16, #tpu.memory_space<vmem>>, %arg5: memref<1x4x4x64xbf16, #tpu.memory_space<vmem>>) attributes {dimension_semantics = [#tpu.dimension_semantics<parallel>], iteration_bounds = array<i64: 2>, scalar_prefetch = 0 : i64, scratch_operands = 0 : i64, tpu.core_type = #tpu.core_type<tc>, window_params = [{transform_indices = @transform_0, window_bounds = array<i64: 1, 5, 5, 64>}, {transform_indices = @transform_1, window_bounds = array<i64: 1, 5, 5, 64>}, {transform_indices = @transform_2, window_bounds = array<i64: 1, 5, 5, 64>}, {transform_indices = @transform_3, window_bounds = array<i64: 1, 5, 5, 64>}, {transform_indices = @transform_4, window_bounds = array<i64: 1, 4, 4, 64>}]} {
    %c0 = arith.constant 0 : index
    %c0_0 = arith.constant 0 : index
    %c0_1 = arith.constant 0 : index
    %c0_2 = arith.constant 0 : index
    %0 = vector.load %arg1[%c0, %c0_0, %c0_1, %c0_2] : memref<1x5x5x64xbf16, #tpu.memory_space<vmem>>, vector<1x5x5x64xbf16>
    %1 = vector.shape_cast %0 : vector<1x5x5x64xbf16> to vector<5x5x64xbf16>
    %2 = arith.extf %1 : vector<5x5x64xbf16> to vector<5x5x64xf32>
    %c0_3 = arith.constant 0 : index
    %c0_4 = arith.constant 0 : index
    %c0_5 = arith.constant 0 : index
    %c0_6 = arith.constant 0 : index
    %3 = vector.load %arg2[%c0_3, %c0_4, %c0_5, %c0_6] : memref<1x5x5x64xbf16, #tpu.memory_space<vmem>>, vector<1x5x5x64xbf16>
    %4 = vector.shape_cast %3 : vector<1x5x5x64xbf16> to vector<5x5x64xbf16>
    %5 = arith.extf %4 : vector<5x5x64xbf16> to vector<5x5x64xf32>
    %c0_7 = arith.constant 0 : index
    %c0_8 = arith.constant 0 : index
    %c0_9 = arith.constant 0 : index
    %c0_10 = arith.constant 0 : index
    %6 = vector.load %arg3[%c0_7, %c0_8, %c0_9, %c0_10] : memref<1x5x5x64xbf16, #tpu.memory_space<vmem>>, vector<1x5x5x64xbf16>
    %7 = vector.shape_cast %6 : vector<1x5x5x64xbf16> to vector<5x5x64xbf16>
    %8 = arith.extf %7 : vector<5x5x64xbf16> to vector<5x5x64xf32>
    %c0_11 = arith.constant 0 : index
    %c0_12 = arith.constant 0 : index
    %c0_13 = arith.constant 0 : index
    %c0_14 = arith.constant 0 : index
    %9 = vector.load %arg4[%c0_11, %c0_12, %c0_13, %c0_14] : memref<1x5x5x64xbf16, #tpu.memory_space<vmem>>, vector<1x5x5x64xbf16>
    %10 = vector.shape_cast %9 : vector<1x5x5x64xbf16> to vector<5x5x64xbf16>
    %11 = arith.extf %10 : vector<5x5x64xbf16> to vector<5x5x64xf32>
    %12 = vector.extract_strided_slice %2 {offsets = [0, 0, 0], sizes = [4, 4, 64], strides = [1, 1, 1]} : vector<5x5x64xf32> to vector<4x4x64xf32>
    %13 = vector.extract_strided_slice %2 {offsets = [0, 1, 0], sizes = [4, 4, 64], strides = [1, 1, 1]} : vector<5x5x64xf32> to vector<4x4x64xf32>
    %14 = arith.maximumf %12, %13 : vector<4x4x64xf32>
    %15 = vector.extract_strided_slice %2 {offsets = [1, 0, 0], sizes = [4, 4, 64], strides = [1, 1, 1]} : vector<5x5x64xf32> to vector<4x4x64xf32>
    %16 = arith.maximumf %14, %15 : vector<4x4x64xf32>
    %17 = vector.extract_strided_slice %2 {offsets = [1, 1, 0], sizes = [4, 4, 64], strides = [1, 1, 1]} : vector<5x5x64xf32> to vector<4x4x64xf32>
    %18 = arith.maximumf %16, %17 : vector<4x4x64xf32>
    %19 = vector.extract_strided_slice %5 {offsets = [0, 0, 0], sizes = [4, 4, 64], strides = [1, 1, 1]} : vector<5x5x64xf32> to vector<4x4x64xf32>
    %20 = arith.maximumf %18, %19 : vector<4x4x64xf32>
    %21 = vector.extract_strided_slice %5 {offsets = [1, 0, 0], sizes = [4, 4, 64], strides = [1, 1, 1]} : vector<5x5x64xf32> to vector<4x4x64xf32>
    %22 = arith.maximumf %20, %21 : vector<4x4x64xf32>
    %23 = vector.extract_strided_slice %8 {offsets = [0, 0, 0], sizes = [4, 4, 64], strides = [1, 1, 1]} : vector<5x5x64xf32> to vector<4x4x64xf32>
    %24 = arith.maximumf %22, %23 : vector<4x4x64xf32>
    %25 = vector.extract_strided_slice %8 {offsets = [0, 1, 0], sizes = [4, 4, 64], strides = [1, 1, 1]} : vector<5x5x64xf32> to vector<4x4x64xf32>
    %26 = arith.maximumf %24, %25 : vector<4x4x64xf32>
    %27 = vector.extract_strided_slice %11 {offsets = [0, 0, 0], sizes = [4, 4, 64], strides = [1, 1, 1]} : vector<5x5x64xf32> to vector<4x4x64xf32>
    %28 = arith.maximumf %26, %27 : vector<4x4x64xf32>
    %29 = arith.truncf %28 : vector<4x4x64xf32> to vector<4x4x64xbf16>
    %c0_15 = arith.constant 0 : index
    %c0_16 = arith.constant 0 : index
    %c0_17 = arith.constant 0 : index
    %c0_18 = arith.constant 0 : index
    %30 = vector.load %arg5[%c0_15, %c0_16, %c0_17, %c0_18] : memref<1x4x4x64xbf16, #tpu.memory_space<vmem>>, vector<1x4x4x64xbf16>
    %31 = vector.shape_cast %30 : vector<1x4x4x64xbf16> to vector<4x4x64xbf16>
    %32 = vector.shape_cast %29 : vector<4x4x64xbf16> to vector<1x4x4x64xbf16>
    tpu.vector_store %arg5[%c0_15, %c0_16, %c0_17, %c0_18], %32 {strides = array<i32>} : memref<1x4x4x64xbf16, #tpu.memory_space<vmem>>, vector<1x4x4x64xbf16>,
    return
  }
  func.func @transform_0(%arg0: i32) -> (i32, i32, i32, i32) {
    %c0_i32 = arith.constant 0 : i32
    %c0_i32_0 = arith.constant 0 : i32
    %c0_i32_1 = arith.constant 0 : i32
    %c0_i32_2 = arith.constant 0 : i32
    return %arg0, %c0_i32, %c0_i32_0, %c0_i32_1 : i32, i32, i32, i32
  }
  func.func @transform_1(%arg0: i32) -> (i32, i32, i32, i32) {
    %c0_i32 = arith.constant 0 : i32
    %c0_i32_0 = arith.constant 0 : i32
    %c0_i32_1 = arith.constant 0 : i32
    %c0_i32_2 = arith.constant 0 : i32
    return %arg0, %c0_i32, %c0_i32_0, %c0_i32_1 : i32, i32, i32, i32
  }
  func.func @transform_2(%arg0: i32) -> (i32, i32, i32, i32) {
    %c0_i32 = arith.constant 0 : i32
    %c0_i32_0 = arith.constant 0 : i32
    %c0_i32_1 = arith.constant 0 : i32
    %c0_i32_2 = arith.constant 0 : i32
    return %arg0, %c0_i32, %c0_i32_0, %c0_i32_1 : i32, i32, i32, i32
  }
  func.func @transform_3(%arg0: i32) -> (i32, i32, i32, i32) {
    %c0_i32 = arith.constant 0 : i32
    %c0_i32_0 = arith.constant 0 : i32
    %c0_i32_1 = arith.constant 0 : i32
    %c0_i32_2 = arith.constant 0 : i32
    return %arg0, %c0_i32, %c0_i32_0, %c0_i32_1 : i32, i32, i32, i32
  }
  func.func @transform_4(%arg0: i32) -> (i32, i32, i32, i32) {
    %c0_i32 = arith.constant 0 : i32
    %c0_i32_0 = arith.constant 0 : i32
    %c0_i32_1 = arith.constant 0 : i32
    %c0_i32_2 = arith.constant 0 : i32
    return %arg0, %c0_i32, %c0_i32_0, %c0_i32_1 : i32, i32, i32, i32
  }
}

module attributes {stable_mosaic.version = 11 : i64} {
  func.func @_mm_bn_res_relu_kernel(%arg0: i32, %arg1: i32, %arg2: i32, %arg3: memref<32x128xbf16, #tpu.memory_space<vmem>>, %arg4: memref<128x128xbf16, #tpu.memory_space<vmem>>, %arg5: memref<1x128xf32, #tpu.memory_space<vmem>>, %arg6: memref<1x128xf32, #tpu.memory_space<vmem>>, %arg7: memref<32x128xbf16, #tpu.memory_space<vmem>>, %arg8: memref<32x128xbf16, #tpu.memory_space<vmem>>, %arg9: memref<32x128xf32, #tpu.memory_space<vmem>>) attributes {dimension_semantics = [#tpu.dimension_semantics<parallel>, #tpu.dimension_semantics<parallel>, #tpu.dimension_semantics<arbitrary>], iteration_bounds = array<i64: 1, 1, 5>, scalar_prefetch = 0 : i64, scratch_operands = 1 : i64, tpu.core_type = #tpu.core_type<tc>, window_params = [{transform_indices = @transform_0, window_bounds = array<i64: 32, 128>}, {transform_indices = @transform_1, window_bounds = array<i64: 128, 128>}, {transform_indices = @transform_2, window_bounds = array<i64: 1, 128>}, {transform_indices = @transform_3, window_bounds = array<i64: 1, 128>}, {transform_indices = @transform_4, window_bounds = array<i64: 32, 128>}, {transform_indices = @transform_5, window_bounds = array<i64: 32, 128>}]} {
    %c0_i32 = arith.constant 0 : i32
    %0 = arith.cmpi eq, %arg2, %c0_i32 : i32
    %1 = arith.extui %0 : i1 to i32
    %c0_i32_0 = arith.constant 0 : i32
    %2 = arith.cmpi ne, %1, %c0_i32_0 : i32
    scf.if %2 {
      %cst_9 = arith.constant 0.000000e+00 : f32
      %12 = vector.broadcast %cst_9 : f32 to vector<32x128xf32>
      %c0_10 = arith.constant 0 : index
      %c0_11 = arith.constant 0 : index
      %13 = vector.load %arg9[%c0_10, %c0_11] : memref<32x128xf32, #tpu.memory_space<vmem>>, vector<32x128xf32>
      tpu.vector_store %arg9[%c0_10, %c0_11], %12 {strides = array<i32>} : memref<32x128xf32, #tpu.memory_space<vmem>>, vector<32x128xf32>,
    } else {
    }
    %c0 = arith.constant 0 : index
    %c0_1 = arith.constant 0 : index
    %3 = vector.load %arg9[%c0, %c0_1] : memref<32x128xf32, #tpu.memory_space<vmem>>, vector<32x128xf32>
    %c0_2 = arith.constant 0 : index
    %c0_3 = arith.constant 0 : index
    %4 = vector.load %arg3[%c0_2, %c0_3] : memref<32x128xbf16, #tpu.memory_space<vmem>>, vector<32x128xbf16>
    %c0_4 = arith.constant 0 : index
    %c0_5 = arith.constant 0 : index
    %5 = vector.load %arg4[%c0_4, %c0_5] : memref<128x128xbf16, #tpu.memory_space<vmem>>, vector<128x128xbf16>
    %cst = arith.constant dense<0.000000e+00> : vector<32x128xf32>
    %6 = tpu.matmul %4, %5, %cst {dimension_numbers = #tpu.dot_dimension_numbers<[1], [0], [0], [1], [0, 0, 1, 1], [], []>} : vector<32x128xbf16>, vector<128x128xbf16>, vector<32x128xf32> -> vector<32x128xf32>
    %7 = arith.addf %3, %6 : vector<32x128xf32>
    %c0_6 = arith.constant 0 : index
    %c0_7 = arith.constant 0 : index
    %8 = vector.load %arg9[%c0_6, %c0_7] : memref<32x128xf32, #tpu.memory_space<vmem>>, vector<32x128xf32>
    tpu.vector_store %arg9[%c0_6, %c0_7], %7 {strides = array<i32>} : memref<32x128xf32, #tpu.memory_space<vmem>>, vector<32x128xf32>,
    %c4_i32 = arith.constant 4 : i32
    %9 = arith.cmpi eq, %arg2, %c4_i32 : i32
    %10 = arith.extui %9 : i1 to i32
    %c0_i32_8 = arith.constant 0 : i32
    %11 = arith.cmpi ne, %10, %c0_i32_8 : i32
    scf.if %11 {
      %c0_9 = arith.constant 0 : index
      %c0_10 = arith.constant 0 : index
      %12 = vector.load %arg9[%c0_9, %c0_10] : memref<32x128xf32, #tpu.memory_space<vmem>>, vector<32x128xf32>
      %c0_11 = arith.constant 0 : index
      %c0_12 = arith.constant 0 : index
      %13 = vector.load %arg5[%c0_11, %c0_12] : memref<1x128xf32, #tpu.memory_space<vmem>>, vector<1x128xf32>
      %14 = vector.broadcast %13 : vector<1x128xf32> to vector<32x128xf32>
      %15 = arith.mulf %12, %14 : vector<32x128xf32>
      %c0_13 = arith.constant 0 : index
      %c0_14 = arith.constant 0 : index
      %16 = vector.load %arg6[%c0_13, %c0_14] : memref<1x128xf32, #tpu.memory_space<vmem>>, vector<1x128xf32>
      %17 = vector.broadcast %16 : vector<1x128xf32> to vector<32x128xf32>
      %18 = arith.addf %15, %17 : vector<32x128xf32>
      %c0_15 = arith.constant 0 : index
      %c0_16 = arith.constant 0 : index
      %19 = vector.load %arg7[%c0_15, %c0_16] : memref<32x128xbf16, #tpu.memory_space<vmem>>, vector<32x128xbf16>
      %20 = arith.extf %19 : vector<32x128xbf16> to vector<32x128xf32>
      %21 = arith.addf %18, %20 : vector<32x128xf32>
      %cst_17 = arith.constant 0.000000e+00 : f32
      %22 = vector.broadcast %cst_17 : f32 to vector<32x128xf32>
      %23 = arith.maximumf %21, %22 : vector<32x128xf32>
      %24 = arith.truncf %23 : vector<32x128xf32> to vector<32x128xbf16>
      %c0_18 = arith.constant 0 : index
      %c0_19 = arith.constant 0 : index
      %25 = vector.load %arg8[%c0_18, %c0_19] : memref<32x128xbf16, #tpu.memory_space<vmem>>, vector<32x128xbf16>
      tpu.vector_store %arg8[%c0_18, %c0_19], %24 {strides = array<i32>} : memref<32x128xbf16, #tpu.memory_space<vmem>>, vector<32x128xbf16>,
    } else {
    }
    return
  }
  func.func @transform_0(%arg0: i32, %arg1: i32, %arg2: i32) -> (i32, i32) {
    %c0_i32 = arith.constant 0 : i32
    return %arg0, %arg2 : i32, i32
  }
  func.func @transform_1(%arg0: i32, %arg1: i32, %arg2: i32) -> (i32, i32) {
    %c0_i32 = arith.constant 0 : i32
    return %arg2, %arg1 : i32, i32
  }
  func.func @transform_2(%arg0: i32, %arg1: i32, %arg2: i32) -> (i32, i32) {
    %c0_i32 = arith.constant 0 : i32
    %c0_i32_0 = arith.constant 0 : i32
    return %c0_i32, %arg1 : i32, i32
  }
  func.func @transform_3(%arg0: i32, %arg1: i32, %arg2: i32) -> (i32, i32) {
    %c0_i32 = arith.constant 0 : i32
    %c0_i32_0 = arith.constant 0 : i32
    return %c0_i32, %arg1 : i32, i32
  }
  func.func @transform_4(%arg0: i32, %arg1: i32, %arg2: i32) -> (i32, i32) {
    %c0_i32 = arith.constant 0 : i32
    return %arg0, %arg1 : i32, i32
  }
  func.func @transform_5(%arg0: i32, %arg1: i32, %arg2: i32) -> (i32, i32) {
    %c0_i32 = arith.constant 0 : i32
    return %arg0, %arg1 : i32, i32
  }
}

module attributes {stable_mosaic.version = 11 : i64} {
  func.func @_mm_bn_kernel(%arg0: i32, %arg1: i32, %arg2: i32, %arg3: memref<16x128xbf16, #tpu.memory_space<vmem>>, %arg4: memref<128x128xbf16, #tpu.memory_space<vmem>>, %arg5: memref<1x128xf32, #tpu.memory_space<vmem>>, %arg6: memref<1x128xf32, #tpu.memory_space<vmem>>, %arg7: memref<16x128xbf16, #tpu.memory_space<vmem>>, %arg8: memref<16x128xf32, #tpu.memory_space<vmem>>) attributes {dimension_semantics = [#tpu.dimension_semantics<parallel>, #tpu.dimension_semantics<parallel>, #tpu.dimension_semantics<arbitrary>], iteration_bounds = array<i64: 1, 1, 1>, scalar_prefetch = 0 : i64, scratch_operands = 1 : i64, tpu.core_type = #tpu.core_type<tc>, window_params = [{transform_indices = @transform_0, window_bounds = array<i64: 16, 128>}, {transform_indices = @transform_1, window_bounds = array<i64: 128, 128>}, {transform_indices = @transform_2, window_bounds = array<i64: 1, 128>}, {transform_indices = @transform_3, window_bounds = array<i64: 1, 128>}, {transform_indices = @transform_4, window_bounds = array<i64: 16, 128>}]} {
    %c0_i32 = arith.constant 0 : i32
    %0 = arith.cmpi eq, %arg2, %c0_i32 : i32
    %1 = arith.extui %0 : i1 to i32
    %c0_i32_0 = arith.constant 0 : i32
    %2 = arith.cmpi ne, %1, %c0_i32_0 : i32
    scf.if %2 {
      %cst_10 = arith.constant 0.000000e+00 : f32
      %12 = vector.broadcast %cst_10 : f32 to vector<16x128xf32>
      %c0_11 = arith.constant 0 : index
      %c0_12 = arith.constant 0 : index
      %13 = vector.load %arg8[%c0_11, %c0_12] : memref<16x128xf32, #tpu.memory_space<vmem>>, vector<16x128xf32>
      tpu.vector_store %arg8[%c0_11, %c0_12], %12 {strides = array<i32>} : memref<16x128xf32, #tpu.memory_space<vmem>>, vector<16x128xf32>,
    } else {
    }
    %c0 = arith.constant 0 : index
    %c0_1 = arith.constant 0 : index
    %3 = vector.load %arg8[%c0, %c0_1] : memref<16x128xf32, #tpu.memory_space<vmem>>, vector<16x128xf32>
    %c0_2 = arith.constant 0 : index
    %c0_3 = arith.constant 0 : index
    %4 = vector.load %arg3[%c0_2, %c0_3] : memref<16x128xbf16, #tpu.memory_space<vmem>>, vector<16x128xbf16>
    %c0_4 = arith.constant 0 : index
    %c0_5 = arith.constant 0 : index
    %5 = vector.load %arg4[%c0_4, %c0_5] : memref<128x128xbf16, #tpu.memory_space<vmem>>, vector<128x128xbf16>
    %cst = arith.constant dense<0.000000e+00> : vector<16x128xf32>
    %6 = tpu.matmul %4, %5, %cst {dimension_numbers = #tpu.dot_dimension_numbers<[1], [0], [0], [1], [0, 0, 1, 1], [], []>} : vector<16x128xbf16>, vector<128x128xbf16>, vector<16x128xf32> -> vector<16x128xf32>
    %7 = arith.addf %3, %6 : vector<16x128xf32>
    %c0_6 = arith.constant 0 : index
    %c0_7 = arith.constant 0 : index
    %8 = vector.load %arg8[%c0_6, %c0_7] : memref<16x128xf32, #tpu.memory_space<vmem>>, vector<16x128xf32>
    tpu.vector_store %arg8[%c0_6, %c0_7], %7 {strides = array<i32>} : memref<16x128xf32, #tpu.memory_space<vmem>>, vector<16x128xf32>,
    %c0_i32_8 = arith.constant 0 : i32
    %9 = arith.cmpi eq, %arg2, %c0_i32_8 : i32
    %10 = arith.extui %9 : i1 to i32
    %c0_i32_9 = arith.constant 0 : i32
    %11 = arith.cmpi ne, %10, %c0_i32_9 : i32
    scf.if %11 {
      %c0_10 = arith.constant 0 : index
      %c0_11 = arith.constant 0 : index
      %12 = vector.load %arg8[%c0_10, %c0_11] : memref<16x128xf32, #tpu.memory_space<vmem>>, vector<16x128xf32>
      %c0_12 = arith.constant 0 : index
      %c0_13 = arith.constant 0 : index
      %13 = vector.load %arg5[%c0_12, %c0_13] : memref<1x128xf32, #tpu.memory_space<vmem>>, vector<1x128xf32>
      %14 = vector.broadcast %13 : vector<1x128xf32> to vector<16x128xf32>
      %15 = arith.mulf %12, %14 : vector<16x128xf32>
      %c0_14 = arith.constant 0 : index
      %c0_15 = arith.constant 0 : index
      %16 = vector.load %arg6[%c0_14, %c0_15] : memref<1x128xf32, #tpu.memory_space<vmem>>, vector<1x128xf32>
      %17 = vector.broadcast %16 : vector<1x128xf32> to vector<16x128xf32>
      %18 = arith.addf %15, %17 : vector<16x128xf32>
      %19 = arith.truncf %18 : vector<16x128xf32> to vector<16x128xbf16>
      %c0_16 = arith.constant 0 : index
      %c0_17 = arith.constant 0 : index
      %20 = vector.load %arg7[%c0_16, %c0_17] : memref<16x128xbf16, #tpu.memory_space<vmem>>, vector<16x128xbf16>
      tpu.vector_store %arg7[%c0_16, %c0_17], %19 {strides = array<i32>} : memref<16x128xbf16, #tpu.memory_space<vmem>>, vector<16x128xbf16>,
    } else {
    }
    return
  }
  func.func @transform_0(%arg0: i32, %arg1: i32, %arg2: i32) -> (i32, i32) {
    %c0_i32 = arith.constant 0 : i32
    return %arg0, %arg2 : i32, i32
  }
  func.func @transform_1(%arg0: i32, %arg1: i32, %arg2: i32) -> (i32, i32) {
    %c0_i32 = arith.constant 0 : i32
    return %arg2, %arg1 : i32, i32
  }
  func.func @transform_2(%arg0: i32, %arg1: i32, %arg2: i32) -> (i32, i32) {
    %c0_i32 = arith.constant 0 : i32
    %c0_i32_0 = arith.constant 0 : i32
    return %c0_i32, %arg1 : i32, i32
  }
  func.func @transform_3(%arg0: i32, %arg1: i32, %arg2: i32) -> (i32, i32) {
    %c0_i32 = arith.constant 0 : i32
    %c0_i32_0 = arith.constant 0 : i32
    return %c0_i32, %arg1 : i32, i32
  }
  func.func @transform_4(%arg0: i32, %arg1: i32, %arg2: i32) -> (i32, i32) {
    %c0_i32 = arith.constant 0 : i32
    return %arg0, %arg1 : i32, i32
  }
}

module attributes {stable_mosaic.version = 11 : i64} {
  func.func @_mm_bn_kernel(%arg0: i32, %arg1: i32, %arg2: i32, %arg3: memref<32x128xbf16, #tpu.memory_space<vmem>>, %arg4: memref<128x128xbf16, #tpu.memory_space<vmem>>, %arg5: memref<1x128xf32, #tpu.memory_space<vmem>>, %arg6: memref<1x128xf32, #tpu.memory_space<vmem>>, %arg7: memref<32x128xbf16, #tpu.memory_space<vmem>>, %arg8: memref<32x128xf32, #tpu.memory_space<vmem>>) attributes {dimension_semantics = [#tpu.dimension_semantics<parallel>, #tpu.dimension_semantics<parallel>, #tpu.dimension_semantics<arbitrary>], iteration_bounds = array<i64: 1, 1, 5>, scalar_prefetch = 0 : i64, scratch_operands = 1 : i64, tpu.core_type = #tpu.core_type<tc>, window_params = [{transform_indices = @transform_0, window_bounds = array<i64: 32, 128>}, {transform_indices = @transform_1, window_bounds = array<i64: 128, 128>}, {transform_indices = @transform_2, window_bounds = array<i64: 1, 128>}, {transform_indices = @transform_3, window_bounds = array<i64: 1, 128>}, {transform_indices = @transform_4, window_bounds = array<i64: 32, 128>}]} {
    %c0_i32 = arith.constant 0 : i32
    %0 = arith.cmpi eq, %arg2, %c0_i32 : i32
    %1 = arith.extui %0 : i1 to i32
    %c0_i32_0 = arith.constant 0 : i32
    %2 = arith.cmpi ne, %1, %c0_i32_0 : i32
    scf.if %2 {
      %cst_9 = arith.constant 0.000000e+00 : f32
      %12 = vector.broadcast %cst_9 : f32 to vector<32x128xf32>
      %c0_10 = arith.constant 0 : index
      %c0_11 = arith.constant 0 : index
      %13 = vector.load %arg8[%c0_10, %c0_11] : memref<32x128xf32, #tpu.memory_space<vmem>>, vector<32x128xf32>
      tpu.vector_store %arg8[%c0_10, %c0_11], %12 {strides = array<i32>} : memref<32x128xf32, #tpu.memory_space<vmem>>, vector<32x128xf32>,
    } else {
    }
    %c0 = arith.constant 0 : index
    %c0_1 = arith.constant 0 : index
    %3 = vector.load %arg8[%c0, %c0_1] : memref<32x128xf32, #tpu.memory_space<vmem>>, vector<32x128xf32>
    %c0_2 = arith.constant 0 : index
    %c0_3 = arith.constant 0 : index
    %4 = vector.load %arg3[%c0_2, %c0_3] : memref<32x128xbf16, #tpu.memory_space<vmem>>, vector<32x128xbf16>
    %c0_4 = arith.constant 0 : index
    %c0_5 = arith.constant 0 : index
    %5 = vector.load %arg4[%c0_4, %c0_5] : memref<128x128xbf16, #tpu.memory_space<vmem>>, vector<128x128xbf16>
    %cst = arith.constant dense<0.000000e+00> : vector<32x128xf32>
    %6 = tpu.matmul %4, %5, %cst {dimension_numbers = #tpu.dot_dimension_numbers<[1], [0], [0], [1], [0, 0, 1, 1], [], []>} : vector<32x128xbf16>, vector<128x128xbf16>, vector<32x128xf32> -> vector<32x128xf32>
    %7 = arith.addf %3, %6 : vector<32x128xf32>
    %c0_6 = arith.constant 0 : index
    %c0_7 = arith.constant 0 : index
    %8 = vector.load %arg8[%c0_6, %c0_7] : memref<32x128xf32, #tpu.memory_space<vmem>>, vector<32x128xf32>
    tpu.vector_store %arg8[%c0_6, %c0_7], %7 {strides = array<i32>} : memref<32x128xf32, #tpu.memory_space<vmem>>, vector<32x128xf32>,
    %c4_i32 = arith.constant 4 : i32
    %9 = arith.cmpi eq, %arg2, %c4_i32 : i32
    %10 = arith.extui %9 : i1 to i32
    %c0_i32_8 = arith.constant 0 : i32
    %11 = arith.cmpi ne, %10, %c0_i32_8 : i32
    scf.if %11 {
      %c0_9 = arith.constant 0 : index
      %c0_10 = arith.constant 0 : index
      %12 = vector.load %arg8[%c0_9, %c0_10] : memref<32x128xf32, #tpu.memory_space<vmem>>, vector<32x128xf32>
      %c0_11 = arith.constant 0 : index
      %c0_12 = arith.constant 0 : index
      %13 = vector.load %arg5[%c0_11, %c0_12] : memref<1x128xf32, #tpu.memory_space<vmem>>, vector<1x128xf32>
      %14 = vector.broadcast %13 : vector<1x128xf32> to vector<32x128xf32>
      %15 = arith.mulf %12, %14 : vector<32x128xf32>
      %c0_13 = arith.constant 0 : index
      %c0_14 = arith.constant 0 : index
      %16 = vector.load %arg6[%c0_13, %c0_14] : memref<1x128xf32, #tpu.memory_space<vmem>>, vector<1x128xf32>
      %17 = vector.broadcast %16 : vector<1x128xf32> to vector<32x128xf32>
      %18 = arith.addf %15, %17 : vector<32x128xf32>
      %cst_15 = arith.constant 0.000000e+00 : f32
      %19 = vector.broadcast %cst_15 : f32 to vector<32x128xf32>
      %20 = arith.maximumf %18, %19 : vector<32x128xf32>
      %21 = arith.truncf %20 : vector<32x128xf32> to vector<32x128xbf16>
      %c0_16 = arith.constant 0 : index
      %c0_17 = arith.constant 0 : index
      %22 = vector.load %arg7[%c0_16, %c0_17] : memref<32x128xbf16, #tpu.memory_space<vmem>>, vector<32x128xbf16>
      tpu.vector_store %arg7[%c0_16, %c0_17], %21 {strides = array<i32>} : memref<32x128xbf16, #tpu.memory_space<vmem>>, vector<32x128xbf16>,
    } else {
    }
    return
  }
  func.func @transform_0(%arg0: i32, %arg1: i32, %arg2: i32) -> (i32, i32) {
    %c0_i32 = arith.constant 0 : i32
    return %arg0, %arg2 : i32, i32
  }
  func.func @transform_1(%arg0: i32, %arg1: i32, %arg2: i32) -> (i32, i32) {
    %c0_i32 = arith.constant 0 : i32
    return %arg2, %arg1 : i32, i32
  }
  func.func @transform_2(%arg0: i32, %arg1: i32, %arg2: i32) -> (i32, i32) {
    %c0_i32 = arith.constant 0 : i32
    %c0_i32_0 = arith.constant 0 : i32
    return %c0_i32, %arg1 : i32, i32
  }
  func.func @transform_3(%arg0: i32, %arg1: i32, %arg2: i32) -> (i32, i32) {
    %c0_i32 = arith.constant 0 : i32
    %c0_i32_0 = arith.constant 0 : i32
    return %c0_i32, %arg1 : i32, i32
  }
  func.func @transform_4(%arg0: i32, %arg1: i32, %arg2: i32) -> (i32, i32) {
    %c0_i32 = arith.constant 0 : i32
    return %arg0, %arg1 : i32, i32
  }
}

module attributes {stable_mosaic.version = 11 : i64} {
  func.func @_mm_bn_kernel(%arg0: i32, %arg1: i32, %arg2: i32, %arg3: memref<16x128xbf16, #tpu.memory_space<vmem>>, %arg4: memref<128x128xbf16, #tpu.memory_space<vmem>>, %arg5: memref<1x128xf32, #tpu.memory_space<vmem>>, %arg6: memref<1x128xf32, #tpu.memory_space<vmem>>, %arg7: memref<16x128xbf16, #tpu.memory_space<vmem>>, %arg8: memref<16x128xf32, #tpu.memory_space<vmem>>) attributes {dimension_semantics = [#tpu.dimension_semantics<parallel>, #tpu.dimension_semantics<parallel>, #tpu.dimension_semantics<arbitrary>], iteration_bounds = array<i64: 1, 1, 5>, scalar_prefetch = 0 : i64, scratch_operands = 1 : i64, tpu.core_type = #tpu.core_type<tc>, window_params = [{transform_indices = @transform_0, window_bounds = array<i64: 16, 128>}, {transform_indices = @transform_1, window_bounds = array<i64: 128, 128>}, {transform_indices = @transform_2, window_bounds = array<i64: 1, 128>}, {transform_indices = @transform_3, window_bounds = array<i64: 1, 128>}, {transform_indices = @transform_4, window_bounds = array<i64: 16, 128>}]} {
    %c0_i32 = arith.constant 0 : i32
    %0 = arith.cmpi eq, %arg2, %c0_i32 : i32
    %1 = arith.extui %0 : i1 to i32
    %c0_i32_0 = arith.constant 0 : i32
    %2 = arith.cmpi ne, %1, %c0_i32_0 : i32
    scf.if %2 {
      %cst_9 = arith.constant 0.000000e+00 : f32
      %12 = vector.broadcast %cst_9 : f32 to vector<16x128xf32>
      %c0_10 = arith.constant 0 : index
      %c0_11 = arith.constant 0 : index
      %13 = vector.load %arg8[%c0_10, %c0_11] : memref<16x128xf32, #tpu.memory_space<vmem>>, vector<16x128xf32>
      tpu.vector_store %arg8[%c0_10, %c0_11], %12 {strides = array<i32>} : memref<16x128xf32, #tpu.memory_space<vmem>>, vector<16x128xf32>,
    } else {
    }
    %c0 = arith.constant 0 : index
    %c0_1 = arith.constant 0 : index
    %3 = vector.load %arg8[%c0, %c0_1] : memref<16x128xf32, #tpu.memory_space<vmem>>, vector<16x128xf32>
    %c0_2 = arith.constant 0 : index
    %c0_3 = arith.constant 0 : index
    %4 = vector.load %arg3[%c0_2, %c0_3] : memref<16x128xbf16, #tpu.memory_space<vmem>>, vector<16x128xbf16>
    %c0_4 = arith.constant 0 : index
    %c0_5 = arith.constant 0 : index
    %5 = vector.load %arg4[%c0_4, %c0_5] : memref<128x128xbf16, #tpu.memory_space<vmem>>, vector<128x128xbf16>
    %cst = arith.constant dense<0.000000e+00> : vector<16x128xf32>
    %6 = tpu.matmul %4, %5, %cst {dimension_numbers = #tpu.dot_dimension_numbers<[1], [0], [0], [1], [0, 0, 1, 1], [], []>} : vector<16x128xbf16>, vector<128x128xbf16>, vector<16x128xf32> -> vector<16x128xf32>
    %7 = arith.addf %3, %6 : vector<16x128xf32>
    %c0_6 = arith.constant 0 : index
    %c0_7 = arith.constant 0 : index
    %8 = vector.load %arg8[%c0_6, %c0_7] : memref<16x128xf32, #tpu.memory_space<vmem>>, vector<16x128xf32>
    tpu.vector_store %arg8[%c0_6, %c0_7], %7 {strides = array<i32>} : memref<16x128xf32, #tpu.memory_space<vmem>>, vector<16x128xf32>,
    %c4_i32 = arith.constant 4 : i32
    %9 = arith.cmpi eq, %arg2, %c4_i32 : i32
    %10 = arith.extui %9 : i1 to i32
    %c0_i32_8 = arith.constant 0 : i32
    %11 = arith.cmpi ne, %10, %c0_i32_8 : i32
    scf.if %11 {
      %c0_9 = arith.constant 0 : index
      %c0_10 = arith.constant 0 : index
      %12 = vector.load %arg8[%c0_9, %c0_10] : memref<16x128xf32, #tpu.memory_space<vmem>>, vector<16x128xf32>
      %c0_11 = arith.constant 0 : index
      %c0_12 = arith.constant 0 : index
      %13 = vector.load %arg5[%c0_11, %c0_12] : memref<1x128xf32, #tpu.memory_space<vmem>>, vector<1x128xf32>
      %14 = vector.broadcast %13 : vector<1x128xf32> to vector<16x128xf32>
      %15 = arith.mulf %12, %14 : vector<16x128xf32>
      %c0_13 = arith.constant 0 : index
      %c0_14 = arith.constant 0 : index
      %16 = vector.load %arg6[%c0_13, %c0_14] : memref<1x128xf32, #tpu.memory_space<vmem>>, vector<1x128xf32>
      %17 = vector.broadcast %16 : vector<1x128xf32> to vector<16x128xf32>
      %18 = arith.addf %15, %17 : vector<16x128xf32>
      %cst_15 = arith.constant 0.000000e+00 : f32
      %19 = vector.broadcast %cst_15 : f32 to vector<16x128xf32>
      %20 = arith.maximumf %18, %19 : vector<16x128xf32>
      %21 = arith.truncf %20 : vector<16x128xf32> to vector<16x128xbf16>
      %c0_16 = arith.constant 0 : index
      %c0_17 = arith.constant 0 : index
      %22 = vector.load %arg7[%c0_16, %c0_17] : memref<16x128xbf16, #tpu.memory_space<vmem>>, vector<16x128xbf16>
      tpu.vector_store %arg7[%c0_16, %c0_17], %21 {strides = array<i32>} : memref<16x128xbf16, #tpu.memory_space<vmem>>, vector<16x128xbf16>,
    } else {
    }
    return
  }
  func.func @transform_0(%arg0: i32, %arg1: i32, %arg2: i32) -> (i32, i32) {
    %c0_i32 = arith.constant 0 : i32
    return %arg0, %arg2 : i32, i32
  }
  func.func @transform_1(%arg0: i32, %arg1: i32, %arg2: i32) -> (i32, i32) {
    %c0_i32 = arith.constant 0 : i32
    return %arg2, %arg1 : i32, i32
  }
  func.func @transform_2(%arg0: i32, %arg1: i32, %arg2: i32) -> (i32, i32) {
    %c0_i32 = arith.constant 0 : i32
    %c0_i32_0 = arith.constant 0 : i32
    return %c0_i32, %arg1 : i32, i32
  }
  func.func @transform_3(%arg0: i32, %arg1: i32, %arg2: i32) -> (i32, i32) {
    %c0_i32 = arith.constant 0 : i32
    %c0_i32_0 = arith.constant 0 : i32
    return %c0_i32, %arg1 : i32, i32
  }
  func.func @transform_4(%arg0: i32, %arg1: i32, %arg2: i32) -> (i32, i32) {
    %c0_i32 = arith.constant 0 : i32
    return %arg0, %arg1 : i32, i32
  }
}

module attributes {stable_mosaic.version = 11 : i64} {
  func.func @_mm_bn_res_relu_kernel(%arg0: i32, %arg1: i32, %arg2: i32, %arg3: memref<16x384xbf16, #tpu.memory_space<vmem>>, %arg4: memref<384x128xbf16, #tpu.memory_space<vmem>>, %arg5: memref<1x128xf32, #tpu.memory_space<vmem>>, %arg6: memref<1x128xf32, #tpu.memory_space<vmem>>, %arg7: memref<16x128xbf16, #tpu.memory_space<vmem>>, %arg8: memref<16x128xbf16, #tpu.memory_space<vmem>>, %arg9: memref<16x128xf32, #tpu.memory_space<vmem>>) attributes {dimension_semantics = [#tpu.dimension_semantics<parallel>, #tpu.dimension_semantics<parallel>, #tpu.dimension_semantics<arbitrary>], iteration_bounds = array<i64: 1, 1, 3>, scalar_prefetch = 0 : i64, scratch_operands = 1 : i64, tpu.core_type = #tpu.core_type<tc>, window_params = [{transform_indices = @transform_0, window_bounds = array<i64: 16, 384>}, {transform_indices = @transform_1, window_bounds = array<i64: 384, 128>}, {transform_indices = @transform_2, window_bounds = array<i64: 1, 128>}, {transform_indices = @transform_3, window_bounds = array<i64: 1, 128>}, {transform_indices = @transform_4, window_bounds = array<i64: 16, 128>}, {transform_indices = @transform_5, window_bounds = array<i64: 16, 128>}]} {
    %c0_i32 = arith.constant 0 : i32
    %0 = arith.cmpi eq, %arg2, %c0_i32 : i32
    %1 = arith.extui %0 : i1 to i32
    %c0_i32_0 = arith.constant 0 : i32
    %2 = arith.cmpi ne, %1, %c0_i32_0 : i32
    scf.if %2 {
      %cst_9 = arith.constant 0.000000e+00 : f32
      %12 = vector.broadcast %cst_9 : f32 to vector<16x128xf32>
      %c0_10 = arith.constant 0 : index
      %c0_11 = arith.constant 0 : index
      %13 = vector.load %arg9[%c0_10, %c0_11] : memref<16x128xf32, #tpu.memory_space<vmem>>, vector<16x128xf32>
      tpu.vector_store %arg9[%c0_10, %c0_11], %12 {strides = array<i32>} : memref<16x128xf32, #tpu.memory_space<vmem>>, vector<16x128xf32>,
    } else {
    }
    %c0 = arith.constant 0 : index
    %c0_1 = arith.constant 0 : index
    %3 = vector.load %arg9[%c0, %c0_1] : memref<16x128xf32, #tpu.memory_space<vmem>>, vector<16x128xf32>
    %c0_2 = arith.constant 0 : index
    %c0_3 = arith.constant 0 : index
    %4 = vector.load %arg3[%c0_2, %c0_3] : memref<16x384xbf16, #tpu.memory_space<vmem>>, vector<16x384xbf16>
    %c0_4 = arith.constant 0 : index
    %c0_5 = arith.constant 0 : index
    %5 = vector.load %arg4[%c0_4, %c0_5] : memref<384x128xbf16, #tpu.memory_space<vmem>>, vector<384x128xbf16>
    %cst = arith.constant dense<0.000000e+00> : vector<16x128xf32>
    %6 = tpu.matmul %4, %5, %cst {dimension_numbers = #tpu.dot_dimension_numbers<[1], [0], [0], [1], [0, 0, 1, 1], [], []>} : vector<16x384xbf16>, vector<384x128xbf16>, vector<16x128xf32> -> vector<16x128xf32>
    %7 = arith.addf %3, %6 : vector<16x128xf32>
    %c0_6 = arith.constant 0 : index
    %c0_7 = arith.constant 0 : index
    %8 = vector.load %arg9[%c0_6, %c0_7] : memref<16x128xf32, #tpu.memory_space<vmem>>, vector<16x128xf32>
    tpu.vector_store %arg9[%c0_6, %c0_7], %7 {strides = array<i32>} : memref<16x128xf32, #tpu.memory_space<vmem>>, vector<16x128xf32>,
    %c2_i32 = arith.constant 2 : i32
    %9 = arith.cmpi eq, %arg2, %c2_i32 : i32
    %10 = arith.extui %9 : i1 to i32
    %c0_i32_8 = arith.constant 0 : i32
    %11 = arith.cmpi ne, %10, %c0_i32_8 : i32
    scf.if %11 {
      %c0_9 = arith.constant 0 : index
      %c0_10 = arith.constant 0 : index
      %12 = vector.load %arg9[%c0_9, %c0_10] : memref<16x128xf32, #tpu.memory_space<vmem>>, vector<16x128xf32>
      %c0_11 = arith.constant 0 : index
      %c0_12 = arith.constant 0 : index
      %13 = vector.load %arg5[%c0_11, %c0_12] : memref<1x128xf32, #tpu.memory_space<vmem>>, vector<1x128xf32>
      %14 = vector.broadcast %13 : vector<1x128xf32> to vector<16x128xf32>
      %15 = arith.mulf %12, %14 : vector<16x128xf32>
      %c0_13 = arith.constant 0 : index
      %c0_14 = arith.constant 0 : index
      %16 = vector.load %arg6[%c0_13, %c0_14] : memref<1x128xf32, #tpu.memory_space<vmem>>, vector<1x128xf32>
      %17 = vector.broadcast %16 : vector<1x128xf32> to vector<16x128xf32>
      %18 = arith.addf %15, %17 : vector<16x128xf32>
      %c0_15 = arith.constant 0 : index
      %c0_16 = arith.constant 0 : index
      %19 = vector.load %arg7[%c0_15, %c0_16] : memref<16x128xbf16, #tpu.memory_space<vmem>>, vector<16x128xbf16>
      %20 = arith.extf %19 : vector<16x128xbf16> to vector<16x128xf32>
      %21 = arith.addf %18, %20 : vector<16x128xf32>
      %cst_17 = arith.constant 0.000000e+00 : f32
      %22 = vector.broadcast %cst_17 : f32 to vector<16x128xf32>
      %23 = arith.maximumf %21, %22 : vector<16x128xf32>
      %24 = arith.truncf %23 : vector<16x128xf32> to vector<16x128xbf16>
      %c0_18 = arith.constant 0 : index
      %c0_19 = arith.constant 0 : index
      %25 = vector.load %arg8[%c0_18, %c0_19] : memref<16x128xbf16, #tpu.memory_space<vmem>>, vector<16x128xbf16>
      tpu.vector_store %arg8[%c0_18, %c0_19], %24 {strides = array<i32>} : memref<16x128xbf16, #tpu.memory_space<vmem>>, vector<16x128xbf16>,
    } else {
    }
    return
  }
  func.func @transform_0(%arg0: i32, %arg1: i32, %arg2: i32) -> (i32, i32) {
    %c0_i32 = arith.constant 0 : i32
    return %arg0, %arg2 : i32, i32
  }
  func.func @transform_1(%arg0: i32, %arg1: i32, %arg2: i32) -> (i32, i32) {
    %c0_i32 = arith.constant 0 : i32
    return %arg2, %arg1 : i32, i32
  }
  func.func @transform_2(%arg0: i32, %arg1: i32, %arg2: i32) -> (i32, i32) {
    %c0_i32 = arith.constant 0 : i32
    %c0_i32_0 = arith.constant 0 : i32
    return %c0_i32, %arg1 : i32, i32
  }
  func.func @transform_3(%arg0: i32, %arg1: i32, %arg2: i32) -> (i32, i32) {
    %c0_i32 = arith.constant 0 : i32
    %c0_i32_0 = arith.constant 0 : i32
    return %c0_i32, %arg1 : i32, i32
  }
  func.func @transform_4(%arg0: i32, %arg1: i32, %arg2: i32) -> (i32, i32) {
    %c0_i32 = arith.constant 0 : i32
    return %arg0, %arg1 : i32, i32
  }
  func.func @transform_5(%arg0: i32, %arg1: i32, %arg2: i32) -> (i32, i32) {
    %c0_i32 = arith.constant 0 : i32
    return %arg0, %arg1 : i32, i32
  }
}

module attributes {stable_mosaic.version = 11 : i64} {
  func.func @_mm_bn_kernel(%arg0: i32, %arg1: i32, %arg2: i32, %arg3: memref<16x128xbf16, #tpu.memory_space<vmem>>, %arg4: memref<128x256xbf16, #tpu.memory_space<vmem>>, %arg5: memref<1x256xf32, #tpu.memory_space<vmem>>, %arg6: memref<1x256xf32, #tpu.memory_space<vmem>>, %arg7: memref<16x256xbf16, #tpu.memory_space<vmem>>, %arg8: memref<16x256xf32, #tpu.memory_space<vmem>>) attributes {dimension_semantics = [#tpu.dimension_semantics<parallel>, #tpu.dimension_semantics<parallel>, #tpu.dimension_semantics<arbitrary>], iteration_bounds = array<i64: 1, 1, 1>, scalar_prefetch = 0 : i64, scratch_operands = 1 : i64, tpu.core_type = #tpu.core_type<tc>, window_params = [{transform_indices = @transform_0, window_bounds = array<i64: 16, 128>}, {transform_indices = @transform_1, window_bounds = array<i64: 128, 256>}, {transform_indices = @transform_2, window_bounds = array<i64: 1, 256>}, {transform_indices = @transform_3, window_bounds = array<i64: 1, 256>}, {transform_indices = @transform_4, window_bounds = array<i64: 16, 256>}]} {
    %c0_i32 = arith.constant 0 : i32
    %0 = arith.cmpi eq, %arg2, %c0_i32 : i32
    %1 = arith.extui %0 : i1 to i32
    %c0_i32_0 = arith.constant 0 : i32
    %2 = arith.cmpi ne, %1, %c0_i32_0 : i32
    scf.if %2 {
      %cst_10 = arith.constant 0.000000e+00 : f32
      %12 = vector.broadcast %cst_10 : f32 to vector<16x256xf32>
      %c0_11 = arith.constant 0 : index
      %c0_12 = arith.constant 0 : index
      %13 = vector.load %arg8[%c0_11, %c0_12] : memref<16x256xf32, #tpu.memory_space<vmem>>, vector<16x256xf32>
      tpu.vector_store %arg8[%c0_11, %c0_12], %12 {strides = array<i32>} : memref<16x256xf32, #tpu.memory_space<vmem>>, vector<16x256xf32>,
    } else {
    }
    %c0 = arith.constant 0 : index
    %c0_1 = arith.constant 0 : index
    %3 = vector.load %arg8[%c0, %c0_1] : memref<16x256xf32, #tpu.memory_space<vmem>>, vector<16x256xf32>
    %c0_2 = arith.constant 0 : index
    %c0_3 = arith.constant 0 : index
    %4 = vector.load %arg3[%c0_2, %c0_3] : memref<16x128xbf16, #tpu.memory_space<vmem>>, vector<16x128xbf16>
    %c0_4 = arith.constant 0 : index
    %c0_5 = arith.constant 0 : index
    %5 = vector.load %arg4[%c0_4, %c0_5] : memref<128x256xbf16, #tpu.memory_space<vmem>>, vector<128x256xbf16>
    %cst = arith.constant dense<0.000000e+00> : vector<16x256xf32>
    %6 = tpu.matmul %4, %5, %cst {dimension_numbers = #tpu.dot_dimension_numbers<[1], [0], [0], [1], [0, 0, 1, 1], [], []>} : vector<16x128xbf16>, vector<128x256xbf16>, vector<16x256xf32> -> vector<16x256xf32>
    %7 = arith.addf %3, %6 : vector<16x256xf32>
    %c0_6 = arith.constant 0 : index
    %c0_7 = arith.constant 0 : index
    %8 = vector.load %arg8[%c0_6, %c0_7] : memref<16x256xf32, #tpu.memory_space<vmem>>, vector<16x256xf32>
    tpu.vector_store %arg8[%c0_6, %c0_7], %7 {strides = array<i32>} : memref<16x256xf32, #tpu.memory_space<vmem>>, vector<16x256xf32>,
    %c0_i32_8 = arith.constant 0 : i32
    %9 = arith.cmpi eq, %arg2, %c0_i32_8 : i32
    %10 = arith.extui %9 : i1 to i32
    %c0_i32_9 = arith.constant 0 : i32
    %11 = arith.cmpi ne, %10, %c0_i32_9 : i32
    scf.if %11 {
      %c0_10 = arith.constant 0 : index
      %c0_11 = arith.constant 0 : index
      %12 = vector.load %arg8[%c0_10, %c0_11] : memref<16x256xf32, #tpu.memory_space<vmem>>, vector<16x256xf32>
      %c0_12 = arith.constant 0 : index
      %c0_13 = arith.constant 0 : index
      %13 = vector.load %arg5[%c0_12, %c0_13] : memref<1x256xf32, #tpu.memory_space<vmem>>, vector<1x256xf32>
      %14 = vector.broadcast %13 : vector<1x256xf32> to vector<16x256xf32>
      %15 = arith.mulf %12, %14 : vector<16x256xf32>
      %c0_14 = arith.constant 0 : index
      %c0_15 = arith.constant 0 : index
      %16 = vector.load %arg6[%c0_14, %c0_15] : memref<1x256xf32, #tpu.memory_space<vmem>>, vector<1x256xf32>
      %17 = vector.broadcast %16 : vector<1x256xf32> to vector<16x256xf32>
      %18 = arith.addf %15, %17 : vector<16x256xf32>
      %19 = arith.truncf %18 : vector<16x256xf32> to vector<16x256xbf16>
      %c0_16 = arith.constant 0 : index
      %c0_17 = arith.constant 0 : index
      %20 = vector.load %arg7[%c0_16, %c0_17] : memref<16x256xbf16, #tpu.memory_space<vmem>>, vector<16x256xbf16>
      tpu.vector_store %arg7[%c0_16, %c0_17], %19 {strides = array<i32>} : memref<16x256xbf16, #tpu.memory_space<vmem>>, vector<16x256xbf16>,
    } else {
    }
    return
  }
  func.func @transform_0(%arg0: i32, %arg1: i32, %arg2: i32) -> (i32, i32) {
    %c0_i32 = arith.constant 0 : i32
    return %arg0, %arg2 : i32, i32
  }
  func.func @transform_1(%arg0: i32, %arg1: i32, %arg2: i32) -> (i32, i32) {
    %c0_i32 = arith.constant 0 : i32
    return %arg2, %arg1 : i32, i32
  }
  func.func @transform_2(%arg0: i32, %arg1: i32, %arg2: i32) -> (i32, i32) {
    %c0_i32 = arith.constant 0 : i32
    %c0_i32_0 = arith.constant 0 : i32
    return %c0_i32, %arg1 : i32, i32
  }
  func.func @transform_3(%arg0: i32, %arg1: i32, %arg2: i32) -> (i32, i32) {
    %c0_i32 = arith.constant 0 : i32
    %c0_i32_0 = arith.constant 0 : i32
    return %c0_i32, %arg1 : i32, i32
  }
  func.func @transform_4(%arg0: i32, %arg1: i32, %arg2: i32) -> (i32, i32) {
    %c0_i32 = arith.constant 0 : i32
    return %arg0, %arg1 : i32, i32
  }
}

module attributes {stable_mosaic.version = 11 : i64} {
  func.func @_mm_bn_kernel(%arg0: i32, %arg1: i32, %arg2: i32, %arg3: memref<16x384xbf16, #tpu.memory_space<vmem>>, %arg4: memref<384x256xbf16, #tpu.memory_space<vmem>>, %arg5: memref<1x256xf32, #tpu.memory_space<vmem>>, %arg6: memref<1x256xf32, #tpu.memory_space<vmem>>, %arg7: memref<16x256xbf16, #tpu.memory_space<vmem>>, %arg8: memref<16x256xf32, #tpu.memory_space<vmem>>) attributes {dimension_semantics = [#tpu.dimension_semantics<parallel>, #tpu.dimension_semantics<parallel>, #tpu.dimension_semantics<arbitrary>], iteration_bounds = array<i64: 1, 1, 3>, scalar_prefetch = 0 : i64, scratch_operands = 1 : i64, tpu.core_type = #tpu.core_type<tc>, window_params = [{transform_indices = @transform_0, window_bounds = array<i64: 16, 384>}, {transform_indices = @transform_1, window_bounds = array<i64: 384, 256>}, {transform_indices = @transform_2, window_bounds = array<i64: 1, 256>}, {transform_indices = @transform_3, window_bounds = array<i64: 1, 256>}, {transform_indices = @transform_4, window_bounds = array<i64: 16, 256>}]} {
    %c0_i32 = arith.constant 0 : i32
    %0 = arith.cmpi eq, %arg2, %c0_i32 : i32
    %1 = arith.extui %0 : i1 to i32
    %c0_i32_0 = arith.constant 0 : i32
    %2 = arith.cmpi ne, %1, %c0_i32_0 : i32
    scf.if %2 {
      %cst_9 = arith.constant 0.000000e+00 : f32
      %12 = vector.broadcast %cst_9 : f32 to vector<16x256xf32>
      %c0_10 = arith.constant 0 : index
      %c0_11 = arith.constant 0 : index
      %13 = vector.load %arg8[%c0_10, %c0_11] : memref<16x256xf32, #tpu.memory_space<vmem>>, vector<16x256xf32>
      tpu.vector_store %arg8[%c0_10, %c0_11], %12 {strides = array<i32>} : memref<16x256xf32, #tpu.memory_space<vmem>>, vector<16x256xf32>,
    } else {
    }
    %c0 = arith.constant 0 : index
    %c0_1 = arith.constant 0 : index
    %3 = vector.load %arg8[%c0, %c0_1] : memref<16x256xf32, #tpu.memory_space<vmem>>, vector<16x256xf32>
    %c0_2 = arith.constant 0 : index
    %c0_3 = arith.constant 0 : index
    %4 = vector.load %arg3[%c0_2, %c0_3] : memref<16x384xbf16, #tpu.memory_space<vmem>>, vector<16x384xbf16>
    %c0_4 = arith.constant 0 : index
    %c0_5 = arith.constant 0 : index
    %5 = vector.load %arg4[%c0_4, %c0_5] : memref<384x256xbf16, #tpu.memory_space<vmem>>, vector<384x256xbf16>
    %cst = arith.constant dense<0.000000e+00> : vector<16x256xf32>
    %6 = tpu.matmul %4, %5, %cst {dimension_numbers = #tpu.dot_dimension_numbers<[1], [0], [0], [1], [0, 0, 1, 1], [], []>} : vector<16x384xbf16>, vector<384x256xbf16>, vector<16x256xf32> -> vector<16x256xf32>
    %7 = arith.addf %3, %6 : vector<16x256xf32>
    %c0_6 = arith.constant 0 : index
    %c0_7 = arith.constant 0 : index
    %8 = vector.load %arg8[%c0_6, %c0_7] : memref<16x256xf32, #tpu.memory_space<vmem>>, vector<16x256xf32>
    tpu.vector_store %arg8[%c0_6, %c0_7], %7 {strides = array<i32>} : memref<16x256xf32, #tpu.memory_space<vmem>>, vector<16x256xf32>,
    %c2_i32 = arith.constant 2 : i32
    %9 = arith.cmpi eq, %arg2, %c2_i32 : i32
    %10 = arith.extui %9 : i1 to i32
    %c0_i32_8 = arith.constant 0 : i32
    %11 = arith.cmpi ne, %10, %c0_i32_8 : i32
    scf.if %11 {
      %c0_9 = arith.constant 0 : index
      %c0_10 = arith.constant 0 : index
      %12 = vector.load %arg8[%c0_9, %c0_10] : memref<16x256xf32, #tpu.memory_space<vmem>>, vector<16x256xf32>
      %c0_11 = arith.constant 0 : index
      %c0_12 = arith.constant 0 : index
      %13 = vector.load %arg5[%c0_11, %c0_12] : memref<1x256xf32, #tpu.memory_space<vmem>>, vector<1x256xf32>
      %14 = vector.broadcast %13 : vector<1x256xf32> to vector<16x256xf32>
      %15 = arith.mulf %12, %14 : vector<16x256xf32>
      %c0_13 = arith.constant 0 : index
      %c0_14 = arith.constant 0 : index
      %16 = vector.load %arg6[%c0_13, %c0_14] : memref<1x256xf32, #tpu.memory_space<vmem>>, vector<1x256xf32>
      %17 = vector.broadcast %16 : vector<1x256xf32> to vector<16x256xf32>
      %18 = arith.addf %15, %17 : vector<16x256xf32>
      %cst_15 = arith.constant 0.000000e+00 : f32
      %19 = vector.broadcast %cst_15 : f32 to vector<16x256xf32>
      %20 = arith.maximumf %18, %19 : vector<16x256xf32>
      %21 = arith.truncf %20 : vector<16x256xf32> to vector<16x256xbf16>
      %c0_16 = arith.constant 0 : index
      %c0_17 = arith.constant 0 : index
      %22 = vector.load %arg7[%c0_16, %c0_17] : memref<16x256xbf16, #tpu.memory_space<vmem>>, vector<16x256xbf16>
      tpu.vector_store %arg7[%c0_16, %c0_17], %21 {strides = array<i32>} : memref<16x256xbf16, #tpu.memory_space<vmem>>, vector<16x256xbf16>,
    } else {
    }
    return
  }
  func.func @transform_0(%arg0: i32, %arg1: i32, %arg2: i32) -> (i32, i32) {
    %c0_i32 = arith.constant 0 : i32
    return %arg0, %arg2 : i32, i32
  }
  func.func @transform_1(%arg0: i32, %arg1: i32, %arg2: i32) -> (i32, i32) {
    %c0_i32 = arith.constant 0 : i32
    return %arg2, %arg1 : i32, i32
  }
  func.func @transform_2(%arg0: i32, %arg1: i32, %arg2: i32) -> (i32, i32) {
    %c0_i32 = arith.constant 0 : i32
    %c0_i32_0 = arith.constant 0 : i32
    return %c0_i32, %arg1 : i32, i32
  }
  func.func @transform_3(%arg0: i32, %arg1: i32, %arg2: i32) -> (i32, i32) {
    %c0_i32 = arith.constant 0 : i32
    %c0_i32_0 = arith.constant 0 : i32
    return %c0_i32, %arg1 : i32, i32
  }
  func.func @transform_4(%arg0: i32, %arg1: i32, %arg2: i32) -> (i32, i32) {
    %c0_i32 = arith.constant 0 : i32
    return %arg0, %arg1 : i32, i32
  }
}

module attributes {stable_mosaic.version = 11 : i64} {
  func.func @_mm_bn_res_relu_kernel(%arg0: i32, %arg1: i32, %arg2: i32, %arg3: memref<16x384xbf16, #tpu.memory_space<vmem>>, %arg4: memref<384x256xbf16, #tpu.memory_space<vmem>>, %arg5: memref<1x256xf32, #tpu.memory_space<vmem>>, %arg6: memref<1x256xf32, #tpu.memory_space<vmem>>, %arg7: memref<16x256xbf16, #tpu.memory_space<vmem>>, %arg8: memref<16x256xbf16, #tpu.memory_space<vmem>>, %arg9: memref<16x256xf32, #tpu.memory_space<vmem>>) attributes {dimension_semantics = [#tpu.dimension_semantics<parallel>, #tpu.dimension_semantics<parallel>, #tpu.dimension_semantics<arbitrary>], iteration_bounds = array<i64: 1, 1, 6>, scalar_prefetch = 0 : i64, scratch_operands = 1 : i64, tpu.core_type = #tpu.core_type<tc>, window_params = [{transform_indices = @transform_0, window_bounds = array<i64: 16, 384>}, {transform_indices = @transform_1, window_bounds = array<i64: 384, 256>}, {transform_indices = @transform_2, window_bounds = array<i64: 1, 256>}, {transform_indices = @transform_3, window_bounds = array<i64: 1, 256>}, {transform_indices = @transform_4, window_bounds = array<i64: 16, 256>}, {transform_indices = @transform_5, window_bounds = array<i64: 16, 256>}]} {
    %c0_i32 = arith.constant 0 : i32
    %0 = arith.cmpi eq, %arg2, %c0_i32 : i32
    %1 = arith.extui %0 : i1 to i32
    %c0_i32_0 = arith.constant 0 : i32
    %2 = arith.cmpi ne, %1, %c0_i32_0 : i32
    scf.if %2 {
      %cst_9 = arith.constant 0.000000e+00 : f32
      %12 = vector.broadcast %cst_9 : f32 to vector<16x256xf32>
      %c0_10 = arith.constant 0 : index
      %c0_11 = arith.constant 0 : index
      %13 = vector.load %arg9[%c0_10, %c0_11] : memref<16x256xf32, #tpu.memory_space<vmem>>, vector<16x256xf32>
      tpu.vector_store %arg9[%c0_10, %c0_11], %12 {strides = array<i32>} : memref<16x256xf32, #tpu.memory_space<vmem>>, vector<16x256xf32>,
    } else {
    }
    %c0 = arith.constant 0 : index
    %c0_1 = arith.constant 0 : index
    %3 = vector.load %arg9[%c0, %c0_1] : memref<16x256xf32, #tpu.memory_space<vmem>>, vector<16x256xf32>
    %c0_2 = arith.constant 0 : index
    %c0_3 = arith.constant 0 : index
    %4 = vector.load %arg3[%c0_2, %c0_3] : memref<16x384xbf16, #tpu.memory_space<vmem>>, vector<16x384xbf16>
    %c0_4 = arith.constant 0 : index
    %c0_5 = arith.constant 0 : index
    %5 = vector.load %arg4[%c0_4, %c0_5] : memref<384x256xbf16, #tpu.memory_space<vmem>>, vector<384x256xbf16>
    %cst = arith.constant dense<0.000000e+00> : vector<16x256xf32>
    %6 = tpu.matmul %4, %5, %cst {dimension_numbers = #tpu.dot_dimension_numbers<[1], [0], [0], [1], [0, 0, 1, 1], [], []>} : vector<16x384xbf16>, vector<384x256xbf16>, vector<16x256xf32> -> vector<16x256xf32>
    %7 = arith.addf %3, %6 : vector<16x256xf32>
    %c0_6 = arith.constant 0 : index
    %c0_7 = arith.constant 0 : index
    %8 = vector.load %arg9[%c0_6, %c0_7] : memref<16x256xf32, #tpu.memory_space<vmem>>, vector<16x256xf32>
    tpu.vector_store %arg9[%c0_6, %c0_7], %7 {strides = array<i32>} : memref<16x256xf32, #tpu.memory_space<vmem>>, vector<16x256xf32>,
    %c5_i32 = arith.constant 5 : i32
    %9 = arith.cmpi eq, %arg2, %c5_i32 : i32
    %10 = arith.extui %9 : i1 to i32
    %c0_i32_8 = arith.constant 0 : i32
    %11 = arith.cmpi ne, %10, %c0_i32_8 : i32
    scf.if %11 {
      %c0_9 = arith.constant 0 : index
      %c0_10 = arith.constant 0 : index
      %12 = vector.load %arg9[%c0_9, %c0_10] : memref<16x256xf32, #tpu.memory_space<vmem>>, vector<16x256xf32>
      %c0_11 = arith.constant 0 : index
      %c0_12 = arith.constant 0 : index
      %13 = vector.load %arg5[%c0_11, %c0_12] : memref<1x256xf32, #tpu.memory_space<vmem>>, vector<1x256xf32>
      %14 = vector.broadcast %13 : vector<1x256xf32> to vector<16x256xf32>
      %15 = arith.mulf %12, %14 : vector<16x256xf32>
      %c0_13 = arith.constant 0 : index
      %c0_14 = arith.constant 0 : index
      %16 = vector.load %arg6[%c0_13, %c0_14] : memref<1x256xf32, #tpu.memory_space<vmem>>, vector<1x256xf32>
      %17 = vector.broadcast %16 : vector<1x256xf32> to vector<16x256xf32>
      %18 = arith.addf %15, %17 : vector<16x256xf32>
      %c0_15 = arith.constant 0 : index
      %c0_16 = arith.constant 0 : index
      %19 = vector.load %arg7[%c0_15, %c0_16] : memref<16x256xbf16, #tpu.memory_space<vmem>>, vector<16x256xbf16>
      %20 = arith.extf %19 : vector<16x256xbf16> to vector<16x256xf32>
      %21 = arith.addf %18, %20 : vector<16x256xf32>
      %cst_17 = arith.constant 0.000000e+00 : f32
      %22 = vector.broadcast %cst_17 : f32 to vector<16x256xf32>
      %23 = arith.maximumf %21, %22 : vector<16x256xf32>
      %24 = arith.truncf %23 : vector<16x256xf32> to vector<16x256xbf16>
      %c0_18 = arith.constant 0 : index
      %c0_19 = arith.constant 0 : index
      %25 = vector.load %arg8[%c0_18, %c0_19] : memref<16x256xbf16, #tpu.memory_space<vmem>>, vector<16x256xbf16>
      tpu.vector_store %arg8[%c0_18, %c0_19], %24 {strides = array<i32>} : memref<16x256xbf16, #tpu.memory_space<vmem>>, vector<16x256xbf16>,
    } else {
    }
    return
  }
  func.func @transform_0(%arg0: i32, %arg1: i32, %arg2: i32) -> (i32, i32) {
    %c0_i32 = arith.constant 0 : i32
    return %arg0, %arg2 : i32, i32
  }
  func.func @transform_1(%arg0: i32, %arg1: i32, %arg2: i32) -> (i32, i32) {
    %c0_i32 = arith.constant 0 : i32
    return %arg2, %arg1 : i32, i32
  }
  func.func @transform_2(%arg0: i32, %arg1: i32, %arg2: i32) -> (i32, i32) {
    %c0_i32 = arith.constant 0 : i32
    %c0_i32_0 = arith.constant 0 : i32
    return %c0_i32, %arg1 : i32, i32
  }
  func.func @transform_3(%arg0: i32, %arg1: i32, %arg2: i32) -> (i32, i32) {
    %c0_i32 = arith.constant 0 : i32
    %c0_i32_0 = arith.constant 0 : i32
    return %c0_i32, %arg1 : i32, i32
  }
  func.func @transform_4(%arg0: i32, %arg1: i32, %arg2: i32) -> (i32, i32) {
    %c0_i32 = arith.constant 0 : i32
    return %arg0, %arg1 : i32, i32
  }
  func.func @transform_5(%arg0: i32, %arg1: i32, %arg2: i32) -> (i32, i32) {
    %c0_i32 = arith.constant 0 : i32
    return %arg0, %arg1 : i32, i32
  }
}

module attributes {stable_mosaic.version = 11 : i64} {
  func.func @_mm_bn_kernel(%arg0: i32, %arg1: i32, %arg2: i32, %arg3: memref<16x256xbf16, #tpu.memory_space<vmem>>, %arg4: memref<256x512xbf16, #tpu.memory_space<vmem>>, %arg5: memref<1x512xf32, #tpu.memory_space<vmem>>, %arg6: memref<1x512xf32, #tpu.memory_space<vmem>>, %arg7: memref<16x512xbf16, #tpu.memory_space<vmem>>, %arg8: memref<16x512xf32, #tpu.memory_space<vmem>>) attributes {dimension_semantics = [#tpu.dimension_semantics<parallel>, #tpu.dimension_semantics<parallel>, #tpu.dimension_semantics<arbitrary>], iteration_bounds = array<i64: 1, 1, 1>, scalar_prefetch = 0 : i64, scratch_operands = 1 : i64, tpu.core_type = #tpu.core_type<tc>, window_params = [{transform_indices = @transform_0, window_bounds = array<i64: 16, 256>}, {transform_indices = @transform_1, window_bounds = array<i64: 256, 512>}, {transform_indices = @transform_2, window_bounds = array<i64: 1, 512>}, {transform_indices = @transform_3, window_bounds = array<i64: 1, 512>}, {transform_indices = @transform_4, window_bounds = array<i64: 16, 512>}]} {
    %c0_i32 = arith.constant 0 : i32
    %0 = arith.cmpi eq, %arg2, %c0_i32 : i32
    %1 = arith.extui %0 : i1 to i32
    %c0_i32_0 = arith.constant 0 : i32
    %2 = arith.cmpi ne, %1, %c0_i32_0 : i32
    scf.if %2 {
      %cst_10 = arith.constant 0.000000e+00 : f32
      %12 = vector.broadcast %cst_10 : f32 to vector<16x512xf32>
      %c0_11 = arith.constant 0 : index
      %c0_12 = arith.constant 0 : index
      %13 = vector.load %arg8[%c0_11, %c0_12] : memref<16x512xf32, #tpu.memory_space<vmem>>, vector<16x512xf32>
      tpu.vector_store %arg8[%c0_11, %c0_12], %12 {strides = array<i32>} : memref<16x512xf32, #tpu.memory_space<vmem>>, vector<16x512xf32>,
    } else {
    }
    %c0 = arith.constant 0 : index
    %c0_1 = arith.constant 0 : index
    %3 = vector.load %arg8[%c0, %c0_1] : memref<16x512xf32, #tpu.memory_space<vmem>>, vector<16x512xf32>
    %c0_2 = arith.constant 0 : index
    %c0_3 = arith.constant 0 : index
    %4 = vector.load %arg3[%c0_2, %c0_3] : memref<16x256xbf16, #tpu.memory_space<vmem>>, vector<16x256xbf16>
    %c0_4 = arith.constant 0 : index
    %c0_5 = arith.constant 0 : index
    %5 = vector.load %arg4[%c0_4, %c0_5] : memref<256x512xbf16, #tpu.memory_space<vmem>>, vector<256x512xbf16>
    %cst = arith.constant dense<0.000000e+00> : vector<16x512xf32>
    %6 = tpu.matmul %4, %5, %cst {dimension_numbers = #tpu.dot_dimension_numbers<[1], [0], [0], [1], [0, 0, 1, 1], [], []>} : vector<16x256xbf16>, vector<256x512xbf16>, vector<16x512xf32> -> vector<16x512xf32>
    %7 = arith.addf %3, %6 : vector<16x512xf32>
    %c0_6 = arith.constant 0 : index
    %c0_7 = arith.constant 0 : index
    %8 = vector.load %arg8[%c0_6, %c0_7] : memref<16x512xf32, #tpu.memory_space<vmem>>, vector<16x512xf32>
    tpu.vector_store %arg8[%c0_6, %c0_7], %7 {strides = array<i32>} : memref<16x512xf32, #tpu.memory_space<vmem>>, vector<16x512xf32>,
    %c0_i32_8 = arith.constant 0 : i32
    %9 = arith.cmpi eq, %arg2, %c0_i32_8 : i32
    %10 = arith.extui %9 : i1 to i32
    %c0_i32_9 = arith.constant 0 : i32
    %11 = arith.cmpi ne, %10, %c0_i32_9 : i32
    scf.if %11 {
      %c0_10 = arith.constant 0 : index
      %c0_11 = arith.constant 0 : index
      %12 = vector.load %arg8[%c0_10, %c0_11] : memref<16x512xf32, #tpu.memory_space<vmem>>, vector<16x512xf32>
      %c0_12 = arith.constant 0 : index
      %c0_13 = arith.constant 0 : index
      %13 = vector.load %arg5[%c0_12, %c0_13] : memref<1x512xf32, #tpu.memory_space<vmem>>, vector<1x512xf32>
      %14 = vector.broadcast %13 : vector<1x512xf32> to vector<16x512xf32>
      %15 = arith.mulf %12, %14 : vector<16x512xf32>
      %c0_14 = arith.constant 0 : index
      %c0_15 = arith.constant 0 : index
      %16 = vector.load %arg6[%c0_14, %c0_15] : memref<1x512xf32, #tpu.memory_space<vmem>>, vector<1x512xf32>
      %17 = vector.broadcast %16 : vector<1x512xf32> to vector<16x512xf32>
      %18 = arith.addf %15, %17 : vector<16x512xf32>
      %19 = arith.truncf %18 : vector<16x512xf32> to vector<16x512xbf16>
      %c0_16 = arith.constant 0 : index
      %c0_17 = arith.constant 0 : index
      %20 = vector.load %arg7[%c0_16, %c0_17] : memref<16x512xbf16, #tpu.memory_space<vmem>>, vector<16x512xbf16>
      tpu.vector_store %arg7[%c0_16, %c0_17], %19 {strides = array<i32>} : memref<16x512xbf16, #tpu.memory_space<vmem>>, vector<16x512xbf16>,
    } else {
    }
    return
  }
  func.func @transform_0(%arg0: i32, %arg1: i32, %arg2: i32) -> (i32, i32) {
    %c0_i32 = arith.constant 0 : i32
    return %arg0, %arg2 : i32, i32
  }
  func.func @transform_1(%arg0: i32, %arg1: i32, %arg2: i32) -> (i32, i32) {
    %c0_i32 = arith.constant 0 : i32
    return %arg2, %arg1 : i32, i32
  }
  func.func @transform_2(%arg0: i32, %arg1: i32, %arg2: i32) -> (i32, i32) {
    %c0_i32 = arith.constant 0 : i32
    %c0_i32_0 = arith.constant 0 : i32
    return %c0_i32, %arg1 : i32, i32
  }
  func.func @transform_3(%arg0: i32, %arg1: i32, %arg2: i32) -> (i32, i32) {
    %c0_i32 = arith.constant 0 : i32
    %c0_i32_0 = arith.constant 0 : i32
    return %c0_i32, %arg1 : i32, i32
  }
  func.func @transform_4(%arg0: i32, %arg1: i32, %arg2: i32) -> (i32, i32) {
    %c0_i32 = arith.constant 0 : i32
    return %arg0, %arg1 : i32, i32
  }
}

module attributes {stable_mosaic.version = 11 : i64} {
  func.func @_mm_bn_kernel(%arg0: i32, %arg1: i32, %arg2: i32, %arg3: memref<16x384xbf16, #tpu.memory_space<vmem>>, %arg4: memref<384x512xbf16, #tpu.memory_space<vmem>>, %arg5: memref<1x512xf32, #tpu.memory_space<vmem>>, %arg6: memref<1x512xf32, #tpu.memory_space<vmem>>, %arg7: memref<16x512xbf16, #tpu.memory_space<vmem>>, %arg8: memref<16x512xf32, #tpu.memory_space<vmem>>) attributes {dimension_semantics = [#tpu.dimension_semantics<parallel>, #tpu.dimension_semantics<parallel>, #tpu.dimension_semantics<arbitrary>], iteration_bounds = array<i64: 1, 1, 6>, scalar_prefetch = 0 : i64, scratch_operands = 1 : i64, tpu.core_type = #tpu.core_type<tc>, window_params = [{transform_indices = @transform_0, window_bounds = array<i64: 16, 384>}, {transform_indices = @transform_1, window_bounds = array<i64: 384, 512>}, {transform_indices = @transform_2, window_bounds = array<i64: 1, 512>}, {transform_indices = @transform_3, window_bounds = array<i64: 1, 512>}, {transform_indices = @transform_4, window_bounds = array<i64: 16, 512>}]} {
    %c0_i32 = arith.constant 0 : i32
    %0 = arith.cmpi eq, %arg2, %c0_i32 : i32
    %1 = arith.extui %0 : i1 to i32
    %c0_i32_0 = arith.constant 0 : i32
    %2 = arith.cmpi ne, %1, %c0_i32_0 : i32
    scf.if %2 {
      %cst_9 = arith.constant 0.000000e+00 : f32
      %12 = vector.broadcast %cst_9 : f32 to vector<16x512xf32>
      %c0_10 = arith.constant 0 : index
      %c0_11 = arith.constant 0 : index
      %13 = vector.load %arg8[%c0_10, %c0_11] : memref<16x512xf32, #tpu.memory_space<vmem>>, vector<16x512xf32>
      tpu.vector_store %arg8[%c0_10, %c0_11], %12 {strides = array<i32>} : memref<16x512xf32, #tpu.memory_space<vmem>>, vector<16x512xf32>,
    } else {
    }
    %c0 = arith.constant 0 : index
    %c0_1 = arith.constant 0 : index
    %3 = vector.load %arg8[%c0, %c0_1] : memref<16x512xf32, #tpu.memory_space<vmem>>, vector<16x512xf32>
    %c0_2 = arith.constant 0 : index
    %c0_3 = arith.constant 0 : index
    %4 = vector.load %arg3[%c0_2, %c0_3] : memref<16x384xbf16, #tpu.memory_space<vmem>>, vector<16x384xbf16>
    %c0_4 = arith.constant 0 : index
    %c0_5 = arith.constant 0 : index
    %5 = vector.load %arg4[%c0_4, %c0_5] : memref<384x512xbf16, #tpu.memory_space<vmem>>, vector<384x512xbf16>
    %cst = arith.constant dense<0.000000e+00> : vector<16x512xf32>
    %6 = tpu.matmul %4, %5, %cst {dimension_numbers = #tpu.dot_dimension_numbers<[1], [0], [0], [1], [0, 0, 1, 1], [], []>} : vector<16x384xbf16>, vector<384x512xbf16>, vector<16x512xf32> -> vector<16x512xf32>
    %7 = arith.addf %3, %6 : vector<16x512xf32>
    %c0_6 = arith.constant 0 : index
    %c0_7 = arith.constant 0 : index
    %8 = vector.load %arg8[%c0_6, %c0_7] : memref<16x512xf32, #tpu.memory_space<vmem>>, vector<16x512xf32>
    tpu.vector_store %arg8[%c0_6, %c0_7], %7 {strides = array<i32>} : memref<16x512xf32, #tpu.memory_space<vmem>>, vector<16x512xf32>,
    %c5_i32 = arith.constant 5 : i32
    %9 = arith.cmpi eq, %arg2, %c5_i32 : i32
    %10 = arith.extui %9 : i1 to i32
    %c0_i32_8 = arith.constant 0 : i32
    %11 = arith.cmpi ne, %10, %c0_i32_8 : i32
    scf.if %11 {
      %c0_9 = arith.constant 0 : index
      %c0_10 = arith.constant 0 : index
      %12 = vector.load %arg8[%c0_9, %c0_10] : memref<16x512xf32, #tpu.memory_space<vmem>>, vector<16x512xf32>
      %c0_11 = arith.constant 0 : index
      %c0_12 = arith.constant 0 : index
      %13 = vector.load %arg5[%c0_11, %c0_12] : memref<1x512xf32, #tpu.memory_space<vmem>>, vector<1x512xf32>
      %14 = vector.broadcast %13 : vector<1x512xf32> to vector<16x512xf32>
      %15 = arith.mulf %12, %14 : vector<16x512xf32>
      %c0_13 = arith.constant 0 : index
      %c0_14 = arith.constant 0 : index
      %16 = vector.load %arg6[%c0_13, %c0_14] : memref<1x512xf32, #tpu.memory_space<vmem>>, vector<1x512xf32>
      %17 = vector.broadcast %16 : vector<1x512xf32> to vector<16x512xf32>
      %18 = arith.addf %15, %17 : vector<16x512xf32>
      %cst_15 = arith.constant 0.000000e+00 : f32
      %19 = vector.broadcast %cst_15 : f32 to vector<16x512xf32>
      %20 = arith.maximumf %18, %19 : vector<16x512xf32>
      %21 = arith.truncf %20 : vector<16x512xf32> to vector<16x512xbf16>
      %c0_16 = arith.constant 0 : index
      %c0_17 = arith.constant 0 : index
      %22 = vector.load %arg7[%c0_16, %c0_17] : memref<16x512xbf16, #tpu.memory_space<vmem>>, vector<16x512xbf16>
      tpu.vector_store %arg7[%c0_16, %c0_17], %21 {strides = array<i32>} : memref<16x512xbf16, #tpu.memory_space<vmem>>, vector<16x512xbf16>,
    } else {
    }
    return
  }
  func.func @transform_0(%arg0: i32, %arg1: i32, %arg2: i32) -> (i32, i32) {
    %c0_i32 = arith.constant 0 : i32
    return %arg0, %arg2 : i32, i32
  }
  func.func @transform_1(%arg0: i32, %arg1: i32, %arg2: i32) -> (i32, i32) {
    %c0_i32 = arith.constant 0 : i32
    return %arg2, %arg1 : i32, i32
  }
  func.func @transform_2(%arg0: i32, %arg1: i32, %arg2: i32) -> (i32, i32) {
    %c0_i32 = arith.constant 0 : i32
    %c0_i32_0 = arith.constant 0 : i32
    return %c0_i32, %arg1 : i32, i32
  }
  func.func @transform_3(%arg0: i32, %arg1: i32, %arg2: i32) -> (i32, i32) {
    %c0_i32 = arith.constant 0 : i32
    %c0_i32_0 = arith.constant 0 : i32
    return %c0_i32, %arg1 : i32, i32
  }
  func.func @transform_4(%arg0: i32, %arg1: i32, %arg2: i32) -> (i32, i32) {
    %c0_i32 = arith.constant 0 : i32
    return %arg0, %arg1 : i32, i32
  }
}

module attributes {stable_mosaic.version = 11 : i64} {
  func.func @_mm_bn_res_relu_kernel(%arg0: i32, %arg1: i32, %arg2: i32, %arg3: memref<16x512xbf16, #tpu.memory_space<vmem>>, %arg4: memref<512x512xbf16, #tpu.memory_space<vmem>>, %arg5: memref<1x512xf32, #tpu.memory_space<vmem>>, %arg6: memref<1x512xf32, #tpu.memory_space<vmem>>, %arg7: memref<16x512xbf16, #tpu.memory_space<vmem>>, %arg8: memref<16x512xbf16, #tpu.memory_space<vmem>>, %arg9: memref<16x512xf32, #tpu.memory_space<vmem>>) attributes {dimension_semantics = [#tpu.dimension_semantics<parallel>, #tpu.dimension_semantics<parallel>, #tpu.dimension_semantics<arbitrary>], iteration_bounds = array<i64: 1, 1, 9>, scalar_prefetch = 0 : i64, scratch_operands = 1 : i64, tpu.core_type = #tpu.core_type<tc>, window_params = [{transform_indices = @transform_0, window_bounds = array<i64: 16, 512>}, {transform_indices = @transform_1, window_bounds = array<i64: 512, 512>}, {transform_indices = @transform_2, window_bounds = array<i64: 1, 512>}, {transform_indices = @transform_3, window_bounds = array<i64: 1, 512>}, {transform_indices = @transform_4, window_bounds = array<i64: 16, 512>}, {transform_indices = @transform_5, window_bounds = array<i64: 16, 512>}]} {
    %c0_i32 = arith.constant 0 : i32
    %0 = arith.cmpi eq, %arg2, %c0_i32 : i32
    %1 = arith.extui %0 : i1 to i32
    %c0_i32_0 = arith.constant 0 : i32
    %2 = arith.cmpi ne, %1, %c0_i32_0 : i32
    scf.if %2 {
      %cst_9 = arith.constant 0.000000e+00 : f32
      %12 = vector.broadcast %cst_9 : f32 to vector<16x512xf32>
      %c0_10 = arith.constant 0 : index
      %c0_11 = arith.constant 0 : index
      %13 = vector.load %arg9[%c0_10, %c0_11] : memref<16x512xf32, #tpu.memory_space<vmem>>, vector<16x512xf32>
      tpu.vector_store %arg9[%c0_10, %c0_11], %12 {strides = array<i32>} : memref<16x512xf32, #tpu.memory_space<vmem>>, vector<16x512xf32>,
    } else {
    }
    %c0 = arith.constant 0 : index
    %c0_1 = arith.constant 0 : index
    %3 = vector.load %arg9[%c0, %c0_1] : memref<16x512xf32, #tpu.memory_space<vmem>>, vector<16x512xf32>
    %c0_2 = arith.constant 0 : index
    %c0_3 = arith.constant 0 : index
    %4 = vector.load %arg3[%c0_2, %c0_3] : memref<16x512xbf16, #tpu.memory_space<vmem>>, vector<16x512xbf16>
    %c0_4 = arith.constant 0 : index
    %c0_5 = arith.constant 0 : index
    %5 = vector.load %arg4[%c0_4, %c0_5] : memref<512x512xbf16, #tpu.memory_space<vmem>>, vector<512x512xbf16>
    %cst = arith.constant dense<0.000000e+00> : vector<16x512xf32>
    %6 = tpu.matmul %4, %5, %cst {dimension_numbers = #tpu.dot_dimension_numbers<[1], [0], [0], [1], [0, 0, 1, 1], [], []>} : vector<16x512xbf16>, vector<512x512xbf16>, vector<16x512xf32> -> vector<16x512xf32>
    %7 = arith.addf %3, %6 : vector<16x512xf32>
    %c0_6 = arith.constant 0 : index
    %c0_7 = arith.constant 0 : index
    %8 = vector.load %arg9[%c0_6, %c0_7] : memref<16x512xf32, #tpu.memory_space<vmem>>, vector<16x512xf32>
    tpu.vector_store %arg9[%c0_6, %c0_7], %7 {strides = array<i32>} : memref<16x512xf32, #tpu.memory_space<vmem>>, vector<16x512xf32>,
    %c8_i32 = arith.constant 8 : i32
    %9 = arith.cmpi eq, %arg2, %c8_i32 : i32
    %10 = arith.extui %9 : i1 to i32
    %c0_i32_8 = arith.constant 0 : i32
    %11 = arith.cmpi ne, %10, %c0_i32_8 : i32
    scf.if %11 {
      %c0_9 = arith.constant 0 : index
      %c0_10 = arith.constant 0 : index
      %12 = vector.load %arg9[%c0_9, %c0_10] : memref<16x512xf32, #tpu.memory_space<vmem>>, vector<16x512xf32>
      %c0_11 = arith.constant 0 : index
      %c0_12 = arith.constant 0 : index
      %13 = vector.load %arg5[%c0_11, %c0_12] : memref<1x512xf32, #tpu.memory_space<vmem>>, vector<1x512xf32>
      %14 = vector.broadcast %13 : vector<1x512xf32> to vector<16x512xf32>
      %15 = arith.mulf %12, %14 : vector<16x512xf32>
      %c0_13 = arith.constant 0 : index
      %c0_14 = arith.constant 0 : index
      %16 = vector.load %arg6[%c0_13, %c0_14] : memref<1x512xf32, #tpu.memory_space<vmem>>, vector<1x512xf32>
      %17 = vector.broadcast %16 : vector<1x512xf32> to vector<16x512xf32>
      %18 = arith.addf %15, %17 : vector<16x512xf32>
      %c0_15 = arith.constant 0 : index
      %c0_16 = arith.constant 0 : index
      %19 = vector.load %arg7[%c0_15, %c0_16] : memref<16x512xbf16, #tpu.memory_space<vmem>>, vector<16x512xbf16>
      %20 = arith.extf %19 : vector<16x512xbf16> to vector<16x512xf32>
      %21 = arith.addf %18, %20 : vector<16x512xf32>
      %cst_17 = arith.constant 0.000000e+00 : f32
      %22 = vector.broadcast %cst_17 : f32 to vector<16x512xf32>
      %23 = arith.maximumf %21, %22 : vector<16x512xf32>
      %24 = arith.truncf %23 : vector<16x512xf32> to vector<16x512xbf16>
      %c0_18 = arith.constant 0 : index
      %c0_19 = arith.constant 0 : index
      %25 = vector.load %arg8[%c0_18, %c0_19] : memref<16x512xbf16, #tpu.memory_space<vmem>>, vector<16x512xbf16>
      tpu.vector_store %arg8[%c0_18, %c0_19], %24 {strides = array<i32>} : memref<16x512xbf16, #tpu.memory_space<vmem>>, vector<16x512xbf16>,
    } else {
    }
    return
  }
  func.func @transform_0(%arg0: i32, %arg1: i32, %arg2: i32) -> (i32, i32) {
    %c0_i32 = arith.constant 0 : i32
    return %arg0, %arg2 : i32, i32
  }
  func.func @transform_1(%arg0: i32, %arg1: i32, %arg2: i32) -> (i32, i32) {
    %c0_i32 = arith.constant 0 : i32
    return %arg2, %arg1 : i32, i32
  }
  func.func @transform_2(%arg0: i32, %arg1: i32, %arg2: i32) -> (i32, i32) {
    %c0_i32 = arith.constant 0 : i32
    %c0_i32_0 = arith.constant 0 : i32
    return %c0_i32, %arg1 : i32, i32
  }
  func.func @transform_3(%arg0: i32, %arg1: i32, %arg2: i32) -> (i32, i32) {
    %c0_i32 = arith.constant 0 : i32
    %c0_i32_0 = arith.constant 0 : i32
    return %c0_i32, %arg1 : i32, i32
  }
  func.func @transform_4(%arg0: i32, %arg1: i32, %arg2: i32) -> (i32, i32) {
    %c0_i32 = arith.constant 0 : i32
    return %arg0, %arg1 : i32, i32
  }
  func.func @transform_5(%arg0: i32, %arg1: i32, %arg2: i32) -> (i32, i32) {
    %c0_i32 = arith.constant 0 : i32
    return %arg0, %arg1 : i32, i32
  }
}

</mosaic_0001>

<llo_original>
// kernel: _lambda_.14
$region0: #{_lambda_.14}
  #allocation0 [shape = 'u32[]', space=smem, size = 0x4, offset = 0x4, fixed_abs, tag = 'smem constant byte address 0x4 - core index']
  #allocation1 [shape = 'u32[144,128]{1,0:T(1,128)}', space=vmem, size = 0x12000, scoped, tag = 'internal scratch']
  %s0 = inlined_call_operand.vmem [shape: bf16[2,5,5,64], index: 0, kind: input, shape index: {}]
  %s1 = inlined_call_operand.vmem [shape: bf16[2,5,5,64], index: 1, kind: input, shape index: {}]
  %s2 = inlined_call_operand.vmem [shape: bf16[2,5,5,64], index: 2, kind: input, shape index: {}]
  %s3 = inlined_call_operand.vmem [shape: bf16[2,5,5,64], index: 3, kind: input, shape index: {}]
  %s4 = inlined_call_operand.vmem [shape: bf16[2,4,4,64], index: 4, kind: output, shape index: {}]
  %s5 = sld [smem:[#allocation0]]
  $region49: #{_lambda_.14} parent=0
    _
  %s7 = ssub.s32 1, %s5
  %s8 = scalar_select 0, %s7, %s5
  loop: start=0, step=1, limit=4
  $region2: #{_lambda_.14} parent=0 // loop_pre_header
    _
  $region3: #{_lambda_.14} parent=0 // loop_header
    %s10 = sphi 0, %s14
    %p11 = scmp.ge.s32.totalorder %s10, 4
    %s20 = sphi 0, %s22
    %s23 = sphi 0, %s20
    %s24 = sphi 0, %s23
    %s40 = sphi 0, %s24
    %s46 = sphi 0, %s48
    %s49 = sphi 0, %s46
    %s50 = sphi 0, %s49
    %s66 = sphi 0, %s50
    %s72 = sphi 0, %s74
    %s75 = sphi 0, %s72
    %s76 = sphi 0, %s75
    %s92 = sphi 0, %s76
    %s98 = sphi 0, %s100
    %s101 = sphi 0, %s98
    %s102 = sphi 0, %s101
    %s118 = sphi 0, %s102
    %s124 = sphi 0, %s126
    %s127 = sphi 0, %s124
    %s128 = sphi 0, %s127
    %s144 = sphi 0, %s128
  $region4: #{_lambda_.14} parent=0 // loop_header_branch
    %13 = sbr.rel (%p11) target = $region8
  $region5: #{_lambda_.14} parent=0 // loop_body
    %s15 = ssub.s32 %s10, 1
    %s16 = ssub.s32 %s10, 2
    %s17 = sadd.s32 %s10, 1
    %s18 = ssub.s32 %s10, %s17
    %p19 = scmp.eq.s32.totalorder %s18, 0
    %s21 = sadd.s32 %s20, 1
    %s22 = scalar_select %p19, %s20, %s21
    %p25 = pneg %p19
    %p26 = scmp.eq.s32.totalorder %s10, 1
    %p27 = por %p25, %p26
    %p28 = scmp.ne.s32.totalorder %s20, %s23
    %p29 = scmp.eq.s32.totalorder %s10, 0
    %p30 = por %p28, %p29
    %p31 = scmp.ne.s32.totalorder %s20, %s23
    %p32 = scmp.eq.s32.totalorder %s15, 1
    %p33 = por %p31, %p32
    %p34 = scmp.ne.s32.totalorder %s23, %s24
    %p35 = scmp.eq.s32.totalorder %s15, 0
    %p36 = por %p34, %p35
    %p37 = scmp.ne.s32.totalorder %s23, %s24
    %p38 = scmp.eq.s32.totalorder %s16, 1
    %p39 = por %p37, %p38
    %p41 = scmp.ne.s32.totalorder %s24, %s40
    %p42 = scmp.eq.s32.totalorder %s16, 0
    %p43 = por %p41, %p42
    %s44 = ssub.s32 %s10, %s17
    %p45 = scmp.eq.s32.totalorder %s44, 0
    %s47 = sadd.s32 %s46, 1
    %s48 = scalar_select %p45, %s46, %s47
    %p51 = pneg %p45
    %p52 = scmp.eq.s32.totalorder %s10, 1
    %p53 = por %p51, %p52
    %p54 = scmp.ne.s32.totalorder %s46, %s49
    %p55 = scmp.eq.s32.totalorder %s10, 0
    %p56 = por %p54, %p55
    %p57 = scmp.ne.s32.totalorder %s46, %s49
    %p58 = scmp.eq.s32.totalorder %s15, 1
    %p59 = por %p57, %p58
    %p60 = scmp.ne.s32.totalorder %s49, %s50
    %p61 = scmp.eq.s32.totalorder %s15, 0
    %p62 = por %p60, %p61
    %p63 = scmp.ne.s32.totalorder %s49, %s50
    %p64 = scmp.eq.s32.totalorder %s16, 1
    %p65 = por %p63, %p64
    %p67 = scmp.ne.s32.totalorder %s50, %s66
    %p68 = scmp.eq.s32.totalorder %s16, 0
    %p69 = por %p67, %p68
    %s70 = ssub.s32 %s10, %s17
    %p71 = scmp.eq.s32.totalorder %s70, 0
    %s73 = sadd.s32 %s72, 1
    %s74 = scalar_select %p71, %s72, %s73
    %p77 = pneg %p71
    %p78 = scmp.eq.s32.totalorder %s10, 1
    %p79 = por %p77, %p78
    %p80 = scmp.ne.s32.totalorder %s72, %s75
    %p81 = scmp.eq.s32.totalorder %s10, 0
    %p82 = por %p80, %p81
    %p83 = scmp.ne.s32.totalorder %s72, %s75
    %p84 = scmp.eq.s32.totalorder %s15, 1
    %p85 = por %p83, %p84
    %p86 = scmp.ne.s32.totalorder %s75, %s76
    %p87 = scmp.eq.s32.totalorder %s15, 0
    %p88 = por %p86, %p87
    %p89 = scmp.ne.s32.totalorder %s75, %s76
    %p90 = scmp.eq.s32.totalorder %s16, 1
    %p91 = por %p89, %p90
    %p93 = scmp.ne.s32.totalorder %s76, %s92
    %p94 = scmp.eq.s32.totalorder %s16, 0
    %p95 = por %p93, %p94
    %s96 = ssub.s32 %s10, %s17
    %p97 = scmp.eq.s32.totalorder %s96, 0
    %s99 = sadd.s32 %s98, 1
    %s100 = scalar_select %p97, %s98, %s99
    %p103 = pneg %p97
    %p104 = scmp.eq.s32.totalorder %s10, 1
    %p105 = por %p103, %p104
    %p106 = scmp.ne.s32.totalorder %s98, %s101
    %p107 = scmp.eq.s32.totalorder %s10, 0
    %p108 = por %p106, %p107
    %p109 = scmp.ne.s32.totalorder %s98, %s101
    %p110 = scmp.eq.s32.totalorder %s15, 1
    %p111 = por %p109, %p110
    %p112 = scmp.ne.s32.totalorder %s101, %s102
    %p113 = scmp.eq.s32.totalorder %s15, 0
    %p114 = por %p112, %p113
    %p115 = scmp.ne.s32.totalorder %s101, %s102
    %p116 = scmp.eq.s32.totalorder %s16, 1
    %p117 = por %p115, %p116
    %p119 = scmp.ne.s32.totalorder %s102, %s118
    %p120 = scmp.eq.s32.totalorder %s16, 0
    %p121 = por %p119, %p120
    %s122 = ssub.s32 %s10, %s17
    %p123 = scmp.eq.s32.totalorder %s122, 0
    %s125 = sadd.s32 %s124, 1
    %s126 = scalar_select %p123, %s124, %s125
    %p129 = pneg %p123
    %p130 = scmp.eq.s32.totalorder %s10, 1
    %p131 = por %p129, %p130
    %p132 = scmp.ne.s32.totalorder %s124, %s127
    %p133 = scmp.eq.s32.totalorder %s10, 0
    %p134 = por %p132, %p133
    %p135 = scmp.ne.s32.totalorder %s124, %s127
    %p136 = scmp.eq.s32.totalorder %s15, 1
    %p137 = por %p135, %p136
    %p138 = scmp.ne.s32.totalorder %s127, %s128
    %p139 = scmp.eq.s32.totalorder %s15, 0
    %p140 = por %p138, %p139
    %p141 = scmp.ne.s32.totalorder %s127, %s128
    %p142 = scmp.eq.s32.totalorder %s16, 1
    %p143 = por %p141, %p142
    %p145 = scmp.ne.s32.totalorder %s128, %s144
    %p146 = scmp.eq.s32.totalorder %s16, 0
    %p147 = por %p145, %p146
    %p148 = scmp.le.s32.totalorder 1, %s10
    %p149 = scmp.lt.s32.totalorder %s10, 3
    %p150 = pnand %p148, %p149
    %p151 = pneg %p150
    // Predicated region
    $region9: #{_lambda_.14} parent=5 // pred_check
      _
    $region10: #{_lambda_.14} parent=5 // pred_check_branch
      %153 = sbr.rel (%p150) target = $region12
    $region11: #{_lambda_.14} parent=5 // pred_region
      %s154 = ssub.s32 %s10, 1
    $region12: #{_lambda_.14} parent=5 // pred_fallthru
      _
    %p155 = scmp.lt.s32.totalorder %s10, 2
    // Predicated region
    $region13: #{_lambda_.14} parent=5 // pred_check
      %p156 = pneg %p155
    $region14: #{_lambda_.14} parent=5 // pred_check_branch
      %158 = sbr.rel (%p156) target = $region16
    $region15: #{_lambda_.14} parent=5 // pred_region
      // Predicated region
      $region17: #{_lambda_.14} parent=15 // pred_check
        %p159 = pneg %p30
      $region18: #{_lambda_.14} parent=15 // pred_check_branch
        %161 = sbr.rel (%p159) target = $region20
      $region19: #{_lambda_.14} parent=15 // pred_region
        %p162 = scmp.lt.s32.totalorder %s10, 1
        %s163 = scalar_select %p162, %s10, 1
        %s164 = smul.addr %s163, 5
        %s165 = smul.addr %s164, 4
        %s166 = scalar_lea.vmem %s0, %s165
      $region20: #{_lambda_.14} parent=15 // pred_fallthru
        _
      // Predicated region
      $region21: #{_lambda_.14} parent=15 // pred_check
        %p167 = pneg %p56
      $region22: #{_lambda_.14} parent=15 // pred_check_branch
        %169 = sbr.rel (%p167) target = $region24
      $region23: #{_lambda_.14} parent=15 // pred_region
        %p170 = scmp.lt.s32.totalorder %s10, 1
        %s171 = scalar_select %p170, %s10, 1
        %s172 = smul.addr %s171, 5
        %s173 = smul.addr %s172, 4
        %s174 = scalar_lea.vmem %s1, %s173
      $region24: #{_lambda_.14} parent=15 // pred_fallthru
        _
      // Predicated region
      $region25: #{_lambda_.14} parent=15 // pred_check
        %p175 = pneg %p82
      $region26: #{_lambda_.14} parent=15 // pred_check_branch
        %177 = sbr.rel (%p175) target = $region28
      $region27: #{_lambda_.14} parent=15 // pred_region
        %p178 = scmp.lt.s32.totalorder %s10, 1
        %s179 = scalar_select %p178, %s10, 1
        %s180 = smul.addr %s179, 5
        %s181 = smul.addr %s180, 4
        %s182 = scalar_lea.vmem %s2, %s181
      $region28: #{_lambda_.14} parent=15 // pred_fallthru
        _
      // Predicated region
      $region29: #{_lambda_.14} parent=15 // pred_check
        %p183 = pneg %p108
      $region30: #{_lambda_.14} parent=15 // pred_check_branch
        %185 = sbr.rel (%p183) target = $region32
      $region31: #{_lambda_.14} parent=15 // pred_region
        %p186 = scmp.lt.s32.totalorder %s10, 1
        %s187 = scalar_select %p186, %s10, 1
        %s188 = smul.addr %s187, 5
        %s189 = smul.addr %s188, 4
        %s190 = scalar_lea.vmem %s3, %s189
      $region32: #{_lambda_.14} parent=15 // pred_fallthru
        _
    $region16: #{_lambda_.14} parent=5 // pred_fallthru
      _
    %p191 = scmp.le.s32.totalorder 1, %s10
    %p192 = scmp.lt.s32.totalorder %s10, 3
    %p193 = pnand %p191, %p192
    %p194 = pneg %p193
    // Predicated region
    $region33: #{_lambda_.14} parent=5 // pred_check
      _
    $region34: #{_lambda_.14} parent=5 // pred_check_branch
      %196 = sbr.rel (%p193) target = $region36
    $region35: #{_lambda_.14} parent=5 // pred_region
      %s197 = ssub.s32 %s10, 1
      %p198 = scmp.lt.s32.totalorder %s15, 1
      %s199 = scalar_select %p198, %s15, 1
      %s200 = smul.addr %s199, 5
      %s201 = smul.addr %s200, 4
      %s202 = scalar_lea.vmem %s0, %s201
      %p203 = pneg %p36
      %p204 = pneg %p33
      %p205 = scmp.lt.s32.totalorder %s15, 1
      %s206 = scalar_select %p205, %s15, 1
      %s207 = smul.addr %s206, 5
      %s208 = smul.addr %s207, 4
      %s209 = scalar_lea.vmem %s1, %s208
      %p210 = pneg %p62
      %p211 = pneg %p59
      %p212 = scmp.lt.s32.totalorder %s15, 1
      %s213 = scalar_select %p212, %s15, 1
      %s214 = smul.addr %s213, 5
      %s215 = smul.addr %s214, 4
      %s216 = scalar_lea.vmem %s2, %s215
      %p217 = pneg %p88
      %p218 = pneg %p85
      %p219 = scmp.lt.s32.totalorder %s15, 1
      %s220 = scalar_select %p219, %s15, 1
      %s221 = smul.addr %s220, 5
      %s222 = smul.addr %s221, 4
      %s223 = scalar_lea.vmem %s3, %s222
      %p224 = pneg %p114
      %p225 = pneg %p111
      %p226 = pneg %p140
      %p227 = pneg %p137
      %p228 = scmp.lt.s32.totalorder %s15, 1
      %s229 = scalar_select %p228, %s15, 1
      %s230 = smul.addr %s229, 4
      %s231 = smul.addr %s230, 2
      %s232 = scalar_lea.vmem %s4, %s231
      %p233 = scmp.lt.s32.totalorder %s15, 1
      %s234 = scalar_select %p233, %s15, 1
      %s235 = smul.addr %s234, 5
      %s236 = smul.addr %s235, 4
      %s237 = scalar_lea.vmem %s0, %s236
      %p238 = scmp.lt.s32.totalorder %s15, 1
      %s239 = scalar_select %p238, %s15, 1
      %s240 = smul.addr %s239, 5
      %s241 = smul.addr %s240, 4
      %s242 = scalar_lea.vmem %s1, %s241
      %p243 = scmp.lt.s32.totalorder %s15, 1
      %s244 = scalar_select %p243, %s15, 1
      %s245 = smul.addr %s244, 5
      %s246 = smul.addr %s245, 4
      %s247 = scalar_lea.vmem %s2, %s246
      %p248 = scmp.lt.s32.totalorder %s15, 1
      %s249 = scalar_select %p248, %s15, 1
      %s250 = smul.addr %s249, 5
      %s251 = smul.addr %s250, 4
      %s252 = scalar_lea.vmem %s3, %s251
      %p253 = scmp.lt.s32.totalorder %s15, 1
      %s254 = scalar_select %p253, %s15, 1
      %s255 = smul.addr %s254, 4
      %s256 = smul.addr %s255, 2
      %s257 = scalar_lea.vmem %s4, %s256
      %v258 = vld [vmem:[%s237] sm:$0x7]
      %v259 = vld [vmem:[%s237 + $0x4] sm:$0x7]
      %v260 = vld [vmem:[%s237 + $0x8] sm:$0x7]
      %v261 = vld [vmem:[%s237 + $0xc] sm:$0x7]
      %v262 = vld [vmem:[%s237 + $0x10] sm:$0x7]
      %v263 = vunpack.c.l.bf16 %v258
      %v264 = vunpack.c.l.bf16 %v259
      %v265 = vunpack.c.l.bf16 %v260
      %v266 = vunpack.c.l.bf16 %v261
      %v267 = vunpack.c.l.bf16 %v262
      %v268 = vld [vmem:[%s242] sm:$0x7]
      %v269 = vld [vmem:[%s242 + $0x4] sm:$0x7]
      %v270 = vld [vmem:[%s242 + $0x8] sm:$0x7]
      %v271 = vld [vmem:[%s242 + $0xc] sm:$0x7]
      %v272 = vld [vmem:[%s242 + $0x10] sm:$0x7]
      %v273 = vunpack.c.l.bf16 %v268
      %v274 = vunpack.c.l.bf16 %v269
      %v275 = vunpack.c.l.bf16 %v270
      %v276 = vunpack.c.l.bf16 %v271
      %v277 = vunpack.c.l.bf16 %v272
      %v278 = vld [vmem:[%s247] sm:$0x7]
      %v279 = vld [vmem:[%s247 + $0x4] sm:$0x7]
      %v280 = vld [vmem:[%s247 + $0x8] sm:$0x7]
      %v281 = vld [vmem:[%s247 + $0xc] sm:$0x7]
      %v282 = vunpack.c.l.bf16 %v278
      %v283 = vunpack.c.l.bf16 %v279
      %v284 = vunpack.c.l.bf16 %v280
      %v285 = vunpack.c.l.bf16 %v281
      %v286 = vld [vmem:[%s252] sm:$0x7]
      %v287 = vld [vmem:[%s252 + $0x4] sm:$0x7]
      %v288 = vld [vmem:[%s252 + $0x8] sm:$0x7]
      %v289 = vld [vmem:[%s252 + $0xc] sm:$0x7]
      %v290 = vunpack.c.l.bf16 %v286
      %v291 = vunpack.c.l.bf16 %v287
      %v292 = vunpack.c.l.bf16 %v288
      %v293 = vunpack.c.l.bf16 %v289
      %v298 = vrot.slane %v263, 1
      %v299 = vrot.slane %v264, 1
      %v300 = vrot.slane %v265, 1
      %v301 = vrot.slane %v266, 1
      %v306 = vmax.f32 %v263, %v298
      %v307 = vmax.f32 %v264, %v299
      %v308 = vmax.f32 %v265, %v300
      %v309 = vmax.f32 %v266, %v301
      %v310 = vmax.f32 %v306, %v264
      %v311 = vmax.f32 %v307, %v265
      %v312 = vmax.f32 %v308, %v266
      %v313 = vmax.f32 %v309, %v267
      %v315 = vrot.slane %v267, 1
      %v317 = vmax.f32 %v310, %v299
      %v318 = vmax.f32 %v311, %v300
      %v319 = vmax.f32 %v312, %v301
      %v320 = vmax.f32 %v313, %v315
      %v321 = vmax.f32 %v317, %v273
      %v322 = vmax.f32 %v318, %v274
      %v323 = vmax.f32 %v319, %v275
      %v324 = vmax.f32 %v320, %v276
      %v325 = vmax.f32 %v321, %v274
      %v326 = vmax.f32 %v322, %v275
      %v327 = vmax.f32 %v323, %v276
      %v328 = vmax.f32 %v324, %v277
      %v329 = vmax.f32 %v325, %v282
      %v330 = vmax.f32 %v326, %v283
      %v331 = vmax.f32 %v327, %v284
      %v332 = vmax.f32 %v328, %v285
      %v337 = vrot.slane %v282, 1
      %v338 = vrot.slane %v283, 1
      %v339 = vrot.slane %v284, 1
      %v340 = vrot.slane %v285, 1
      %v345 = vmax.f32 %v329, %v337
      %v346 = vmax.f32 %v330, %v338
      %v347 = vmax.f32 %v331, %v339
      %v348 = vmax.f32 %v332, %v340
      %v349 = vmax.f32 %v345, %v290
      %v350 = vmax.f32 %v346, %v291
      %v351 = vmax.f32 %v347, %v292
      %v352 = vmax.f32 %v348, %v293
      %v353 = vpack.c.bf16 %v349, %v349
      %v354 = vpack.c.bf16 %v350, %v350
      %v355 = vpack.c.bf16 %v351, %v351
      %v356 = vpack.c.bf16 %v352, %v352
      %vm357 = vcmask 517120
      %358 = vst.msk [vmem:[%s257] sm:$0x3] %vm357, %v353
      %359 = vst.msk [vmem:[%s257 + $0x2] sm:$0x3] %vm357, %v354
      %360 = vst.msk [vmem:[%s257 + $0x4] sm:$0x3] %vm357, %v355
      %361 = vst.msk [vmem:[%s257 + $0x6] sm:$0x3] %vm357, %v356
      %p362 = scmp.lt.s32.totalorder %s15, 1
      %s363 = scalar_select %p362, %s15, 1
      %s364 = smul.addr %s363, 4
      %s365 = smul.addr %s364, 2
      %s366 = scalar_lea.vmem %s4, %s365
      // Predicated region
      $region37: #{_lambda_.14} parent=35 // pred_check
        %p367 = pneg %p137
      $region38: #{_lambda_.14} parent=35 // pred_check_branch
        %369 = sbr.rel (%p367) target = $region40
      $region39: #{_lambda_.14} parent=35 // pred_region
        _
      $region40: #{_lambda_.14} parent=35 // pred_fallthru
        _
    $region36: #{_lambda_.14} parent=5 // pred_fallthru
      _
    %p370 = scmp.le.s32.totalorder 2, %s10
    // Predicated region
    $region41: #{_lambda_.14} parent=5 // pred_check
      %p371 = pneg %p370
    $region42: #{_lambda_.14} parent=5 // pred_check_branch
      %373 = sbr.rel (%p371) target = $region44
    $region43: #{_lambda_.14} parent=5 // pred_region
      %s374 = ssub.s32 %s10, 2
      // Predicated region
      $region45: #{_lambda_.14} parent=43 // pred_check
        %p375 = pneg %p143
      $region46: #{_lambda_.14} parent=43 // pred_check_branch
        %377 = sbr.rel (%p375) target = $region48
      $region47: #{_lambda_.14} parent=43 // pred_region
        %p378 = scmp.lt.s32.totalorder %s16, 1
        %s379 = scalar_select %p378, %s16, 1
        %s380 = smul.addr %s379, 4
        %s381 = smul.addr %s380, 2
        %s382 = scalar_lea.vmem %s4, %s381
      $region48: #{_lambda_.14} parent=43 // pred_fallthru
        _
    $region44: #{_lambda_.14} parent=5 // pred_fallthru
      _
  $region6: #{_lambda_.14} parent=0 // loop_footer
    %s14 = sadd.s32 1, %s10
  $region7: #{_lambda_.14} parent=0 // loop_footer_branch
    %9 = sbr.rel target = $region3
  $region8: #{_lambda_.14} parent=0 // loop_exit
    _

// kernel: _lambda_.13
$region0: #{_lambda_.13}
  #allocation0 [shape = 'u32[]', space=smem, size = 0x4, offset = 0x4, fixed_abs, tag = 'smem constant byte address 0x4 - core index']
  #allocation1 [shape = 'u32[144,128]{1,0:T(1,128)}', space=vmem, size = 0x12000, scoped, tag = 'internal scratch']
  #allocation2 [shape = 'f32[128,128]{1,0:T(8,128)}', space=vmem, size = 0x10000, scoped, tag = 'scratch operand']
  %s0 = inlined_call_operand.vmem [shape: bf16[128,256], index: 0, kind: input, shape index: {}]
  %s1 = inlined_call_operand.vmem [shape: bf16[256,128], index: 1, kind: input, shape index: {}]
  %s2 = inlined_call_operand.vmem [shape: f32[1,128], index: 2, kind: input, shape index: {}]
  %s3 = inlined_call_operand.vmem [shape: f32[1,128], index: 3, kind: input, shape index: {}]
  %s4 = inlined_call_operand.vmem [shape: bf16[128,128], index: 4, kind: output, shape index: {}]
  %s5 = sld [smem:[#allocation0]]
  $region34: #{_lambda_.13} parent=0
    _
  %s7 = ssub.s32 1, %s5
  %s8 = scalar_select 0, %s7, %s5
  // Predicated region
  $region2: #{_lambda_.13} parent=0 // pred_check
    _
  $region3: #{_lambda_.13} parent=0 // pred_check_branch
    %10 = sbr.rel (0) target = $region5
  $region4: #{_lambda_.13} parent=0 // pred_region
    _
  $region5: #{_lambda_.13} parent=0 // pred_fallthru
    _
  // Predicated region
  $region6: #{_lambda_.13} parent=0 // pred_check
    _
  $region7: #{_lambda_.13} parent=0 // pred_check_branch
    %12 = sbr.rel (0) target = $region9
  $region8: #{_lambda_.13} parent=0 // pred_region
    _
  $region9: #{_lambda_.13} parent=0 // pred_fallthru
    _
  // Predicated region
  $region10: #{_lambda_.13} parent=0 // pred_check
    _
  $region11: #{_lambda_.13} parent=0 // pred_check_branch
    %14 = sbr.rel (0) target = $region13
  $region12: #{_lambda_.13} parent=0 // pred_region
    _
  $region13: #{_lambda_.13} parent=0 // pred_fallthru
    _
  // Predicated region
  $region14: #{_lambda_.13} parent=0 // pred_check
    _
  $region15: #{_lambda_.13} parent=0 // pred_check_branch
    %16 = sbr.rel (0) target = $region17
  $region16: #{_lambda_.13} parent=0 // pred_region
    _
  $region17: #{_lambda_.13} parent=0 // pred_fallthru
    _
  %p18 = scmp.eq.s32.totalorder 0, 0
  // Predicated region
  $region18: #{_lambda_.13} parent=0 // pred_check
    %p19 = pneg %p18
  $region19: #{_lambda_.13} parent=0 // pred_check_branch
    %21 = sbr.rel (%p19) target = $region21
  $region20: #{_lambda_.13} parent=0 // pred_region
    %22 = vst [vmem:[#allocation2] sm:$0xff] 0.0
    %23 = vst [vmem:[#allocation2 + $0x8] sm:$0xff] 0.0
    %24 = vst [vmem:[#allocation2 + $0x10] sm:$0xff] 0.0
    %25 = vst [vmem:[#allocation2 + $0x18] sm:$0xff] 0.0
    %26 = vst [vmem:[#allocation2 + $0x20] sm:$0xff] 0.0
    %27 = vst [vmem:[#allocation2 + $0x28] sm:$0xff] 0.0
    %28 = vst [vmem:[#allocation2 + $0x30] sm:$0xff] 0.0
    %29 = vst [vmem:[#allocation2 + $0x38] sm:$0xff] 0.0
    %30 = vst [vmem:[#allocation2 + $0x40] sm:$0xff] 0.0
    %31 = vst [vmem:[#allocation2 + $0x48] sm:$0xff] 0.0
    %32 = vst [vmem:[#allocation2 + $0x50] sm:$0xff] 0.0
    %33 = vst [vmem:[#allocation2 + $0x58] sm:$0xff] 0.0
    %34 = vst [vmem:[#allocation2 + $0x60] sm:$0xff] 0.0
    %35 = vst [vmem:[#allocation2 + $0x68] sm:$0xff] 0.0
    %36 = vst [vmem:[#allocation2 + $0x70] sm:$0xff] 0.0
    %37 = vst [vmem:[#allocation2 + $0x78] sm:$0xff] 0.0
  $region21: #{_lambda_.13} parent=0 // pred_fallthru
    _
  %v38 = vld [vmem:[#allocation2] sm:$0xff]
  %v39 = vld [vmem:[#allocation2 + $0x8] sm:$0xff]
  %v40 = vld [vmem:[#allocation2 + $0x10] sm:$0xff]
  %v41 = vld [vmem:[#allocation2 + $0x18] sm:$0xff]
  %v42 = vld [vmem:[#allocation2 + $0x20] sm:$0xff]
  %v43 = vld [vmem:[#allocation2 + $0x28] sm:$0xff]
  %v44 = vld [vmem:[#allocation2 + $0x30] sm:$0xff]
  %v45 = vld [vmem:[#allocation2 + $0x38] sm:$0xff]
  %v46 = vld [vmem:[#allocation2 + $0x40] sm:$0xff]
  %v47 = vld [vmem:[#allocation2 + $0x48] sm:$0xff]
  %v48 = vld [vmem:[#allocation2 + $0x50] sm:$0xff]
  %v49 = vld [vmem:[#allocation2 + $0x58] sm:$0xff]
  %v50 = vld [vmem:[#allocation2 + $0x60] sm:$0xff]
  %v51 = vld [vmem:[#allocation2 + $0x68] sm:$0xff]
  %v52 = vld [vmem:[#allocation2 + $0x70] sm:$0xff]
  %v53 = vld [vmem:[#allocation2 + $0x78] sm:$0xff]
  %v54 = vld [vmem:[%s0] sm:$0xff]
  %v55 = vld [vmem:[%s0 + $0x8] sm:$0xff]
  %v56 = vld [vmem:[%s0 + $0x10] sm:$0xff]
  %v57 = vld [vmem:[%s0 + $0x18] sm:$0xff]
  %v58 = vld [vmem:[%s0 + $0x20] sm:$0xff]
  %v59 = vld [vmem:[%s0 + $0x28] sm:$0xff]
  %v60 = vld [vmem:[%s0 + $0x30] sm:$0xff]
  %v61 = vld [vmem:[%s0 + $0x38] sm:$0xff]
  %v62 = vld [vmem:[%s0 + $0x40] sm:$0xff]
  %v63 = vld [vmem:[%s0 + $0x48] sm:$0xff]
  %v64 = vld [vmem:[%s0 + $0x50] sm:$0xff]
  %v65 = vld [vmem:[%s0 + $0x58] sm:$0xff]
  %v66 = vld [vmem:[%s0 + $0x60] sm:$0xff]
  %v67 = vld [vmem:[%s0 + $0x68] sm:$0xff]
  %v68 = vld [vmem:[%s0 + $0x70] sm:$0xff]
  %v69 = vld [vmem:[%s0 + $0x78] sm:$0xff]
  %v70 = vld [vmem:[%s1] sm:$0xf]
  %v71 = vld [vmem:[%s1 + $0x4] sm:$0xf]
  %v72 = vld [vmem:[%s1 + $0x8] sm:$0xf]
  %v73 = vld [vmem:[%s1 + $0xc] sm:$0xf]
  %v74 = vld [vmem:[%s1 + $0x10] sm:$0xf]
  %v75 = vld [vmem:[%s1 + $0x14] sm:$0xf]
  %v76 = vld [vmem:[%s1 + $0x18] sm:$0xf]
  %v77 = vld [vmem:[%s1 + $0x1c] sm:$0xf]
  %v78 = vld [vmem:[%s1 + $0x20] sm:$0xf]
  %v79 = vld [vmem:[%s1 + $0x24] sm:$0xf]
  %v80 = vld [vmem:[%s1 + $0x28] sm:$0xf]
  %v81 = vld [vmem:[%s1 + $0x2c] sm:$0xf]
  %v82 = vld [vmem:[%s1 + $0x30] sm:$0xf]
  %v83 = vld [vmem:[%s1 + $0x34] sm:$0xf]
  %v84 = vld [vmem:[%s1 + $0x38] sm:$0xf]
  %v85 = vld [vmem:[%s1 + $0x3c] sm:$0xf]
  %v86 = vld [vmem:[%s1 + $0x40] sm:$0xf]
  %v87 = vld [vmem:[%s1 + $0x44] sm:$0xf]
  %v88 = vld [vmem:[%s1 + $0x48] sm:$0xf]
  %v89 = vld [vmem:[%s1 + $0x4c] sm:$0xf]
  %v90 = vld [vmem:[%s1 + $0x50] sm:$0xf]
  %v91 = vld [vmem:[%s1 + $0x54] sm:$0xf]
  %v92 = vld [vmem:[%s1 + $0x58] sm:$0xf]
  %v93 = vld [vmem:[%s1 + $0x5c] sm:$0xf]
  %v94 = vld [vmem:[%s1 + $0x60] sm:$0xf]
  %v95 = vld [vmem:[%s1 + $0x64] sm:$0xf]
  %v96 = vld [vmem:[%s1 + $0x68] sm:$0xf]
  %v97 = vld [vmem:[%s1 + $0x6c] sm:$0xf]
  %v98 = vld [vmem:[%s1 + $0x70] sm:$0xf]
  %v99 = vld [vmem:[%s1 + $0x74] sm:$0xf]
  %v100 = vld [vmem:[%s1 + $0x78] sm:$0xf]
  %v101 = vld [vmem:[%s1 + $0x7c] sm:$0xf]
  %v118 = vunpack.c.l.b16 %v54
  %v119 = vunpack.c.h.b16 %v54
  %v120 = vunpack.c.l.b16 %v55
  %v121 = vunpack.c.h.b16 %v55
  %v122 = vunpack.c.l.b16 %v56
  %v123 = vunpack.c.h.b16 %v56
  %v124 = vunpack.c.l.b16 %v57
  %v125 = vunpack.c.h.b16 %v57
  %v126 = vunpack.c.l.b16 %v58
  %v127 = vunpack.c.h.b16 %v58
  %v128 = vunpack.c.l.b16 %v59
  %v129 = vunpack.c.h.b16 %v59
  %v130 = vunpack.c.l.b16 %v60
  %v131 = vunpack.c.h.b16 %v60
  %v132 = vunpack.c.l.b16 %v61
  %v133 = vunpack.c.h.b16 %v61
  %v134 = vunpack.c.l.b16 %v62
  %v135 = vunpack.c.h.b16 %v62
  %v136 = vunpack.c.l.b16 %v63
  %v137 = vunpack.c.h.b16 %v63
  %v138 = vunpack.c.l.b16 %v64
  %v139 = vunpack.c.h.b16 %v64
  %v140 = vunpack.c.l.b16 %v65
  %v141 = vunpack.c.h.b16 %v65
  %v142 = vunpack.c.l.b16 %v66
  %v143 = vunpack.c.h.b16 %v66
  %v144 = vunpack.c.l.b16 %v67
  %v145 = vunpack.c.h.b16 %v67
  %v146 = vunpack.c.l.b16 %v68
  %v147 = vunpack.c.h.b16 %v68
  %v148 = vunpack.c.l.b16 %v69
  %v149 = vunpack.c.h.b16 %v69
  %v150 = vpack.c.b16 %v120, %v118
  %v151 = vpack.c.b16 %v121, %v119
  %v152 = vpack.c.b16 %v124, %v122
  %v153 = vpack.c.b16 %v125, %v123
  %v154 = vpack.c.b16 %v128, %v126
  %v155 = vpack.c.b16 %v129, %v127
  %v156 = vpack.c.b16 %v132, %v130
  %v157 = vpack.c.b16 %v133, %v131
  %v158 = vpack.c.b16 %v136, %v134
  %v159 = vpack.c.b16 %v137, %v135
  %v160 = vpack.c.b16 %v140, %v138
  %v161 = vpack.c.b16 %v141, %v139
  %v162 = vpack.c.b16 %v144, %v142
  %v163 = vpack.c.b16 %v145, %v143
  %v164 = vpack.c.b16 %v148, %v146
  %v165 = vpack.c.b16 %v149, %v147
  %v214 = vunpack.c.l.b16 %v70
  %v215 = vunpack.c.l.b16 %v71
  %v216 = vunpack.c.l.b16 %v72
  %v217 = vunpack.c.l.b16 %v73
  %v218 = vunpack.c.l.b16 %v74
  %v219 = vunpack.c.l.b16 %v75
  %v220 = vunpack.c.l.b16 %v76
  %v221 = vunpack.c.l.b16 %v77
  %v222 = vunpack.c.l.b16 %v78
  %v223 = vunpack.c.l.b16 %v79
  %v224 = vunpack.c.l.b16 %v80
  %v225 = vunpack.c.l.b16 %v81
  %v226 = vunpack.c.l.b16 %v82
  %v227 = vunpack.c.l.b16 %v83
  %v228 = vunpack.c.l.b16 %v84
  %v229 = vunpack.c.l.b16 %v85
  %v230 = vunpack.c.l.b16 %v86
  %v231 = vunpack.c.l.b16 %v87
  %v232 = vunpack.c.l.b16 %v88
  %v233 = vunpack.c.l.b16 %v89
  %v234 = vunpack.c.l.b16 %v90
  %v235 = vunpack.c.l.b16 %v91
  %v236 = vunpack.c.l.b16 %v92
  %v237 = vunpack.c.l.b16 %v93
  %v238 = vunpack.c.l.b16 %v94
  %v239 = vunpack.c.l.b16 %v95
  %v240 = vunpack.c.l.b16 %v96
  %v241 = vunpack.c.l.b16 %v97
  %v242 = vunpack.c.l.b16 %v98
  %v243 = vunpack.c.l.b16 %v99
  %v244 = vunpack.c.l.b16 %v100
  %v245 = vunpack.c.l.b16 %v101
  %v246 = vpack.c.b16 %v215, %v214
  %v247 = vpack.c.b16 %v217, %v216
  %v248 = vpack.c.b16 %v219, %v218
  %v249 = vpack.c.b16 %v221, %v220
  %v250 = vpack.c.b16 %v223, %v222
  %v251 = vpack.c.b16 %v225, %v224
  %v252 = vpack.c.b16 %v227, %v226
  %v253 = vpack.c.b16 %v229, %v228
  %v254 = vpack.c.b16 %v231, %v230
  %v255 = vpack.c.b16 %v233, %v232
  %v256 = vpack.c.b16 %v235, %v234
  %v257 = vpack.c.b16 %v237, %v236
  %v258 = vpack.c.b16 %v239, %v238
  %v259 = vpack.c.b16 %v241, %v240
  %v260 = vpack.c.b16 %v243, %v242
  %v261 = vpack.c.b16 %v245, %v244
  %278 = vmatprep.subr.bf16.mxu0 0
  %279 = vmatpush1.bf16.msra.mxu0 %v246
  %280 = vmatprep.subr.bf16.mxu0 0
  %281 = vmatpush1.bf16.msra.mxu0 %v247
  %282 = vmatprep.subr.bf16.mxu0 0
  %283 = vmatpush1.bf16.msra.mxu0 %v248
  %284 = vmatprep.subr.bf16.mxu0 0
  %285 = vmatpush1.bf16.msra.mxu0 %v249
  %286 = vmatprep.subr.bf16.mxu0 0
  %287 = vmatpush1.bf16.msra.mxu0 %v250
  %288 = vmatprep.subr.bf16.mxu0 0
  %289 = vmatpush1.bf16.msra.mxu0 %v251
  %290 = vmatprep.subr.bf16.mxu0 0
  %291 = vmatpush1.bf16.msra.mxu0 %v252
  %292 = vmatprep.subr.bf16.mxu0 0
  %293 = vmatpush1.bf16.msra.mxu0 %v253
  %294 = vmatprep.subr.bf16.mxu0 0
  %295 = vmatpush1.bf16.msra.mxu0 %v254
  %296 = vmatprep.subr.bf16.mxu0 0
  %297 = vmatpush1.bf16.msra.mxu0 %v255
  %298 = vmatprep.subr.bf16.mxu0 0
  %299 = vmatpush1.bf16.msra.mxu0 %v256
  %300 = vmatprep.subr.bf16.mxu0 0
  %301 = vmatpush1.bf16.msra.mxu0 %v257
  %302 = vmatprep.subr.bf16.mxu0 0
  %303 = vmatpush1.bf16.msra.mxu0 %v258
  %304 = vmatprep.subr.bf16.mxu0 0
  %305 = vmatpush1.bf16.msra.mxu0 %v259
  %306 = vmatprep.subr.bf16.mxu0 0
  %307 = vmatpush1.bf16.msra.mxu0 %v260
  %308 = vmatprep.subr.bf16.mxu0 0
  %309 = vmatpush1.bf16.msra.mxu0 %v261
  %310 = vmatprep.mubr.bf16.mxu0 %v151
  %311 = vmatmul.mubr.bf16.gmra.mrb[0].mxu0 %v150
  %v312 = vpop.f32.mrb[0].mxu0
  %v313 = vadd.f32 0.0, %v312
  %v314 = vpop.f32.mrb[0].mxu0
  %v315 = vpop.f32.mrb[0].mxu0
  %v316 = vadd.f32 0.0, %v315
  %v317 = vpop.f32.mrb[0].mxu0
  %318 = vmatprep.mubr.bf16.mxu0 %v153
  %319 = vmatmul.mubr.bf16.gmra.mrb[0].mxu0 %v152
  %v320 = vpop.f32.mrb[0].mxu0
  %v321 = vadd.f32 0.0, %v320
  %v322 = vpop.f32.mrb[0].mxu0
  %v323 = vpop.f32.mrb[0].mxu0
  %v324 = vadd.f32 0.0, %v323
  %v325 = vpop.f32.mrb[0].mxu0
  %326 = vmatprep.mubr.bf16.mxu0 %v155
  %327 = vmatmul.mubr.bf16.gmra.mrb[0].mxu0 %v154
  %v328 = vpop.f32.mrb[0].mxu0
  %v329 = vadd.f32 0.0, %v328
  %v330 = vpop.f32.mrb[0].mxu0
  %v331 = vpop.f32.mrb[0].mxu0
  %v332 = vadd.f32 0.0, %v331
  %v333 = vpop.f32.mrb[0].mxu0
  %334 = vmatprep.mubr.bf16.mxu0 %v157
  %335 = vmatmul.mubr.bf16.gmra.mrb[0].mxu0 %v156
  %v336 = vpop.f32.mrb[0].mxu0
  %v337 = vadd.f32 0.0, %v336
  %v338 = vpop.f32.mrb[0].mxu0
  %v339 = vpop.f32.mrb[0].mxu0
  %v340 = vadd.f32 0.0, %v339
  %v341 = vpop.f32.mrb[0].mxu0
  %342 = vmatprep.mubr.bf16.mxu0 %v159
  %343 = vmatmul.mubr.bf16.gmra.mrb[0].mxu0 %v158
  %v344 = vpop.f32.mrb[0].mxu0
  %v345 = vadd.f32 0.0, %v344
  %v346 = vpop.f32.mrb[0].mxu0
  %v347 = vpop.f32.mrb[0].mxu0
  %v348 = vadd.f32 0.0, %v347
  %v349 = vpop.f32.mrb[0].mxu0
  %350 = vmatprep.mubr.bf16.mxu0 %v161
  %351 = vmatmul.mubr.bf16.gmra.mrb[0].mxu0 %v160
  %v352 = vpop.f32.mrb[0].mxu0
  %v353 = vadd.f32 0.0, %v352
  %v354 = vpop.f32.mrb[0].mxu0
  %v355 = vpop.f32.mrb[0].mxu0
  %v356 = vadd.f32 0.0, %v355
  %v357 = vpop.f32.mrb[0].mxu0
  %358 = vmatprep.mubr.bf16.mxu0 %v163
  %359 = vmatmul.mubr.bf16.gmra.mrb[0].mxu0 %v162
  %v360 = vpop.f32.mrb[0].mxu0
  %v361 = vadd.f32 0.0, %v360
  %v362 = vpop.f32.mrb[0].mxu0
  %v363 = vpop.f32.mrb[0].mxu0
  %v364 = vadd.f32 0.0, %v363
  %v365 = vpop.f32.mrb[0].mxu0
  %366 = vmatprep.mubr.bf16.mxu0 %v165
  %367 = vmatmul.mubr.bf16.gmra.mrb[0].mxu0 %v164
  %v368 = vpop.f32.mrb[0].mxu0
  %v369 = vadd.f32 0.0, %v368
  %v370 = vpop.f32.mrb[0].mxu0
  %v371 = vpop.f32.mrb[0].mxu0
  %v372 = vadd.f32 0.0, %v371
  %v373 = vpop.f32.mrb[0].mxu0
  %374 = vdwg.mxu0
  %v375 = vadd.f32 %v38, %v313
  %v376 = vadd.f32 %v39, %v316
  %v377 = vadd.f32 %v40, %v321
  %v378 = vadd.f32 %v41, %v324
  %v379 = vadd.f32 %v42, %v329
  %v380 = vadd.f32 %v43, %v332
  %v381 = vadd.f32 %v44, %v337
  %v382 = vadd.f32 %v45, %v340
  %v383 = vadd.f32 %v46, %v345
  %v384 = vadd.f32 %v47, %v348
  %v385 = vadd.f32 %v48, %v353
  %v386 = vadd.f32 %v49, %v356
  %v387 = vadd.f32 %v50, %v361
  %v388 = vadd.f32 %v51, %v364
  %v389 = vadd.f32 %v52, %v369
  %v390 = vadd.f32 %v53, %v372
  %391 = vst [vmem:[#allocation2] sm:$0xff] %v375
  %392 = vst [vmem:[#allocation2 + $0x8] sm:$0xff] %v376
  %393 = vst [vmem:[#allocation2 + $0x10] sm:$0xff] %v377
  %394 = vst [vmem:[#allocation2 + $0x18] sm:$0xff] %v378
  %395 = vst [vmem:[#allocation2 + $0x20] sm:$0xff] %v379
  %396 = vst [vmem:[#allocation2 + $0x28] sm:$0xff] %v380
  %397 = vst [vmem:[#allocation2 + $0x30] sm:$0xff] %v381
  %398 = vst [vmem:[#allocation2 + $0x38] sm:$0xff] %v382
  %399 = vst [vmem:[#allocation2 + $0x40] sm:$0xff] %v383
  %400 = vst [vmem:[#allocation2 + $0x48] sm:$0xff] %v384
  %401 = vst [vmem:[#allocation2 + $0x50] sm:$0xff] %v385
  %402 = vst [vmem:[#allocation2 + $0x58] sm:$0xff] %v386
  %403 = vst [vmem:[#allocation2 + $0x60] sm:$0xff] %v387
  %404 = vst [vmem:[#allocation2 + $0x68] sm:$0xff] %v388
  %405 = vst [vmem:[#allocation2 + $0x70] sm:$0xff] %v389
  %406 = vst [vmem:[#allocation2 + $0x78] sm:$0xff] %v390
  // Predicated region
  $region22: #{_lambda_.13} parent=0 // pred_check
    %p407 = pneg %p18
  $region23: #{_lambda_.13} parent=0 // pred_check_branch
    %409 = sbr.rel (%p407) target = $region25
  $region24: #{_lambda_.13} parent=0 // pred_region
    %v410 = vld [vmem:[#allocation2] sm:$0xff]
    %v411 = vld [vmem:[#allocation2 + $0x8] sm:$0xff]
    %v412 = vld [vmem:[#allocation2 + $0x10] sm:$0xff]
    %v413 = vld [vmem:[#allocation2 + $0x18] sm:$0xff]
    %v414 = vld [vmem:[#allocation2 + $0x20] sm:$0xff]
    %v415 = vld [vmem:[#allocation2 + $0x28] sm:$0xff]
    %v416 = vld [vmem:[#allocation2 + $0x30] sm:$0xff]
    %v417 = vld [vmem:[#allocation2 + $0x38] sm:$0xff]
    %v418 = vld [vmem:[#allocation2 + $0x40] sm:$0xff]
    %v419 = vld [vmem:[#allocation2 + $0x48] sm:$0xff]
    %v420 = vld [vmem:[#allocation2 + $0x50] sm:$0xff]
    %v421 = vld [vmem:[#allocation2 + $0x58] sm:$0xff]
    %v422 = vld [vmem:[#allocation2 + $0x60] sm:$0xff]
    %v423 = vld [vmem:[#allocation2 + $0x68] sm:$0xff]
    %v424 = vld [vmem:[#allocation2 + $0x70] sm:$0xff]
    %v425 = vld [vmem:[#allocation2 + $0x78] sm:$0xff]
    %v426 = vld [vmem:[%s2] sm:$0x1]
    %v428 = vlaneseq
    %v429 = vshrl.u32 %v428, 7
    %v430 = vsub.s32 0, %v429
    %v431 = vrot.slane %v426, %v430
    %v433 = vmul.f32 %v410, %v431
    %v434 = vmul.f32 %v411, %v431
    %v435 = vmul.f32 %v412, %v431
    %v436 = vmul.f32 %v413, %v431
    %v437 = vmul.f32 %v414, %v431
    %v438 = vmul.f32 %v415, %v431
    %v439 = vmul.f32 %v416, %v431
    %v440 = vmul.f32 %v417, %v431
    %v441 = vmul.f32 %v418, %v431
    %v442 = vmul.f32 %v419, %v431
    %v443 = vmul.f32 %v420, %v431
    %v444 = vmul.f32 %v421, %v431
    %v445 = vmul.f32 %v422, %v431
    %v446 = vmul.f32 %v423, %v431
    %v447 = vmul.f32 %v424, %v431
    %v448 = vmul.f32 %v425, %v431
    %v449 = vld [vmem:[%s3] sm:$0x1]
    %v451 = vlaneseq
    %v452 = vshrl.u32 %v451, 7
    %v453 = vsub.s32 0, %v452
    %v454 = vrot.slane %v449, %v453
    %v456 = vadd.f32 %v433, %v454
    %v457 = vadd.f32 %v434, %v454
    %v458 = vadd.f32 %v435, %v454
    %v459 = vadd.f32 %v436, %v454
    %v460 = vadd.f32 %v437, %v454
    %v461 = vadd.f32 %v438, %v454
    %v462 = vadd.f32 %v439, %v454
    %v463 = vadd.f32 %v440, %v454
    %v464 = vadd.f32 %v441, %v454
    %v465 = vadd.f32 %v442, %v454
    %v466 = vadd.f32 %v443, %v454
    %v467 = vadd.f32 %v444, %v454
    %v468 = vadd.f32 %v445, %v454
    %v469 = vadd.f32 %v446, %v454
    %v470 = vadd.f32 %v447, %v454
    %v471 = vadd.f32 %v448, %v454
    %v472 = vmax.f32 %v456, 0.0
    %v473 = vmax.f32 %v457, 0.0
    %v474 = vmax.f32 %v458, 0.0
    %v475 = vmax.f32 %v459, 0.0
    %v476 = vmax.f32 %v460, 0.0
    %v477 = vmax.f32 %v461, 0.0
    %v478 = vmax.f32 %v462, 0.0
    %v479 = vmax.f32 %v463, 0.0
    %v480 = vmax.f32 %v464, 0.0
    %v481 = vmax.f32 %v465, 0.0
    %v482 = vmax.f32 %v466, 0.0
    %v483 = vmax.f32 %v467, 0.0
    %v484 = vmax.f32 %v468, 0.0
    %v485 = vmax.f32 %v469, 0.0
    %v486 = vmax.f32 %v470, 0.0
    %v487 = vmax.f32 %v471, 0.0
    %v488 = vpack.c.bf16 %v473, %v472
    %v489 = vpack.c.bf16 %v475, %v474
    %v490 = vpack.c.bf16 %v477, %v476
    %v491 = vpack.c.bf16 %v479, %v478
    %v492 = vpack.c.bf16 %v481, %v480
    %v493 = vpack.c.bf16 %v483, %v482
    %v494 = vpack.c.bf16 %v485, %v484
    %v495 = vpack.c.bf16 %v487, %v486
    %v504 = vunpack.c.l.b16 %v488
    %v505 = vunpack.c.h.b16 %v488
    %v506 = vunpack.c.l.b16 %v489
    %v507 = vunpack.c.h.b16 %v489
    %v508 = vunpack.c.l.b16 %v490
    %v509 = vunpack.c.h.b16 %v490
    %v510 = vunpack.c.l.b16 %v491
    %v511 = vunpack.c.h.b16 %v491
    %v512 = vunpack.c.l.b16 %v492
    %v513 = vunpack.c.h.b16 %v492
    %v514 = vunpack.c.l.b16 %v493
    %v515 = vunpack.c.h.b16 %v493
    %v516 = vunpack.c.l.b16 %v494
    %v517 = vunpack.c.h.b16 %v494
    %v518 = vunpack.c.l.b16 %v495
    %v519 = vunpack.c.h.b16 %v495
    %v520 = vpack.c.b16 %v504, %v504
    %v521 = vpack.c.b16 %v505, %v505
    %v522 = vpack.c.b16 %v506, %v506
    %v523 = vpack.c.b16 %v507, %v507
    %v524 = vpack.c.b16 %v508, %v508
    %v525 = vpack.c.b16 %v509, %v509
    %v526 = vpack.c.b16 %v510, %v510
    %v527 = vpack.c.b16 %v511, %v511
    %v528 = vpack.c.b16 %v512, %v512
    %v529 = vpack.c.b16 %v513, %v513
    %v530 = vpack.c.b16 %v514, %v514
    %v531 = vpack.c.b16 %v515, %v515
    %v532 = vpack.c.b16 %v516, %v516
    %v533 = vpack.c.b16 %v517, %v517
    %v534 = vpack.c.b16 %v518, %v518
    %v535 = vpack.c.b16 %v519, %v519
    %552 = vst [vmem:[%s4] sm:$0xf] %v520
    %553 = vst [vmem:[%s4 + $0x4] sm:$0xf] %v521
    %554 = vst [vmem:[%s4 + $0x8] sm:$0xf] %v522
    %555 = vst [vmem:[%s4 + $0xc] sm:$0xf] %v523
    %556 = vst [vmem:[%s4 + $0x10] sm:$0xf] %v524
    %557 = vst [vmem:[%s4 + $0x14] sm:$0xf] %v525
    %558 = vst [vmem:[%s4 + $0x18] sm:$0xf] %v526
    %559 = vst [vmem:[%s4 + $0x1c] sm:$0xf] %v527
    %560 = vst [vmem:[%s4 + $0x20] sm:$0xf] %v528
    %561 = vst [vmem:[%s4 + $0x24] sm:$0xf] %v529
    %562 = vst [vmem:[%s4 + $0x28] sm:$0xf] %v530
    %563 = vst [vmem:[%s4 + $0x2c] sm:$0xf] %v531
    %564 = vst [vmem:[%s4 + $0x30] sm:$0xf] %v532
    %565 = vst [vmem:[%s4 + $0x34] sm:$0xf] %v533
    %566 = vst [vmem:[%s4 + $0x38] sm:$0xf] %v534
    %567 = vst [vmem:[%s4 + $0x3c] sm:$0xf] %v535
  $region25: #{_lambda_.13} parent=0 // pred_fallthru
    _
  // Predicated region
  $region26: #{_lambda_.13} parent=0 // pred_check
    _
  $region27: #{_lambda_.13} parent=0 // pred_check_branch
    %569 = sbr.rel (0) target = $region29
  $region28: #{_lambda_.13} parent=0 // pred_region
    _
  $region29: #{_lambda_.13} parent=0 // pred_fallthru
    _
  // Predicated region
  $region30: #{_lambda_.13} parent=0 // pred_check
    _
  $region31: #{_lambda_.13} parent=0 // pred_check_branch
    %571 = sbr.rel (0) target = $region33
  $region32: #{_lambda_.13} parent=0 // pred_region
    _
  $region33: #{_lambda_.13} parent=0 // pred_fallthru
    _

// kernel: _lambda_.18
$region0: #{_lambda_.18}
  #allocation0 [shape = 'u32[]', space=smem, size = 0x4, offset = 0x4, fixed_abs, tag = 'smem constant byte address 0x4 - core index']
  #allocation1 [shape = 'u32[144,128]{1,0:T(1,128)}', space=vmem, size = 0x12000, scoped, tag = 'internal scratch']
  #allocation2 [shape = 'f32[16,128]{1,0:T(8,128)}', space=vmem, size = 0x2000, scoped, tag = 'scratch operand']
  %s0 = inlined_call_operand.vmem [shape: bf16[16,128], index: 0, kind: input, shape index: {}]
  %s1 = inlined_call_operand.vmem [shape: bf16[128,128], index: 1, kind: input, shape index: {}]
  %s2 = inlined_call_operand.vmem [shape: f32[1,128], index: 2, kind: input, shape index: {}]
  %s3 = inlined_call_operand.vmem [shape: f32[1,128], index: 3, kind: input, shape index: {}]
  %s4 = inlined_call_operand.vmem [shape: bf16[16,128], index: 4, kind: output, shape index: {}]
  %s5 = sld [smem:[#allocation0]]
  $region34: #{_lambda_.18} parent=0
    _
  %s7 = ssub.s32 1, %s5
  %s8 = scalar_select 0, %s7, %s5
  // Predicated region
  $region2: #{_lambda_.18} parent=0 // pred_check
    _
  $region3: #{_lambda_.18} parent=0 // pred_check_branch
    %10 = sbr.rel (0) target = $region5
  $region4: #{_lambda_.18} parent=0 // pred_region
    _
  $region5: #{_lambda_.18} parent=0 // pred_fallthru
    _
  // Predicated region
  $region6: #{_lambda_.18} parent=0 // pred_check
    _
  $region7: #{_lambda_.18} parent=0 // pred_check_branch
    %12 = sbr.rel (0) target = $region9
  $region8: #{_lambda_.18} parent=0 // pred_region
    _
  $region9: #{_lambda_.18} parent=0 // pred_fallthru
    _
  // Predicated region
  $region10: #{_lambda_.18} parent=0 // pred_check
    _
  $region11: #{_lambda_.18} parent=0 // pred_check_branch
    %14 = sbr.rel (0) target = $region13
  $region12: #{_lambda_.18} parent=0 // pred_region
    _
  $region13: #{_lambda_.18} parent=0 // pred_fallthru
    _
  // Predicated region
  $region14: #{_lambda_.18} parent=0 // pred_check
    _
  $region15: #{_lambda_.18} parent=0 // pred_check_branch
    %16 = sbr.rel (0) target = $region17
  $region16: #{_lambda_.18} parent=0 // pred_region
    _
  $region17: #{_lambda_.18} parent=0 // pred_fallthru
    _
  %p18 = scmp.eq.s32.totalorder 0, 0
  // Predicated region
  $region18: #{_lambda_.18} parent=0 // pred_check
    %p19 = pneg %p18
  $region19: #{_lambda_.18} parent=0 // pred_check_branch
    %21 = sbr.rel (%p19) target = $region21
  $region20: #{_lambda_.18} parent=0 // pred_region
    %22 = vst [vmem:[#allocation2] sm:$0xff] 0.0
    %23 = vst [vmem:[#allocation2 + $0x8] sm:$0xff] 0.0
  $region21: #{_lambda_.18} parent=0 // pred_fallthru
    _
  %v24 = vld [vmem:[#allocation2] sm:$0xff]
  %v25 = vld [vmem:[#allocation2 + $0x8] sm:$0xff]
  %v26 = vld [vmem:[%s0] sm:$0xf]
  %v27 = vld [vmem:[%s0 + $0x4] sm:$0xf]
  %v28 = vld [vmem:[%s1] sm:$0xf]
  %v29 = vld [vmem:[%s1 + $0x4] sm:$0xf]
  %v30 = vld [vmem:[%s1 + $0x8] sm:$0xf]
  %v31 = vld [vmem:[%s1 + $0xc] sm:$0xf]
  %v32 = vld [vmem:[%s1 + $0x10] sm:$0xf]
  %v33 = vld [vmem:[%s1 + $0x14] sm:$0xf]
  %v34 = vld [vmem:[%s1 + $0x18] sm:$0xf]
  %v35 = vld [vmem:[%s1 + $0x1c] sm:$0xf]
  %v36 = vld [vmem:[%s1 + $0x20] sm:$0xf]
  %v37 = vld [vmem:[%s1 + $0x24] sm:$0xf]
  %v38 = vld [vmem:[%s1 + $0x28] sm:$0xf]
  %v39 = vld [vmem:[%s1 + $0x2c] sm:$0xf]
  %v40 = vld [vmem:[%s1 + $0x30] sm:$0xf]
  %v41 = vld [vmem:[%s1 + $0x34] sm:$0xf]
  %v42 = vld [vmem:[%s1 + $0x38] sm:$0xf]
  %v43 = vld [vmem:[%s1 + $0x3c] sm:$0xf]
  %v46 = vunpack.c.l.b16 %v26
  %v47 = vunpack.c.l.b16 %v27
  %v48 = vpack.c.b16 %v47, %v46
  %v66 = vunpack.c.l.b16 %v28
  %v67 = vunpack.c.l.b16 %v29
  %v68 = vunpack.c.l.b16 %v30
  %v69 = vunpack.c.l.b16 %v31
  %v70 = vunpack.c.l.b16 %v32
  %v71 = vunpack.c.l.b16 %v33
  %v72 = vunpack.c.l.b16 %v34
  %v73 = vunpack.c.l.b16 %v35
  %v74 = vunpack.c.l.b16 %v36
  %v75 = vunpack.c.l.b16 %v37
  %v76 = vunpack.c.l.b16 %v38
  %v77 = vunpack.c.l.b16 %v39
  %v78 = vunpack.c.l.b16 %v40
  %v79 = vunpack.c.l.b16 %v41
  %v80 = vunpack.c.l.b16 %v42
  %v81 = vunpack.c.l.b16 %v43
  %v82 = vpack.c.b16 %v67, %v66
  %v83 = vpack.c.b16 %v69, %v68
  %v84 = vpack.c.b16 %v71, %v70
  %v85 = vpack.c.b16 %v73, %v72
  %v86 = vpack.c.b16 %v75, %v74
  %v87 = vpack.c.b16 %v77, %v76
  %v88 = vpack.c.b16 %v79, %v78
  %v89 = vpack.c.b16 %v81, %v80
  %98 = vmatprep.subr.bf16.mxu0 0
  %99 = vmatpush1.bf16.msra.mxu0 %v82
  %100 = vmatprep.subr.bf16.mxu0 0
  %101 = vmatpush1.bf16.msra.mxu0 %v83
  %102 = vmatprep.subr.bf16.mxu0 0
  %103 = vmatpush1.bf16.msra.mxu0 %v84
  %104 = vmatprep.subr.bf16.mxu0 0
  %105 = vmatpush1.bf16.msra.mxu0 %v85
  %106 = vmatprep.subr.bf16.mxu0 0
  %107 = vmatpush1.bf16.msra.mxu0 %v86
  %108 = vmatprep.subr.bf16.mxu0 0
  %109 = vmatpush1.bf16.msra.mxu0 %v87
  %110 = vmatprep.subr.bf16.mxu0 0
  %111 = vmatpush1.bf16.msra.mxu0 %v88
  %112 = vmatprep.subr.bf16.mxu0 0
  %113 = vmatpush1.bf16.msra.mxu0 %v89
  %114 = vmatprep.subr.bf16.mxu0 0
  %115 = vmatpush1.bf16.msra.mxu0 0
  %116 = vmatprep.subr.bf16.mxu0 0
  %117 = vmatpush1.bf16.msra.mxu0 0
  %118 = vmatprep.subr.bf16.mxu0 0
  %119 = vmatpush1.bf16.msra.mxu0 0
  %120 = vmatprep.subr.bf16.mxu0 0
  %121 = vmatpush1.bf16.msra.mxu0 0
  %122 = vmatprep.subr.bf16.mxu0 0
  %123 = vmatpush1.bf16.msra.mxu0 0
  %124 = vmatprep.subr.bf16.mxu0 0
  %125 = vmatpush1.bf16.msra.mxu0 0
  %126 = vmatprep.subr.bf16.mxu0 0
  %127 = vmatpush1.bf16.msra.mxu0 0
  %128 = vmatprep.subr.bf16.mxu0 0
  %129 = vmatpush1.bf16.msra.mxu0 0
  %130 = vmatprep.mubr.bf16.mxu0 0
  %131 = vmatmul.mubr.bf16.gmra.mrb[0].mxu0 %v48
  %v132 = vpop.f32.mrb[0].mxu0
  %v133 = vadd.f32 0.0, %v132
  %v134 = vpop.f32.mrb[0].mxu0
  %v135 = vpop.f32.mrb[0].mxu0
  %v136 = vadd.f32 0.0, %v135
  %v137 = vpop.f32.mrb[0].mxu0
  %138 = vdwg.mxu0
  %v139 = vadd.f32 %v24, %v133
  %v140 = vadd.f32 %v25, %v136
  %141 = vst [vmem:[#allocation2] sm:$0xff] %v139
  %142 = vst [vmem:[#allocation2 + $0x8] sm:$0xff] %v140
  // Predicated region
  $region22: #{_lambda_.18} parent=0 // pred_check
    %p143 = pneg %p18
  $region23: #{_lambda_.18} parent=0 // pred_check_branch
    %145 = sbr.rel (%p143) target = $region25
  $region24: #{_lambda_.18} parent=0 // pred_region
    %v146 = vld [vmem:[#allocation2] sm:$0xff]
    %v147 = vld [vmem:[#allocation2 + $0x8] sm:$0xff]
    %v148 = vld [vmem:[%s2] sm:$0x1]
    %v150 = vlaneseq
    %v151 = vshrl.u32 %v150, 7
    %v152 = vsub.s32 0, %v151
    %v153 = vrot.slane %v148, %v152
    %v155 = vmul.f32 %v146, %v153
    %v156 = vmul.f32 %v147, %v153
    %v157 = vld [vmem:[%s3] sm:$0x1]
    %v159 = vlaneseq
    %v160 = vshrl.u32 %v159, 7
    %v161 = vsub.s32 0, %v160
    %v162 = vrot.slane %v157, %v161
    %v164 = vadd.f32 %v155, %v162
    %v165 = vadd.f32 %v156, %v162
    %v166 = vpack.c.bf16 %v165, %v164
    %v168 = vunpack.c.l.b16 %v166
    %v169 = vunpack.c.h.b16 %v166
    %v170 = vpack.c.b16 %v168, %v168
    %v171 = vpack.c.b16 %v169, %v169
    %174 = vst [vmem:[%s4] sm:$0xf] %v170
    %175 = vst [vmem:[%s4 + $0x4] sm:$0xf] %v171
  $region25: #{_lambda_.18} parent=0 // pred_fallthru
    _
  // Predicated region
  $region26: #{_lambda_.18} parent=0 // pred_check
    _
  $region27: #{_lambda_.18} parent=0 // pred_check_branch
    %177 = sbr.rel (0) target = $region29
  $region28: #{_lambda_.18} parent=0 // pred_region
    _
  $region29: #{_lambda_.18} parent=0 // pred_fallthru
    _
  // Predicated region
  $region30: #{_lambda_.18} parent=0 // pred_check
    _
  $region31: #{_lambda_.18} parent=0 // pred_check_branch
    %179 = sbr.rel (0) target = $region33
  $region32: #{_lambda_.18} parent=0 // pred_region
    _
  $region33: #{_lambda_.18} parent=0 // pred_fallthru
    _

// kernel: _lambda_.16
$region0: #{_lambda_.16}
  #allocation0 [shape = 'u32[]', space=smem, size = 0x4, offset = 0x4, fixed_abs, tag = 'smem constant byte address 0x4 - core index']
  #allocation1 [shape = 'u32[144,128]{1,0:T(1,128)}', space=vmem, size = 0x12000, scoped, tag = 'internal scratch']
  #allocation2 [shape = 'f32[32,128]{1,0:T(8,128)}', space=vmem, size = 0x4000, scoped, tag = 'scratch operand']
  %s0 = inlined_call_operand.vmem [shape: bf16[32,640], index: 0, kind: input, shape index: {}]
  %s1 = inlined_call_operand.vmem [shape: bf16[640,128], index: 1, kind: input, shape index: {}]
  %s2 = inlined_call_operand.vmem [shape: f32[1,128], index: 2, kind: input, shape index: {}]
  %s3 = inlined_call_operand.vmem [shape: f32[1,128], index: 3, kind: input, shape index: {}]
  %s4 = inlined_call_operand.vmem [shape: bf16[32,128], index: 4, kind: input, shape index: {}]
  %s5 = inlined_call_operand.vmem [shape: bf16[32,128], index: 5, kind: output, shape index: {}]
  %s6 = sld [smem:[#allocation0]]
  $region102: #{_lambda_.16} parent=0
    _
  %s8 = ssub.s32 1, %s6
  %s9 = scalar_select 0, %s8, %s6
  $region1: #{_lambda_.16} parent=0
    #allocation3 [shape = 'u8[16384]{0}', space=vmem, size = 0x4000, scoped, tag = 'input window, operand 0']
    loop: start=0, step=1, limit=7
    $region2: #{_lambda_.16} parent=1 // loop_pre_header
      _
    $region3: #{_lambda_.16} parent=1 // loop_header
      %s11 = sphi 0, %s15
      %p12 = scmp.ge.s32.totalorder %s11, 7
      %s18 = sphi 0, %s37
      %s19 = sphi 0, %s33
      %s20 = sphi 0, %s29
      %s21 = sphi 0, %s18
      %s22 = sphi 0, %s19
      %s23 = sphi 0, %s20
      %s24 = sphi 0, %s21
      %s25 = sphi 0, %s22
      %s26 = sphi 0, %s23
      %s42 = sphi 0, %s44
      %s45 = sphi 0, %s42
      %s46 = sphi 0, %s45
      %s62 = sphi 0, %s46
      %s70 = sphi 0, %s72
      %s73 = sphi 0, %s70
      %s74 = sphi 0, %s73
      %s90 = sphi 0, %s74
      %s96 = sphi 0, %s98
      %s99 = sphi 0, %s96
      %s100 = sphi 0, %s99
      %s116 = sphi 0, %s100
      %s122 = sphi 0, %s124
      %s125 = sphi 0, %s122
      %s126 = sphi 0, %s125
      %s142 = sphi 0, %s126
      %s150 = sphi 0, %s152
      %s153 = sphi 0, %s150
      %s154 = sphi 0, %s153
      %s170 = sphi 0, %s154
      %s178 = sphi 0, %s180
      %s181 = sphi 0, %s178
      %s182 = sphi 0, %s181
      %s198 = sphi 0, %s182
    $region4: #{_lambda_.16} parent=1 // loop_header_branch
      %14 = sbr.rel (%p12) target = $region8
    $region5: #{_lambda_.16} parent=1 // loop_body
      %s16 = ssub.s32 %s11, 1
      %s17 = ssub.s32 %s11, 2
      %s27 = sadd.s32 1, %s20
      %p28 = scmp.ge.s32.totalorder %s27, 5
      %s29 = scalar_select %p28, 0, %s27
      %s30 = sadd.s32 1, %s19
      %s31 = scalar_select %p28, %s30, %s19
      %p32 = scmp.ge.s32.totalorder %s31, 1
      %s33 = scalar_select %p32, 0, %s31
      %s34 = sadd.s32 1, %s18
      %s35 = scalar_select %p32, %s34, %s18
      %p36 = scmp.ge.s32.totalorder %s35, 1
      %s37 = scalar_select %p36, 0, %s35
      %s38 = ssub.s32 %s18, %s37
      %s39 = ssub.s32 %s20, %s29
      %s40 = sor.u32 %s38, %s39
      %p41 = scmp.eq.s32.totalorder %s40, 0
      %s43 = sadd.s32 %s42, 1
      %s44 = scalar_select %p41, %s42, %s43
      %p47 = pneg %p41
      %p48 = scmp.eq.s32.totalorder %s11, 4
      %p49 = por %p47, %p48
      %p50 = scmp.ne.s32.totalorder %s42, %s45
      %p51 = scmp.eq.s32.totalorder %s11, 0
      %p52 = por %p50, %p51
      %p53 = scmp.ne.s32.totalorder %s42, %s45
      %p54 = scmp.eq.s32.totalorder %s16, 4
      %p55 = por %p53, %p54
      %p56 = scmp.ne.s32.totalorder %s45, %s46
      %p57 = scmp.eq.s32.totalorder %s16, 0
      %p58 = por %p56, %p57
      %p59 = scmp.ne.s32.totalorder %s45, %s46
      %p60 = scmp.eq.s32.totalorder %s17, 4
      %p61 = por %p59, %p60
      %p63 = scmp.ne.s32.totalorder %s46, %s62
      %p64 = scmp.eq.s32.totalorder %s17, 0
      %p65 = por %p63, %p64
      %s66 = ssub.s32 %s20, %s29
      %s67 = ssub.s32 %s19, %s33
      %s68 = sor.u32 %s66, %s67
      %p69 = scmp.eq.s32.totalorder %s68, 0
      %s71 = sadd.s32 %s70, 1
      %s72 = scalar_select %p69, %s70, %s71
      %p75 = pneg %p69
      %p76 = scmp.eq.s32.totalorder %s11, 4
      %p77 = por %p75, %p76
      %p78 = scmp.ne.s32.totalorder %s70, %s73
      %p79 = scmp.eq.s32.totalorder %s11, 0
      %p80 = por %p78, %p79
      %p81 = scmp.ne.s32.totalorder %s70, %s73
      %p82 = scmp.eq.s32.totalorder %s16, 4
      %p83 = por %p81, %p82
      %p84 = scmp.ne.s32.totalorder %s73, %s74
      %p85 = scmp.eq.s32.totalorder %s16, 0
      %p86 = por %p84, %p85
      %p87 = scmp.ne.s32.totalorder %s73, %s74
      %p88 = scmp.eq.s32.totalorder %s17, 4
      %p89 = por %p87, %p88
      %p91 = scmp.ne.s32.totalorder %s74, %s90
      %p92 = scmp.eq.s32.totalorder %s17, 0
      %p93 = por %p91, %p92
      %s94 = ssub.s32 %s19, %s33
      %p95 = scmp.eq.s32.totalorder %s94, 0
      %s97 = sadd.s32 %s96, 1
      %s98 = scalar_select %p95, %s96, %s97
      %p101 = pneg %p95
      %p102 = scmp.eq.s32.totalorder %s11, 4
      %p103 = por %p101, %p102
      %p104 = scmp.ne.s32.totalorder %s96, %s99
      %p105 = scmp.eq.s32.totalorder %s11, 0
      %p106 = por %p104, %p105
      %p107 = scmp.ne.s32.totalorder %s96, %s99
      %p108 = scmp.eq.s32.totalorder %s16, 4
      %p109 = por %p107, %p108
      %p110 = scmp.ne.s32.totalorder %s99, %s100
      %p111 = scmp.eq.s32.totalorder %s16, 0
      %p112 = por %p110, %p111
      %p113 = scmp.ne.s32.totalorder %s99, %s100
      %p114 = scmp.eq.s32.totalorder %s17, 4
      %p115 = por %p113, %p114
      %p117 = scmp.ne.s32.totalorder %s100, %s116
      %p118 = scmp.eq.s32.totalorder %s17, 0
      %p119 = por %p117, %p118
      %s120 = ssub.s32 %s19, %s33
      %p121 = scmp.eq.s32.totalorder %s120, 0
      %s123 = sadd.s32 %s122, 1
      %s124 = scalar_select %p121, %s122, %s123
      %p127 = pneg %p121
      %p128 = scmp.eq.s32.totalorder %s11, 4
      %p129 = por %p127, %p128
      %p130 = scmp.ne.s32.totalorder %s122, %s125
      %p131 = scmp.eq.s32.totalorder %s11, 0
      %p132 = por %p130, %p131
      %p133 = scmp.ne.s32.totalorder %s122, %s125
      %p134 = scmp.eq.s32.totalorder %s16, 4
      %p135 = por %p133, %p134
      %p136 = scmp.ne.s32.totalorder %s125, %s126
      %p137 = scmp.eq.s32.totalorder %s16, 0
      %p138 = por %p136, %p137
      %p139 = scmp.ne.s32.totalorder %s125, %s126
      %p140 = scmp.eq.s32.totalorder %s17, 4
      %p141 = por %p139, %p140
      %p143 = scmp.ne.s32.totalorder %s126, %s142
      %p144 = scmp.eq.s32.totalorder %s17, 0
      %p145 = por %p143, %p144
      %s146 = ssub.s32 %s18, %s37
      %s147 = ssub.s32 %s19, %s33
      %s148 = sor.u32 %s146, %s147
      %p149 = scmp.eq.s32.totalorder %s148, 0
      %s151 = sadd.s32 %s150, 1
      %s152 = scalar_select %p149, %s150, %s151
      %p155 = pneg %p149
      %p156 = scmp.eq.s32.totalorder %s11, 4
      %p157 = por %p155, %p156
      %p158 = scmp.ne.s32.totalorder %s150, %s153
      %p159 = scmp.eq.s32.totalorder %s11, 0
      %p160 = por %p158, %p159
      %p161 = scmp.ne.s32.totalorder %s150, %s153
      %p162 = scmp.eq.s32.totalorder %s16, 4
      %p163 = por %p161, %p162
      %p164 = scmp.ne.s32.totalorder %s153, %s154
      %p165 = scmp.eq.s32.totalorder %s16, 0
      %p166 = por %p164, %p165
      %p167 = scmp.ne.s32.totalorder %s153, %s154
      %p168 = scmp.eq.s32.totalorder %s17, 4
      %p169 = por %p167, %p168
      %p171 = scmp.ne.s32.totalorder %s154, %s170
      %p172 = scmp.eq.s32.totalorder %s17, 0
      %p173 = por %p171, %p172
      %s174 = ssub.s32 %s18, %s37
      %s175 = ssub.s32 %s19, %s33
      %s176 = sor.u32 %s174, %s175
      %p177 = scmp.eq.s32.totalorder %s176, 0
      %s179 = sadd.s32 %s178, 1
      %s180 = scalar_select %p177, %s178, %s179
      %p183 = pneg %p177
      %p184 = scmp.eq.s32.totalorder %s11, 4
      %p185 = por %p183, %p184
      %p186 = scmp.ne.s32.totalorder %s178, %s181
      %p187 = scmp.eq.s32.totalorder %s11, 0
      %p188 = por %p186, %p187
      %p189 = scmp.ne.s32.totalorder %s178, %s181
      %p190 = scmp.eq.s32.totalorder %s16, 4
      %p191 = por %p189, %p190
      %p192 = scmp.ne.s32.totalorder %s181, %s182
      %p193 = scmp.eq.s32.totalorder %s16, 0
      %p194 = por %p192, %p193
      %p195 = scmp.ne.s32.totalorder %s181, %s182
      %p196 = scmp.eq.s32.totalorder %s17, 4
      %p197 = por %p195, %p196
      %p199 = scmp.ne.s32.totalorder %s182, %s198
      %p200 = scmp.eq.s32.totalorder %s17, 0
      %p201 = por %p199, %p200
      %p202 = scmp.le.s32.totalorder 1, %s11
      %p203 = scmp.lt.s32.totalorder %s11, 6
      %p204 = pnand %p202, %p203
      %p205 = pneg %p204
      // Predicated region
      $region9: #{_lambda_.16} parent=5 // pred_check
        _
      $region10: #{_lambda_.16} parent=5 // pred_check_branch
        %207 = sbr.rel (%p204) target = $region12
      $region11: #{_lambda_.16} parent=5 // pred_region
        %s208 = ssub.s32 %s11, 1
        // Predicated region
        $region13: #{_lambda_.16} parent=11 // pred_check
          %p209 = pneg %p112
        $region14: #{_lambda_.16} parent=11 // pred_check_branch
          %211 = sbr.rel (%p209) target = $region16
        $region15: #{_lambda_.16} parent=11 // pred_region
          %p212 = scmp.lt.s32.totalorder %s22, 0
          %s213 = scalar_select %p212, %s22, 0
          %s214 = scalar_lea.vmem %s2, %s213
        $region16: #{_lambda_.16} parent=11 // pred_fallthru
          _
        // Predicated region
        $region17: #{_lambda_.16} parent=11 // pred_check
          %p215 = pneg %p138
        $region18: #{_lambda_.16} parent=11 // pred_check_branch
          %217 = sbr.rel (%p215) target = $region20
        $region19: #{_lambda_.16} parent=11 // pred_region
          %p218 = scmp.lt.s32.totalorder %s22, 0
          %s219 = scalar_select %p218, %s22, 0
          %s220 = scalar_lea.vmem %s3, %s219
        $region20: #{_lambda_.16} parent=11 // pred_fallthru
          _
        // Predicated region
        $region21: #{_lambda_.16} parent=11 // pred_check
          %p221 = pneg %p166
        $region22: #{_lambda_.16} parent=11 // pred_check_branch
          %223 = sbr.rel (%p221) target = $region24
        $region23: #{_lambda_.16} parent=11 // pred_region
          %s224 = smul.u32 4, %s21
          %p225 = scmp.lt.s32.totalorder %s224, 3
          %s226 = scalar_select %p225, %s224, 3
          %p227 = scmp.lt.s32.totalorder %s22, 0
          %s228 = scalar_select %p227, %s22, 0
          %s229 = sadd.s32 %s228, %s226
          %s230 = smul.addr %s229, 4
          %s231 = scalar_lea.vmem %s4, %s230
          %s232 = smul.u32 4, %s21
        $region24: #{_lambda_.16} parent=11 // pred_fallthru
          _
      $region12: #{_lambda_.16} parent=5 // pred_fallthru
        _
      %p233 = scmp.lt.s32.totalorder %s11, 5
      // Predicated region
      $region25: #{_lambda_.16} parent=5 // pred_check
        %p234 = pneg %p233
      $region26: #{_lambda_.16} parent=5 // pred_check_branch
        %236 = sbr.rel (%p234) target = $region28
      $region27: #{_lambda_.16} parent=5 // pred_region
        // Predicated region
        $region29: #{_lambda_.16} parent=27 // pred_check
          %p237 = pneg %p52
        $region30: #{_lambda_.16} parent=27 // pred_check_branch
          %239 = sbr.rel (%p237) target = $region32
        $region31: #{_lambda_.16} parent=27 // pred_region
          %s240 = sand.u32 %s42, 1
          %s241 = sand.u32 %s42, 1
          %s242 = smul.addr %s241, 16
          %s243 = scalar_lea.vmem [#allocation3], %s242
          %s244 = smul.u32 4, %s18
          %s245 = smul.addr %s244, 5
          %s246 = sadd.s32 %s20, %s245
          %s247 = smul.addr %s246, 4
          %s248 = scalar_lea.vmem %s0, %s247
          // Predicated region
          $region33: #{_lambda_.16} parent=31 // pred_check
            _
          $region34: #{_lambda_.16} parent=31 // pred_check_branch
            %250 = sbr.rel (0) target = $region36
          $region35: #{_lambda_.16} parent=31 // pred_region
            // Predicated region
            $region37: #{_lambda_.16} parent=35 // pred_check
              _
            $region38: #{_lambda_.16} parent=35 // pred_check_branch
              %252 = sbr.rel target = $region40
            $region39: #{_lambda_.16} parent=35 // pred_region
              // Predicated region
              $region52: #{_lambda_.16} parent=39 // pred_check
                _
              $region53: #{_lambda_.16} parent=39 // pred_check_branch
                %273 = sbr.rel (0) target = $region55
              $region54: #{_lambda_.16} parent=39 // pred_region
                loop: start=0, step=1, limit=1
                $region56: #{_lambda_.16} parent=54 // loop_pre_header
                  _
                $region57: #{_lambda_.16} parent=54 // loop_header
                  %s275 = sphi 0, %s279
                  %p276 = scmp.ge.s32.totalorder %s275, 1
                  %s280 = sphi %s248, %s248
                  %s281 = sphi %s243, %s243
                $region58: #{_lambda_.16} parent=54 // loop_header_branch
                  %278 = sbr.rel (%p276) target = $region62
                $region59: #{_lambda_.16} parent=54 // loop_body
                  _
                $region60: #{_lambda_.16} parent=54 // loop_footer
                  %s279 = sadd.s32 1, %s275
                $region61: #{_lambda_.16} parent=54 // loop_footer_branch
                  %274 = sbr.rel target = $region57
                $region62: #{_lambda_.16} parent=54 // loop_exit
                  _
                loop: start=0, step=1, limit=1
                $region63: #{_lambda_.16} parent=54 // loop_pre_header
                  _
                $region64: #{_lambda_.16} parent=54 // loop_header
                  %s284 = sphi 0, %s288
                  %p285 = scmp.ge.s32.totalorder %s284, 1
                  %s289 = sphi %s248, %s248
                  %s290 = sphi %s243, %s243
                $region65: #{_lambda_.16} parent=54 // loop_header_branch
                  %287 = sbr.rel (%p285) target = $region69
                $region66: #{_lambda_.16} parent=54 // loop_body
                  %v291 = vld [vmem:[%s289] sm:$0xf]
                  %292 = vst [vmem:[%s290] sm:$0xf] %v291
                  %v293 = vld [vmem:[%s289 + $0x14] sm:$0xf]
                  %294 = vst [vmem:[%s290 + $0x4] sm:$0xf] %v293
                  %v295 = vld [vmem:[%s289 + $0x28] sm:$0xf]
                  %296 = vst [vmem:[%s290 + $0x8] sm:$0xf] %v295
                  %v297 = vld [vmem:[%s289 + $0x3c] sm:$0xf]
                  %298 = vst [vmem:[%s290 + $0xc] sm:$0xf] %v297
                $region67: #{_lambda_.16} parent=54 // loop_footer
                  %s288 = sadd.s32 1, %s284
                $region68: #{_lambda_.16} parent=54 // loop_footer_branch
                  %283 = sbr.rel target = $region64
                $region69: #{_lambda_.16} parent=54 // loop_exit
                  _
              $region55: #{_lambda_.16} parent=39 // pred_fallthru
                _
            $region40: #{_lambda_.16} parent=35 // pred_fallthru
              _
            // Predicated region
            $region41: #{_lambda_.16} parent=35 // pred_check
              _
            $region42: #{_lambda_.16} parent=35 // pred_check_branch
              %254 = sbr.rel (0) target = $region44
            $region43: #{_lambda_.16} parent=35 // pred_region
              loop: start=0, step=1, limit=1
              $region45: #{_lambda_.16} parent=43 // loop_pre_header
                _
              $region46: #{_lambda_.16} parent=43 // loop_header
                %s257 = sphi 0, %s261
                %p258 = scmp.ge.s32.totalorder %s257, 1
                %s262 = sphi %s248, %s248
                %s263 = sphi %s243, %s243
              $region47: #{_lambda_.16} parent=43 // loop_header_branch
                %260 = sbr.rel (%p258) target = $region51
              $region48: #{_lambda_.16} parent=43 // loop_body
                %v264 = vld [vmem:[%s262] sm:$0xf]
                %265 = vst [vmem:[%s263] sm:$0xf] %v264
                %v266 = vld [vmem:[%s262 + $0x14] sm:$0xf]
                %267 = vst [vmem:[%s263 + $0x4] sm:$0xf] %v266
                %v268 = vld [vmem:[%s262 + $0x28] sm:$0xf]
                %269 = vst [vmem:[%s263 + $0x8] sm:$0xf] %v268
                %v270 = vld [vmem:[%s262 + $0x3c] sm:$0xf]
                %271 = vst [vmem:[%s263 + $0xc] sm:$0xf] %v270
              $region49: #{_lambda_.16} parent=43 // loop_footer
                %s261 = sadd.s32 1, %s257
              $region50: #{_lambda_.16} parent=43 // loop_footer_branch
                %256 = sbr.rel target = $region46
              $region51: #{_lambda_.16} parent=43 // loop_exit
                _
            $region44: #{_lambda_.16} parent=35 // pred_fallthru
              _
          $region36: #{_lambda_.16} parent=31 // pred_fallthru
            _
          %299 = vnop
        $region32: #{_lambda_.16} parent=27 // pred_fallthru
          _
        // Predicated region
        $region70: #{_lambda_.16} parent=27 // pred_check
          %p300 = pneg %p80
        $region71: #{_lambda_.16} parent=27 // pred_check_branch
          %302 = sbr.rel (%p300) target = $region73
        $region72: #{_lambda_.16} parent=27 // pred_region
          %s303 = smul.u32 16, %s20
          %p304 = scmp.lt.s32.totalorder %s303, 79
          %s305 = scalar_select %p304, %s303, 79
          %p306 = scmp.lt.s32.totalorder %s19, 0
          %s307 = scalar_select %p306, %s19, 0
          %s308 = sadd.s32 %s307, %s305
          %s309 = smul.addr %s308, 4
          %s310 = scalar_lea.vmem %s1, %s309
          %s311 = smul.u32 16, %s20
        $region73: #{_lambda_.16} parent=27 // pred_fallthru
          _
      $region28: #{_lambda_.16} parent=5 // pred_fallthru
        _
      %p312 = scmp.le.s32.totalorder 1, %s11
      %p313 = scmp.lt.s32.totalorder %s11, 6
      %p314 = pnand %p312, %p313
      %p315 = pneg %p314
      // Predicated region
      $region74: #{_lambda_.16} parent=5 // pred_check
        _
      $region75: #{_lambda_.16} parent=5 // pred_check_branch
        %317 = sbr.rel (%p314) target = $region77
      $region76: #{_lambda_.16} parent=5 // pred_region
        %s318 = ssub.s32 %s11, 1
        %s319 = sand.u32 %s45, 1
        %s320 = sand.u32 %s45, 1
        %s321 = smul.addr %s320, 16
        %s322 = scalar_lea.vmem [#allocation3], %s321
        // Predicated region
        $region78: #{_lambda_.16} parent=76 // pred_check
          %p323 = pneg %p58
        $region79: #{_lambda_.16} parent=76 // pred_check_branch
          %325 = sbr.rel (%p323) target = $region81
        $region80: #{_lambda_.16} parent=76 // pred_region
          _
        $region81: #{_lambda_.16} parent=76 // pred_fallthru
          _
        %s326 = sand.u32 %s45, 1
        %s327 = sand.u32 %s45, 1
        %s328 = smul.addr %s327, 16
        %s329 = scalar_lea.vmem [#allocation3], %s328
        %p330 = pneg %p58
        %p331 = pneg %p55
        %s332 = smul.u32 16, %s23
        %p333 = scmp.lt.s32.totalorder %s332, 79
        %s334 = scalar_select %p333, %s332, 79
        %p335 = scmp.lt.s32.totalorder %s22, 0
        %s336 = scalar_select %p335, %s22, 0
        %s337 = sadd.s32 %s336, %s334
        %s338 = smul.addr %s337, 4
        %s339 = scalar_lea.vmem %s1, %s338
        %p340 = pneg %p86
        %p341 = pneg %p83
        %p342 = scmp.lt.s32.totalorder %s22, 0
        %s343 = scalar_select %p342, %s22, 0
        %s344 = scalar_lea.vmem %s2, %s343
        %p345 = pneg %p112
        %p346 = pneg %p109
        %p347 = scmp.lt.s32.totalorder %s22, 0
        %s348 = scalar_select %p347, %s22, 0
        %s349 = scalar_lea.vmem %s3, %s348
        %p350 = pneg %p138
        %p351 = pneg %p135
        %s352 = smul.u32 4, %s21
        %p353 = scmp.lt.s32.totalorder %s352, 3
        %s354 = scalar_select %p353, %s352, 3
        %p355 = scmp.lt.s32.totalorder %s22, 0
        %s356 = scalar_select %p355, %s22, 0
        %s357 = sadd.s32 %s356, %s354
        %s358 = smul.addr %s357, 4
        %s359 = scalar_lea.vmem %s4, %s358
        %p360 = pneg %p166
        %p361 = pneg %p163
        %p362 = pneg %p194
        %p363 = pneg %p191
        %s364 = smul.u32 4, %s21
        %p365 = scmp.lt.s32.totalorder %s364, 3
        %s366 = scalar_select %p365, %s364, 3
        %p367 = scmp.lt.s32.totalorder %s22, 0
        %s368 = scalar_select %p367, %s22, 0
        %s369 = sadd.s32 %s368, %s366
        %s370 = smul.addr %s369, 4
        %s371 = scalar_lea.vmem %s5, %s370
        %s372 = smul.u32 4, %s21
        %s373 = smul.u32 16, %s23
        %p374 = scmp.lt.s32.totalorder %s373, 79
        %s375 = scalar_select %p374, %s373, 79
        %p376 = scmp.lt.s32.totalorder %s22, 0
        %s377 = scalar_select %p376, %s22, 0
        %s378 = sadd.s32 %s377, %s375
        %s379 = smul.addr %s378, 4
        %s380 = scalar_lea.vmem %s1, %s379
        %s381 = smul.u32 16, %s23
        %p382 = scmp.lt.s32.totalorder %s22, 0
        %s383 = scalar_select %p382, %s22, 0
        %s384 = scalar_lea.vmem %s2, %s383
        %p385 = scmp.lt.s32.totalorder %s22, 0
        %s386 = scalar_select %p385, %s22, 0
        %s387 = scalar_lea.vmem %s3, %s386
        %s388 = smul.u32 4, %s21
        %p389 = scmp.lt.s32.totalorder %s388, 3
        %s390 = scalar_select %p389, %s388, 3
        %p391 = scmp.lt.s32.totalorder %s22, 0
        %s392 = scalar_select %p391, %s22, 0
        %s393 = sadd.s32 %s392, %s390
        %s394 = smul.addr %s393, 4
        %s395 = scalar_lea.vmem %s4, %s394
        %s396 = smul.u32 4, %s21
        %s397 = smul.u32 4, %s21
        %p398 = scmp.lt.s32.totalorder %s397, 3
        %s399 = scalar_select %p398, %s397, 3
        %p400 = scmp.lt.s32.totalorder %s22, 0
        %s401 = scalar_select %p400, %s22, 0
        %s402 = sadd.s32 %s401, %s399
        %s403 = smul.addr %s402, 4
        %s404 = scalar_lea.vmem %s5, %s403
        %s405 = smul.u32 4, %s21
        %p407 = scmp.eq.s32.totalorder %s23, 0
        // Predicated region
        $region82: #{_lambda_.16} parent=76 // pred_check
          %p408 = pneg %p407
        $region83: #{_lambda_.16} parent=76 // pred_check_branch
          %410 = sbr.rel (%p408) target = $region85
        $region84: #{_lambda_.16} parent=76 // pred_region
          %411 = vst [vmem:[#allocation2] sm:$0xff] 0.0
          %412 = vst [vmem:[#allocation2 + $0x8] sm:$0xff] 0.0
          %413 = vst [vmem:[#allocation2 + $0x10] sm:$0xff] 0.0
          %414 = vst [vmem:[#allocation2 + $0x18] sm:$0xff] 0.0
        $region85: #{_lambda_.16} parent=76 // pred_fallthru
          _
        %v415 = vld [vmem:[#allocation2] sm:$0xff]
        %v416 = vld [vmem:[#allocation2 + $0x8] sm:$0xff]
        %v417 = vld [vmem:[#allocation2 + $0x10] sm:$0xff]
        %v418 = vld [vmem:[#allocation2 + $0x18] sm:$0xff]
        %v419 = vld [vmem:[%s322] sm:$0xf]
        %v420 = vld [vmem:[%s322 + $0x4] sm:$0xf]
        %v421 = vld [vmem:[%s322 + $0x8] sm:$0xf]
        %v422 = vld [vmem:[%s322 + $0xc] sm:$0xf]
        %v423 = vld [vmem:[%s380] sm:$0xf]
        %v424 = vld [vmem:[%s380 + $0x4] sm:$0xf]
        %v425 = vld [vmem:[%s380 + $0x8] sm:$0xf]
        %v426 = vld [vmem:[%s380 + $0xc] sm:$0xf]
        %v427 = vld [vmem:[%s380 + $0x10] sm:$0xf]
        %v428 = vld [vmem:[%s380 + $0x14] sm:$0xf]
        %v429 = vld [vmem:[%s380 + $0x18] sm:$0xf]
        %v430 = vld [vmem:[%s380 + $0x1c] sm:$0xf]
        %v431 = vld [vmem:[%s380 + $0x20] sm:$0xf]
        %v432 = vld [vmem:[%s380 + $0x24] sm:$0xf]
        %v433 = vld [vmem:[%s380 + $0x28] sm:$0xf]
        %v434 = vld [vmem:[%s380 + $0x2c] sm:$0xf]
        %v435 = vld [vmem:[%s380 + $0x30] sm:$0xf]
        %v436 = vld [vmem:[%s380 + $0x34] sm:$0xf]
        %v437 = vld [vmem:[%s380 + $0x38] sm:$0xf]
        %v438 = vld [vmem:[%s380 + $0x3c] sm:$0xf]
        %v443 = vunpack.c.l.b16 %v419
        %v444 = vunpack.c.l.b16 %v420
        %v445 = vunpack.c.l.b16 %v421
        %v446 = vunpack.c.l.b16 %v422
        %v447 = vpack.c.b16 %v444, %v443
        %v448 = vpack.c.b16 %v446, %v445
        %v467 = vunpack.c.l.b16 %v423
        %v468 = vunpack.c.l.b16 %v424
        %v469 = vunpack.c.l.b16 %v425
        %v470 = vunpack.c.l.b16 %v426
        %v471 = vunpack.c.l.b16 %v427
        %v472 = vunpack.c.l.b16 %v428
        %v473 = vunpack.c.l.b16 %v429
        %v474 = vunpack.c.l.b16 %v430
        %v475 = vunpack.c.l.b16 %v431
        %v476 = vunpack.c.l.b16 %v432
        %v477 = vunpack.c.l.b16 %v433
        %v478 = vunpack.c.l.b16 %v434
        %v479 = vunpack.c.l.b16 %v435
        %v480 = vunpack.c.l.b16 %v436
        %v481 = vunpack.c.l.b16 %v437
        %v482 = vunpack.c.l.b16 %v438
        %v483 = vpack.c.b16 %v468, %v467
        %v484 = vpack.c.b16 %v470, %v469
        %v485 = vpack.c.b16 %v472, %v471
        %v486 = vpack.c.b16 %v474, %v473
        %v487 = vpack.c.b16 %v476, %v475
        %v488 = vpack.c.b16 %v478, %v477
        %v489 = vpack.c.b16 %v480, %v479
        %v490 = vpack.c.b16 %v482, %v481
        %499 = vmatprep.subr.bf16.mxu0 0
        %500 = vmatpush1.bf16.msra.mxu0 %v483
        %501 = vmatprep.subr.bf16.mxu0 0
        %502 = vmatpush1.bf16.msra.mxu0 %v484
        %503 = vmatprep.subr.bf16.mxu0 0
        %504 = vmatpush1.bf16.msra.mxu0 %v485
        %505 = vmatprep.subr.bf16.mxu0 0
        %506 = vmatpush1.bf16.msra.mxu0 %v486
        %507 = vmatprep.subr.bf16.mxu0 0
        %508 = vmatpush1.bf16.msra.mxu0 %v487
        %509 = vmatprep.subr.bf16.mxu0 0
        %510 = vmatpush1.bf16.msra.mxu0 %v488
        %511 = vmatprep.subr.bf16.mxu0 0
        %512 = vmatpush1.bf16.msra.mxu0 %v489
        %513 = vmatprep.subr.bf16.mxu0 0
        %514 = vmatpush1.bf16.msra.mxu0 %v490
        %515 = vmatprep.subr.bf16.mxu0 0
        %516 = vmatpush1.bf16.msra.mxu0 0
        %517 = vmatprep.subr.bf16.mxu0 0
        %518 = vmatpush1.bf16.msra.mxu0 0
        %519 = vmatprep.subr.bf16.mxu0 0
        %520 = vmatpush1.bf16.msra.mxu0 0
        %521 = vmatprep.subr.bf16.mxu0 0
        %522 = vmatpush1.bf16.msra.mxu0 0
        %523 = vmatprep.subr.bf16.mxu0 0
        %524 = vmatpush1.bf16.msra.mxu0 0
        %525 = vmatprep.subr.bf16.mxu0 0
        %526 = vmatpush1.bf16.msra.mxu0 0
        %527 = vmatprep.subr.bf16.mxu0 0
        %528 = vmatpush1.bf16.msra.mxu0 0
        %529 = vmatprep.subr.bf16.mxu0 0
        %530 = vmatpush1.bf16.msra.mxu0 0
        %531 = vmatprep.mubr.bf16.mxu0 0
        %532 = vmatmul.mubr.bf16.gmra.mrb[0].mxu0 %v447
        %v533 = vpop.f32.mrb[0].mxu0
        %v534 = vadd.f32 0.0, %v533
        %v535 = vpop.f32.mrb[0].mxu0
        %v536 = vpop.f32.mrb[0].mxu0
        %v537 = vadd.f32 0.0, %v536
        %v538 = vpop.f32.mrb[0].mxu0
        %539 = vmatprep.mubr.bf16.mxu0 0
        %540 = vmatmul.mubr.bf16.gmra.mrb[0].mxu0 %v448
        %v541 = vpop.f32.mrb[0].mxu0
        %v542 = vadd.f32 0.0, %v541
        %v543 = vpop.f32.mrb[0].mxu0
        %v544 = vpop.f32.mrb[0].mxu0
        %v545 = vadd.f32 0.0, %v544
        %v546 = vpop.f32.mrb[0].mxu0
        %547 = vdwg.mxu0
        %v548 = vadd.f32 %v415, %v534
        %v549 = vadd.f32 %v416, %v537
        %v550 = vadd.f32 %v417, %v542
        %v551 = vadd.f32 %v418, %v545
        %552 = vst [vmem:[#allocation2] sm:$0xff] %v548
        %553 = vst [vmem:[#allocation2 + $0x8] sm:$0xff] %v549
        %554 = vst [vmem:[#allocation2 + $0x10] sm:$0xff] %v550
        %555 = vst [vmem:[#allocation2 + $0x18] sm:$0xff] %v551
        %p556 = scmp.eq.s32.totalorder %s23, 4
        // Predicated region
        $region86: #{_lambda_.16} parent=76 // pred_check
          %p557 = pneg %p556
        $region87: #{_lambda_.16} parent=76 // pred_check_branch
          %559 = sbr.rel (%p557) target = $region89
        $region88: #{_lambda_.16} parent=76 // pred_region
          %v560 = vld [vmem:[#allocation2] sm:$0xff]
          %v561 = vld [vmem:[#allocation2 + $0x8] sm:$0xff]
          %v562 = vld [vmem:[#allocation2 + $0x10] sm:$0xff]
          %v563 = vld [vmem:[#allocation2 + $0x18] sm:$0xff]
          %v564 = vld [vmem:[%s384] sm:$0x1]
          %v566 = vlaneseq
          %v567 = vshrl.u32 %v566, 7
          %v568 = vsub.s32 0, %v567
          %v569 = vrot.slane %v564, %v568
          %v571 = vmul.f32 %v560, %v569
          %v572 = vmul.f32 %v561, %v569
          %v573 = vmul.f32 %v562, %v569
          %v574 = vmul.f32 %v563, %v569
          %v575 = vld [vmem:[%s387] sm:$0x1]
          %v577 = vlaneseq
          %v578 = vshrl.u32 %v577, 7
          %v579 = vsub.s32 0, %v578
          %v580 = vrot.slane %v575, %v579
          %v582 = vadd.f32 %v571, %v580
          %v583 = vadd.f32 %v572, %v580
          %v584 = vadd.f32 %v573, %v580
          %v585 = vadd.f32 %v574, %v580
          %v586 = vld [vmem:[%s395] sm:$0xf]
          %v587 = vld [vmem:[%s395 + $0x4] sm:$0xf]
          %v588 = vld [vmem:[%s395 + $0x8] sm:$0xf]
          %v589 = vld [vmem:[%s395 + $0xc] sm:$0xf]
          %v590 = vunpack.c.l.bf16 %v586
          %v591 = vunpack.c.l.bf16 %v587
          %v592 = vunpack.c.l.bf16 %v588
          %v593 = vunpack.c.l.bf16 %v589
          %v594 = vadd.f32 %v582, %v590
          %v595 = vadd.f32 %v583, %v591
          %v596 = vadd.f32 %v584, %v592
          %v597 = vadd.f32 %v585, %v593
          %v598 = vmax.f32 %v594, 0.0
          %v599 = vmax.f32 %v595, 0.0
          %v600 = vmax.f32 %v596, 0.0
          %v601 = vmax.f32 %v597, 0.0
          %v602 = vpack.c.bf16 %v599, %v598
          %v603 = vpack.c.bf16 %v601, %v600
          %v606 = vunpack.c.l.b16 %v602
          %v607 = vunpack.c.h.b16 %v602
          %v608 = vunpack.c.l.b16 %v603
          %v609 = vunpack.c.h.b16 %v603
          %v610 = vpack.c.b16 %v606, %v606
          %v611 = vpack.c.b16 %v607, %v607
          %v612 = vpack.c.b16 %v608, %v608
          %v613 = vpack.c.b16 %v609, %v609
          %618 = vst [vmem:[%s404] sm:$0xf] %v610
          %619 = vst [vmem:[%s404 + $0x4] sm:$0xf] %v611
          %620 = vst [vmem:[%s404 + $0x8] sm:$0xf] %v612
          %621 = vst [vmem:[%s404 + $0xc] sm:$0xf] %v613
        $region89: #{_lambda_.16} parent=76 // pred_fallthru
          _
        %s622 = smul.u32 4, %s21
        %p623 = scmp.lt.s32.totalorder %s622, 3
        %s624 = scalar_select %p623, %s622, 3
        %p625 = scmp.lt.s32.totalorder %s22, 0
        %s626 = scalar_select %p625, %s22, 0
        %s627 = sadd.s32 %s626, %s624
        %s628 = smul.addr %s627, 4
        %s629 = scalar_lea.vmem %s5, %s628
        // Predicated region
        $region90: #{_lambda_.16} parent=76 // pred_check
          %p630 = pneg %p191
        $region91: #{_lambda_.16} parent=76 // pred_check_branch
          %632 = sbr.rel (%p630) target = $region93
        $region92: #{_lambda_.16} parent=76 // pred_region
          %s633 = smul.u32 4, %s21
        $region93: #{_lambda_.16} parent=76 // pred_fallthru
          _
        // Predicated region
        $region94: #{_lambda_.16} parent=76 // pred_check
          %p634 = pneg %p191
        $region95: #{_lambda_.16} parent=76 // pred_check_branch
          %636 = sbr.rel (%p634) target = $region97
        $region96: #{_lambda_.16} parent=76 // pred_region
          %s637 = smul.u32 4, %s21
          %p638 = scmp.lt.s32.totalorder %s637, 3
          %s639 = scalar_select %p638, %s637, 3
          %p640 = scmp.lt.s32.totalorder %s22, 0
          %s641 = scalar_select %p640, %s22, 0
          %s642 = sadd.s32 %s641, %s639
          %s643 = smul.addr %s642, 4
          %s644 = scalar_lea.vmem %s5, %s643
        $region97: #{_lambda_.16} parent=76 // pred_fallthru
          _
      $region77: #{_lambda_.16} parent=5 // pred_fallthru
        _
      %p645 = scmp.le.s32.totalorder 2, %s11
      // Predicated region
      $region98: #{_lambda_.16} parent=5 // pred_check
        %p646 = pneg %p645
      $region99: #{_lambda_.16} parent=5 // pred_check_branch
        %648 = sbr.rel (%p646) target = $region101
      $region100: #{_lambda_.16} parent=5 // pred_region
        %s649 = ssub.s32 %s11, 2
      $region101: #{_lambda_.16} parent=5 // pred_fallthru
        _
    $region6: #{_lambda_.16} parent=1 // loop_footer
      %s15 = sadd.s32 1, %s11
    $region7: #{_lambda_.16} parent=1 // loop_footer_branch
      %10 = sbr.rel target = $region3
    $region8: #{_lambda_.16} parent=1 // loop_exit
      _

// kernel: _lambda_.15
$region0: #{_lambda_.15}
  #allocation0 [shape = 'u32[]', space=smem, size = 0x4, offset = 0x4, fixed_abs, tag = 'smem constant byte address 0x4 - core index']
  #allocation1 [shape = 'u32[144,128]{1,0:T(1,128)}', space=vmem, size = 0x12000, scoped, tag = 'internal scratch']
  #allocation2 [shape = 'f32[32,128]{1,0:T(8,128)}', space=vmem, size = 0x4000, scoped, tag = 'scratch operand']
  %s0 = inlined_call_operand.vmem [shape: bf16[32,640], index: 0, kind: input, shape index: {}]
  %s1 = inlined_call_operand.vmem [shape: bf16[640,128], index: 1, kind: input, shape index: {}]
  %s2 = inlined_call_operand.vmem [shape: f32[1,128], index: 2, kind: input, shape index: {}]
  %s3 = inlined_call_operand.vmem [shape: f32[1,128], index: 3, kind: input, shape index: {}]
  %s4 = inlined_call_operand.vmem [shape: bf16[32,128], index: 4, kind: output, shape index: {}]
  %s5 = sld [smem:[#allocation0]]
  $region98: #{_lambda_.15} parent=0
    _
  %s7 = ssub.s32 1, %s5
  %s8 = scalar_select 0, %s7, %s5
  $region1: #{_lambda_.15} parent=0
    #allocation3 [shape = 'u8[16384]{0}', space=vmem, size = 0x4000, scoped, tag = 'input window, operand 0']
    loop: start=0, step=1, limit=7
    $region2: #{_lambda_.15} parent=1 // loop_pre_header
      _
    $region3: #{_lambda_.15} parent=1 // loop_header
      %s10 = sphi 0, %s14
      %p11 = scmp.ge.s32.totalorder %s10, 7
      %s17 = sphi 0, %s36
      %s18 = sphi 0, %s32
      %s19 = sphi 0, %s28
      %s20 = sphi 0, %s17
      %s21 = sphi 0, %s18
      %s22 = sphi 0, %s19
      %s23 = sphi 0, %s20
      %s24 = sphi 0, %s21
      %s25 = sphi 0, %s22
      %s41 = sphi 0, %s43
      %s44 = sphi 0, %s41
      %s45 = sphi 0, %s44
      %s61 = sphi 0, %s45
      %s69 = sphi 0, %s71
      %s72 = sphi 0, %s69
      %s73 = sphi 0, %s72
      %s89 = sphi 0, %s73
      %s95 = sphi 0, %s97
      %s98 = sphi 0, %s95
      %s99 = sphi 0, %s98
      %s115 = sphi 0, %s99
      %s121 = sphi 0, %s123
      %s124 = sphi 0, %s121
      %s125 = sphi 0, %s124
      %s141 = sphi 0, %s125
      %s149 = sphi 0, %s151
      %s152 = sphi 0, %s149
      %s153 = sphi 0, %s152
      %s169 = sphi 0, %s153
    $region4: #{_lambda_.15} parent=1 // loop_header_branch
      %13 = sbr.rel (%p11) target = $region8
    $region5: #{_lambda_.15} parent=1 // loop_body
      %s15 = ssub.s32 %s10, 1
      %s16 = ssub.s32 %s10, 2
      %s26 = sadd.s32 1, %s19
      %p27 = scmp.ge.s32.totalorder %s26, 5
      %s28 = scalar_select %p27, 0, %s26
      %s29 = sadd.s32 1, %s18
      %s30 = scalar_select %p27, %s29, %s18
      %p31 = scmp.ge.s32.totalorder %s30, 1
      %s32 = scalar_select %p31, 0, %s30
      %s33 = sadd.s32 1, %s17
      %s34 = scalar_select %p31, %s33, %s17
      %p35 = scmp.ge.s32.totalorder %s34, 1
      %s36 = scalar_select %p35, 0, %s34
      %s37 = ssub.s32 %s17, %s36
      %s38 = ssub.s32 %s19, %s28
      %s39 = sor.u32 %s37, %s38
      %p40 = scmp.eq.s32.totalorder %s39, 0
      %s42 = sadd.s32 %s41, 1
      %s43 = scalar_select %p40, %s41, %s42
      %p46 = pneg %p40
      %p47 = scmp.eq.s32.totalorder %s10, 4
      %p48 = por %p46, %p47
      %p49 = scmp.ne.s32.totalorder %s41, %s44
      %p50 = scmp.eq.s32.totalorder %s10, 0
      %p51 = por %p49, %p50
      %p52 = scmp.ne.s32.totalorder %s41, %s44
      %p53 = scmp.eq.s32.totalorder %s15, 4
      %p54 = por %p52, %p53
      %p55 = scmp.ne.s32.totalorder %s44, %s45
      %p56 = scmp.eq.s32.totalorder %s15, 0
      %p57 = por %p55, %p56
      %p58 = scmp.ne.s32.totalorder %s44, %s45
      %p59 = scmp.eq.s32.totalorder %s16, 4
      %p60 = por %p58, %p59
      %p62 = scmp.ne.s32.totalorder %s45, %s61
      %p63 = scmp.eq.s32.totalorder %s16, 0
      %p64 = por %p62, %p63
      %s65 = ssub.s32 %s19, %s28
      %s66 = ssub.s32 %s18, %s32
      %s67 = sor.u32 %s65, %s66
      %p68 = scmp.eq.s32.totalorder %s67, 0
      %s70 = sadd.s32 %s69, 1
      %s71 = scalar_select %p68, %s69, %s70
      %p74 = pneg %p68
      %p75 = scmp.eq.s32.totalorder %s10, 4
      %p76 = por %p74, %p75
      %p77 = scmp.ne.s32.totalorder %s69, %s72
      %p78 = scmp.eq.s32.totalorder %s10, 0
      %p79 = por %p77, %p78
      %p80 = scmp.ne.s32.totalorder %s69, %s72
      %p81 = scmp.eq.s32.totalorder %s15, 4
      %p82 = por %p80, %p81
      %p83 = scmp.ne.s32.totalorder %s72, %s73
      %p84 = scmp.eq.s32.totalorder %s15, 0
      %p85 = por %p83, %p84
      %p86 = scmp.ne.s32.totalorder %s72, %s73
      %p87 = scmp.eq.s32.totalorder %s16, 4
      %p88 = por %p86, %p87
      %p90 = scmp.ne.s32.totalorder %s73, %s89
      %p91 = scmp.eq.s32.totalorder %s16, 0
      %p92 = por %p90, %p91
      %s93 = ssub.s32 %s18, %s32
      %p94 = scmp.eq.s32.totalorder %s93, 0
      %s96 = sadd.s32 %s95, 1
      %s97 = scalar_select %p94, %s95, %s96
      %p100 = pneg %p94
      %p101 = scmp.eq.s32.totalorder %s10, 4
      %p102 = por %p100, %p101
      %p103 = scmp.ne.s32.totalorder %s95, %s98
      %p104 = scmp.eq.s32.totalorder %s10, 0
      %p105 = por %p103, %p104
      %p106 = scmp.ne.s32.totalorder %s95, %s98
      %p107 = scmp.eq.s32.totalorder %s15, 4
      %p108 = por %p106, %p107
      %p109 = scmp.ne.s32.totalorder %s98, %s99
      %p110 = scmp.eq.s32.totalorder %s15, 0
      %p111 = por %p109, %p110
      %p112 = scmp.ne.s32.totalorder %s98, %s99
      %p113 = scmp.eq.s32.totalorder %s16, 4
      %p114 = por %p112, %p113
      %p116 = scmp.ne.s32.totalorder %s99, %s115
      %p117 = scmp.eq.s32.totalorder %s16, 0
      %p118 = por %p116, %p117
      %s119 = ssub.s32 %s18, %s32
      %p120 = scmp.eq.s32.totalorder %s119, 0
      %s122 = sadd.s32 %s121, 1
      %s123 = scalar_select %p120, %s121, %s122
      %p126 = pneg %p120
      %p127 = scmp.eq.s32.totalorder %s10, 4
      %p128 = por %p126, %p127
      %p129 = scmp.ne.s32.totalorder %s121, %s124
      %p130 = scmp.eq.s32.totalorder %s10, 0
      %p131 = por %p129, %p130
      %p132 = scmp.ne.s32.totalorder %s121, %s124
      %p133 = scmp.eq.s32.totalorder %s15, 4
      %p134 = por %p132, %p133
      %p135 = scmp.ne.s32.totalorder %s124, %s125
      %p136 = scmp.eq.s32.totalorder %s15, 0
      %p137 = por %p135, %p136
      %p138 = scmp.ne.s32.totalorder %s124, %s125
      %p139 = scmp.eq.s32.totalorder %s16, 4
      %p140 = por %p138, %p139
      %p142 = scmp.ne.s32.totalorder %s125, %s141
      %p143 = scmp.eq.s32.totalorder %s16, 0
      %p144 = por %p142, %p143
      %s145 = ssub.s32 %s17, %s36
      %s146 = ssub.s32 %s18, %s32
      %s147 = sor.u32 %s145, %s146
      %p148 = scmp.eq.s32.totalorder %s147, 0
      %s150 = sadd.s32 %s149, 1
      %s151 = scalar_select %p148, %s149, %s150
      %p154 = pneg %p148
      %p155 = scmp.eq.s32.totalorder %s10, 4
      %p156 = por %p154, %p155
      %p157 = scmp.ne.s32.totalorder %s149, %s152
      %p158 = scmp.eq.s32.totalorder %s10, 0
      %p159 = por %p157, %p158
      %p160 = scmp.ne.s32.totalorder %s149, %s152
      %p161 = scmp.eq.s32.totalorder %s15, 4
      %p162 = por %p160, %p161
      %p163 = scmp.ne.s32.totalorder %s152, %s153
      %p164 = scmp.eq.s32.totalorder %s15, 0
      %p165 = por %p163, %p164
      %p166 = scmp.ne.s32.totalorder %s152, %s153
      %p167 = scmp.eq.s32.totalorder %s16, 4
      %p168 = por %p166, %p167
      %p170 = scmp.ne.s32.totalorder %s153, %s169
      %p171 = scmp.eq.s32.totalorder %s16, 0
      %p172 = por %p170, %p171
      %p173 = scmp.le.s32.totalorder 1, %s10
      %p174 = scmp.lt.s32.totalorder %s10, 6
      %p175 = pnand %p173, %p174
      %p176 = pneg %p175
      // Predicated region
      $region9: #{_lambda_.15} parent=5 // pred_check
        _
      $region10: #{_lambda_.15} parent=5 // pred_check_branch
        %178 = sbr.rel (%p175) target = $region12
      $region11: #{_lambda_.15} parent=5 // pred_region
        %s179 = ssub.s32 %s10, 1
        // Predicated region
        $region13: #{_lambda_.15} parent=11 // pred_check
          %p180 = pneg %p111
        $region14: #{_lambda_.15} parent=11 // pred_check_branch
          %182 = sbr.rel (%p180) target = $region16
        $region15: #{_lambda_.15} parent=11 // pred_region
          %p183 = scmp.lt.s32.totalorder %s21, 0
          %s184 = scalar_select %p183, %s21, 0
          %s185 = scalar_lea.vmem %s2, %s184
        $region16: #{_lambda_.15} parent=11 // pred_fallthru
          _
        // Predicated region
        $region17: #{_lambda_.15} parent=11 // pred_check
          %p186 = pneg %p137
        $region18: #{_lambda_.15} parent=11 // pred_check_branch
          %188 = sbr.rel (%p186) target = $region20
        $region19: #{_lambda_.15} parent=11 // pred_region
          %p189 = scmp.lt.s32.totalorder %s21, 0
          %s190 = scalar_select %p189, %s21, 0
          %s191 = scalar_lea.vmem %s3, %s190
        $region20: #{_lambda_.15} parent=11 // pred_fallthru
          _
      $region12: #{_lambda_.15} parent=5 // pred_fallthru
        _
      %p192 = scmp.lt.s32.totalorder %s10, 5
      // Predicated region
      $region21: #{_lambda_.15} parent=5 // pred_check
        %p193 = pneg %p192
      $region22: #{_lambda_.15} parent=5 // pred_check_branch
        %195 = sbr.rel (%p193) target = $region24
      $region23: #{_lambda_.15} parent=5 // pred_region
        // Predicated region
        $region25: #{_lambda_.15} parent=23 // pred_check
          %p196 = pneg %p51
        $region26: #{_lambda_.15} parent=23 // pred_check_branch
          %198 = sbr.rel (%p196) target = $region28
        $region27: #{_lambda_.15} parent=23 // pred_region
          %s199 = sand.u32 %s41, 1
          %s200 = sand.u32 %s41, 1
          %s201 = smul.addr %s200, 16
          %s202 = scalar_lea.vmem [#allocation3], %s201
          %s203 = smul.u32 4, %s17
          %s204 = smul.addr %s203, 5
          %s205 = sadd.s32 %s19, %s204
          %s206 = smul.addr %s205, 4
          %s207 = scalar_lea.vmem %s0, %s206
          // Predicated region
          $region29: #{_lambda_.15} parent=27 // pred_check
            _
          $region30: #{_lambda_.15} parent=27 // pred_check_branch
            %209 = sbr.rel (0) target = $region32
          $region31: #{_lambda_.15} parent=27 // pred_region
            // Predicated region
            $region33: #{_lambda_.15} parent=31 // pred_check
              _
            $region34: #{_lambda_.15} parent=31 // pred_check_branch
              %211 = sbr.rel target = $region36
            $region35: #{_lambda_.15} parent=31 // pred_region
              // Predicated region
              $region48: #{_lambda_.15} parent=35 // pred_check
                _
              $region49: #{_lambda_.15} parent=35 // pred_check_branch
                %232 = sbr.rel (0) target = $region51
              $region50: #{_lambda_.15} parent=35 // pred_region
                loop: start=0, step=1, limit=1
                $region52: #{_lambda_.15} parent=50 // loop_pre_header
                  _
                $region53: #{_lambda_.15} parent=50 // loop_header
                  %s234 = sphi 0, %s238
                  %p235 = scmp.ge.s32.totalorder %s234, 1
                  %s239 = sphi %s207, %s207
                  %s240 = sphi %s202, %s202
                $region54: #{_lambda_.15} parent=50 // loop_header_branch
                  %237 = sbr.rel (%p235) target = $region58
                $region55: #{_lambda_.15} parent=50 // loop_body
                  _
                $region56: #{_lambda_.15} parent=50 // loop_footer
                  %s238 = sadd.s32 1, %s234
                $region57: #{_lambda_.15} parent=50 // loop_footer_branch
                  %233 = sbr.rel target = $region53
                $region58: #{_lambda_.15} parent=50 // loop_exit
                  _
                loop: start=0, step=1, limit=1
                $region59: #{_lambda_.15} parent=50 // loop_pre_header
                  _
                $region60: #{_lambda_.15} parent=50 // loop_header
                  %s243 = sphi 0, %s247
                  %p244 = scmp.ge.s32.totalorder %s243, 1
                  %s248 = sphi %s207, %s207
                  %s249 = sphi %s202, %s202
                $region61: #{_lambda_.15} parent=50 // loop_header_branch
                  %246 = sbr.rel (%p244) target = $region65
                $region62: #{_lambda_.15} parent=50 // loop_body
                  %v250 = vld [vmem:[%s248] sm:$0xf]
                  %251 = vst [vmem:[%s249] sm:$0xf] %v250
                  %v252 = vld [vmem:[%s248 + $0x14] sm:$0xf]
                  %253 = vst [vmem:[%s249 + $0x4] sm:$0xf] %v252
                  %v254 = vld [vmem:[%s248 + $0x28] sm:$0xf]
                  %255 = vst [vmem:[%s249 + $0x8] sm:$0xf] %v254
                  %v256 = vld [vmem:[%s248 + $0x3c] sm:$0xf]
                  %257 = vst [vmem:[%s249 + $0xc] sm:$0xf] %v256
                $region63: #{_lambda_.15} parent=50 // loop_footer
                  %s247 = sadd.s32 1, %s243
                $region64: #{_lambda_.15} parent=50 // loop_footer_branch
                  %242 = sbr.rel target = $region60
                $region65: #{_lambda_.15} parent=50 // loop_exit
                  _
              $region51: #{_lambda_.15} parent=35 // pred_fallthru
                _
            $region36: #{_lambda_.15} parent=31 // pred_fallthru
              _
            // Predicated region
            $region37: #{_lambda_.15} parent=31 // pred_check
              _
            $region38: #{_lambda_.15} parent=31 // pred_check_branch
              %213 = sbr.rel (0) target = $region40
            $region39: #{_lambda_.15} parent=31 // pred_region
              loop: start=0, step=1, limit=1
              $region41: #{_lambda_.15} parent=39 // loop_pre_header
                _
              $region42: #{_lambda_.15} parent=39 // loop_header
                %s216 = sphi 0, %s220
                %p217 = scmp.ge.s32.totalorder %s216, 1
                %s221 = sphi %s207, %s207
                %s222 = sphi %s202, %s202
              $region43: #{_lambda_.15} parent=39 // loop_header_branch
                %219 = sbr.rel (%p217) target = $region47
              $region44: #{_lambda_.15} parent=39 // loop_body
                %v223 = vld [vmem:[%s221] sm:$0xf]
                %224 = vst [vmem:[%s222] sm:$0xf] %v223
                %v225 = vld [vmem:[%s221 + $0x14] sm:$0xf]
                %226 = vst [vmem:[%s222 + $0x4] sm:$0xf] %v225
                %v227 = vld [vmem:[%s221 + $0x28] sm:$0xf]
                %228 = vst [vmem:[%s222 + $0x8] sm:$0xf] %v227
                %v229 = vld [vmem:[%s221 + $0x3c] sm:$0xf]
                %230 = vst [vmem:[%s222 + $0xc] sm:$0xf] %v229
              $region45: #{_lambda_.15} parent=39 // loop_footer
                %s220 = sadd.s32 1, %s216
              $region46: #{_lambda_.15} parent=39 // loop_footer_branch
                %215 = sbr.rel target = $region42
              $region47: #{_lambda_.15} parent=39 // loop_exit
                _
            $region40: #{_lambda_.15} parent=31 // pred_fallthru
              _
          $region32: #{_lambda_.15} parent=27 // pred_fallthru
            _
          %258 = vnop
        $region28: #{_lambda_.15} parent=23 // pred_fallthru
          _
        // Predicated region
        $region66: #{_lambda_.15} parent=23 // pred_check
          %p259 = pneg %p79
        $region67: #{_lambda_.15} parent=23 // pred_check_branch
          %261 = sbr.rel (%p259) target = $region69
        $region68: #{_lambda_.15} parent=23 // pred_region
          %s262 = smul.u32 16, %s19
          %p263 = scmp.lt.s32.totalorder %s262, 79
          %s264 = scalar_select %p263, %s262, 79
          %p265 = scmp.lt.s32.totalorder %s18, 0
          %s266 = scalar_select %p265, %s18, 0
          %s267 = sadd.s32 %s266, %s264
          %s268 = smul.addr %s267, 4
          %s269 = scalar_lea.vmem %s1, %s268
          %s270 = smul.u32 16, %s19
        $region69: #{_lambda_.15} parent=23 // pred_fallthru
          _
      $region24: #{_lambda_.15} parent=5 // pred_fallthru
        _
      %p271 = scmp.le.s32.totalorder 1, %s10
      %p272 = scmp.lt.s32.totalorder %s10, 6
      %p273 = pnand %p271, %p272
      %p274 = pneg %p273
      // Predicated region
      $region70: #{_lambda_.15} parent=5 // pred_check
        _
      $region71: #{_lambda_.15} parent=5 // pred_check_branch
        %276 = sbr.rel (%p273) target = $region73
      $region72: #{_lambda_.15} parent=5 // pred_region
        %s277 = ssub.s32 %s10, 1
        %s278 = sand.u32 %s44, 1
        %s279 = sand.u32 %s44, 1
        %s280 = smul.addr %s279, 16
        %s281 = scalar_lea.vmem [#allocation3], %s280
        // Predicated region
        $region74: #{_lambda_.15} parent=72 // pred_check
          %p282 = pneg %p57
        $region75: #{_lambda_.15} parent=72 // pred_check_branch
          %284 = sbr.rel (%p282) target = $region77
        $region76: #{_lambda_.15} parent=72 // pred_region
          _
        $region77: #{_lambda_.15} parent=72 // pred_fallthru
          _
        %s285 = sand.u32 %s44, 1
        %s286 = sand.u32 %s44, 1
        %s287 = smul.addr %s286, 16
        %s288 = scalar_lea.vmem [#allocation3], %s287
        %p289 = pneg %p57
        %p290 = pneg %p54
        %s291 = smul.u32 16, %s22
        %p292 = scmp.lt.s32.totalorder %s291, 79
        %s293 = scalar_select %p292, %s291, 79
        %p294 = scmp.lt.s32.totalorder %s21, 0
        %s295 = scalar_select %p294, %s21, 0
        %s296 = sadd.s32 %s295, %s293
        %s297 = smul.addr %s296, 4
        %s298 = scalar_lea.vmem %s1, %s297
        %p299 = pneg %p85
        %p300 = pneg %p82
        %p301 = scmp.lt.s32.totalorder %s21, 0
        %s302 = scalar_select %p301, %s21, 0
        %s303 = scalar_lea.vmem %s2, %s302
        %p304 = pneg %p111
        %p305 = pneg %p108
        %p306 = scmp.lt.s32.totalorder %s21, 0
        %s307 = scalar_select %p306, %s21, 0
        %s308 = scalar_lea.vmem %s3, %s307
        %p309 = pneg %p137
        %p310 = pneg %p134
        %p311 = pneg %p165
        %p312 = pneg %p162
        %s313 = smul.u32 4, %s20
        %p314 = scmp.lt.s32.totalorder %s313, 3
        %s315 = scalar_select %p314, %s313, 3
        %p316 = scmp.lt.s32.totalorder %s21, 0
        %s317 = scalar_select %p316, %s21, 0
        %s318 = sadd.s32 %s317, %s315
        %s319 = smul.addr %s318, 4
        %s320 = scalar_lea.vmem %s4, %s319
        %s321 = smul.u32 4, %s20
        %s322 = smul.u32 16, %s22
        %p323 = scmp.lt.s32.totalorder %s322, 79
        %s324 = scalar_select %p323, %s322, 79
        %p325 = scmp.lt.s32.totalorder %s21, 0
        %s326 = scalar_select %p325, %s21, 0
        %s327 = sadd.s32 %s326, %s324
        %s328 = smul.addr %s327, 4
        %s329 = scalar_lea.vmem %s1, %s328
        %s330 = smul.u32 16, %s22
        %p331 = scmp.lt.s32.totalorder %s21, 0
        %s332 = scalar_select %p331, %s21, 0
        %s333 = scalar_lea.vmem %s2, %s332
        %p334 = scmp.lt.s32.totalorder %s21, 0
        %s335 = scalar_select %p334, %s21, 0
        %s336 = scalar_lea.vmem %s3, %s335
        %s337 = smul.u32 4, %s20
        %p338 = scmp.lt.s32.totalorder %s337, 3
        %s339 = scalar_select %p338, %s337, 3
        %p340 = scmp.lt.s32.totalorder %s21, 0
        %s341 = scalar_select %p340, %s21, 0
        %s342 = sadd.s32 %s341, %s339
        %s343 = smul.addr %s342, 4
        %s344 = scalar_lea.vmem %s4, %s343
        %s345 = smul.u32 4, %s20
        %p347 = scmp.eq.s32.totalorder %s22, 0
        // Predicated region
        $region78: #{_lambda_.15} parent=72 // pred_check
          %p348 = pneg %p347
        $region79: #{_lambda_.15} parent=72 // pred_check_branch
          %350 = sbr.rel (%p348) target = $region81
        $region80: #{_lambda_.15} parent=72 // pred_region
          %351 = vst [vmem:[#allocation2] sm:$0xff] 0.0
          %352 = vst [vmem:[#allocation2 + $0x8] sm:$0xff] 0.0
          %353 = vst [vmem:[#allocation2 + $0x10] sm:$0xff] 0.0
          %354 = vst [vmem:[#allocation2 + $0x18] sm:$0xff] 0.0
        $region81: #{_lambda_.15} parent=72 // pred_fallthru
          _
        %v355 = vld [vmem:[#allocation2] sm:$0xff]
        %v356 = vld [vmem:[#allocation2 + $0x8] sm:$0xff]
        %v357 = vld [vmem:[#allocation2 + $0x10] sm:$0xff]
        %v358 = vld [vmem:[#allocation2 + $0x18] sm:$0xff]
        %v359 = vld [vmem:[%s281] sm:$0xf]
        %v360 = vld [vmem:[%s281 + $0x4] sm:$0xf]
        %v361 = vld [vmem:[%s281 + $0x8] sm:$0xf]
        %v362 = vld [vmem:[%s281 + $0xc] sm:$0xf]
        %v363 = vld [vmem:[%s329] sm:$0xf]
        %v364 = vld [vmem:[%s329 + $0x4] sm:$0xf]
        %v365 = vld [vmem:[%s329 + $0x8] sm:$0xf]
        %v366 = vld [vmem:[%s329 + $0xc] sm:$0xf]
        %v367 = vld [vmem:[%s329 + $0x10] sm:$0xf]
        %v368 = vld [vmem:[%s329 + $0x14] sm:$0xf]
        %v369 = vld [vmem:[%s329 + $0x18] sm:$0xf]
        %v370 = vld [vmem:[%s329 + $0x1c] sm:$0xf]
        %v371 = vld [vmem:[%s329 + $0x20] sm:$0xf]
        %v372 = vld [vmem:[%s329 + $0x24] sm:$0xf]
        %v373 = vld [vmem:[%s329 + $0x28] sm:$0xf]
        %v374 = vld [vmem:[%s329 + $0x2c] sm:$0xf]
        %v375 = vld [vmem:[%s329 + $0x30] sm:$0xf]
        %v376 = vld [vmem:[%s329 + $0x34] sm:$0xf]
        %v377 = vld [vmem:[%s329 + $0x38] sm:$0xf]
        %v378 = vld [vmem:[%s329 + $0x3c] sm:$0xf]
        %v383 = vunpack.c.l.b16 %v359
        %v384 = vunpack.c.l.b16 %v360
        %v385 = vunpack.c.l.b16 %v361
        %v386 = vunpack.c.l.b16 %v362
        %v387 = vpack.c.b16 %v384, %v383
        %v388 = vpack.c.b16 %v386, %v385
        %v407 = vunpack.c.l.b16 %v363
        %v408 = vunpack.c.l.b16 %v364
        %v409 = vunpack.c.l.b16 %v365
        %v410 = vunpack.c.l.b16 %v366
        %v411 = vunpack.c.l.b16 %v367
        %v412 = vunpack.c.l.b16 %v368
        %v413 = vunpack.c.l.b16 %v369
        %v414 = vunpack.c.l.b16 %v370
        %v415 = vunpack.c.l.b16 %v371
        %v416 = vunpack.c.l.b16 %v372
        %v417 = vunpack.c.l.b16 %v373
        %v418 = vunpack.c.l.b16 %v374
        %v419 = vunpack.c.l.b16 %v375
        %v420 = vunpack.c.l.b16 %v376
        %v421 = vunpack.c.l.b16 %v377
        %v422 = vunpack.c.l.b16 %v378
        %v423 = vpack.c.b16 %v408, %v407
        %v424 = vpack.c.b16 %v410, %v409
        %v425 = vpack.c.b16 %v412, %v411
        %v426 = vpack.c.b16 %v414, %v413
        %v427 = vpack.c.b16 %v416, %v415
        %v428 = vpack.c.b16 %v418, %v417
        %v429 = vpack.c.b16 %v420, %v419
        %v430 = vpack.c.b16 %v422, %v421
        %439 = vmatprep.subr.bf16.mxu0 0
        %440 = vmatpush1.bf16.msra.mxu0 %v423
        %441 = vmatprep.subr.bf16.mxu0 0
        %442 = vmatpush1.bf16.msra.mxu0 %v424
        %443 = vmatprep.subr.bf16.mxu0 0
        %444 = vmatpush1.bf16.msra.mxu0 %v425
        %445 = vmatprep.subr.bf16.mxu0 0
        %446 = vmatpush1.bf16.msra.mxu0 %v426
        %447 = vmatprep.subr.bf16.mxu0 0
        %448 = vmatpush1.bf16.msra.mxu0 %v427
        %449 = vmatprep.subr.bf16.mxu0 0
        %450 = vmatpush1.bf16.msra.mxu0 %v428
        %451 = vmatprep.subr.bf16.mxu0 0
        %452 = vmatpush1.bf16.msra.mxu0 %v429
        %453 = vmatprep.subr.bf16.mxu0 0
        %454 = vmatpush1.bf16.msra.mxu0 %v430
        %455 = vmatprep.subr.bf16.mxu0 0
        %456 = vmatpush1.bf16.msra.mxu0 0
        %457 = vmatprep.subr.bf16.mxu0 0
        %458 = vmatpush1.bf16.msra.mxu0 0
        %459 = vmatprep.subr.bf16.mxu0 0
        %460 = vmatpush1.bf16.msra.mxu0 0
        %461 = vmatprep.subr.bf16.mxu0 0
        %462 = vmatpush1.bf16.msra.mxu0 0
        %463 = vmatprep.subr.bf16.mxu0 0
        %464 = vmatpush1.bf16.msra.mxu0 0
        %465 = vmatprep.subr.bf16.mxu0 0
        %466 = vmatpush1.bf16.msra.mxu0 0
        %467 = vmatprep.subr.bf16.mxu0 0
        %468 = vmatpush1.bf16.msra.mxu0 0
        %469 = vmatprep.subr.bf16.mxu0 0
        %470 = vmatpush1.bf16.msra.mxu0 0
        %471 = vmatprep.mubr.bf16.mxu0 0
        %472 = vmatmul.mubr.bf16.gmra.mrb[0].mxu0 %v387
        %v473 = vpop.f32.mrb[0].mxu0
        %v474 = vadd.f32 0.0, %v473
        %v475 = vpop.f32.mrb[0].mxu0
        %v476 = vpop.f32.mrb[0].mxu0
        %v477 = vadd.f32 0.0, %v476
        %v478 = vpop.f32.mrb[0].mxu0
        %479 = vmatprep.mubr.bf16.mxu0 0
        %480 = vmatmul.mubr.bf16.gmra.mrb[0].mxu0 %v388
        %v481 = vpop.f32.mrb[0].mxu0
        %v482 = vadd.f32 0.0, %v481
        %v483 = vpop.f32.mrb[0].mxu0
        %v484 = vpop.f32.mrb[0].mxu0
        %v485 = vadd.f32 0.0, %v484
        %v486 = vpop.f32.mrb[0].mxu0
        %487 = vdwg.mxu0
        %v488 = vadd.f32 %v355, %v474
        %v489 = vadd.f32 %v356, %v477
        %v490 = vadd.f32 %v357, %v482
        %v491 = vadd.f32 %v358, %v485
        %492 = vst [vmem:[#allocation2] sm:$0xff] %v488
        %493 = vst [vmem:[#allocation2 + $0x8] sm:$0xff] %v489
        %494 = vst [vmem:[#allocation2 + $0x10] sm:$0xff] %v490
        %495 = vst [vmem:[#allocation2 + $0x18] sm:$0xff] %v491
        %p496 = scmp.eq.s32.totalorder %s22, 4
        // Predicated region
        $region82: #{_lambda_.15} parent=72 // pred_check
          %p497 = pneg %p496
        $region83: #{_lambda_.15} parent=72 // pred_check_branch
          %499 = sbr.rel (%p497) target = $region85
        $region84: #{_lambda_.15} parent=72 // pred_region
          %v500 = vld [vmem:[#allocation2] sm:$0xff]
          %v501 = vld [vmem:[#allocation2 + $0x8] sm:$0xff]
          %v502 = vld [vmem:[#allocation2 + $0x10] sm:$0xff]
          %v503 = vld [vmem:[#allocation2 + $0x18] sm:$0xff]
          %v504 = vld [vmem:[%s333] sm:$0x1]
          %v506 = vlaneseq
          %v507 = vshrl.u32 %v506, 7
          %v508 = vsub.s32 0, %v507
          %v509 = vrot.slane %v504, %v508
          %v511 = vmul.f32 %v500, %v509
          %v512 = vmul.f32 %v501, %v509
          %v513 = vmul.f32 %v502, %v509
          %v514 = vmul.f32 %v503, %v509
          %v515 = vld [vmem:[%s336] sm:$0x1]
          %v517 = vlaneseq
          %v518 = vshrl.u32 %v517, 7
          %v519 = vsub.s32 0, %v518
          %v520 = vrot.slane %v515, %v519
          %v522 = vadd.f32 %v511, %v520
          %v523 = vadd.f32 %v512, %v520
          %v524 = vadd.f32 %v513, %v520
          %v525 = vadd.f32 %v514, %v520
          %v526 = vmax.f32 %v522, 0.0
          %v527 = vmax.f32 %v523, 0.0
          %v528 = vmax.f32 %v524, 0.0
          %v529 = vmax.f32 %v525, 0.0
          %v530 = vpack.c.bf16 %v527, %v526
          %v531 = vpack.c.bf16 %v529, %v528
          %v534 = vunpack.c.l.b16 %v530
          %v535 = vunpack.c.h.b16 %v530
          %v536 = vunpack.c.l.b16 %v531
          %v537 = vunpack.c.h.b16 %v531
          %v538 = vpack.c.b16 %v534, %v534
          %v539 = vpack.c.b16 %v535, %v535
          %v540 = vpack.c.b16 %v536, %v536
          %v541 = vpack.c.b16 %v537, %v537
          %546 = vst [vmem:[%s344] sm:$0xf] %v538
          %547 = vst [vmem:[%s344 + $0x4] sm:$0xf] %v539
          %548 = vst [vmem:[%s344 + $0x8] sm:$0xf] %v540
          %549 = vst [vmem:[%s344 + $0xc] sm:$0xf] %v541
        $region85: #{_lambda_.15} parent=72 // pred_fallthru
          _
        %s550 = smul.u32 4, %s20
        %p551 = scmp.lt.s32.totalorder %s550, 3
        %s552 = scalar_select %p551, %s550, 3
        %p553 = scmp.lt.s32.totalorder %s21, 0
        %s554 = scalar_select %p553, %s21, 0
        %s555 = sadd.s32 %s554, %s552
        %s556 = smul.addr %s555, 4
        %s557 = scalar_lea.vmem %s4, %s556
        // Predicated region
        $region86: #{_lambda_.15} parent=72 // pred_check
          %p558 = pneg %p162
        $region87: #{_lambda_.15} parent=72 // pred_check_branch
          %560 = sbr.rel (%p558) target = $region89
        $region88: #{_lambda_.15} parent=72 // pred_region
          %s561 = smul.u32 4, %s20
        $region89: #{_lambda_.15} parent=72 // pred_fallthru
          _
        // Predicated region
        $region90: #{_lambda_.15} parent=72 // pred_check
          %p562 = pneg %p162
        $region91: #{_lambda_.15} parent=72 // pred_check_branch
          %564 = sbr.rel (%p562) target = $region93
        $region92: #{_lambda_.15} parent=72 // pred_region
          %s565 = smul.u32 4, %s20
          %p566 = scmp.lt.s32.totalorder %s565, 3
          %s567 = scalar_select %p566, %s565, 3
          %p568 = scmp.lt.s32.totalorder %s21, 0
          %s569 = scalar_select %p568, %s21, 0
          %s570 = sadd.s32 %s569, %s567
          %s571 = smul.addr %s570, 4
          %s572 = scalar_lea.vmem %s4, %s571
        $region93: #{_lambda_.15} parent=72 // pred_fallthru
          _
      $region73: #{_lambda_.15} parent=5 // pred_fallthru
        _
      %p573 = scmp.le.s32.totalorder 2, %s10
      // Predicated region
      $region94: #{_lambda_.15} parent=5 // pred_check
        %p574 = pneg %p573
      $region95: #{_lambda_.15} parent=5 // pred_check_branch
        %576 = sbr.rel (%p574) target = $region97
      $region96: #{_lambda_.15} parent=5 // pred_region
        %s577 = ssub.s32 %s10, 2
      $region97: #{_lambda_.15} parent=5 // pred_fallthru
        _
    $region6: #{_lambda_.15} parent=1 // loop_footer
      %s14 = sadd.s32 1, %s10
    $region7: #{_lambda_.15} parent=1 // loop_footer_branch
      %9 = sbr.rel target = $region3
    $region8: #{_lambda_.15} parent=1 // loop_exit
      _

// kernel: _lambda_.17
$region0: #{_lambda_.17}
  #allocation0 [shape = 'u32[]', space=smem, size = 0x4, offset = 0x4, fixed_abs, tag = 'smem constant byte address 0x4 - core index']
  #allocation1 [shape = 'u32[144,128]{1,0:T(1,128)}', space=vmem, size = 0x12000, scoped, tag = 'internal scratch']
  #allocation2 [shape = 'f32[16,128]{1,0:T(8,128)}', space=vmem, size = 0x2000, scoped, tag = 'scratch operand']
  %s0 = inlined_call_operand.vmem [shape: bf16[16,640], index: 0, kind: input, shape index: {}]
  %s1 = inlined_call_operand.vmem [shape: bf16[640,128], index: 1, kind: input, shape index: {}]
  %s2 = inlined_call_operand.vmem [shape: f32[1,128], index: 2, kind: input, shape index: {}]
  %s3 = inlined_call_operand.vmem [shape: f32[1,128], index: 3, kind: input, shape index: {}]
  %s4 = inlined_call_operand.vmem [shape: bf16[16,128], index: 4, kind: output, shape index: {}]
  %s5 = sld [smem:[#allocation0]]
  $region98: #{_lambda_.17} parent=0
    _
  %s7 = ssub.s32 1, %s5
  %s8 = scalar_select 0, %s7, %s5
  $region1: #{_lambda_.17} parent=0
    #allocation3 [shape = 'u8[8192]{0}', space=vmem, size = 0x2000, scoped, tag = 'input window, operand 0']
    loop: start=0, step=1, limit=7
    $region2: #{_lambda_.17} parent=1 // loop_pre_header
      _
    $region3: #{_lambda_.17} parent=1 // loop_header
      %s10 = sphi 0, %s14
      %p11 = scmp.ge.s32.totalorder %s10, 7
      %s17 = sphi 0, %s36
      %s18 = sphi 0, %s32
      %s19 = sphi 0, %s28
      %s20 = sphi 0, %s17
      %s21 = sphi 0, %s18
      %s22 = sphi 0, %s19
      %s23 = sphi 0, %s20
      %s24 = sphi 0, %s21
      %s25 = sphi 0, %s22
      %s41 = sphi 0, %s43
      %s44 = sphi 0, %s41
      %s45 = sphi 0, %s44
      %s61 = sphi 0, %s45
      %s69 = sphi 0, %s71
      %s72 = sphi 0, %s69
      %s73 = sphi 0, %s72
      %s89 = sphi 0, %s73
      %s95 = sphi 0, %s97
      %s98 = sphi 0, %s95
      %s99 = sphi 0, %s98
      %s115 = sphi 0, %s99
      %s121 = sphi 0, %s123
      %s124 = sphi 0, %s121
      %s125 = sphi 0, %s124
      %s141 = sphi 0, %s125
      %s149 = sphi 0, %s151
      %s152 = sphi 0, %s149
      %s153 = sphi 0, %s152
      %s169 = sphi 0, %s153
    $region4: #{_lambda_.17} parent=1 // loop_header_branch
      %13 = sbr.rel (%p11) target = $region8
    $region5: #{_lambda_.17} parent=1 // loop_body
      %s15 = ssub.s32 %s10, 1
      %s16 = ssub.s32 %s10, 2
      %s26 = sadd.s32 1, %s19
      %p27 = scmp.ge.s32.totalorder %s26, 5
      %s28 = scalar_select %p27, 0, %s26
      %s29 = sadd.s32 1, %s18
      %s30 = scalar_select %p27, %s29, %s18
      %p31 = scmp.ge.s32.totalorder %s30, 1
      %s32 = scalar_select %p31, 0, %s30
      %s33 = sadd.s32 1, %s17
      %s34 = scalar_select %p31, %s33, %s17
      %p35 = scmp.ge.s32.totalorder %s34, 1
      %s36 = scalar_select %p35, 0, %s34
      %s37 = ssub.s32 %s17, %s36
      %s38 = ssub.s32 %s19, %s28
      %s39 = sor.u32 %s37, %s38
      %p40 = scmp.eq.s32.totalorder %s39, 0
      %s42 = sadd.s32 %s41, 1
      %s43 = scalar_select %p40, %s41, %s42
      %p46 = pneg %p40
      %p47 = scmp.eq.s32.totalorder %s10, 4
      %p48 = por %p46, %p47
      %p49 = scmp.ne.s32.totalorder %s41, %s44
      %p50 = scmp.eq.s32.totalorder %s10, 0
      %p51 = por %p49, %p50
      %p52 = scmp.ne.s32.totalorder %s41, %s44
      %p53 = scmp.eq.s32.totalorder %s15, 4
      %p54 = por %p52, %p53
      %p55 = scmp.ne.s32.totalorder %s44, %s45
      %p56 = scmp.eq.s32.totalorder %s15, 0
      %p57 = por %p55, %p56
      %p58 = scmp.ne.s32.totalorder %s44, %s45
      %p59 = scmp.eq.s32.totalorder %s16, 4
      %p60 = por %p58, %p59
      %p62 = scmp.ne.s32.totalorder %s45, %s61
      %p63 = scmp.eq.s32.totalorder %s16, 0
      %p64 = por %p62, %p63
      %s65 = ssub.s32 %s19, %s28
      %s66 = ssub.s32 %s18, %s32
      %s67 = sor.u32 %s65, %s66
      %p68 = scmp.eq.s32.totalorder %s67, 0
      %s70 = sadd.s32 %s69, 1
      %s71 = scalar_select %p68, %s69, %s70
      %p74 = pneg %p68
      %p75 = scmp.eq.s32.totalorder %s10, 4
      %p76 = por %p74, %p75
      %p77 = scmp.ne.s32.totalorder %s69, %s72
      %p78 = scmp.eq.s32.totalorder %s10, 0
      %p79 = por %p77, %p78
      %p80 = scmp.ne.s32.totalorder %s69, %s72
      %p81 = scmp.eq.s32.totalorder %s15, 4
      %p82 = por %p80, %p81
      %p83 = scmp.ne.s32.totalorder %s72, %s73
      %p84 = scmp.eq.s32.totalorder %s15, 0
      %p85 = por %p83, %p84
      %p86 = scmp.ne.s32.totalorder %s72, %s73
      %p87 = scmp.eq.s32.totalorder %s16, 4
      %p88 = por %p86, %p87
      %p90 = scmp.ne.s32.totalorder %s73, %s89
      %p91 = scmp.eq.s32.totalorder %s16, 0
      %p92 = por %p90, %p91
      %s93 = ssub.s32 %s18, %s32
      %p94 = scmp.eq.s32.totalorder %s93, 0
      %s96 = sadd.s32 %s95, 1
      %s97 = scalar_select %p94, %s95, %s96
      %p100 = pneg %p94
      %p101 = scmp.eq.s32.totalorder %s10, 4
      %p102 = por %p100, %p101
      %p103 = scmp.ne.s32.totalorder %s95, %s98
      %p104 = scmp.eq.s32.totalorder %s10, 0
      %p105 = por %p103, %p104
      %p106 = scmp.ne.s32.totalorder %s95, %s98
      %p107 = scmp.eq.s32.totalorder %s15, 4
      %p108 = por %p106, %p107
      %p109 = scmp.ne.s32.totalorder %s98, %s99
      %p110 = scmp.eq.s32.totalorder %s15, 0
      %p111 = por %p109, %p110
      %p112 = scmp.ne.s32.totalorder %s98, %s99
      %p113 = scmp.eq.s32.totalorder %s16, 4
      %p114 = por %p112, %p113
      %p116 = scmp.ne.s32.totalorder %s99, %s115
      %p117 = scmp.eq.s32.totalorder %s16, 0
      %p118 = por %p116, %p117
      %s119 = ssub.s32 %s18, %s32
      %p120 = scmp.eq.s32.totalorder %s119, 0
      %s122 = sadd.s32 %s121, 1
      %s123 = scalar_select %p120, %s121, %s122
      %p126 = pneg %p120
      %p127 = scmp.eq.s32.totalorder %s10, 4
      %p128 = por %p126, %p127
      %p129 = scmp.ne.s32.totalorder %s121, %s124
      %p130 = scmp.eq.s32.totalorder %s10, 0
      %p131 = por %p129, %p130
      %p132 = scmp.ne.s32.totalorder %s121, %s124
      %p133 = scmp.eq.s32.totalorder %s15, 4
      %p134 = por %p132, %p133
      %p135 = scmp.ne.s32.totalorder %s124, %s125
      %p136 = scmp.eq.s32.totalorder %s15, 0
      %p137 = por %p135, %p136
      %p138 = scmp.ne.s32.totalorder %s124, %s125
      %p139 = scmp.eq.s32.totalorder %s16, 4
      %p140 = por %p138, %p139
      %p142 = scmp.ne.s32.totalorder %s125, %s141
      %p143 = scmp.eq.s32.totalorder %s16, 0
      %p144 = por %p142, %p143
      %s145 = ssub.s32 %s17, %s36
      %s146 = ssub.s32 %s18, %s32
      %s147 = sor.u32 %s145, %s146
      %p148 = scmp.eq.s32.totalorder %s147, 0
      %s150 = sadd.s32 %s149, 1
      %s151 = scalar_select %p148, %s149, %s150
      %p154 = pneg %p148
      %p155 = scmp.eq.s32.totalorder %s10, 4
      %p156 = por %p154, %p155
      %p157 = scmp.ne.s32.totalorder %s149, %s152
      %p158 = scmp.eq.s32.totalorder %s10, 0
      %p159 = por %p157, %p158
      %p160 = scmp.ne.s32.totalorder %s149, %s152
      %p161 = scmp.eq.s32.totalorder %s15, 4
      %p162 = por %p160, %p161
      %p163 = scmp.ne.s32.totalorder %s152, %s153
      %p164 = scmp.eq.s32.totalorder %s15, 0
      %p165 = por %p163, %p164
      %p166 = scmp.ne.s32.totalorder %s152, %s153
      %p167 = scmp.eq.s32.totalorder %s16, 4
      %p168 = por %p166, %p167
      %p170 = scmp.ne.s32.totalorder %s153, %s169
      %p171 = scmp.eq.s32.totalorder %s16, 0
      %p172 = por %p170, %p171
      %p173 = scmp.le.s32.totalorder 1, %s10
      %p174 = scmp.lt.s32.totalorder %s10, 6
      %p175 = pnand %p173, %p174
      %p176 = pneg %p175
      // Predicated region
      $region9: #{_lambda_.17} parent=5 // pred_check
        _
      $region10: #{_lambda_.17} parent=5 // pred_check_branch
        %178 = sbr.rel (%p175) target = $region12
      $region11: #{_lambda_.17} parent=5 // pred_region
        %s179 = ssub.s32 %s10, 1
        // Predicated region
        $region13: #{_lambda_.17} parent=11 // pred_check
          %p180 = pneg %p111
        $region14: #{_lambda_.17} parent=11 // pred_check_branch
          %182 = sbr.rel (%p180) target = $region16
        $region15: #{_lambda_.17} parent=11 // pred_region
          %p183 = scmp.lt.s32.totalorder %s21, 0
          %s184 = scalar_select %p183, %s21, 0
          %s185 = scalar_lea.vmem %s2, %s184
        $region16: #{_lambda_.17} parent=11 // pred_fallthru
          _
        // Predicated region
        $region17: #{_lambda_.17} parent=11 // pred_check
          %p186 = pneg %p137
        $region18: #{_lambda_.17} parent=11 // pred_check_branch
          %188 = sbr.rel (%p186) target = $region20
        $region19: #{_lambda_.17} parent=11 // pred_region
          %p189 = scmp.lt.s32.totalorder %s21, 0
          %s190 = scalar_select %p189, %s21, 0
          %s191 = scalar_lea.vmem %s3, %s190
        $region20: #{_lambda_.17} parent=11 // pred_fallthru
          _
      $region12: #{_lambda_.17} parent=5 // pred_fallthru
        _
      %p192 = scmp.lt.s32.totalorder %s10, 5
      // Predicated region
      $region21: #{_lambda_.17} parent=5 // pred_check
        %p193 = pneg %p192
      $region22: #{_lambda_.17} parent=5 // pred_check_branch
        %195 = sbr.rel (%p193) target = $region24
      $region23: #{_lambda_.17} parent=5 // pred_region
        // Predicated region
        $region25: #{_lambda_.17} parent=23 // pred_check
          %p196 = pneg %p51
        $region26: #{_lambda_.17} parent=23 // pred_check_branch
          %198 = sbr.rel (%p196) target = $region28
        $region27: #{_lambda_.17} parent=23 // pred_region
          %s199 = sand.u32 %s41, 1
          %s200 = sand.u32 %s41, 1
          %s201 = smul.addr %s200, 8
          %s202 = scalar_lea.vmem [#allocation3], %s201
          %s203 = smul.u32 2, %s17
          %s204 = smul.addr %s203, 5
          %s205 = sadd.s32 %s19, %s204
          %s206 = smul.addr %s205, 4
          %s207 = scalar_lea.vmem %s0, %s206
          // Predicated region
          $region29: #{_lambda_.17} parent=27 // pred_check
            _
          $region30: #{_lambda_.17} parent=27 // pred_check_branch
            %209 = sbr.rel (0) target = $region32
          $region31: #{_lambda_.17} parent=27 // pred_region
            // Predicated region
            $region33: #{_lambda_.17} parent=31 // pred_check
              _
            $region34: #{_lambda_.17} parent=31 // pred_check_branch
              %211 = sbr.rel target = $region36
            $region35: #{_lambda_.17} parent=31 // pred_region
              // Predicated region
              $region48: #{_lambda_.17} parent=35 // pred_check
                _
              $region49: #{_lambda_.17} parent=35 // pred_check_branch
                %228 = sbr.rel (0) target = $region51
              $region50: #{_lambda_.17} parent=35 // pred_region
                loop: start=0, step=1, limit=1
                $region52: #{_lambda_.17} parent=50 // loop_pre_header
                  _
                $region53: #{_lambda_.17} parent=50 // loop_header
                  %s230 = sphi 0, %s234
                  %p231 = scmp.ge.s32.totalorder %s230, 1
                  %s235 = sphi %s207, %s207
                  %s236 = sphi %s202, %s202
                $region54: #{_lambda_.17} parent=50 // loop_header_branch
                  %233 = sbr.rel (%p231) target = $region58
                $region55: #{_lambda_.17} parent=50 // loop_body
                  _
                $region56: #{_lambda_.17} parent=50 // loop_footer
                  %s234 = sadd.s32 1, %s230
                $region57: #{_lambda_.17} parent=50 // loop_footer_branch
                  %229 = sbr.rel target = $region53
                $region58: #{_lambda_.17} parent=50 // loop_exit
                  _
                loop: start=0, step=1, limit=1
                $region59: #{_lambda_.17} parent=50 // loop_pre_header
                  _
                $region60: #{_lambda_.17} parent=50 // loop_header
                  %s239 = sphi 0, %s243
                  %p240 = scmp.ge.s32.totalorder %s239, 1
                  %s244 = sphi %s207, %s207
                  %s245 = sphi %s202, %s202
                $region61: #{_lambda_.17} parent=50 // loop_header_branch
                  %242 = sbr.rel (%p240) target = $region65
                $region62: #{_lambda_.17} parent=50 // loop_body
                  %v246 = vld [vmem:[%s244] sm:$0xf]
                  %247 = vst [vmem:[%s245] sm:$0xf] %v246
                  %v248 = vld [vmem:[%s244 + $0x14] sm:$0xf]
                  %249 = vst [vmem:[%s245 + $0x4] sm:$0xf] %v248
                $region63: #{_lambda_.17} parent=50 // loop_footer
                  %s243 = sadd.s32 1, %s239
                $region64: #{_lambda_.17} parent=50 // loop_footer_branch
                  %238 = sbr.rel target = $region60
                $region65: #{_lambda_.17} parent=50 // loop_exit
                  _
              $region51: #{_lambda_.17} parent=35 // pred_fallthru
                _
            $region36: #{_lambda_.17} parent=31 // pred_fallthru
              _
            // Predicated region
            $region37: #{_lambda_.17} parent=31 // pred_check
              _
            $region38: #{_lambda_.17} parent=31 // pred_check_branch
              %213 = sbr.rel (0) target = $region40
            $region39: #{_lambda_.17} parent=31 // pred_region
              loop: start=0, step=1, limit=1
              $region41: #{_lambda_.17} parent=39 // loop_pre_header
                _
              $region42: #{_lambda_.17} parent=39 // loop_header
                %s216 = sphi 0, %s220
                %p217 = scmp.ge.s32.totalorder %s216, 1
                %s221 = sphi %s207, %s207
                %s222 = sphi %s202, %s202
              $region43: #{_lambda_.17} parent=39 // loop_header_branch
                %219 = sbr.rel (%p217) target = $region47
              $region44: #{_lambda_.17} parent=39 // loop_body
                %v223 = vld [vmem:[%s221] sm:$0xf]
                %224 = vst [vmem:[%s222] sm:$0xf] %v223
                %v225 = vld [vmem:[%s221 + $0x14] sm:$0xf]
                %226 = vst [vmem:[%s222 + $0x4] sm:$0xf] %v225
              $region45: #{_lambda_.17} parent=39 // loop_footer
                %s220 = sadd.s32 1, %s216
              $region46: #{_lambda_.17} parent=39 // loop_footer_branch
                %215 = sbr.rel target = $region42
              $region47: #{_lambda_.17} parent=39 // loop_exit
                _
            $region40: #{_lambda_.17} parent=31 // pred_fallthru
              _
          $region32: #{_lambda_.17} parent=27 // pred_fallthru
            _
          %250 = vnop
        $region28: #{_lambda_.17} parent=23 // pred_fallthru
          _
        // Predicated region
        $region66: #{_lambda_.17} parent=23 // pred_check
          %p251 = pneg %p79
        $region67: #{_lambda_.17} parent=23 // pred_check_branch
          %253 = sbr.rel (%p251) target = $region69
        $region68: #{_lambda_.17} parent=23 // pred_region
          %s254 = smul.u32 16, %s19
          %p255 = scmp.lt.s32.totalorder %s254, 79
          %s256 = scalar_select %p255, %s254, 79
          %p257 = scmp.lt.s32.totalorder %s18, 0
          %s258 = scalar_select %p257, %s18, 0
          %s259 = sadd.s32 %s258, %s256
          %s260 = smul.addr %s259, 4
          %s261 = scalar_lea.vmem %s1, %s260
          %s262 = smul.u32 16, %s19
        $region69: #{_lambda_.17} parent=23 // pred_fallthru
          _
      $region24: #{_lambda_.17} parent=5 // pred_fallthru
        _
      %p263 = scmp.le.s32.totalorder 1, %s10
      %p264 = scmp.lt.s32.totalorder %s10, 6
      %p265 = pnand %p263, %p264
      %p266 = pneg %p265
      // Predicated region
      $region70: #{_lambda_.17} parent=5 // pred_check
        _
      $region71: #{_lambda_.17} parent=5 // pred_check_branch
        %268 = sbr.rel (%p265) target = $region73
      $region72: #{_lambda_.17} parent=5 // pred_region
        %s269 = ssub.s32 %s10, 1
        %s270 = sand.u32 %s44, 1
        %s271 = sand.u32 %s44, 1
        %s272 = smul.addr %s271, 8
        %s273 = scalar_lea.vmem [#allocation3], %s272
        // Predicated region
        $region74: #{_lambda_.17} parent=72 // pred_check
          %p274 = pneg %p57
        $region75: #{_lambda_.17} parent=72 // pred_check_branch
          %276 = sbr.rel (%p274) target = $region77
        $region76: #{_lambda_.17} parent=72 // pred_region
          _
        $region77: #{_lambda_.17} parent=72 // pred_fallthru
          _
        %s277 = sand.u32 %s44, 1
        %s278 = sand.u32 %s44, 1
        %s279 = smul.addr %s278, 8
        %s280 = scalar_lea.vmem [#allocation3], %s279
        %p281 = pneg %p57
        %p282 = pneg %p54
        %s283 = smul.u32 16, %s22
        %p284 = scmp.lt.s32.totalorder %s283, 79
        %s285 = scalar_select %p284, %s283, 79
        %p286 = scmp.lt.s32.totalorder %s21, 0
        %s287 = scalar_select %p286, %s21, 0
        %s288 = sadd.s32 %s287, %s285
        %s289 = smul.addr %s288, 4
        %s290 = scalar_lea.vmem %s1, %s289
        %p291 = pneg %p85
        %p292 = pneg %p82
        %p293 = scmp.lt.s32.totalorder %s21, 0
        %s294 = scalar_select %p293, %s21, 0
        %s295 = scalar_lea.vmem %s2, %s294
        %p296 = pneg %p111
        %p297 = pneg %p108
        %p298 = scmp.lt.s32.totalorder %s21, 0
        %s299 = scalar_select %p298, %s21, 0
        %s300 = scalar_lea.vmem %s3, %s299
        %p301 = pneg %p137
        %p302 = pneg %p134
        %p303 = pneg %p165
        %p304 = pneg %p162
        %s305 = smul.u32 2, %s20
        %p306 = scmp.lt.s32.totalorder %s305, 1
        %s307 = scalar_select %p306, %s305, 1
        %p308 = scmp.lt.s32.totalorder %s21, 0
        %s309 = scalar_select %p308, %s21, 0
        %s310 = sadd.s32 %s309, %s307
        %s311 = smul.addr %s310, 4
        %s312 = scalar_lea.vmem %s4, %s311
        %s313 = smul.u32 2, %s20
        %s314 = smul.u32 16, %s22
        %p315 = scmp.lt.s32.totalorder %s314, 79
        %s316 = scalar_select %p315, %s314, 79
        %p317 = scmp.lt.s32.totalorder %s21, 0
        %s318 = scalar_select %p317, %s21, 0
        %s319 = sadd.s32 %s318, %s316
        %s320 = smul.addr %s319, 4
        %s321 = scalar_lea.vmem %s1, %s320
        %s322 = smul.u32 16, %s22
        %p323 = scmp.lt.s32.totalorder %s21, 0
        %s324 = scalar_select %p323, %s21, 0
        %s325 = scalar_lea.vmem %s2, %s324
        %p326 = scmp.lt.s32.totalorder %s21, 0
        %s327 = scalar_select %p326, %s21, 0
        %s328 = scalar_lea.vmem %s3, %s327
        %s329 = smul.u32 2, %s20
        %p330 = scmp.lt.s32.totalorder %s329, 1
        %s331 = scalar_select %p330, %s329, 1
        %p332 = scmp.lt.s32.totalorder %s21, 0
        %s333 = scalar_select %p332, %s21, 0
        %s334 = sadd.s32 %s333, %s331
        %s335 = smul.addr %s334, 4
        %s336 = scalar_lea.vmem %s4, %s335
        %s337 = smul.u32 2, %s20
        %p339 = scmp.eq.s32.totalorder %s22, 0
        // Predicated region
        $region78: #{_lambda_.17} parent=72 // pred_check
          %p340 = pneg %p339
        $region79: #{_lambda_.17} parent=72 // pred_check_branch
          %342 = sbr.rel (%p340) target = $region81
        $region80: #{_lambda_.17} parent=72 // pred_region
          %343 = vst [vmem:[#allocation2] sm:$0xff] 0.0
          %344 = vst [vmem:[#allocation2 + $0x8] sm:$0xff] 0.0
        $region81: #{_lambda_.17} parent=72 // pred_fallthru
          _
        %v345 = vld [vmem:[#allocation2] sm:$0xff]
        %v346 = vld [vmem:[#allocation2 + $0x8] sm:$0xff]
        %v347 = vld [vmem:[%s273] sm:$0xf]
        %v348 = vld [vmem:[%s273 + $0x4] sm:$0xf]
        %v349 = vld [vmem:[%s321] sm:$0xf]
        %v350 = vld [vmem:[%s321 + $0x4] sm:$0xf]
        %v351 = vld [vmem:[%s321 + $0x8] sm:$0xf]
        %v352 = vld [vmem:[%s321 + $0xc] sm:$0xf]
        %v353 = vld [vmem:[%s321 + $0x10] sm:$0xf]
        %v354 = vld [vmem:[%s321 + $0x14] sm:$0xf]
        %v355 = vld [vmem:[%s321 + $0x18] sm:$0xf]
        %v356 = vld [vmem:[%s321 + $0x1c] sm:$0xf]
        %v357 = vld [vmem:[%s321 + $0x20] sm:$0xf]
        %v358 = vld [vmem:[%s321 + $0x24] sm:$0xf]
        %v359 = vld [vmem:[%s321 + $0x28] sm:$0xf]
        %v360 = vld [vmem:[%s321 + $0x2c] sm:$0xf]
        %v361 = vld [vmem:[%s321 + $0x30] sm:$0xf]
        %v362 = vld [vmem:[%s321 + $0x34] sm:$0xf]
        %v363 = vld [vmem:[%s321 + $0x38] sm:$0xf]
        %v364 = vld [vmem:[%s321 + $0x3c] sm:$0xf]
        %v367 = vunpack.c.l.b16 %v347
        %v368 = vunpack.c.l.b16 %v348
        %v369 = vpack.c.b16 %v368, %v367
        %v387 = vunpack.c.l.b16 %v349
        %v388 = vunpack.c.l.b16 %v350
        %v389 = vunpack.c.l.b16 %v351
        %v390 = vunpack.c.l.b16 %v352
        %v391 = vunpack.c.l.b16 %v353
        %v392 = vunpack.c.l.b16 %v354
        %v393 = vunpack.c.l.b16 %v355
        %v394 = vunpack.c.l.b16 %v356
        %v395 = vunpack.c.l.b16 %v357
        %v396 = vunpack.c.l.b16 %v358
        %v397 = vunpack.c.l.b16 %v359
        %v398 = vunpack.c.l.b16 %v360
        %v399 = vunpack.c.l.b16 %v361
        %v400 = vunpack.c.l.b16 %v362
        %v401 = vunpack.c.l.b16 %v363
        %v402 = vunpack.c.l.b16 %v364
        %v403 = vpack.c.b16 %v388, %v387
        %v404 = vpack.c.b16 %v390, %v389
        %v405 = vpack.c.b16 %v392, %v391
        %v406 = vpack.c.b16 %v394, %v393
        %v407 = vpack.c.b16 %v396, %v395
        %v408 = vpack.c.b16 %v398, %v397
        %v409 = vpack.c.b16 %v400, %v399
        %v410 = vpack.c.b16 %v402, %v401
        %419 = vmatprep.subr.bf16.mxu0 0
        %420 = vmatpush1.bf16.msra.mxu0 %v403
        %421 = vmatprep.subr.bf16.mxu0 0
        %422 = vmatpush1.bf16.msra.mxu0 %v404
        %423 = vmatprep.subr.bf16.mxu0 0
        %424 = vmatpush1.bf16.msra.mxu0 %v405
        %425 = vmatprep.subr.bf16.mxu0 0
        %426 = vmatpush1.bf16.msra.mxu0 %v406
        %427 = vmatprep.subr.bf16.mxu0 0
        %428 = vmatpush1.bf16.msra.mxu0 %v407
        %429 = vmatprep.subr.bf16.mxu0 0
        %430 = vmatpush1.bf16.msra.mxu0 %v408
        %431 = vmatprep.subr.bf16.mxu0 0
        %432 = vmatpush1.bf16.msra.mxu0 %v409
        %433 = vmatprep.subr.bf16.mxu0 0
        %434 = vmatpush1.bf16.msra.mxu0 %v410
        %435 = vmatprep.subr.bf16.mxu0 0
        %436 = vmatpush1.bf16.msra.mxu0 0
        %437 = vmatprep.subr.bf16.mxu0 0
        %438 = vmatpush1.bf16.msra.mxu0 0
        %439 = vmatprep.subr.bf16.mxu0 0
        %440 = vmatpush1.bf16.msra.mxu0 0
        %441 = vmatprep.subr.bf16.mxu0 0
        %442 = vmatpush1.bf16.msra.mxu0 0
        %443 = vmatprep.subr.bf16.mxu0 0
        %444 = vmatpush1.bf16.msra.mxu0 0
        %445 = vmatprep.subr.bf16.mxu0 0
        %446 = vmatpush1.bf16.msra.mxu0 0
        %447 = vmatprep.subr.bf16.mxu0 0
        %448 = vmatpush1.bf16.msra.mxu0 0
        %449 = vmatprep.subr.bf16.mxu0 0
        %450 = vmatpush1.bf16.msra.mxu0 0
        %451 = vmatprep.mubr.bf16.mxu0 0
        %452 = vmatmul.mubr.bf16.gmra.mrb[0].mxu0 %v369
        %v453 = vpop.f32.mrb[0].mxu0
        %v454 = vadd.f32 0.0, %v453
        %v455 = vpop.f32.mrb[0].mxu0
        %v456 = vpop.f32.mrb[0].mxu0
        %v457 = vadd.f32 0.0, %v456
        %v458 = vpop.f32.mrb[0].mxu0
        %459 = vdwg.mxu0
        %v460 = vadd.f32 %v345, %v454
        %v461 = vadd.f32 %v346, %v457
        %462 = vst [vmem:[#allocation2] sm:$0xff] %v460
        %463 = vst [vmem:[#allocation2 + $0x8] sm:$0xff] %v461
        %p464 = scmp.eq.s32.totalorder %s22, 4
        // Predicated region
        $region82: #{_lambda_.17} parent=72 // pred_check
          %p465 = pneg %p464
        $region83: #{_lambda_.17} parent=72 // pred_check_branch
          %467 = sbr.rel (%p465) target = $region85
        $region84: #{_lambda_.17} parent=72 // pred_region
          %v468 = vld [vmem:[#allocation2] sm:$0xff]
          %v469 = vld [vmem:[#allocation2 + $0x8] sm:$0xff]
          %v470 = vld [vmem:[%s325] sm:$0x1]
          %v472 = vlaneseq
          %v473 = vshrl.u32 %v472, 7
          %v474 = vsub.s32 0, %v473
          %v475 = vrot.slane %v470, %v474
          %v477 = vmul.f32 %v468, %v475
          %v478 = vmul.f32 %v469, %v475
          %v479 = vld [vmem:[%s328] sm:$0x1]
          %v481 = vlaneseq
          %v482 = vshrl.u32 %v481, 7
          %v483 = vsub.s32 0, %v482
          %v484 = vrot.slane %v479, %v483
          %v486 = vadd.f32 %v477, %v484
          %v487 = vadd.f32 %v478, %v484
          %v488 = vmax.f32 %v486, 0.0
          %v489 = vmax.f32 %v487, 0.0
          %v490 = vpack.c.bf16 %v489, %v488
          %v492 = vunpack.c.l.b16 %v490
          %v493 = vunpack.c.h.b16 %v490
          %v494 = vpack.c.b16 %v492, %v492
          %v495 = vpack.c.b16 %v493, %v493
          %498 = vst [vmem:[%s336] sm:$0xf] %v494
          %499 = vst [vmem:[%s336 + $0x4] sm:$0xf] %v495
        $region85: #{_lambda_.17} parent=72 // pred_fallthru
          _
        %s500 = smul.u32 2, %s20
        %p501 = scmp.lt.s32.totalorder %s500, 1
        %s502 = scalar_select %p501, %s500, 1
        %p503 = scmp.lt.s32.totalorder %s21, 0
        %s504 = scalar_select %p503, %s21, 0
        %s505 = sadd.s32 %s504, %s502
        %s506 = smul.addr %s505, 4
        %s507 = scalar_lea.vmem %s4, %s506
        // Predicated region
        $region86: #{_lambda_.17} parent=72 // pred_check
          %p508 = pneg %p162
        $region87: #{_lambda_.17} parent=72 // pred_check_branch
          %510 = sbr.rel (%p508) target = $region89
        $region88: #{_lambda_.17} parent=72 // pred_region
          %s511 = smul.u32 2, %s20
        $region89: #{_lambda_.17} parent=72 // pred_fallthru
          _
        // Predicated region
        $region90: #{_lambda_.17} parent=72 // pred_check
          %p512 = pneg %p162
        $region91: #{_lambda_.17} parent=72 // pred_check_branch
          %514 = sbr.rel (%p512) target = $region93
        $region92: #{_lambda_.17} parent=72 // pred_region
          %s515 = smul.u32 2, %s20
          %p516 = scmp.lt.s32.totalorder %s515, 1
          %s517 = scalar_select %p516, %s515, 1
          %p518 = scmp.lt.s32.totalorder %s21, 0
          %s519 = scalar_select %p518, %s21, 0
          %s520 = sadd.s32 %s519, %s517
          %s521 = smul.addr %s520, 4
          %s522 = scalar_lea.vmem %s4, %s521
        $region93: #{_lambda_.17} parent=72 // pred_fallthru
          _
      $region73: #{_lambda_.17} parent=5 // pred_fallthru
        _
      %p523 = scmp.le.s32.totalorder 2, %s10
      // Predicated region
      $region94: #{_lambda_.17} parent=5 // pred_check
        %p524 = pneg %p523
      $region95: #{_lambda_.17} parent=5 // pred_check_branch
        %526 = sbr.rel (%p524) target = $region97
      $region96: #{_lambda_.17} parent=5 // pred_region
        %s527 = ssub.s32 %s10, 2
      $region97: #{_lambda_.17} parent=5 // pred_fallthru
        _
    $region6: #{_lambda_.17} parent=1 // loop_footer
      %s14 = sadd.s32 1, %s10
    $region7: #{_lambda_.17} parent=1 // loop_footer_branch
      %9 = sbr.rel target = $region3
    $region8: #{_lambda_.17} parent=1 // loop_exit
      _

// kernel: _lambda_.19
$region0: #{_lambda_.19}
  #allocation0 [shape = 'u32[]', space=smem, size = 0x4, offset = 0x4, fixed_abs, tag = 'smem constant byte address 0x4 - core index']
  #allocation1 [shape = 'u32[144,128]{1,0:T(1,128)}', space=vmem, size = 0x12000, scoped, tag = 'internal scratch']
  #allocation2 [shape = 'f32[16,128]{1,0:T(8,128)}', space=vmem, size = 0x2000, scoped, tag = 'scratch operand']
  %s0 = inlined_call_operand.vmem [shape: bf16[16,1152], index: 0, kind: input, shape index: {}]
  %s1 = inlined_call_operand.vmem [shape: bf16[1152,128], index: 1, kind: input, shape index: {}]
  %s2 = inlined_call_operand.vmem [shape: f32[1,128], index: 2, kind: input, shape index: {}]
  %s3 = inlined_call_operand.vmem [shape: f32[1,128], index: 3, kind: input, shape index: {}]
  %s4 = inlined_call_operand.vmem [shape: bf16[16,128], index: 4, kind: input, shape index: {}]
  %s5 = inlined_call_operand.vmem [shape: bf16[16,128], index: 5, kind: output, shape index: {}]
  %s6 = sld [smem:[#allocation0]]
  $region87: #{_lambda_.19} parent=0
    _
  %s8 = ssub.s32 1, %s6
  %s9 = scalar_select 0, %s8, %s6
  $region1: #{_lambda_.19} parent=0
    #allocation3 [shape = 'u8[24576]{0}', space=vmem, size = 0x6000, scoped, tag = 'input window, operand 0']
    loop: start=0, step=1, limit=5
    $region2: #{_lambda_.19} parent=1 // loop_pre_header
      _
    $region3: #{_lambda_.19} parent=1 // loop_header
      %s11 = sphi 0, %s15
      %p12 = scmp.ge.s32.totalorder %s11, 5
      %s18 = sphi 0, %s37
      %s19 = sphi 0, %s33
      %s20 = sphi 0, %s29
      %s21 = sphi 0, %s18
      %s22 = sphi 0, %s19
      %s23 = sphi 0, %s20
      %s24 = sphi 0, %s21
      %s25 = sphi 0, %s22
      %s26 = sphi 0, %s23
      %s42 = sphi 0, %s44
      %s45 = sphi 0, %s42
      %s46 = sphi 0, %s45
      %s62 = sphi 0, %s46
      %s70 = sphi 0, %s72
      %s73 = sphi 0, %s70
      %s74 = sphi 0, %s73
      %s90 = sphi 0, %s74
      %s96 = sphi 0, %s98
      %s99 = sphi 0, %s96
      %s100 = sphi 0, %s99
      %s116 = sphi 0, %s100
      %s122 = sphi 0, %s124
      %s125 = sphi 0, %s122
      %s126 = sphi 0, %s125
      %s142 = sphi 0, %s126
      %s150 = sphi 0, %s152
      %s153 = sphi 0, %s150
      %s154 = sphi 0, %s153
      %s170 = sphi 0, %s154
      %s178 = sphi 0, %s180
      %s181 = sphi 0, %s178
      %s182 = sphi 0, %s181
      %s198 = sphi 0, %s182
    $region4: #{_lambda_.19} parent=1 // loop_header_branch
      %14 = sbr.rel (%p12) target = $region8
    $region5: #{_lambda_.19} parent=1 // loop_body
      %s16 = ssub.s32 %s11, 1
      %s17 = ssub.s32 %s11, 2
      %s27 = sadd.s32 1, %s20
      %p28 = scmp.ge.s32.totalorder %s27, 3
      %s29 = scalar_select %p28, 0, %s27
      %s30 = sadd.s32 1, %s19
      %s31 = scalar_select %p28, %s30, %s19
      %p32 = scmp.ge.s32.totalorder %s31, 1
      %s33 = scalar_select %p32, 0, %s31
      %s34 = sadd.s32 1, %s18
      %s35 = scalar_select %p32, %s34, %s18
      %p36 = scmp.ge.s32.totalorder %s35, 1
      %s37 = scalar_select %p36, 0, %s35
      %s38 = ssub.s32 %s18, %s37
      %s39 = ssub.s32 %s20, %s29
      %s40 = sor.u32 %s38, %s39
      %p41 = scmp.eq.s32.totalorder %s40, 0
      %s43 = sadd.s32 %s42, 1
      %s44 = scalar_select %p41, %s42, %s43
      %p47 = pneg %p41
      %p48 = scmp.eq.s32.totalorder %s11, 2
      %p49 = por %p47, %p48
      %p50 = scmp.ne.s32.totalorder %s42, %s45
      %p51 = scmp.eq.s32.totalorder %s11, 0
      %p52 = por %p50, %p51
      %p53 = scmp.ne.s32.totalorder %s42, %s45
      %p54 = scmp.eq.s32.totalorder %s16, 2
      %p55 = por %p53, %p54
      %p56 = scmp.ne.s32.totalorder %s45, %s46
      %p57 = scmp.eq.s32.totalorder %s16, 0
      %p58 = por %p56, %p57
      %p59 = scmp.ne.s32.totalorder %s45, %s46
      %p60 = scmp.eq.s32.totalorder %s17, 2
      %p61 = por %p59, %p60
      %p63 = scmp.ne.s32.totalorder %s46, %s62
      %p64 = scmp.eq.s32.totalorder %s17, 0
      %p65 = por %p63, %p64
      %s66 = ssub.s32 %s20, %s29
      %s67 = ssub.s32 %s19, %s33
      %s68 = sor.u32 %s66, %s67
      %p69 = scmp.eq.s32.totalorder %s68, 0
      %s71 = sadd.s32 %s70, 1
      %s72 = scalar_select %p69, %s70, %s71
      %p75 = pneg %p69
      %p76 = scmp.eq.s32.totalorder %s11, 2
      %p77 = por %p75, %p76
      %p78 = scmp.ne.s32.totalorder %s70, %s73
      %p79 = scmp.eq.s32.totalorder %s11, 0
      %p80 = por %p78, %p79
      %p81 = scmp.ne.s32.totalorder %s70, %s73
      %p82 = scmp.eq.s32.totalorder %s16, 2
      %p83 = por %p81, %p82
      %p84 = scmp.ne.s32.totalorder %s73, %s74
      %p85 = scmp.eq.s32.totalorder %s16, 0
      %p86 = por %p84, %p85
      %p87 = scmp.ne.s32.totalorder %s73, %s74
      %p88 = scmp.eq.s32.totalorder %s17, 2
      %p89 = por %p87, %p88
      %p91 = scmp.ne.s32.totalorder %s74, %s90
      %p92 = scmp.eq.s32.totalorder %s17, 0
      %p93 = por %p91, %p92
      %s94 = ssub.s32 %s19, %s33
      %p95 = scmp.eq.s32.totalorder %s94, 0
      %s97 = sadd.s32 %s96, 1
      %s98 = scalar_select %p95, %s96, %s97
      %p101 = pneg %p95
      %p102 = scmp.eq.s32.totalorder %s11, 2
      %p103 = por %p101, %p102
      %p104 = scmp.ne.s32.totalorder %s96, %s99
      %p105 = scmp.eq.s32.totalorder %s11, 0
      %p106 = por %p104, %p105
      %p107 = scmp.ne.s32.totalorder %s96, %s99
      %p108 = scmp.eq.s32.totalorder %s16, 2
      %p109 = por %p107, %p108
      %p110 = scmp.ne.s32.totalorder %s99, %s100
      %p111 = scmp.eq.s32.totalorder %s16, 0
      %p112 = por %p110, %p111
      %p113 = scmp.ne.s32.totalorder %s99, %s100
      %p114 = scmp.eq.s32.totalorder %s17, 2
      %p115 = por %p113, %p114
      %p117 = scmp.ne.s32.totalorder %s100, %s116
      %p118 = scmp.eq.s32.totalorder %s17, 0
      %p119 = por %p117, %p118
      %s120 = ssub.s32 %s19, %s33
      %p121 = scmp.eq.s32.totalorder %s120, 0
      %s123 = sadd.s32 %s122, 1
      %s124 = scalar_select %p121, %s122, %s123
      %p127 = pneg %p121
      %p128 = scmp.eq.s32.totalorder %s11, 2
      %p129 = por %p127, %p128
      %p130 = scmp.ne.s32.totalorder %s122, %s125
      %p131 = scmp.eq.s32.totalorder %s11, 0
      %p132 = por %p130, %p131
      %p133 = scmp.ne.s32.totalorder %s122, %s125
      %p134 = scmp.eq.s32.totalorder %s16, 2
      %p135 = por %p133, %p134
      %p136 = scmp.ne.s32.totalorder %s125, %s126
      %p137 = scmp.eq.s32.totalorder %s16, 0
      %p138 = por %p136, %p137
      %p139 = scmp.ne.s32.totalorder %s125, %s126
      %p140 = scmp.eq.s32.totalorder %s17, 2
      %p141 = por %p139, %p140
      %p143 = scmp.ne.s32.totalorder %s126, %s142
      %p144 = scmp.eq.s32.totalorder %s17, 0
      %p145 = por %p143, %p144
      %s146 = ssub.s32 %s18, %s37
      %s147 = ssub.s32 %s19, %s33
      %s148 = sor.u32 %s146, %s147
      %p149 = scmp.eq.s32.totalorder %s148, 0
      %s151 = sadd.s32 %s150, 1
      %s152 = scalar_select %p149, %s150, %s151
      %p155 = pneg %p149
      %p156 = scmp.eq.s32.totalorder %s11, 2
      %p157 = por %p155, %p156
      %p158 = scmp.ne.s32.totalorder %s150, %s153
      %p159 = scmp.eq.s32.totalorder %s11, 0
      %p160 = por %p158, %p159
      %p161 = scmp.ne.s32.totalorder %s150, %s153
      %p162 = scmp.eq.s32.totalorder %s16, 2
      %p163 = por %p161, %p162
      %p164 = scmp.ne.s32.totalorder %s153, %s154
      %p165 = scmp.eq.s32.totalorder %s16, 0
      %p166 = por %p164, %p165
      %p167 = scmp.ne.s32.totalorder %s153, %s154
      %p168 = scmp.eq.s32.totalorder %s17, 2
      %p169 = por %p167, %p168
      %p171 = scmp.ne.s32.totalorder %s154, %s170
      %p172 = scmp.eq.s32.totalorder %s17, 0
      %p173 = por %p171, %p172
      %s174 = ssub.s32 %s18, %s37
      %s175 = ssub.s32 %s19, %s33
      %s176 = sor.u32 %s174, %s175
      %p177 = scmp.eq.s32.totalorder %s176, 0
      %s179 = sadd.s32 %s178, 1
      %s180 = scalar_select %p177, %s178, %s179
      %p183 = pneg %p177
      %p184 = scmp.eq.s32.totalorder %s11, 2
      %p185 = por %p183, %p184
      %p186 = scmp.ne.s32.totalorder %s178, %s181
      %p187 = scmp.eq.s32.totalorder %s11, 0
      %p188 = por %p186, %p187
      %p189 = scmp.ne.s32.totalorder %s178, %s181
      %p190 = scmp.eq.s32.totalorder %s16, 2
      %p191 = por %p189, %p190
      %p192 = scmp.ne.s32.totalorder %s181, %s182
      %p193 = scmp.eq.s32.totalorder %s16, 0
      %p194 = por %p192, %p193
      %p195 = scmp.ne.s32.totalorder %s181, %s182
      %p196 = scmp.eq.s32.totalorder %s17, 2
      %p197 = por %p195, %p196
      %p199 = scmp.ne.s32.totalorder %s182, %s198
      %p200 = scmp.eq.s32.totalorder %s17, 0
      %p201 = por %p199, %p200
      %p202 = scmp.le.s32.totalorder 1, %s11
      %p203 = scmp.lt.s32.totalorder %s11, 4
      %p204 = pnand %p202, %p203
      %p205 = pneg %p204
      // Predicated region
      $region9: #{_lambda_.19} parent=5 // pred_check
        _
      $region10: #{_lambda_.19} parent=5 // pred_check_branch
        %207 = sbr.rel (%p204) target = $region12
      $region11: #{_lambda_.19} parent=5 // pred_region
        %s208 = ssub.s32 %s11, 1
        // Predicated region
        $region13: #{_lambda_.19} parent=11 // pred_check
          %p209 = pneg %p112
        $region14: #{_lambda_.19} parent=11 // pred_check_branch
          %211 = sbr.rel (%p209) target = $region16
        $region15: #{_lambda_.19} parent=11 // pred_region
          %p212 = scmp.lt.s32.totalorder %s22, 0
          %s213 = scalar_select %p212, %s22, 0
          %s214 = scalar_lea.vmem %s2, %s213
        $region16: #{_lambda_.19} parent=11 // pred_fallthru
          _
        // Predicated region
        $region17: #{_lambda_.19} parent=11 // pred_check
          %p215 = pneg %p138
        $region18: #{_lambda_.19} parent=11 // pred_check_branch
          %217 = sbr.rel (%p215) target = $region20
        $region19: #{_lambda_.19} parent=11 // pred_region
          %p218 = scmp.lt.s32.totalorder %s22, 0
          %s219 = scalar_select %p218, %s22, 0
          %s220 = scalar_lea.vmem %s3, %s219
        $region20: #{_lambda_.19} parent=11 // pred_fallthru
          _
        // Predicated region
        $region21: #{_lambda_.19} parent=11 // pred_check
          %p221 = pneg %p166
        $region22: #{_lambda_.19} parent=11 // pred_check_branch
          %223 = sbr.rel (%p221) target = $region24
        $region23: #{_lambda_.19} parent=11 // pred_region
          %s224 = smul.u32 2, %s21
          %p225 = scmp.lt.s32.totalorder %s224, 1
          %s226 = scalar_select %p225, %s224, 1
          %p227 = scmp.lt.s32.totalorder %s22, 0
          %s228 = scalar_select %p227, %s22, 0
          %s229 = sadd.s32 %s228, %s226
          %s230 = smul.addr %s229, 4
          %s231 = scalar_lea.vmem %s4, %s230
          %s232 = smul.u32 2, %s21
        $region24: #{_lambda_.19} parent=11 // pred_fallthru
          _
      $region12: #{_lambda_.19} parent=5 // pred_fallthru
        _
      %p233 = scmp.lt.s32.totalorder %s11, 3
      // Predicated region
      $region25: #{_lambda_.19} parent=5 // pred_check
        %p234 = pneg %p233
      $region26: #{_lambda_.19} parent=5 // pred_check_branch
        %236 = sbr.rel (%p234) target = $region28
      $region27: #{_lambda_.19} parent=5 // pred_region
        // Predicated region
        $region29: #{_lambda_.19} parent=27 // pred_check
          %p237 = pneg %p52
        $region30: #{_lambda_.19} parent=27 // pred_check_branch
          %239 = sbr.rel (%p237) target = $region32
        $region31: #{_lambda_.19} parent=27 // pred_region
          %s240 = sand.u32 %s42, 1
          %s241 = sand.u32 %s42, 1
          %s242 = smul.addr %s241, 24
          %s243 = scalar_lea.vmem [#allocation3], %s242
          %s244 = smul.u32 2, %s18
          %s245 = smul.u32 3, %s20
          %s246 = smul.addr %s244, 9
          %s247 = sadd.s32 %s245, %s246
          %s248 = smul.addr %s247, 4
          %s249 = scalar_lea.vmem %s0, %s248
          // Predicated region
          $region33: #{_lambda_.19} parent=31 // pred_check
            _
          $region34: #{_lambda_.19} parent=31 // pred_check_branch
            %251 = sbr.rel (0) target = $region36
          $region35: #{_lambda_.19} parent=31 // pred_region
            // Predicated region
            $region37: #{_lambda_.19} parent=35 // pred_check
              _
            $region38: #{_lambda_.19} parent=35 // pred_check_branch
              %253 = sbr.rel (0) target = $region40
            $region39: #{_lambda_.19} parent=35 // pred_region
              %s254 = scalar_lea.vmem %s249, 8
              %s255 = scalar_lea.vmem %s243, 8 [#allocation3]
              loop: start=0, step=1, limit=1
              $region41: #{_lambda_.19} parent=39 // loop_pre_header
                _
              $region42: #{_lambda_.19} parent=39 // loop_header
                %s257 = sphi 0, %s261
                %p258 = scmp.ge.s32.totalorder %s257, 1
                %s262 = sphi %s249, %s249
                %s263 = sphi %s243, %s243
              $region43: #{_lambda_.19} parent=39 // loop_header_branch
                %260 = sbr.rel (%p258) target = $region47
              $region44: #{_lambda_.19} parent=39 // loop_body
                %v264 = vld [vmem:[%s262] sm:$0xff]
                %265 = vst [vmem:[%s263] sm:$0xff] %v264
                %v266 = vld [vmem:[%s262 + $0x24] sm:$0xff]
                %267 = vst [vmem:[%s263 + $0xc] sm:$0xff] %v266
              $region45: #{_lambda_.19} parent=39 // loop_footer
                %s261 = sadd.s32 1, %s257
              $region46: #{_lambda_.19} parent=39 // loop_footer_branch
                %256 = sbr.rel target = $region42
              $region47: #{_lambda_.19} parent=39 // loop_exit
                _
              loop: start=0, step=1, limit=1
              $region48: #{_lambda_.19} parent=39 // loop_pre_header
                _
              $region49: #{_lambda_.19} parent=39 // loop_header
                %s270 = sphi 0, %s274
                %p271 = scmp.ge.s32.totalorder %s270, 1
                %s275 = sphi %s254, %s254
                %s276 = sphi %s255, %s255
              $region50: #{_lambda_.19} parent=39 // loop_header_branch
                %273 = sbr.rel (%p271) target = $region54
              $region51: #{_lambda_.19} parent=39 // loop_body
                %v277 = vld [vmem:[%s275] sm:$0xf]
                %278 = vst [vmem:[%s276] sm:$0xf] %v277
                %v279 = vld [vmem:[%s275 + $0x24] sm:$0xf]
                %280 = vst [vmem:[%s276 + $0xc] sm:$0xf] %v279
              $region52: #{_lambda_.19} parent=39 // loop_footer
                %s274 = sadd.s32 1, %s270
              $region53: #{_lambda_.19} parent=39 // loop_footer_branch
                %269 = sbr.rel target = $region49
              $region54: #{_lambda_.19} parent=39 // loop_exit
                _
            $region40: #{_lambda_.19} parent=35 // pred_fallthru
              _
          $region36: #{_lambda_.19} parent=31 // pred_fallthru
            _
          %281 = vnop
        $region32: #{_lambda_.19} parent=27 // pred_fallthru
          _
        // Predicated region
        $region55: #{_lambda_.19} parent=27 // pred_check
          %p282 = pneg %p80
        $region56: #{_lambda_.19} parent=27 // pred_check_branch
          %284 = sbr.rel (%p282) target = $region58
        $region57: #{_lambda_.19} parent=27 // pred_region
          %s285 = smul.u32 48, %s20
          %p286 = scmp.lt.s32.totalorder %s285, 143
          %s287 = scalar_select %p286, %s285, 143
          %p288 = scmp.lt.s32.totalorder %s19, 0
          %s289 = scalar_select %p288, %s19, 0
          %s290 = sadd.s32 %s289, %s287
          %s291 = smul.addr %s290, 4
          %s292 = scalar_lea.vmem %s1, %s291
          %s293 = smul.u32 48, %s20
        $region58: #{_lambda_.19} parent=27 // pred_fallthru
          _
      $region28: #{_lambda_.19} parent=5 // pred_fallthru
        _
      %p294 = scmp.le.s32.totalorder 1, %s11
      %p295 = scmp.lt.s32.totalorder %s11, 4
      %p296 = pnand %p294, %p295
      %p297 = pneg %p296
      // Predicated region
      $region59: #{_lambda_.19} parent=5 // pred_check
        _
      $region60: #{_lambda_.19} parent=5 // pred_check_branch
        %299 = sbr.rel (%p296) target = $region62
      $region61: #{_lambda_.19} parent=5 // pred_region
        %s300 = ssub.s32 %s11, 1
        %s301 = sand.u32 %s45, 1
        %s302 = sand.u32 %s45, 1
        %s303 = smul.addr %s302, 24
        %s304 = scalar_lea.vmem [#allocation3], %s303
        // Predicated region
        $region63: #{_lambda_.19} parent=61 // pred_check
          %p305 = pneg %p58
        $region64: #{_lambda_.19} parent=61 // pred_check_branch
          %307 = sbr.rel (%p305) target = $region66
        $region65: #{_lambda_.19} parent=61 // pred_region
          _
        $region66: #{_lambda_.19} parent=61 // pred_fallthru
          _
        %s308 = sand.u32 %s45, 1
        %s309 = sand.u32 %s45, 1
        %s310 = smul.addr %s309, 24
        %s311 = scalar_lea.vmem [#allocation3], %s310
        %p312 = pneg %p58
        %p313 = pneg %p55
        %s314 = smul.u32 48, %s23
        %p315 = scmp.lt.s32.totalorder %s314, 143
        %s316 = scalar_select %p315, %s314, 143
        %p317 = scmp.lt.s32.totalorder %s22, 0
        %s318 = scalar_select %p317, %s22, 0
        %s319 = sadd.s32 %s318, %s316
        %s320 = smul.addr %s319, 4
        %s321 = scalar_lea.vmem %s1, %s320
        %p322 = pneg %p86
        %p323 = pneg %p83
        %p324 = scmp.lt.s32.totalorder %s22, 0
        %s325 = scalar_select %p324, %s22, 0
        %s326 = scalar_lea.vmem %s2, %s325
        %p327 = pneg %p112
        %p328 = pneg %p109
        %p329 = scmp.lt.s32.totalorder %s22, 0
        %s330 = scalar_select %p329, %s22, 0
        %s331 = scalar_lea.vmem %s3, %s330
        %p332 = pneg %p138
        %p333 = pneg %p135
        %s334 = smul.u32 2, %s21
        %p335 = scmp.lt.s32.totalorder %s334, 1
        %s336 = scalar_select %p335, %s334, 1
        %p337 = scmp.lt.s32.totalorder %s22, 0
        %s338 = scalar_select %p337, %s22, 0
        %s339 = sadd.s32 %s338, %s336
        %s340 = smul.addr %s339, 4
        %s341 = scalar_lea.vmem %s4, %s340
        %p342 = pneg %p166
        %p343 = pneg %p163
        %p344 = pneg %p194
        %p345 = pneg %p191
        %s346 = smul.u32 2, %s21
        %p347 = scmp.lt.s32.totalorder %s346, 1
        %s348 = scalar_select %p347, %s346, 1
        %p349 = scmp.lt.s32.totalorder %s22, 0
        %s350 = scalar_select %p349, %s22, 0
        %s351 = sadd.s32 %s350, %s348
        %s352 = smul.addr %s351, 4
        %s353 = scalar_lea.vmem %s5, %s352
        %s354 = smul.u32 2, %s21
        %s355 = smul.u32 3, %s23
        %s356 = smul.u32 48, %s23
        %p357 = scmp.lt.s32.totalorder %s356, 143
        %s358 = scalar_select %p357, %s356, 143
        %p359 = scmp.lt.s32.totalorder %s22, 0
        %s360 = scalar_select %p359, %s22, 0
        %s361 = sadd.s32 %s360, %s358
        %s362 = smul.addr %s361, 4
        %s363 = scalar_lea.vmem %s1, %s362
        %s364 = smul.u32 48, %s23
        %p365 = scmp.lt.s32.totalorder %s22, 0
        %s366 = scalar_select %p365, %s22, 0
        %s367 = scalar_lea.vmem %s2, %s366
        %p368 = scmp.lt.s32.totalorder %s22, 0
        %s369 = scalar_select %p368, %s22, 0
        %s370 = scalar_lea.vmem %s3, %s369
        %s371 = smul.u32 2, %s21
        %p372 = scmp.lt.s32.totalorder %s371, 1
        %s373 = scalar_select %p372, %s371, 1
        %p374 = scmp.lt.s32.totalorder %s22, 0
        %s375 = scalar_select %p374, %s22, 0
        %s376 = sadd.s32 %s375, %s373
        %s377 = smul.addr %s376, 4
        %s378 = scalar_lea.vmem %s4, %s377
        %s379 = smul.u32 2, %s21
        %s380 = smul.u32 2, %s21
        %p381 = scmp.lt.s32.totalorder %s380, 1
        %s382 = scalar_select %p381, %s380, 1
        %p383 = scmp.lt.s32.totalorder %s22, 0
        %s384 = scalar_select %p383, %s22, 0
        %s385 = sadd.s32 %s384, %s382
        %s386 = smul.addr %s385, 4
        %s387 = scalar_lea.vmem %s5, %s386
        %s388 = smul.u32 2, %s21
        %p390 = scmp.eq.s32.totalorder %s23, 0
        // Predicated region
        $region67: #{_lambda_.19} parent=61 // pred_check
          %p391 = pneg %p390
        $region68: #{_lambda_.19} parent=61 // pred_check_branch
          %393 = sbr.rel (%p391) target = $region70
        $region69: #{_lambda_.19} parent=61 // pred_region
          %394 = vst [vmem:[#allocation2] sm:$0xff] 0.0
          %395 = vst [vmem:[#allocation2 + $0x8] sm:$0xff] 0.0
        $region70: #{_lambda_.19} parent=61 // pred_fallthru
          _
        %v396 = vld [vmem:[#allocation2] sm:$0xff]
        %v397 = vld [vmem:[#allocation2 + $0x8] sm:$0xff]
        %v398 = vld [vmem:[%s304] sm:$0xff]
        %v399 = vld [vmem:[%s304 + $0x8] sm:$0xf]
        %v400 = vld [vmem:[%s304 + $0xc] sm:$0xff]
        %v401 = vld [vmem:[%s304 + $0x14] sm:$0xf]
        %v402 = vld [vmem:[%s363] sm:$0xf]
        %v403 = vld [vmem:[%s363 + $0x4] sm:$0xf]
        %v404 = vld [vmem:[%s363 + $0x8] sm:$0xf]
        %v405 = vld [vmem:[%s363 + $0xc] sm:$0xf]
        %v406 = vld [vmem:[%s363 + $0x10] sm:$0xf]
        %v407 = vld [vmem:[%s363 + $0x14] sm:$0xf]
        %v408 = vld [vmem:[%s363 + $0x18] sm:$0xf]
        %v409 = vld [vmem:[%s363 + $0x1c] sm:$0xf]
        %v410 = vld [vmem:[%s363 + $0x20] sm:$0xf]
        %v411 = vld [vmem:[%s363 + $0x24] sm:$0xf]
        %v412 = vld [vmem:[%s363 + $0x28] sm:$0xf]
        %v413 = vld [vmem:[%s363 + $0x2c] sm:$0xf]
        %v414 = vld [vmem:[%s363 + $0x30] sm:$0xf]
        %v415 = vld [vmem:[%s363 + $0x34] sm:$0xf]
        %v416 = vld [vmem:[%s363 + $0x38] sm:$0xf]
        %v417 = vld [vmem:[%s363 + $0x3c] sm:$0xf]
        %v418 = vld [vmem:[%s363 + $0x40] sm:$0xf]
        %v419 = vld [vmem:[%s363 + $0x44] sm:$0xf]
        %v420 = vld [vmem:[%s363 + $0x48] sm:$0xf]
        %v421 = vld [vmem:[%s363 + $0x4c] sm:$0xf]
        %v422 = vld [vmem:[%s363 + $0x50] sm:$0xf]
        %v423 = vld [vmem:[%s363 + $0x54] sm:$0xf]
        %v424 = vld [vmem:[%s363 + $0x58] sm:$0xf]
        %v425 = vld [vmem:[%s363 + $0x5c] sm:$0xf]
        %v426 = vld [vmem:[%s363 + $0x60] sm:$0xf]
        %v427 = vld [vmem:[%s363 + $0x64] sm:$0xf]
        %v428 = vld [vmem:[%s363 + $0x68] sm:$0xf]
        %v429 = vld [vmem:[%s363 + $0x6c] sm:$0xf]
        %v430 = vld [vmem:[%s363 + $0x70] sm:$0xf]
        %v431 = vld [vmem:[%s363 + $0x74] sm:$0xf]
        %v432 = vld [vmem:[%s363 + $0x78] sm:$0xf]
        %v433 = vld [vmem:[%s363 + $0x7c] sm:$0xf]
        %v434 = vld [vmem:[%s363 + $0x80] sm:$0xf]
        %v435 = vld [vmem:[%s363 + $0x84] sm:$0xf]
        %v436 = vld [vmem:[%s363 + $0x88] sm:$0xf]
        %v437 = vld [vmem:[%s363 + $0x8c] sm:$0xf]
        %v438 = vld [vmem:[%s363 + $0x90] sm:$0xf]
        %v439 = vld [vmem:[%s363 + $0x94] sm:$0xf]
        %v440 = vld [vmem:[%s363 + $0x98] sm:$0xf]
        %v441 = vld [vmem:[%s363 + $0x9c] sm:$0xf]
        %v442 = vld [vmem:[%s363 + $0xa0] sm:$0xf]
        %v443 = vld [vmem:[%s363 + $0xa4] sm:$0xf]
        %v444 = vld [vmem:[%s363 + $0xa8] sm:$0xf]
        %v445 = vld [vmem:[%s363 + $0xac] sm:$0xf]
        %v446 = vld [vmem:[%s363 + $0xb0] sm:$0xf]
        %v447 = vld [vmem:[%s363 + $0xb4] sm:$0xf]
        %v448 = vld [vmem:[%s363 + $0xb8] sm:$0xf]
        %v449 = vld [vmem:[%s363 + $0xbc] sm:$0xf]
        %v454 = vunpack.c.l.b16 %v398
        %v455 = vunpack.c.h.b16 %v398
        %v456 = vunpack.c.l.b16 %v399
        %v457 = vunpack.c.l.b16 %v400
        %v458 = vunpack.c.h.b16 %v400
        %v459 = vunpack.c.l.b16 %v401
        %v460 = vpack.c.b16 %v457, %v454
        %v461 = vpack.c.b16 %v458, %v455
        %v462 = vpack.c.b16 %v459, %v456
        %v514 = vunpack.c.l.b16 %v402
        %v515 = vunpack.c.l.b16 %v403
        %v516 = vunpack.c.l.b16 %v404
        %v517 = vunpack.c.l.b16 %v405
        %v518 = vunpack.c.l.b16 %v406
        %v519 = vunpack.c.l.b16 %v407
        %v520 = vunpack.c.l.b16 %v408
        %v521 = vunpack.c.l.b16 %v409
        %v522 = vunpack.c.l.b16 %v410
        %v523 = vunpack.c.l.b16 %v411
        %v524 = vunpack.c.l.b16 %v412
        %v525 = vunpack.c.l.b16 %v413
        %v526 = vunpack.c.l.b16 %v414
        %v527 = vunpack.c.l.b16 %v415
        %v528 = vunpack.c.l.b16 %v416
        %v529 = vunpack.c.l.b16 %v417
        %v530 = vunpack.c.l.b16 %v418
        %v531 = vunpack.c.l.b16 %v419
        %v532 = vunpack.c.l.b16 %v420
        %v533 = vunpack.c.l.b16 %v421
        %v534 = vunpack.c.l.b16 %v422
        %v535 = vunpack.c.l.b16 %v423
        %v536 = vunpack.c.l.b16 %v424
        %v537 = vunpack.c.l.b16 %v425
        %v538 = vunpack.c.l.b16 %v426
        %v539 = vunpack.c.l.b16 %v427
        %v540 = vunpack.c.l.b16 %v428
        %v541 = vunpack.c.l.b16 %v429
        %v542 = vunpack.c.l.b16 %v430
        %v543 = vunpack.c.l.b16 %v431
        %v544 = vunpack.c.l.b16 %v432
        %v545 = vunpack.c.l.b16 %v433
        %v546 = vunpack.c.l.b16 %v434
        %v547 = vunpack.c.l.b16 %v435
        %v548 = vunpack.c.l.b16 %v436
        %v549 = vunpack.c.l.b16 %v437
        %v550 = vunpack.c.l.b16 %v438
        %v551 = vunpack.c.l.b16 %v439
        %v552 = vunpack.c.l.b16 %v440
        %v553 = vunpack.c.l.b16 %v441
        %v554 = vunpack.c.l.b16 %v442
        %v555 = vunpack.c.l.b16 %v443
        %v556 = vunpack.c.l.b16 %v444
        %v557 = vunpack.c.l.b16 %v445
        %v558 = vunpack.c.l.b16 %v446
        %v559 = vunpack.c.l.b16 %v447
        %v560 = vunpack.c.l.b16 %v448
        %v561 = vunpack.c.l.b16 %v449
        %v562 = vpack.c.b16 %v515, %v514
        %v563 = vpack.c.b16 %v517, %v516
        %v564 = vpack.c.b16 %v519, %v518
        %v565 = vpack.c.b16 %v521, %v520
        %v566 = vpack.c.b16 %v523, %v522
        %v567 = vpack.c.b16 %v525, %v524
        %v568 = vpack.c.b16 %v527, %v526
        %v569 = vpack.c.b16 %v529, %v528
        %v570 = vpack.c.b16 %v531, %v530
        %v571 = vpack.c.b16 %v533, %v532
        %v572 = vpack.c.b16 %v535, %v534
        %v573 = vpack.c.b16 %v537, %v536
        %v574 = vpack.c.b16 %v539, %v538
        %v575 = vpack.c.b16 %v541, %v540
        %v576 = vpack.c.b16 %v543, %v542
        %v577 = vpack.c.b16 %v545, %v544
        %v578 = vpack.c.b16 %v547, %v546
        %v579 = vpack.c.b16 %v549, %v548
        %v580 = vpack.c.b16 %v551, %v550
        %v581 = vpack.c.b16 %v553, %v552
        %v582 = vpack.c.b16 %v555, %v554
        %v583 = vpack.c.b16 %v557, %v556
        %v584 = vpack.c.b16 %v559, %v558
        %v585 = vpack.c.b16 %v561, %v560
        %610 = vmatprep.subr.bf16.mxu0 0
        %611 = vmatpush1.bf16.msra.mxu0 %v562
        %612 = vmatprep.subr.bf16.mxu0 0
        %613 = vmatpush1.bf16.msra.mxu0 %v563
        %614 = vmatprep.subr.bf16.mxu0 0
        %615 = vmatpush1.bf16.msra.mxu0 %v564
        %616 = vmatprep.subr.bf16.mxu0 0
        %617 = vmatpush1.bf16.msra.mxu0 %v565
        %618 = vmatprep.subr.bf16.mxu0 0
        %619 = vmatpush1.bf16.msra.mxu0 %v566
        %620 = vmatprep.subr.bf16.mxu0 0
        %621 = vmatpush1.bf16.msra.mxu0 %v567
        %622 = vmatprep.subr.bf16.mxu0 0
        %623 = vmatpush1.bf16.msra.mxu0 %v568
        %624 = vmatprep.subr.bf16.mxu0 0
        %625 = vmatpush1.bf16.msra.mxu0 %v569
        %626 = vmatprep.subr.bf16.mxu0 0
        %627 = vmatpush1.bf16.msra.mxu0 %v570
        %628 = vmatprep.subr.bf16.mxu0 0
        %629 = vmatpush1.bf16.msra.mxu0 %v571
        %630 = vmatprep.subr.bf16.mxu0 0
        %631 = vmatpush1.bf16.msra.mxu0 %v572
        %632 = vmatprep.subr.bf16.mxu0 0
        %633 = vmatpush1.bf16.msra.mxu0 %v573
        %634 = vmatprep.subr.bf16.mxu0 0
        %635 = vmatpush1.bf16.msra.mxu0 %v574
        %636 = vmatprep.subr.bf16.mxu0 0
        %637 = vmatpush1.bf16.msra.mxu0 %v575
        %638 = vmatprep.subr.bf16.mxu0 0
        %639 = vmatpush1.bf16.msra.mxu0 %v576
        %640 = vmatprep.subr.bf16.mxu0 0
        %641 = vmatpush1.bf16.msra.mxu0 %v577
        %642 = vmatprep.mubr.bf16.mxu0 %v461
        %643 = vmatmul.mubr.bf16.gmra.mrb[0].mxu0 %v460
        %v644 = vpop.f32.mrb[0].mxu0
        %v645 = vadd.f32 0.0, %v644
        %v646 = vpop.f32.mrb[0].mxu0
        %v647 = vpop.f32.mrb[0].mxu0
        %v648 = vadd.f32 0.0, %v647
        %v649 = vpop.f32.mrb[0].mxu0
        %650 = vdwg.mxu0
        %651 = vmatprep.subr.bf16.mxu0 0
        %652 = vmatpush1.bf16.msra.mxu0 %v578
        %653 = vmatprep.subr.bf16.mxu0 0
        %654 = vmatpush1.bf16.msra.mxu0 %v579
        %655 = vmatprep.subr.bf16.mxu0 0
        %656 = vmatpush1.bf16.msra.mxu0 %v580
        %657 = vmatprep.subr.bf16.mxu0 0
        %658 = vmatpush1.bf16.msra.mxu0 %v581
        %659 = vmatprep.subr.bf16.mxu0 0
        %660 = vmatpush1.bf16.msra.mxu0 %v582
        %661 = vmatprep.subr.bf16.mxu0 0
        %662 = vmatpush1.bf16.msra.mxu0 %v583
        %663 = vmatprep.subr.bf16.mxu0 0
        %664 = vmatpush1.bf16.msra.mxu0 %v584
        %665 = vmatprep.subr.bf16.mxu0 0
        %666 = vmatpush1.bf16.msra.mxu0 %v585
        %667 = vmatprep.subr.bf16.mxu0 0
        %668 = vmatpush1.bf16.msra.mxu0 0
        %669 = vmatprep.subr.bf16.mxu0 0
        %670 = vmatpush1.bf16.msra.mxu0 0
        %671 = vmatprep.subr.bf16.mxu0 0
        %672 = vmatpush1.bf16.msra.mxu0 0
        %673 = vmatprep.subr.bf16.mxu0 0
        %674 = vmatpush1.bf16.msra.mxu0 0
        %675 = vmatprep.subr.bf16.mxu0 0
        %676 = vmatpush1.bf16.msra.mxu0 0
        %677 = vmatprep.subr.bf16.mxu0 0
        %678 = vmatpush1.bf16.msra.mxu0 0
        %679 = vmatprep.subr.bf16.mxu0 0
        %680 = vmatpush1.bf16.msra.mxu0 0
        %681 = vmatprep.subr.bf16.mxu0 0
        %682 = vmatpush1.bf16.msra.mxu0 0
        %683 = vmatprep.mubr.bf16.mxu0 0
        %684 = vmatmul.mubr.bf16.gmra.mrb[0].mxu0 %v462
        %v685 = vpop.f32.mrb[0].mxu0
        %v686 = vadd.f32 %v645, %v685
        %v687 = vpop.f32.mrb[0].mxu0
        %v688 = vpop.f32.mrb[0].mxu0
        %v689 = vadd.f32 %v648, %v688
        %v690 = vpop.f32.mrb[0].mxu0
        %691 = vdwg.mxu0
        %v692 = vadd.f32 %v396, %v686
        %v693 = vadd.f32 %v397, %v689
        %694 = vst [vmem:[#allocation2] sm:$0xff] %v692
        %695 = vst [vmem:[#allocation2 + $0x8] sm:$0xff] %v693
        %p696 = scmp.eq.s32.totalorder %s23, 2
        // Predicated region
        $region71: #{_lambda_.19} parent=61 // pred_check
          %p697 = pneg %p696
        $region72: #{_lambda_.19} parent=61 // pred_check_branch
          %699 = sbr.rel (%p697) target = $region74
        $region73: #{_lambda_.19} parent=61 // pred_region
          %v700 = vld [vmem:[#allocation2] sm:$0xff]
          %v701 = vld [vmem:[#allocation2 + $0x8] sm:$0xff]
          %v702 = vld [vmem:[%s367] sm:$0x1]
          %v704 = vlaneseq
          %v705 = vshrl.u32 %v704, 7
          %v706 = vsub.s32 0, %v705
          %v707 = vrot.slane %v702, %v706
          %v709 = vmul.f32 %v700, %v707
          %v710 = vmul.f32 %v701, %v707
          %v711 = vld [vmem:[%s370] sm:$0x1]
          %v713 = vlaneseq
          %v714 = vshrl.u32 %v713, 7
          %v715 = vsub.s32 0, %v714
          %v716 = vrot.slane %v711, %v715
          %v718 = vadd.f32 %v709, %v716
          %v719 = vadd.f32 %v710, %v716
          %v720 = vld [vmem:[%s378] sm:$0xf]
          %v721 = vld [vmem:[%s378 + $0x4] sm:$0xf]
          %v722 = vunpack.c.l.bf16 %v720
          %v723 = vunpack.c.l.bf16 %v721
          %v724 = vadd.f32 %v718, %v722
          %v725 = vadd.f32 %v719, %v723
          %v726 = vmax.f32 %v724, 0.0
          %v727 = vmax.f32 %v725, 0.0
          %v728 = vpack.c.bf16 %v727, %v726
          %v730 = vunpack.c.l.b16 %v728
          %v731 = vunpack.c.h.b16 %v728
          %v732 = vpack.c.b16 %v730, %v730
          %v733 = vpack.c.b16 %v731, %v731
          %736 = vst [vmem:[%s387] sm:$0xf] %v732
          %737 = vst [vmem:[%s387 + $0x4] sm:$0xf] %v733
        $region74: #{_lambda_.19} parent=61 // pred_fallthru
          _
        %s738 = smul.u32 2, %s21
        %p739 = scmp.lt.s32.totalorder %s738, 1
        %s740 = scalar_select %p739, %s738, 1
        %p741 = scmp.lt.s32.totalorder %s22, 0
        %s742 = scalar_select %p741, %s22, 0
        %s743 = sadd.s32 %s742, %s740
        %s744 = smul.addr %s743, 4
        %s745 = scalar_lea.vmem %s5, %s744
        // Predicated region
        $region75: #{_lambda_.19} parent=61 // pred_check
          %p746 = pneg %p191
        $region76: #{_lambda_.19} parent=61 // pred_check_branch
          %748 = sbr.rel (%p746) target = $region78
        $region77: #{_lambda_.19} parent=61 // pred_region
          %s749 = smul.u32 2, %s21
        $region78: #{_lambda_.19} parent=61 // pred_fallthru
          _
        // Predicated region
        $region79: #{_lambda_.19} parent=61 // pred_check
          %p750 = pneg %p191
        $region80: #{_lambda_.19} parent=61 // pred_check_branch
          %752 = sbr.rel (%p750) target = $region82
        $region81: #{_lambda_.19} parent=61 // pred_region
          %s753 = smul.u32 2, %s21
          %p754 = scmp.lt.s32.totalorder %s753, 1
          %s755 = scalar_select %p754, %s753, 1
          %p756 = scmp.lt.s32.totalorder %s22, 0
          %s757 = scalar_select %p756, %s22, 0
          %s758 = sadd.s32 %s757, %s755
          %s759 = smul.addr %s758, 4
          %s760 = scalar_lea.vmem %s5, %s759
        $region82: #{_lambda_.19} parent=61 // pred_fallthru
          _
      $region62: #{_lambda_.19} parent=5 // pred_fallthru
        _
      %p761 = scmp.le.s32.totalorder 2, %s11
      // Predicated region
      $region83: #{_lambda_.19} parent=5 // pred_check
        %p762 = pneg %p761
      $region84: #{_lambda_.19} parent=5 // pred_check_branch
        %764 = sbr.rel (%p762) target = $region86
      $region85: #{_lambda_.19} parent=5 // pred_region
        %s765 = ssub.s32 %s11, 2
      $region86: #{_lambda_.19} parent=5 // pred_fallthru
        _
    $region6: #{_lambda_.19} parent=1 // loop_footer
      %s15 = sadd.s32 1, %s11
    $region7: #{_lambda_.19} parent=1 // loop_footer_branch
      %10 = sbr.rel target = $region3
    $region8: #{_lambda_.19} parent=1 // loop_exit
      _

// kernel: _lambda_.21
$region0: #{_lambda_.21}
  #allocation0 [shape = 'u32[]', space=smem, size = 0x4, offset = 0x4, fixed_abs, tag = 'smem constant byte address 0x4 - core index']
  #allocation1 [shape = 'u32[144,128]{1,0:T(1,128)}', space=vmem, size = 0x12000, scoped, tag = 'internal scratch']
  #allocation2 [shape = 'f32[16,256]{1,0:T(8,128)}', space=vmem, size = 0x4000, scoped, tag = 'scratch operand']
  %s0 = inlined_call_operand.vmem [shape: bf16[16,128], index: 0, kind: input, shape index: {}]
  %s1 = inlined_call_operand.vmem [shape: bf16[128,256], index: 1, kind: input, shape index: {}]
  %s2 = inlined_call_operand.vmem [shape: f32[1,256], index: 2, kind: input, shape index: {}]
  %s3 = inlined_call_operand.vmem [shape: f32[1,256], index: 3, kind: input, shape index: {}]
  %s4 = inlined_call_operand.vmem [shape: bf16[16,256], index: 4, kind: output, shape index: {}]
  %s5 = sld [smem:[#allocation0]]
  $region34: #{_lambda_.21} parent=0
    _
  %s7 = ssub.s32 1, %s5
  %s8 = scalar_select 0, %s7, %s5
  // Predicated region
  $region2: #{_lambda_.21} parent=0 // pred_check
    _
  $region3: #{_lambda_.21} parent=0 // pred_check_branch
    %10 = sbr.rel (0) target = $region5
  $region4: #{_lambda_.21} parent=0 // pred_region
    _
  $region5: #{_lambda_.21} parent=0 // pred_fallthru
    _
  // Predicated region
  $region6: #{_lambda_.21} parent=0 // pred_check
    _
  $region7: #{_lambda_.21} parent=0 // pred_check_branch
    %12 = sbr.rel (0) target = $region9
  $region8: #{_lambda_.21} parent=0 // pred_region
    _
  $region9: #{_lambda_.21} parent=0 // pred_fallthru
    _
  // Predicated region
  $region10: #{_lambda_.21} parent=0 // pred_check
    _
  $region11: #{_lambda_.21} parent=0 // pred_check_branch
    %14 = sbr.rel (0) target = $region13
  $region12: #{_lambda_.21} parent=0 // pred_region
    _
  $region13: #{_lambda_.21} parent=0 // pred_fallthru
    _
  // Predicated region
  $region14: #{_lambda_.21} parent=0 // pred_check
    _
  $region15: #{_lambda_.21} parent=0 // pred_check_branch
    %16 = sbr.rel (0) target = $region17
  $region16: #{_lambda_.21} parent=0 // pred_region
    _
  $region17: #{_lambda_.21} parent=0 // pred_fallthru
    _
  %p18 = scmp.eq.s32.totalorder 0, 0
  // Predicated region
  $region18: #{_lambda_.21} parent=0 // pred_check
    %p19 = pneg %p18
  $region19: #{_lambda_.21} parent=0 // pred_check_branch
    %21 = sbr.rel (%p19) target = $region21
  $region20: #{_lambda_.21} parent=0 // pred_region
    %22 = vst [vmem:[#allocation2] sm:$0xff] 0.0
    %23 = vst [vmem:[#allocation2 + $0x8] sm:$0xff] 0.0
    %24 = vst [vmem:[#allocation2 + $0x10] sm:$0xff] 0.0
    %25 = vst [vmem:[#allocation2 + $0x18] sm:$0xff] 0.0
  $region21: #{_lambda_.21} parent=0 // pred_fallthru
    _
  %v26 = vld [vmem:[#allocation2] sm:$0xff]
  %v27 = vld [vmem:[#allocation2 + $0x8] sm:$0xff]
  %v28 = vld [vmem:[#allocation2 + $0x10] sm:$0xff]
  %v29 = vld [vmem:[#allocation2 + $0x18] sm:$0xff]
  %v30 = vld [vmem:[%s0] sm:$0xf]
  %v31 = vld [vmem:[%s0 + $0x4] sm:$0xf]
  %v32 = vld [vmem:[%s1] sm:$0xff]
  %v33 = vld [vmem:[%s1 + $0x8] sm:$0xff]
  %v34 = vld [vmem:[%s1 + $0x10] sm:$0xff]
  %v35 = vld [vmem:[%s1 + $0x18] sm:$0xff]
  %v36 = vld [vmem:[%s1 + $0x20] sm:$0xff]
  %v37 = vld [vmem:[%s1 + $0x28] sm:$0xff]
  %v38 = vld [vmem:[%s1 + $0x30] sm:$0xff]
  %v39 = vld [vmem:[%s1 + $0x38] sm:$0xff]
  %v40 = vld [vmem:[%s1 + $0x40] sm:$0xff]
  %v41 = vld [vmem:[%s1 + $0x48] sm:$0xff]
  %v42 = vld [vmem:[%s1 + $0x50] sm:$0xff]
  %v43 = vld [vmem:[%s1 + $0x58] sm:$0xff]
  %v44 = vld [vmem:[%s1 + $0x60] sm:$0xff]
  %v45 = vld [vmem:[%s1 + $0x68] sm:$0xff]
  %v46 = vld [vmem:[%s1 + $0x70] sm:$0xff]
  %v47 = vld [vmem:[%s1 + $0x78] sm:$0xff]
  %v50 = vunpack.c.l.b16 %v30
  %v51 = vunpack.c.l.b16 %v31
  %v52 = vpack.c.b16 %v51, %v50
  %v70 = vunpack.c.l.b16 %v32
  %v71 = vunpack.c.h.b16 %v32
  %v72 = vunpack.c.l.b16 %v33
  %v73 = vunpack.c.h.b16 %v33
  %v74 = vunpack.c.l.b16 %v34
  %v75 = vunpack.c.h.b16 %v34
  %v76 = vunpack.c.l.b16 %v35
  %v77 = vunpack.c.h.b16 %v35
  %v78 = vunpack.c.l.b16 %v36
  %v79 = vunpack.c.h.b16 %v36
  %v80 = vunpack.c.l.b16 %v37
  %v81 = vunpack.c.h.b16 %v37
  %v82 = vunpack.c.l.b16 %v38
  %v83 = vunpack.c.h.b16 %v38
  %v84 = vunpack.c.l.b16 %v39
  %v85 = vunpack.c.h.b16 %v39
  %v86 = vunpack.c.l.b16 %v40
  %v87 = vunpack.c.h.b16 %v40
  %v88 = vunpack.c.l.b16 %v41
  %v89 = vunpack.c.h.b16 %v41
  %v90 = vunpack.c.l.b16 %v42
  %v91 = vunpack.c.h.b16 %v42
  %v92 = vunpack.c.l.b16 %v43
  %v93 = vunpack.c.h.b16 %v43
  %v94 = vunpack.c.l.b16 %v44
  %v95 = vunpack.c.h.b16 %v44
  %v96 = vunpack.c.l.b16 %v45
  %v97 = vunpack.c.h.b16 %v45
  %v98 = vunpack.c.l.b16 %v46
  %v99 = vunpack.c.h.b16 %v46
  %v100 = vunpack.c.l.b16 %v47
  %v101 = vunpack.c.h.b16 %v47
  %v102 = vpack.c.b16 %v72, %v70
  %v103 = vpack.c.b16 %v73, %v71
  %v104 = vpack.c.b16 %v76, %v74
  %v105 = vpack.c.b16 %v77, %v75
  %v106 = vpack.c.b16 %v80, %v78
  %v107 = vpack.c.b16 %v81, %v79
  %v108 = vpack.c.b16 %v84, %v82
  %v109 = vpack.c.b16 %v85, %v83
  %v110 = vpack.c.b16 %v88, %v86
  %v111 = vpack.c.b16 %v89, %v87
  %v112 = vpack.c.b16 %v92, %v90
  %v113 = vpack.c.b16 %v93, %v91
  %v114 = vpack.c.b16 %v96, %v94
  %v115 = vpack.c.b16 %v97, %v95
  %v116 = vpack.c.b16 %v100, %v98
  %v117 = vpack.c.b16 %v101, %v99
  %134 = vmatprep.subr.bf16.mxu0 %v103
  %135 = vmatpush1.bf16.msra.mxu0 %v102
  %136 = vmatprep.subr.bf16.mxu0 %v105
  %137 = vmatpush1.bf16.msra.mxu0 %v104
  %138 = vmatprep.subr.bf16.mxu0 %v107
  %139 = vmatpush1.bf16.msra.mxu0 %v106
  %140 = vmatprep.subr.bf16.mxu0 %v109
  %141 = vmatpush1.bf16.msra.mxu0 %v108
  %142 = vmatprep.subr.bf16.mxu0 %v111
  %143 = vmatpush1.bf16.msra.mxu0 %v110
  %144 = vmatprep.subr.bf16.mxu0 %v113
  %145 = vmatpush1.bf16.msra.mxu0 %v112
  %146 = vmatprep.subr.bf16.mxu0 %v115
  %147 = vmatpush1.bf16.msra.mxu0 %v114
  %148 = vmatprep.subr.bf16.mxu0 %v117
  %149 = vmatpush1.bf16.msra.mxu0 %v116
  %150 = vmatprep.subr.bf16.mxu0 0
  %151 = vmatpush1.bf16.msra.mxu0 0
  %152 = vmatprep.subr.bf16.mxu0 0
  %153 = vmatpush1.bf16.msra.mxu0 0
  %154 = vmatprep.subr.bf16.mxu0 0
  %155 = vmatpush1.bf16.msra.mxu0 0
  %156 = vmatprep.subr.bf16.mxu0 0
  %157 = vmatpush1.bf16.msra.mxu0 0
  %158 = vmatprep.subr.bf16.mxu0 0
  %159 = vmatpush1.bf16.msra.mxu0 0
  %160 = vmatprep.subr.bf16.mxu0 0
  %161 = vmatpush1.bf16.msra.mxu0 0
  %162 = vmatprep.subr.bf16.mxu0 0
  %163 = vmatpush1.bf16.msra.mxu0 0
  %164 = vmatprep.subr.bf16.mxu0 0
  %165 = vmatpush1.bf16.msra.mxu0 0
  %166 = vmatprep.mubr.bf16.mxu0 0
  %167 = vmatmul.mubr.bf16.gmra.mrb[0].mxu0 %v52
  %v168 = vpop.f32.mrb[0].mxu0
  %v169 = vadd.f32 0.0, %v168
  %v170 = vpop.f32.mrb[0].mxu0
  %v171 = vadd.f32 0.0, %v170
  %v172 = vpop.f32.mrb[0].mxu0
  %v173 = vadd.f32 0.0, %v172
  %v174 = vpop.f32.mrb[0].mxu0
  %v175 = vadd.f32 0.0, %v174
  %176 = vdwg.mxu0
  %v177 = vadd.f32 %v26, %v169
  %v178 = vadd.f32 %v27, %v171
  %v179 = vadd.f32 %v28, %v173
  %v180 = vadd.f32 %v29, %v175
  %181 = vst [vmem:[#allocation2] sm:$0xff] %v177
  %182 = vst [vmem:[#allocation2 + $0x8] sm:$0xff] %v178
  %183 = vst [vmem:[#allocation2 + $0x10] sm:$0xff] %v179
  %184 = vst [vmem:[#allocation2 + $0x18] sm:$0xff] %v180
  // Predicated region
  $region22: #{_lambda_.21} parent=0 // pred_check
    %p185 = pneg %p18
  $region23: #{_lambda_.21} parent=0 // pred_check_branch
    %187 = sbr.rel (%p185) target = $region25
  $region24: #{_lambda_.21} parent=0 // pred_region
    %v188 = vld [vmem:[#allocation2] sm:$0xff]
    %v189 = vld [vmem:[#allocation2 + $0x8] sm:$0xff]
    %v190 = vld [vmem:[#allocation2 + $0x10] sm:$0xff]
    %v191 = vld [vmem:[#allocation2 + $0x18] sm:$0xff]
    %v192 = vld [vmem:[%s2] sm:$0x3]
    %v194 = vlaneseq
    %v195 = vshrl.u32 %v194, 7
    %v196 = vsub.s32 0, %v195
    %v197 = vrot.slane %v192, %v196
    %v198 = vlaneseq
    %v199 = vshrl.u32 %v198, 7
    %v200 = vsub.s32 1, %v199
    %v201 = vrot.slane %v192, %v200
    %v204 = vmul.f32 %v188, %v197
    %v205 = vmul.f32 %v189, %v201
    %v206 = vmul.f32 %v190, %v197
    %v207 = vmul.f32 %v191, %v201
    %v208 = vld [vmem:[%s3] sm:$0x3]
    %v210 = vlaneseq
    %v211 = vshrl.u32 %v210, 7
    %v212 = vsub.s32 0, %v211
    %v213 = vrot.slane %v208, %v212
    %v214 = vlaneseq
    %v215 = vshrl.u32 %v214, 7
    %v216 = vsub.s32 1, %v215
    %v217 = vrot.slane %v208, %v216
    %v220 = vadd.f32 %v204, %v213
    %v221 = vadd.f32 %v205, %v217
    %v222 = vadd.f32 %v206, %v213
    %v223 = vadd.f32 %v207, %v217
    %v224 = vpack.c.bf16 %v222, %v220
    %v225 = vpack.c.bf16 %v223, %v221
    %v228 = vunpack.c.l.b16 %v224
    %v229 = vunpack.c.l.b16 %v225
    %v230 = vunpack.c.h.b16 %v224
    %v231 = vunpack.c.h.b16 %v225
    %v232 = vpack.c.b16 %v229, %v228
    %v233 = vpack.c.b16 %v231, %v230
    %236 = vst [vmem:[%s4] sm:$0xff] %v232
    %237 = vst [vmem:[%s4 + $0x8] sm:$0xff] %v233
  $region25: #{_lambda_.21} parent=0 // pred_fallthru
    _
  // Predicated region
  $region26: #{_lambda_.21} parent=0 // pred_check
    _
  $region27: #{_lambda_.21} parent=0 // pred_check_branch
    %239 = sbr.rel (0) target = $region29
  $region28: #{_lambda_.21} parent=0 // pred_region
    _
  $region29: #{_lambda_.21} parent=0 // pred_fallthru
    _
  // Predicated region
  $region30: #{_lambda_.21} parent=0 // pred_check
    _
  $region31: #{_lambda_.21} parent=0 // pred_check_branch
    %241 = sbr.rel (0) target = $region33
  $region32: #{_lambda_.21} parent=0 // pred_region
    _
  $region33: #{_lambda_.21} parent=0 // pred_fallthru
    _

// kernel: _lambda_.20
$region0: #{_lambda_.20}
  #allocation0 [shape = 'u32[]', space=smem, size = 0x4, offset = 0x4, fixed_abs, tag = 'smem constant byte address 0x4 - core index']
  #allocation1 [shape = 'u32[144,128]{1,0:T(1,128)}', space=vmem, size = 0x12000, scoped, tag = 'internal scratch']
  #allocation2 [shape = 'f32[16,256]{1,0:T(8,128)}', space=vmem, size = 0x4000, scoped, tag = 'scratch operand']
  %s0 = inlined_call_operand.vmem [shape: bf16[16,1152], index: 0, kind: input, shape index: {}]
  %s1 = inlined_call_operand.vmem [shape: bf16[1152,256], index: 1, kind: input, shape index: {}]
  %s2 = inlined_call_operand.vmem [shape: f32[1,256], index: 2, kind: input, shape index: {}]
  %s3 = inlined_call_operand.vmem [shape: f32[1,256], index: 3, kind: input, shape index: {}]
  %s4 = inlined_call_operand.vmem [shape: bf16[16,256], index: 4, kind: output, shape index: {}]
  %s5 = sld [smem:[#allocation0]]
  $region83: #{_lambda_.20} parent=0
    _
  %s7 = ssub.s32 1, %s5
  %s8 = scalar_select 0, %s7, %s5
  $region1: #{_lambda_.20} parent=0
    #allocation3 [shape = 'u8[24576]{0}', space=vmem, size = 0x6000, scoped, tag = 'input window, operand 0']
    loop: start=0, step=1, limit=5
    $region2: #{_lambda_.20} parent=1 // loop_pre_header
      _
    $region3: #{_lambda_.20} parent=1 // loop_header
      %s10 = sphi 0, %s14
      %p11 = scmp.ge.s32.totalorder %s10, 5
      %s17 = sphi 0, %s36
      %s18 = sphi 0, %s32
      %s19 = sphi 0, %s28
      %s20 = sphi 0, %s17
      %s21 = sphi 0, %s18
      %s22 = sphi 0, %s19
      %s23 = sphi 0, %s20
      %s24 = sphi 0, %s21
      %s25 = sphi 0, %s22
      %s41 = sphi 0, %s43
      %s44 = sphi 0, %s41
      %s45 = sphi 0, %s44
      %s61 = sphi 0, %s45
      %s69 = sphi 0, %s71
      %s72 = sphi 0, %s69
      %s73 = sphi 0, %s72
      %s89 = sphi 0, %s73
      %s95 = sphi 0, %s97
      %s98 = sphi 0, %s95
      %s99 = sphi 0, %s98
      %s115 = sphi 0, %s99
      %s121 = sphi 0, %s123
      %s124 = sphi 0, %s121
      %s125 = sphi 0, %s124
      %s141 = sphi 0, %s125
      %s149 = sphi 0, %s151
      %s152 = sphi 0, %s149
      %s153 = sphi 0, %s152
      %s169 = sphi 0, %s153
    $region4: #{_lambda_.20} parent=1 // loop_header_branch
      %13 = sbr.rel (%p11) target = $region8
    $region5: #{_lambda_.20} parent=1 // loop_body
      %s15 = ssub.s32 %s10, 1
      %s16 = ssub.s32 %s10, 2
      %s26 = sadd.s32 1, %s19
      %p27 = scmp.ge.s32.totalorder %s26, 3
      %s28 = scalar_select %p27, 0, %s26
      %s29 = sadd.s32 1, %s18
      %s30 = scalar_select %p27, %s29, %s18
      %p31 = scmp.ge.s32.totalorder %s30, 1
      %s32 = scalar_select %p31, 0, %s30
      %s33 = sadd.s32 1, %s17
      %s34 = scalar_select %p31, %s33, %s17
      %p35 = scmp.ge.s32.totalorder %s34, 1
      %s36 = scalar_select %p35, 0, %s34
      %s37 = ssub.s32 %s17, %s36
      %s38 = ssub.s32 %s19, %s28
      %s39 = sor.u32 %s37, %s38
      %p40 = scmp.eq.s32.totalorder %s39, 0
      %s42 = sadd.s32 %s41, 1
      %s43 = scalar_select %p40, %s41, %s42
      %p46 = pneg %p40
      %p47 = scmp.eq.s32.totalorder %s10, 2
      %p48 = por %p46, %p47
      %p49 = scmp.ne.s32.totalorder %s41, %s44
      %p50 = scmp.eq.s32.totalorder %s10, 0
      %p51 = por %p49, %p50
      %p52 = scmp.ne.s32.totalorder %s41, %s44
      %p53 = scmp.eq.s32.totalorder %s15, 2
      %p54 = por %p52, %p53
      %p55 = scmp.ne.s32.totalorder %s44, %s45
      %p56 = scmp.eq.s32.totalorder %s15, 0
      %p57 = por %p55, %p56
      %p58 = scmp.ne.s32.totalorder %s44, %s45
      %p59 = scmp.eq.s32.totalorder %s16, 2
      %p60 = por %p58, %p59
      %p62 = scmp.ne.s32.totalorder %s45, %s61
      %p63 = scmp.eq.s32.totalorder %s16, 0
      %p64 = por %p62, %p63
      %s65 = ssub.s32 %s19, %s28
      %s66 = ssub.s32 %s18, %s32
      %s67 = sor.u32 %s65, %s66
      %p68 = scmp.eq.s32.totalorder %s67, 0
      %s70 = sadd.s32 %s69, 1
      %s71 = scalar_select %p68, %s69, %s70
      %p74 = pneg %p68
      %p75 = scmp.eq.s32.totalorder %s10, 2
      %p76 = por %p74, %p75
      %p77 = scmp.ne.s32.totalorder %s69, %s72
      %p78 = scmp.eq.s32.totalorder %s10, 0
      %p79 = por %p77, %p78
      %p80 = scmp.ne.s32.totalorder %s69, %s72
      %p81 = scmp.eq.s32.totalorder %s15, 2
      %p82 = por %p80, %p81
      %p83 = scmp.ne.s32.totalorder %s72, %s73
      %p84 = scmp.eq.s32.totalorder %s15, 0
      %p85 = por %p83, %p84
      %p86 = scmp.ne.s32.totalorder %s72, %s73
      %p87 = scmp.eq.s32.totalorder %s16, 2
      %p88 = por %p86, %p87
      %p90 = scmp.ne.s32.totalorder %s73, %s89
      %p91 = scmp.eq.s32.totalorder %s16, 0
      %p92 = por %p90, %p91
      %s93 = ssub.s32 %s18, %s32
      %p94 = scmp.eq.s32.totalorder %s93, 0
      %s96 = sadd.s32 %s95, 1
      %s97 = scalar_select %p94, %s95, %s96
      %p100 = pneg %p94
      %p101 = scmp.eq.s32.totalorder %s10, 2
      %p102 = por %p100, %p101
      %p103 = scmp.ne.s32.totalorder %s95, %s98
      %p104 = scmp.eq.s32.totalorder %s10, 0
      %p105 = por %p103, %p104
      %p106 = scmp.ne.s32.totalorder %s95, %s98
      %p107 = scmp.eq.s32.totalorder %s15, 2
      %p108 = por %p106, %p107
      %p109 = scmp.ne.s32.totalorder %s98, %s99
      %p110 = scmp.eq.s32.totalorder %s15, 0
      %p111 = por %p109, %p110
      %p112 = scmp.ne.s32.totalorder %s98, %s99
      %p113 = scmp.eq.s32.totalorder %s16, 2
      %p114 = por %p112, %p113
      %p116 = scmp.ne.s32.totalorder %s99, %s115
      %p117 = scmp.eq.s32.totalorder %s16, 0
      %p118 = por %p116, %p117
      %s119 = ssub.s32 %s18, %s32
      %p120 = scmp.eq.s32.totalorder %s119, 0
      %s122 = sadd.s32 %s121, 1
      %s123 = scalar_select %p120, %s121, %s122
      %p126 = pneg %p120
      %p127 = scmp.eq.s32.totalorder %s10, 2
      %p128 = por %p126, %p127
      %p129 = scmp.ne.s32.totalorder %s121, %s124
      %p130 = scmp.eq.s32.totalorder %s10, 0
      %p131 = por %p129, %p130
      %p132 = scmp.ne.s32.totalorder %s121, %s124
      %p133 = scmp.eq.s32.totalorder %s15, 2
      %p134 = por %p132, %p133
      %p135 = scmp.ne.s32.totalorder %s124, %s125
      %p136 = scmp.eq.s32.totalorder %s15, 0
      %p137 = por %p135, %p136
      %p138 = scmp.ne.s32.totalorder %s124, %s125
      %p139 = scmp.eq.s32.totalorder %s16, 2
      %p140 = por %p138, %p139
      %p142 = scmp.ne.s32.totalorder %s125, %s141
      %p143 = scmp.eq.s32.totalorder %s16, 0
      %p144 = por %p142, %p143
      %s145 = ssub.s32 %s17, %s36
      %s146 = ssub.s32 %s18, %s32
      %s147 = sor.u32 %s145, %s146
      %p148 = scmp.eq.s32.totalorder %s147, 0
      %s150 = sadd.s32 %s149, 1
      %s151 = scalar_select %p148, %s149, %s150
      %p154 = pneg %p148
      %p155 = scmp.eq.s32.totalorder %s10, 2
      %p156 = por %p154, %p155
      %p157 = scmp.ne.s32.totalorder %s149, %s152
      %p158 = scmp.eq.s32.totalorder %s10, 0
      %p159 = por %p157, %p158
      %p160 = scmp.ne.s32.totalorder %s149, %s152
      %p161 = scmp.eq.s32.totalorder %s15, 2
      %p162 = por %p160, %p161
      %p163 = scmp.ne.s32.totalorder %s152, %s153
      %p164 = scmp.eq.s32.totalorder %s15, 0
      %p165 = por %p163, %p164
      %p166 = scmp.ne.s32.totalorder %s152, %s153
      %p167 = scmp.eq.s32.totalorder %s16, 2
      %p168 = por %p166, %p167
      %p170 = scmp.ne.s32.totalorder %s153, %s169
      %p171 = scmp.eq.s32.totalorder %s16, 0
      %p172 = por %p170, %p171
      %p173 = scmp.le.s32.totalorder 1, %s10
      %p174 = scmp.lt.s32.totalorder %s10, 4
      %p175 = pnand %p173, %p174
      %p176 = pneg %p175
      // Predicated region
      $region9: #{_lambda_.20} parent=5 // pred_check
        _
      $region10: #{_lambda_.20} parent=5 // pred_check_branch
        %178 = sbr.rel (%p175) target = $region12
      $region11: #{_lambda_.20} parent=5 // pred_region
        %s179 = ssub.s32 %s10, 1
        // Predicated region
        $region13: #{_lambda_.20} parent=11 // pred_check
          %p180 = pneg %p111
        $region14: #{_lambda_.20} parent=11 // pred_check_branch
          %182 = sbr.rel (%p180) target = $region16
        $region15: #{_lambda_.20} parent=11 // pred_region
          %s183 = smul.u32 2, %s21
          %p184 = scmp.lt.s32.totalorder %s183, 1
          %s185 = scalar_select %p184, %s183, 1
          %s186 = scalar_lea.vmem %s2, %s185
          %s187 = smul.u32 2, %s21
        $region16: #{_lambda_.20} parent=11 // pred_fallthru
          _
        // Predicated region
        $region17: #{_lambda_.20} parent=11 // pred_check
          %p188 = pneg %p137
        $region18: #{_lambda_.20} parent=11 // pred_check_branch
          %190 = sbr.rel (%p188) target = $region20
        $region19: #{_lambda_.20} parent=11 // pred_region
          %s191 = smul.u32 2, %s21
          %p192 = scmp.lt.s32.totalorder %s191, 1
          %s193 = scalar_select %p192, %s191, 1
          %s194 = scalar_lea.vmem %s3, %s193
          %s195 = smul.u32 2, %s21
        $region20: #{_lambda_.20} parent=11 // pred_fallthru
          _
      $region12: #{_lambda_.20} parent=5 // pred_fallthru
        _
      %p196 = scmp.lt.s32.totalorder %s10, 3
      // Predicated region
      $region21: #{_lambda_.20} parent=5 // pred_check
        %p197 = pneg %p196
      $region22: #{_lambda_.20} parent=5 // pred_check_branch
        %199 = sbr.rel (%p197) target = $region24
      $region23: #{_lambda_.20} parent=5 // pred_region
        // Predicated region
        $region25: #{_lambda_.20} parent=23 // pred_check
          %p200 = pneg %p51
        $region26: #{_lambda_.20} parent=23 // pred_check_branch
          %202 = sbr.rel (%p200) target = $region28
        $region27: #{_lambda_.20} parent=23 // pred_region
          %s203 = sand.u32 %s41, 1
          %s204 = sand.u32 %s41, 1
          %s205 = smul.addr %s204, 24
          %s206 = scalar_lea.vmem [#allocation3], %s205
          %s207 = smul.u32 2, %s17
          %s208 = smul.u32 3, %s19
          %s209 = smul.addr %s207, 9
          %s210 = sadd.s32 %s208, %s209
          %s211 = smul.addr %s210, 4
          %s212 = scalar_lea.vmem %s0, %s211
          // Predicated region
          $region29: #{_lambda_.20} parent=27 // pred_check
            _
          $region30: #{_lambda_.20} parent=27 // pred_check_branch
            %214 = sbr.rel (0) target = $region32
          $region31: #{_lambda_.20} parent=27 // pred_region
            // Predicated region
            $region33: #{_lambda_.20} parent=31 // pred_check
              _
            $region34: #{_lambda_.20} parent=31 // pred_check_branch
              %216 = sbr.rel (0) target = $region36
            $region35: #{_lambda_.20} parent=31 // pred_region
              %s217 = scalar_lea.vmem %s212, 8
              %s218 = scalar_lea.vmem %s206, 8 [#allocation3]
              loop: start=0, step=1, limit=1
              $region37: #{_lambda_.20} parent=35 // loop_pre_header
                _
              $region38: #{_lambda_.20} parent=35 // loop_header
                %s220 = sphi 0, %s224
                %p221 = scmp.ge.s32.totalorder %s220, 1
                %s225 = sphi %s212, %s212
                %s226 = sphi %s206, %s206
              $region39: #{_lambda_.20} parent=35 // loop_header_branch
                %223 = sbr.rel (%p221) target = $region43
              $region40: #{_lambda_.20} parent=35 // loop_body
                %v227 = vld [vmem:[%s225] sm:$0xff]
                %228 = vst [vmem:[%s226] sm:$0xff] %v227
                %v229 = vld [vmem:[%s225 + $0x24] sm:$0xff]
                %230 = vst [vmem:[%s226 + $0xc] sm:$0xff] %v229
              $region41: #{_lambda_.20} parent=35 // loop_footer
                %s224 = sadd.s32 1, %s220
              $region42: #{_lambda_.20} parent=35 // loop_footer_branch
                %219 = sbr.rel target = $region38
              $region43: #{_lambda_.20} parent=35 // loop_exit
                _
              loop: start=0, step=1, limit=1
              $region44: #{_lambda_.20} parent=35 // loop_pre_header
                _
              $region45: #{_lambda_.20} parent=35 // loop_header
                %s233 = sphi 0, %s237
                %p234 = scmp.ge.s32.totalorder %s233, 1
                %s238 = sphi %s217, %s217
                %s239 = sphi %s218, %s218
              $region46: #{_lambda_.20} parent=35 // loop_header_branch
                %236 = sbr.rel (%p234) target = $region50
              $region47: #{_lambda_.20} parent=35 // loop_body
                %v240 = vld [vmem:[%s238] sm:$0xf]
                %241 = vst [vmem:[%s239] sm:$0xf] %v240
                %v242 = vld [vmem:[%s238 + $0x24] sm:$0xf]
                %243 = vst [vmem:[%s239 + $0xc] sm:$0xf] %v242
              $region48: #{_lambda_.20} parent=35 // loop_footer
                %s237 = sadd.s32 1, %s233
              $region49: #{_lambda_.20} parent=35 // loop_footer_branch
                %232 = sbr.rel target = $region45
              $region50: #{_lambda_.20} parent=35 // loop_exit
                _
            $region36: #{_lambda_.20} parent=31 // pred_fallthru
              _
          $region32: #{_lambda_.20} parent=27 // pred_fallthru
            _
          %244 = vnop
        $region28: #{_lambda_.20} parent=23 // pred_fallthru
          _
        // Predicated region
        $region51: #{_lambda_.20} parent=23 // pred_check
          %p245 = pneg %p79
        $region52: #{_lambda_.20} parent=23 // pred_check_branch
          %247 = sbr.rel (%p245) target = $region54
        $region53: #{_lambda_.20} parent=23 // pred_region
          %s248 = smul.u32 48, %s19
          %s249 = smul.u32 2, %s18
          %p250 = scmp.lt.s32.totalorder %s248, 143
          %s251 = scalar_select %p250, %s248, 143
          %p252 = scmp.lt.s32.totalorder %s249, 1
          %s253 = scalar_select %p252, %s249, 1
          %s254 = smul.addr %s251, 2
          %s255 = sadd.s32 %s253, %s254
          %s256 = smul.addr %s255, 4
          %s257 = scalar_lea.vmem %s1, %s256
          %s258 = smul.u32 48, %s19
          %s259 = smul.u32 2, %s18
        $region54: #{_lambda_.20} parent=23 // pred_fallthru
          _
      $region24: #{_lambda_.20} parent=5 // pred_fallthru
        _
      %p260 = scmp.le.s32.totalorder 1, %s10
      %p261 = scmp.lt.s32.totalorder %s10, 4
      %p262 = pnand %p260, %p261
      %p263 = pneg %p262
      // Predicated region
      $region55: #{_lambda_.20} parent=5 // pred_check
        _
      $region56: #{_lambda_.20} parent=5 // pred_check_branch
        %265 = sbr.rel (%p262) target = $region58
      $region57: #{_lambda_.20} parent=5 // pred_region
        %s266 = ssub.s32 %s10, 1
        %s267 = sand.u32 %s44, 1
        %s268 = sand.u32 %s44, 1
        %s269 = smul.addr %s268, 24
        %s270 = scalar_lea.vmem [#allocation3], %s269
        // Predicated region
        $region59: #{_lambda_.20} parent=57 // pred_check
          %p271 = pneg %p57
        $region60: #{_lambda_.20} parent=57 // pred_check_branch
          %273 = sbr.rel (%p271) target = $region62
        $region61: #{_lambda_.20} parent=57 // pred_region
          _
        $region62: #{_lambda_.20} parent=57 // pred_fallthru
          _
        %s274 = sand.u32 %s44, 1
        %s275 = sand.u32 %s44, 1
        %s276 = smul.addr %s275, 24
        %s277 = scalar_lea.vmem [#allocation3], %s276
        %p278 = pneg %p57
        %p279 = pneg %p54
        %s280 = smul.u32 48, %s22
        %s281 = smul.u32 2, %s21
        %p282 = scmp.lt.s32.totalorder %s280, 143
        %s283 = scalar_select %p282, %s280, 143
        %p284 = scmp.lt.s32.totalorder %s281, 1
        %s285 = scalar_select %p284, %s281, 1
        %s286 = smul.addr %s283, 2
        %s287 = sadd.s32 %s285, %s286
        %s288 = smul.addr %s287, 4
        %s289 = scalar_lea.vmem %s1, %s288
        %p290 = pneg %p85
        %p291 = pneg %p82
        %s292 = smul.u32 2, %s21
        %p293 = scmp.lt.s32.totalorder %s292, 1
        %s294 = scalar_select %p293, %s292, 1
        %s295 = scalar_lea.vmem %s2, %s294
        %p296 = pneg %p111
        %p297 = pneg %p108
        %s298 = smul.u32 2, %s21
        %p299 = scmp.lt.s32.totalorder %s298, 1
        %s300 = scalar_select %p299, %s298, 1
        %s301 = scalar_lea.vmem %s3, %s300
        %p302 = pneg %p137
        %p303 = pneg %p134
        %p304 = pneg %p165
        %p305 = pneg %p162
        %s306 = smul.u32 2, %s20
        %s307 = smul.u32 2, %s21
        %p308 = scmp.lt.s32.totalorder %s306, 1
        %s309 = scalar_select %p308, %s306, 1
        %p310 = scmp.lt.s32.totalorder %s307, 1
        %s311 = scalar_select %p310, %s307, 1
        %s312 = smul.addr %s309, 2
        %s313 = sadd.s32 %s311, %s312
        %s314 = smul.addr %s313, 4
        %s315 = scalar_lea.vmem %s4, %s314
        %s316 = smul.u32 2, %s20
        %s317 = smul.u32 3, %s22
        %s318 = smul.u32 48, %s22
        %s319 = smul.u32 2, %s21
        %p320 = scmp.lt.s32.totalorder %s318, 143
        %s321 = scalar_select %p320, %s318, 143
        %p322 = scmp.lt.s32.totalorder %s319, 1
        %s323 = scalar_select %p322, %s319, 1
        %s324 = smul.addr %s321, 2
        %s325 = sadd.s32 %s323, %s324
        %s326 = smul.addr %s325, 4
        %s327 = scalar_lea.vmem %s1, %s326
        %s328 = smul.u32 48, %s22
        %s329 = smul.u32 2, %s21
        %s330 = smul.u32 2, %s21
        %p331 = scmp.lt.s32.totalorder %s330, 1
        %s332 = scalar_select %p331, %s330, 1
        %s333 = scalar_lea.vmem %s2, %s332
        %s334 = smul.u32 2, %s21
        %s335 = smul.u32 2, %s21
        %p336 = scmp.lt.s32.totalorder %s335, 1
        %s337 = scalar_select %p336, %s335, 1
        %s338 = scalar_lea.vmem %s3, %s337
        %s339 = smul.u32 2, %s21
        %s340 = smul.u32 2, %s20
        %s341 = smul.u32 2, %s21
        %p342 = scmp.lt.s32.totalorder %s340, 1
        %s343 = scalar_select %p342, %s340, 1
        %p344 = scmp.lt.s32.totalorder %s341, 1
        %s345 = scalar_select %p344, %s341, 1
        %s346 = smul.addr %s343, 2
        %s347 = sadd.s32 %s345, %s346
        %s348 = smul.addr %s347, 4
        %s349 = scalar_lea.vmem %s4, %s348
        %s350 = smul.u32 2, %s20
        %s351 = smul.u32 2, %s21
        %p353 = scmp.eq.s32.totalorder %s22, 0
        // Predicated region
        $region63: #{_lambda_.20} parent=57 // pred_check
          %p354 = pneg %p353
        $region64: #{_lambda_.20} parent=57 // pred_check_branch
          %356 = sbr.rel (%p354) target = $region66
        $region65: #{_lambda_.20} parent=57 // pred_region
          %357 = vst [vmem:[#allocation2] sm:$0xff] 0.0
          %358 = vst [vmem:[#allocation2 + $0x8] sm:$0xff] 0.0
          %359 = vst [vmem:[#allocation2 + $0x10] sm:$0xff] 0.0
          %360 = vst [vmem:[#allocation2 + $0x18] sm:$0xff] 0.0
        $region66: #{_lambda_.20} parent=57 // pred_fallthru
          _
        %v361 = vld [vmem:[#allocation2] sm:$0xff]
        %v362 = vld [vmem:[#allocation2 + $0x8] sm:$0xff]
        %v363 = vld [vmem:[#allocation2 + $0x10] sm:$0xff]
        %v364 = vld [vmem:[#allocation2 + $0x18] sm:$0xff]
        %v365 = vld [vmem:[%s270] sm:$0xff]
        %v366 = vld [vmem:[%s270 + $0x8] sm:$0xf]
        %v367 = vld [vmem:[%s270 + $0xc] sm:$0xff]
        %v368 = vld [vmem:[%s270 + $0x14] sm:$0xf]
        %v369 = vld [vmem:[%s327] sm:$0xff]
        %v370 = vld [vmem:[%s327 + $0x8] sm:$0xff]
        %v371 = vld [vmem:[%s327 + $0x10] sm:$0xff]
        %v372 = vld [vmem:[%s327 + $0x18] sm:$0xff]
        %v373 = vld [vmem:[%s327 + $0x20] sm:$0xff]
        %v374 = vld [vmem:[%s327 + $0x28] sm:$0xff]
        %v375 = vld [vmem:[%s327 + $0x30] sm:$0xff]
        %v376 = vld [vmem:[%s327 + $0x38] sm:$0xff]
        %v377 = vld [vmem:[%s327 + $0x40] sm:$0xff]
        %v378 = vld [vmem:[%s327 + $0x48] sm:$0xff]
        %v379 = vld [vmem:[%s327 + $0x50] sm:$0xff]
        %v380 = vld [vmem:[%s327 + $0x58] sm:$0xff]
        %v381 = vld [vmem:[%s327 + $0x60] sm:$0xff]
        %v382 = vld [vmem:[%s327 + $0x68] sm:$0xff]
        %v383 = vld [vmem:[%s327 + $0x70] sm:$0xff]
        %v384 = vld [vmem:[%s327 + $0x78] sm:$0xff]
        %v385 = vld [vmem:[%s327 + $0x80] sm:$0xff]
        %v386 = vld [vmem:[%s327 + $0x88] sm:$0xff]
        %v387 = vld [vmem:[%s327 + $0x90] sm:$0xff]
        %v388 = vld [vmem:[%s327 + $0x98] sm:$0xff]
        %v389 = vld [vmem:[%s327 + $0xa0] sm:$0xff]
        %v390 = vld [vmem:[%s327 + $0xa8] sm:$0xff]
        %v391 = vld [vmem:[%s327 + $0xb0] sm:$0xff]
        %v392 = vld [vmem:[%s327 + $0xb8] sm:$0xff]
        %v393 = vld [vmem:[%s327 + $0xc0] sm:$0xff]
        %v394 = vld [vmem:[%s327 + $0xc8] sm:$0xff]
        %v395 = vld [vmem:[%s327 + $0xd0] sm:$0xff]
        %v396 = vld [vmem:[%s327 + $0xd8] sm:$0xff]
        %v397 = vld [vmem:[%s327 + $0xe0] sm:$0xff]
        %v398 = vld [vmem:[%s327 + $0xe8] sm:$0xff]
        %v399 = vld [vmem:[%s327 + $0xf0] sm:$0xff]
        %v400 = vld [vmem:[%s327 + $0xf8] sm:$0xff]
        %v401 = vld [vmem:[%s327 + $0x100] sm:$0xff]
        %v402 = vld [vmem:[%s327 + $0x108] sm:$0xff]
        %v403 = vld [vmem:[%s327 + $0x110] sm:$0xff]
        %v404 = vld [vmem:[%s327 + $0x118] sm:$0xff]
        %v405 = vld [vmem:[%s327 + $0x120] sm:$0xff]
        %v406 = vld [vmem:[%s327 + $0x128] sm:$0xff]
        %v407 = vld [vmem:[%s327 + $0x130] sm:$0xff]
        %v408 = vld [vmem:[%s327 + $0x138] sm:$0xff]
        %v409 = vld [vmem:[%s327 + $0x140] sm:$0xff]
        %v410 = vld [vmem:[%s327 + $0x148] sm:$0xff]
        %v411 = vld [vmem:[%s327 + $0x150] sm:$0xff]
        %v412 = vld [vmem:[%s327 + $0x158] sm:$0xff]
        %v413 = vld [vmem:[%s327 + $0x160] sm:$0xff]
        %v414 = vld [vmem:[%s327 + $0x168] sm:$0xff]
        %v415 = vld [vmem:[%s327 + $0x170] sm:$0xff]
        %v416 = vld [vmem:[%s327 + $0x178] sm:$0xff]
        %v421 = vunpack.c.l.b16 %v365
        %v422 = vunpack.c.h.b16 %v365
        %v423 = vunpack.c.l.b16 %v366
        %v424 = vunpack.c.l.b16 %v367
        %v425 = vunpack.c.h.b16 %v367
        %v426 = vunpack.c.l.b16 %v368
        %v427 = vpack.c.b16 %v424, %v421
        %v428 = vpack.c.b16 %v425, %v422
        %v429 = vpack.c.b16 %v426, %v423
        %v481 = vunpack.c.l.b16 %v369
        %v482 = vunpack.c.h.b16 %v369
        %v483 = vunpack.c.l.b16 %v370
        %v484 = vunpack.c.h.b16 %v370
        %v485 = vunpack.c.l.b16 %v371
        %v486 = vunpack.c.h.b16 %v371
        %v487 = vunpack.c.l.b16 %v372
        %v488 = vunpack.c.h.b16 %v372
        %v489 = vunpack.c.l.b16 %v373
        %v490 = vunpack.c.h.b16 %v373
        %v491 = vunpack.c.l.b16 %v374
        %v492 = vunpack.c.h.b16 %v374
        %v493 = vunpack.c.l.b16 %v375
        %v494 = vunpack.c.h.b16 %v375
        %v495 = vunpack.c.l.b16 %v376
        %v496 = vunpack.c.h.b16 %v376
        %v497 = vunpack.c.l.b16 %v377
        %v498 = vunpack.c.h.b16 %v377
        %v499 = vunpack.c.l.b16 %v378
        %v500 = vunpack.c.h.b16 %v378
        %v501 = vunpack.c.l.b16 %v379
        %v502 = vunpack.c.h.b16 %v379
        %v503 = vunpack.c.l.b16 %v380
        %v504 = vunpack.c.h.b16 %v380
        %v505 = vunpack.c.l.b16 %v381
        %v506 = vunpack.c.h.b16 %v381
        %v507 = vunpack.c.l.b16 %v382
        %v508 = vunpack.c.h.b16 %v382
        %v509 = vunpack.c.l.b16 %v383
        %v510 = vunpack.c.h.b16 %v383
        %v511 = vunpack.c.l.b16 %v384
        %v512 = vunpack.c.h.b16 %v384
        %v513 = vunpack.c.l.b16 %v385
        %v514 = vunpack.c.h.b16 %v385
        %v515 = vunpack.c.l.b16 %v386
        %v516 = vunpack.c.h.b16 %v386
        %v517 = vunpack.c.l.b16 %v387
        %v518 = vunpack.c.h.b16 %v387
        %v519 = vunpack.c.l.b16 %v388
        %v520 = vunpack.c.h.b16 %v388
        %v521 = vunpack.c.l.b16 %v389
        %v522 = vunpack.c.h.b16 %v389
        %v523 = vunpack.c.l.b16 %v390
        %v524 = vunpack.c.h.b16 %v390
        %v525 = vunpack.c.l.b16 %v391
        %v526 = vunpack.c.h.b16 %v391
        %v527 = vunpack.c.l.b16 %v392
        %v528 = vunpack.c.h.b16 %v392
        %v529 = vunpack.c.l.b16 %v393
        %v530 = vunpack.c.h.b16 %v393
        %v531 = vunpack.c.l.b16 %v394
        %v532 = vunpack.c.h.b16 %v394
        %v533 = vunpack.c.l.b16 %v395
        %v534 = vunpack.c.h.b16 %v395
        %v535 = vunpack.c.l.b16 %v396
        %v536 = vunpack.c.h.b16 %v396
        %v537 = vunpack.c.l.b16 %v397
        %v538 = vunpack.c.h.b16 %v397
        %v539 = vunpack.c.l.b16 %v398
        %v540 = vunpack.c.h.b16 %v398
        %v541 = vunpack.c.l.b16 %v399
        %v542 = vunpack.c.h.b16 %v399
        %v543 = vunpack.c.l.b16 %v400
        %v544 = vunpack.c.h.b16 %v400
        %v545 = vunpack.c.l.b16 %v401
        %v546 = vunpack.c.h.b16 %v401
        %v547 = vunpack.c.l.b16 %v402
        %v548 = vunpack.c.h.b16 %v402
        %v549 = vunpack.c.l.b16 %v403
        %v550 = vunpack.c.h.b16 %v403
        %v551 = vunpack.c.l.b16 %v404
        %v552 = vunpack.c.h.b16 %v404
        %v553 = vunpack.c.l.b16 %v405
        %v554 = vunpack.c.h.b16 %v405
        %v555 = vunpack.c.l.b16 %v406
        %v556 = vunpack.c.h.b16 %v406
        %v557 = vunpack.c.l.b16 %v407
        %v558 = vunpack.c.h.b16 %v407
        %v559 = vunpack.c.l.b16 %v408
        %v560 = vunpack.c.h.b16 %v408
        %v561 = vunpack.c.l.b16 %v409
        %v562 = vunpack.c.h.b16 %v409
        %v563 = vunpack.c.l.b16 %v410
        %v564 = vunpack.c.h.b16 %v410
        %v565 = vunpack.c.l.b16 %v411
        %v566 = vunpack.c.h.b16 %v411
        %v567 = vunpack.c.l.b16 %v412
        %v568 = vunpack.c.h.b16 %v412
        %v569 = vunpack.c.l.b16 %v413
        %v570 = vunpack.c.h.b16 %v413
        %v571 = vunpack.c.l.b16 %v414
        %v572 = vunpack.c.h.b16 %v414
        %v573 = vunpack.c.l.b16 %v415
        %v574 = vunpack.c.h.b16 %v415
        %v575 = vunpack.c.l.b16 %v416
        %v576 = vunpack.c.h.b16 %v416
        %v577 = vpack.c.b16 %v483, %v481
        %v578 = vpack.c.b16 %v484, %v482
        %v579 = vpack.c.b16 %v487, %v485
        %v580 = vpack.c.b16 %v488, %v486
        %v581 = vpack.c.b16 %v491, %v489
        %v582 = vpack.c.b16 %v492, %v490
        %v583 = vpack.c.b16 %v495, %v493
        %v584 = vpack.c.b16 %v496, %v494
        %v585 = vpack.c.b16 %v499, %v497
        %v586 = vpack.c.b16 %v500, %v498
        %v587 = vpack.c.b16 %v503, %v501
        %v588 = vpack.c.b16 %v504, %v502
        %v589 = vpack.c.b16 %v507, %v505
        %v590 = vpack.c.b16 %v508, %v506
        %v591 = vpack.c.b16 %v511, %v509
        %v592 = vpack.c.b16 %v512, %v510
        %v593 = vpack.c.b16 %v515, %v513
        %v594 = vpack.c.b16 %v516, %v514
        %v595 = vpack.c.b16 %v519, %v517
        %v596 = vpack.c.b16 %v520, %v518
        %v597 = vpack.c.b16 %v523, %v521
        %v598 = vpack.c.b16 %v524, %v522
        %v599 = vpack.c.b16 %v527, %v525
        %v600 = vpack.c.b16 %v528, %v526
        %v601 = vpack.c.b16 %v531, %v529
        %v602 = vpack.c.b16 %v532, %v530
        %v603 = vpack.c.b16 %v535, %v533
        %v604 = vpack.c.b16 %v536, %v534
        %v605 = vpack.c.b16 %v539, %v537
        %v606 = vpack.c.b16 %v540, %v538
        %v607 = vpack.c.b16 %v543, %v541
        %v608 = vpack.c.b16 %v544, %v542
        %v609 = vpack.c.b16 %v547, %v545
        %v610 = vpack.c.b16 %v548, %v546
        %v611 = vpack.c.b16 %v551, %v549
        %v612 = vpack.c.b16 %v552, %v550
        %v613 = vpack.c.b16 %v555, %v553
        %v614 = vpack.c.b16 %v556, %v554
        %v615 = vpack.c.b16 %v559, %v557
        %v616 = vpack.c.b16 %v560, %v558
        %v617 = vpack.c.b16 %v563, %v561
        %v618 = vpack.c.b16 %v564, %v562
        %v619 = vpack.c.b16 %v567, %v565
        %v620 = vpack.c.b16 %v568, %v566
        %v621 = vpack.c.b16 %v571, %v569
        %v622 = vpack.c.b16 %v572, %v570
        %v623 = vpack.c.b16 %v575, %v573
        %v624 = vpack.c.b16 %v576, %v574
        %673 = vmatprep.subr.bf16.mxu0 %v578
        %674 = vmatpush1.bf16.msra.mxu0 %v577
        %675 = vmatprep.subr.bf16.mxu0 %v580
        %676 = vmatpush1.bf16.msra.mxu0 %v579
        %677 = vmatprep.subr.bf16.mxu0 %v582
        %678 = vmatpush1.bf16.msra.mxu0 %v581
        %679 = vmatprep.subr.bf16.mxu0 %v584
        %680 = vmatpush1.bf16.msra.mxu0 %v583
        %681 = vmatprep.subr.bf16.mxu0 %v586
        %682 = vmatpush1.bf16.msra.mxu0 %v585
        %683 = vmatprep.subr.bf16.mxu0 %v588
        %684 = vmatpush1.bf16.msra.mxu0 %v587
        %685 = vmatprep.subr.bf16.mxu0 %v590
        %686 = vmatpush1.bf16.msra.mxu0 %v589
        %687 = vmatprep.subr.bf16.mxu0 %v592
        %688 = vmatpush1.bf16.msra.mxu0 %v591
        %689 = vmatprep.subr.bf16.mxu0 %v594
        %690 = vmatpush1.bf16.msra.mxu0 %v593
        %691 = vmatprep.subr.bf16.mxu0 %v596
        %692 = vmatpush1.bf16.msra.mxu0 %v595
        %693 = vmatprep.subr.bf16.mxu0 %v598
        %694 = vmatpush1.bf16.msra.mxu0 %v597
        %695 = vmatprep.subr.bf16.mxu0 %v600
        %696 = vmatpush1.bf16.msra.mxu0 %v599
        %697 = vmatprep.subr.bf16.mxu0 %v602
        %698 = vmatpush1.bf16.msra.mxu0 %v601
        %699 = vmatprep.subr.bf16.mxu0 %v604
        %700 = vmatpush1.bf16.msra.mxu0 %v603
        %701 = vmatprep.subr.bf16.mxu0 %v606
        %702 = vmatpush1.bf16.msra.mxu0 %v605
        %703 = vmatprep.subr.bf16.mxu0 %v608
        %704 = vmatpush1.bf16.msra.mxu0 %v607
        %705 = vmatprep.mubr.bf16.mxu0 %v428
        %706 = vmatmul.mubr.bf16.gmra.mrb[0].mxu0 %v427
        %v707 = vpop.f32.mrb[0].mxu0
        %v708 = vadd.f32 0.0, %v707
        %v709 = vpop.f32.mrb[0].mxu0
        %v710 = vadd.f32 0.0, %v709
        %v711 = vpop.f32.mrb[0].mxu0
        %v712 = vadd.f32 0.0, %v711
        %v713 = vpop.f32.mrb[0].mxu0
        %v714 = vadd.f32 0.0, %v713
        %715 = vdwg.mxu0
        %716 = vmatprep.subr.bf16.mxu0 %v610
        %717 = vmatpush1.bf16.msra.mxu0 %v609
        %718 = vmatprep.subr.bf16.mxu0 %v612
        %719 = vmatpush1.bf16.msra.mxu0 %v611
        %720 = vmatprep.subr.bf16.mxu0 %v614
        %721 = vmatpush1.bf16.msra.mxu0 %v613
        %722 = vmatprep.subr.bf16.mxu0 %v616
        %723 = vmatpush1.bf16.msra.mxu0 %v615
        %724 = vmatprep.subr.bf16.mxu0 %v618
        %725 = vmatpush1.bf16.msra.mxu0 %v617
        %726 = vmatprep.subr.bf16.mxu0 %v620
        %727 = vmatpush1.bf16.msra.mxu0 %v619
        %728 = vmatprep.subr.bf16.mxu0 %v622
        %729 = vmatpush1.bf16.msra.mxu0 %v621
        %730 = vmatprep.subr.bf16.mxu0 %v624
        %731 = vmatpush1.bf16.msra.mxu0 %v623
        %732 = vmatprep.subr.bf16.mxu0 0
        %733 = vmatpush1.bf16.msra.mxu0 0
        %734 = vmatprep.subr.bf16.mxu0 0
        %735 = vmatpush1.bf16.msra.mxu0 0
        %736 = vmatprep.subr.bf16.mxu0 0
        %737 = vmatpush1.bf16.msra.mxu0 0
        %738 = vmatprep.subr.bf16.mxu0 0
        %739 = vmatpush1.bf16.msra.mxu0 0
        %740 = vmatprep.subr.bf16.mxu0 0
        %741 = vmatpush1.bf16.msra.mxu0 0
        %742 = vmatprep.subr.bf16.mxu0 0
        %743 = vmatpush1.bf16.msra.mxu0 0
        %744 = vmatprep.subr.bf16.mxu0 0
        %745 = vmatpush1.bf16.msra.mxu0 0
        %746 = vmatprep.subr.bf16.mxu0 0
        %747 = vmatpush1.bf16.msra.mxu0 0
        %748 = vmatprep.mubr.bf16.mxu0 0
        %749 = vmatmul.mubr.bf16.gmra.mrb[0].mxu0 %v429
        %v750 = vpop.f32.mrb[0].mxu0
        %v751 = vadd.f32 %v708, %v750
        %v752 = vpop.f32.mrb[0].mxu0
        %v753 = vadd.f32 %v710, %v752
        %v754 = vpop.f32.mrb[0].mxu0
        %v755 = vadd.f32 %v712, %v754
        %v756 = vpop.f32.mrb[0].mxu0
        %v757 = vadd.f32 %v714, %v756
        %758 = vdwg.mxu0
        %v759 = vadd.f32 %v361, %v751
        %v760 = vadd.f32 %v362, %v753
        %v761 = vadd.f32 %v363, %v755
        %v762 = vadd.f32 %v364, %v757
        %763 = vst [vmem:[#allocation2] sm:$0xff] %v759
        %764 = vst [vmem:[#allocation2 + $0x8] sm:$0xff] %v760
        %765 = vst [vmem:[#allocation2 + $0x10] sm:$0xff] %v761
        %766 = vst [vmem:[#allocation2 + $0x18] sm:$0xff] %v762
        %p767 = scmp.eq.s32.totalorder %s22, 2
        // Predicated region
        $region67: #{_lambda_.20} parent=57 // pred_check
          %p768 = pneg %p767
        $region68: #{_lambda_.20} parent=57 // pred_check_branch
          %770 = sbr.rel (%p768) target = $region70
        $region69: #{_lambda_.20} parent=57 // pred_region
          %v771 = vld [vmem:[#allocation2] sm:$0xff]
          %v772 = vld [vmem:[#allocation2 + $0x8] sm:$0xff]
          %v773 = vld [vmem:[#allocation2 + $0x10] sm:$0xff]
          %v774 = vld [vmem:[#allocation2 + $0x18] sm:$0xff]
          %v775 = vld [vmem:[%s333] sm:$0x3]
          %v777 = vlaneseq
          %v778 = vshrl.u32 %v777, 7
          %v779 = vsub.s32 0, %v778
          %v780 = vrot.slane %v775, %v779
          %v781 = vlaneseq
          %v782 = vshrl.u32 %v781, 7
          %v783 = vsub.s32 1, %v782
          %v784 = vrot.slane %v775, %v783
          %v787 = vmul.f32 %v771, %v780
          %v788 = vmul.f32 %v772, %v784
          %v789 = vmul.f32 %v773, %v780
          %v790 = vmul.f32 %v774, %v784
          %v791 = vld [vmem:[%s338] sm:$0x3]
          %v793 = vlaneseq
          %v794 = vshrl.u32 %v793, 7
          %v795 = vsub.s32 0, %v794
          %v796 = vrot.slane %v791, %v795
          %v797 = vlaneseq
          %v798 = vshrl.u32 %v797, 7
          %v799 = vsub.s32 1, %v798
          %v800 = vrot.slane %v791, %v799
          %v803 = vadd.f32 %v787, %v796
          %v804 = vadd.f32 %v788, %v800
          %v805 = vadd.f32 %v789, %v796
          %v806 = vadd.f32 %v790, %v800
          %v807 = vmax.f32 %v803, 0.0
          %v808 = vmax.f32 %v804, 0.0
          %v809 = vmax.f32 %v805, 0.0
          %v810 = vmax.f32 %v806, 0.0
          %v811 = vpack.c.bf16 %v809, %v807
          %v812 = vpack.c.bf16 %v810, %v808
          %v815 = vunpack.c.l.b16 %v811
          %v816 = vunpack.c.l.b16 %v812
          %v817 = vunpack.c.h.b16 %v811
          %v818 = vunpack.c.h.b16 %v812
          %v819 = vpack.c.b16 %v816, %v815
          %v820 = vpack.c.b16 %v818, %v817
          %823 = vst [vmem:[%s349] sm:$0xff] %v819
          %824 = vst [vmem:[%s349 + $0x8] sm:$0xff] %v820
        $region70: #{_lambda_.20} parent=57 // pred_fallthru
          _
        %s825 = smul.u32 2, %s20
        %s826 = smul.u32 2, %s21
        %p827 = scmp.lt.s32.totalorder %s825, 1
        %s828 = scalar_select %p827, %s825, 1
        %p829 = scmp.lt.s32.totalorder %s826, 1
        %s830 = scalar_select %p829, %s826, 1
        %s831 = smul.addr %s828, 2
        %s832 = sadd.s32 %s830, %s831
        %s833 = smul.addr %s832, 4
        %s834 = scalar_lea.vmem %s4, %s833
        // Predicated region
        $region71: #{_lambda_.20} parent=57 // pred_check
          %p835 = pneg %p162
        $region72: #{_lambda_.20} parent=57 // pred_check_branch
          %837 = sbr.rel (%p835) target = $region74
        $region73: #{_lambda_.20} parent=57 // pred_region
          %s838 = smul.u32 2, %s20
          %s839 = smul.u32 2, %s21
        $region74: #{_lambda_.20} parent=57 // pred_fallthru
          _
        // Predicated region
        $region75: #{_lambda_.20} parent=57 // pred_check
          %p840 = pneg %p162
        $region76: #{_lambda_.20} parent=57 // pred_check_branch
          %842 = sbr.rel (%p840) target = $region78
        $region77: #{_lambda_.20} parent=57 // pred_region
          %s843 = smul.u32 2, %s20
          %s844 = smul.u32 2, %s21
          %p845 = scmp.lt.s32.totalorder %s843, 1
          %s846 = scalar_select %p845, %s843, 1
          %p847 = scmp.lt.s32.totalorder %s844, 1
          %s848 = scalar_select %p847, %s844, 1
          %s849 = smul.addr %s846, 2
          %s850 = sadd.s32 %s848, %s849
          %s851 = smul.addr %s850, 4
          %s852 = scalar_lea.vmem %s4, %s851
        $region78: #{_lambda_.20} parent=57 // pred_fallthru
          _
      $region58: #{_lambda_.20} parent=5 // pred_fallthru
        _
      %p853 = scmp.le.s32.totalorder 2, %s10
      // Predicated region
      $region79: #{_lambda_.20} parent=5 // pred_check
        %p854 = pneg %p853
      $region80: #{_lambda_.20} parent=5 // pred_check_branch
        %856 = sbr.rel (%p854) target = $region82
      $region81: #{_lambda_.20} parent=5 // pred_region
        %s857 = ssub.s32 %s10, 2
      $region82: #{_lambda_.20} parent=5 // pred_fallthru
        _
    $region6: #{_lambda_.20} parent=1 // loop_footer
      %s14 = sadd.s32 1, %s10
    $region7: #{_lambda_.20} parent=1 // loop_footer_branch
      %9 = sbr.rel target = $region3
    $region8: #{_lambda_.20} parent=1 // loop_exit
      _

// kernel: _lambda_.22
$region0: #{_lambda_.22}
  #allocation0 [shape = 'u32[]', space=smem, size = 0x4, offset = 0x4, fixed_abs, tag = 'smem constant byte address 0x4 - core index']
  #allocation1 [shape = 'u32[144,128]{1,0:T(1,128)}', space=vmem, size = 0x12000, scoped, tag = 'internal scratch']
  #allocation2 [shape = 'f32[16,256]{1,0:T(8,128)}', space=vmem, size = 0x4000, scoped, tag = 'scratch operand']
  %s0 = inlined_call_operand.vmem [shape: bf16[16,2304], index: 0, kind: input, shape index: {}]
  %s1 = inlined_call_operand.vmem [shape: bf16[2304,256], index: 1, kind: input, shape index: {}]
  %s2 = inlined_call_operand.vmem [shape: f32[1,256], index: 2, kind: input, shape index: {}]
  %s3 = inlined_call_operand.vmem [shape: f32[1,256], index: 3, kind: input, shape index: {}]
  %s4 = inlined_call_operand.vmem [shape: bf16[16,256], index: 4, kind: input, shape index: {}]
  %s5 = inlined_call_operand.vmem [shape: bf16[16,256], index: 5, kind: output, shape index: {}]
  %s6 = sld [smem:[#allocation0]]
  $region87: #{_lambda_.22} parent=0
    _
  %s8 = ssub.s32 1, %s6
  %s9 = scalar_select 0, %s8, %s6
  $region1: #{_lambda_.22} parent=0
    #allocation3 [shape = 'u8[24576]{0}', space=vmem, size = 0x6000, scoped, tag = 'input window, operand 0']
    loop: start=0, step=1, limit=8
    $region2: #{_lambda_.22} parent=1 // loop_pre_header
      _
    $region3: #{_lambda_.22} parent=1 // loop_header
      %s11 = sphi 0, %s15
      %p12 = scmp.ge.s32.totalorder %s11, 8
      %s18 = sphi 0, %s37
      %s19 = sphi 0, %s33
      %s20 = sphi 0, %s29
      %s21 = sphi 0, %s18
      %s22 = sphi 0, %s19
      %s23 = sphi 0, %s20
      %s24 = sphi 0, %s21
      %s25 = sphi 0, %s22
      %s26 = sphi 0, %s23
      %s42 = sphi 0, %s44
      %s45 = sphi 0, %s42
      %s46 = sphi 0, %s45
      %s62 = sphi 0, %s46
      %s70 = sphi 0, %s72
      %s73 = sphi 0, %s70
      %s74 = sphi 0, %s73
      %s90 = sphi 0, %s74
      %s96 = sphi 0, %s98
      %s99 = sphi 0, %s96
      %s100 = sphi 0, %s99
      %s116 = sphi 0, %s100
      %s122 = sphi 0, %s124
      %s125 = sphi 0, %s122
      %s126 = sphi 0, %s125
      %s142 = sphi 0, %s126
      %s150 = sphi 0, %s152
      %s153 = sphi 0, %s150
      %s154 = sphi 0, %s153
      %s170 = sphi 0, %s154
      %s178 = sphi 0, %s180
      %s181 = sphi 0, %s178
      %s182 = sphi 0, %s181
      %s198 = sphi 0, %s182
    $region4: #{_lambda_.22} parent=1 // loop_header_branch
      %14 = sbr.rel (%p12) target = $region8
    $region5: #{_lambda_.22} parent=1 // loop_body
      %s16 = ssub.s32 %s11, 1
      %s17 = ssub.s32 %s11, 2
      %s27 = sadd.s32 1, %s20
      %p28 = scmp.ge.s32.totalorder %s27, 6
      %s29 = scalar_select %p28, 0, %s27
      %s30 = sadd.s32 1, %s19
      %s31 = scalar_select %p28, %s30, %s19
      %p32 = scmp.ge.s32.totalorder %s31, 1
      %s33 = scalar_select %p32, 0, %s31
      %s34 = sadd.s32 1, %s18
      %s35 = scalar_select %p32, %s34, %s18
      %p36 = scmp.ge.s32.totalorder %s35, 1
      %s37 = scalar_select %p36, 0, %s35
      %s38 = ssub.s32 %s18, %s37
      %s39 = ssub.s32 %s20, %s29
      %s40 = sor.u32 %s38, %s39
      %p41 = scmp.eq.s32.totalorder %s40, 0
      %s43 = sadd.s32 %s42, 1
      %s44 = scalar_select %p41, %s42, %s43
      %p47 = pneg %p41
      %p48 = scmp.eq.s32.totalorder %s11, 5
      %p49 = por %p47, %p48
      %p50 = scmp.ne.s32.totalorder %s42, %s45
      %p51 = scmp.eq.s32.totalorder %s11, 0
      %p52 = por %p50, %p51
      %p53 = scmp.ne.s32.totalorder %s42, %s45
      %p54 = scmp.eq.s32.totalorder %s16, 5
      %p55 = por %p53, %p54
      %p56 = scmp.ne.s32.totalorder %s45, %s46
      %p57 = scmp.eq.s32.totalorder %s16, 0
      %p58 = por %p56, %p57
      %p59 = scmp.ne.s32.totalorder %s45, %s46
      %p60 = scmp.eq.s32.totalorder %s17, 5
      %p61 = por %p59, %p60
      %p63 = scmp.ne.s32.totalorder %s46, %s62
      %p64 = scmp.eq.s32.totalorder %s17, 0
      %p65 = por %p63, %p64
      %s66 = ssub.s32 %s20, %s29
      %s67 = ssub.s32 %s19, %s33
      %s68 = sor.u32 %s66, %s67
      %p69 = scmp.eq.s32.totalorder %s68, 0
      %s71 = sadd.s32 %s70, 1
      %s72 = scalar_select %p69, %s70, %s71
      %p75 = pneg %p69
      %p76 = scmp.eq.s32.totalorder %s11, 5
      %p77 = por %p75, %p76
      %p78 = scmp.ne.s32.totalorder %s70, %s73
      %p79 = scmp.eq.s32.totalorder %s11, 0
      %p80 = por %p78, %p79
      %p81 = scmp.ne.s32.totalorder %s70, %s73
      %p82 = scmp.eq.s32.totalorder %s16, 5
      %p83 = por %p81, %p82
      %p84 = scmp.ne.s32.totalorder %s73, %s74
      %p85 = scmp.eq.s32.totalorder %s16, 0
      %p86 = por %p84, %p85
      %p87 = scmp.ne.s32.totalorder %s73, %s74
      %p88 = scmp.eq.s32.totalorder %s17, 5
      %p89 = por %p87, %p88
      %p91 = scmp.ne.s32.totalorder %s74, %s90
      %p92 = scmp.eq.s32.totalorder %s17, 0
      %p93 = por %p91, %p92
      %s94 = ssub.s32 %s19, %s33
      %p95 = scmp.eq.s32.totalorder %s94, 0
      %s97 = sadd.s32 %s96, 1
      %s98 = scalar_select %p95, %s96, %s97
      %p101 = pneg %p95
      %p102 = scmp.eq.s32.totalorder %s11, 5
      %p103 = por %p101, %p102
      %p104 = scmp.ne.s32.totalorder %s96, %s99
      %p105 = scmp.eq.s32.totalorder %s11, 0
      %p106 = por %p104, %p105
      %p107 = scmp.ne.s32.totalorder %s96, %s99
      %p108 = scmp.eq.s32.totalorder %s16, 5
      %p109 = por %p107, %p108
      %p110 = scmp.ne.s32.totalorder %s99, %s100
      %p111 = scmp.eq.s32.totalorder %s16, 0
      %p112 = por %p110, %p111
      %p113 = scmp.ne.s32.totalorder %s99, %s100
      %p114 = scmp.eq.s32.totalorder %s17, 5
      %p115 = por %p113, %p114
      %p117 = scmp.ne.s32.totalorder %s100, %s116
      %p118 = scmp.eq.s32.totalorder %s17, 0
      %p119 = por %p117, %p118
      %s120 = ssub.s32 %s19, %s33
      %p121 = scmp.eq.s32.totalorder %s120, 0
      %s123 = sadd.s32 %s122, 1
      %s124 = scalar_select %p121, %s122, %s123
      %p127 = pneg %p121
      %p128 = scmp.eq.s32.totalorder %s11, 5
      %p129 = por %p127, %p128
      %p130 = scmp.ne.s32.totalorder %s122, %s125
      %p131 = scmp.eq.s32.totalorder %s11, 0
      %p132 = por %p130, %p131
      %p133 = scmp.ne.s32.totalorder %s122, %s125
      %p134 = scmp.eq.s32.totalorder %s16, 5
      %p135 = por %p133, %p134
      %p136 = scmp.ne.s32.totalorder %s125, %s126
      %p137 = scmp.eq.s32.totalorder %s16, 0
      %p138 = por %p136, %p137
      %p139 = scmp.ne.s32.totalorder %s125, %s126
      %p140 = scmp.eq.s32.totalorder %s17, 5
      %p141 = por %p139, %p140
      %p143 = scmp.ne.s32.totalorder %s126, %s142
      %p144 = scmp.eq.s32.totalorder %s17, 0
      %p145 = por %p143, %p144
      %s146 = ssub.s32 %s18, %s37
      %s147 = ssub.s32 %s19, %s33
      %s148 = sor.u32 %s146, %s147
      %p149 = scmp.eq.s32.totalorder %s148, 0
      %s151 = sadd.s32 %s150, 1
      %s152 = scalar_select %p149, %s150, %s151
      %p155 = pneg %p149
      %p156 = scmp.eq.s32.totalorder %s11, 5
      %p157 = por %p155, %p156
      %p158 = scmp.ne.s32.totalorder %s150, %s153
      %p159 = scmp.eq.s32.totalorder %s11, 0
      %p160 = por %p158, %p159
      %p161 = scmp.ne.s32.totalorder %s150, %s153
      %p162 = scmp.eq.s32.totalorder %s16, 5
      %p163 = por %p161, %p162
      %p164 = scmp.ne.s32.totalorder %s153, %s154
      %p165 = scmp.eq.s32.totalorder %s16, 0
      %p166 = por %p164, %p165
      %p167 = scmp.ne.s32.totalorder %s153, %s154
      %p168 = scmp.eq.s32.totalorder %s17, 5
      %p169 = por %p167, %p168
      %p171 = scmp.ne.s32.totalorder %s154, %s170
      %p172 = scmp.eq.s32.totalorder %s17, 0
      %p173 = por %p171, %p172
      %s174 = ssub.s32 %s18, %s37
      %s175 = ssub.s32 %s19, %s33
      %s176 = sor.u32 %s174, %s175
      %p177 = scmp.eq.s32.totalorder %s176, 0
      %s179 = sadd.s32 %s178, 1
      %s180 = scalar_select %p177, %s178, %s179
      %p183 = pneg %p177
      %p184 = scmp.eq.s32.totalorder %s11, 5
      %p185 = por %p183, %p184
      %p186 = scmp.ne.s32.totalorder %s178, %s181
      %p187 = scmp.eq.s32.totalorder %s11, 0
      %p188 = por %p186, %p187
      %p189 = scmp.ne.s32.totalorder %s178, %s181
      %p190 = scmp.eq.s32.totalorder %s16, 5
      %p191 = por %p189, %p190
      %p192 = scmp.ne.s32.totalorder %s181, %s182
      %p193 = scmp.eq.s32.totalorder %s16, 0
      %p194 = por %p192, %p193
      %p195 = scmp.ne.s32.totalorder %s181, %s182
      %p196 = scmp.eq.s32.totalorder %s17, 5
      %p197 = por %p195, %p196
      %p199 = scmp.ne.s32.totalorder %s182, %s198
      %p200 = scmp.eq.s32.totalorder %s17, 0
      %p201 = por %p199, %p200
      %p202 = scmp.le.s32.totalorder 1, %s11
      %p203 = scmp.lt.s32.totalorder %s11, 7
      %p204 = pnand %p202, %p203
      %p205 = pneg %p204
      // Predicated region
      $region9: #{_lambda_.22} parent=5 // pred_check
        _
      $region10: #{_lambda_.22} parent=5 // pred_check_branch
        %207 = sbr.rel (%p204) target = $region12
      $region11: #{_lambda_.22} parent=5 // pred_region
        %s208 = ssub.s32 %s11, 1
        // Predicated region
        $region13: #{_lambda_.22} parent=11 // pred_check
          %p209 = pneg %p112
        $region14: #{_lambda_.22} parent=11 // pred_check_branch
          %211 = sbr.rel (%p209) target = $region16
        $region15: #{_lambda_.22} parent=11 // pred_region
          %s212 = smul.u32 2, %s22
          %p213 = scmp.lt.s32.totalorder %s212, 1
          %s214 = scalar_select %p213, %s212, 1
          %s215 = scalar_lea.vmem %s2, %s214
          %s216 = smul.u32 2, %s22
        $region16: #{_lambda_.22} parent=11 // pred_fallthru
          _
        // Predicated region
        $region17: #{_lambda_.22} parent=11 // pred_check
          %p217 = pneg %p138
        $region18: #{_lambda_.22} parent=11 // pred_check_branch
          %219 = sbr.rel (%p217) target = $region20
        $region19: #{_lambda_.22} parent=11 // pred_region
          %s220 = smul.u32 2, %s22
          %p221 = scmp.lt.s32.totalorder %s220, 1
          %s222 = scalar_select %p221, %s220, 1
          %s223 = scalar_lea.vmem %s3, %s222
          %s224 = smul.u32 2, %s22
        $region20: #{_lambda_.22} parent=11 // pred_fallthru
          _
        // Predicated region
        $region21: #{_lambda_.22} parent=11 // pred_check
          %p225 = pneg %p166
        $region22: #{_lambda_.22} parent=11 // pred_check_branch
          %227 = sbr.rel (%p225) target = $region24
        $region23: #{_lambda_.22} parent=11 // pred_region
          %s228 = smul.u32 2, %s21
          %s229 = smul.u32 2, %s22
          %p230 = scmp.lt.s32.totalorder %s228, 1
          %s231 = scalar_select %p230, %s228, 1
          %p232 = scmp.lt.s32.totalorder %s229, 1
          %s233 = scalar_select %p232, %s229, 1
          %s234 = smul.addr %s231, 2
          %s235 = sadd.s32 %s233, %s234
          %s236 = smul.addr %s235, 4
          %s237 = scalar_lea.vmem %s4, %s236
          %s238 = smul.u32 2, %s21
          %s239 = smul.u32 2, %s22
        $region24: #{_lambda_.22} parent=11 // pred_fallthru
          _
      $region12: #{_lambda_.22} parent=5 // pred_fallthru
        _
      %p240 = scmp.lt.s32.totalorder %s11, 6
      // Predicated region
      $region25: #{_lambda_.22} parent=5 // pred_check
        %p241 = pneg %p240
      $region26: #{_lambda_.22} parent=5 // pred_check_branch
        %243 = sbr.rel (%p241) target = $region28
      $region27: #{_lambda_.22} parent=5 // pred_region
        // Predicated region
        $region29: #{_lambda_.22} parent=27 // pred_check
          %p244 = pneg %p52
        $region30: #{_lambda_.22} parent=27 // pred_check_branch
          %246 = sbr.rel (%p244) target = $region32
        $region31: #{_lambda_.22} parent=27 // pred_region
          %s247 = sand.u32 %s42, 1
          %s248 = sand.u32 %s42, 1
          %s249 = smul.addr %s248, 24
          %s250 = scalar_lea.vmem [#allocation3], %s249
          %s251 = smul.u32 2, %s18
          %s252 = smul.u32 3, %s20
          %s253 = smul.addr %s251, 18
          %s254 = sadd.s32 %s252, %s253
          %s255 = smul.addr %s254, 4
          %s256 = scalar_lea.vmem %s0, %s255
          // Predicated region
          $region33: #{_lambda_.22} parent=31 // pred_check
            _
          $region34: #{_lambda_.22} parent=31 // pred_check_branch
            %258 = sbr.rel (0) target = $region36
          $region35: #{_lambda_.22} parent=31 // pred_region
            // Predicated region
            $region37: #{_lambda_.22} parent=35 // pred_check
              _
            $region38: #{_lambda_.22} parent=35 // pred_check_branch
              %260 = sbr.rel (0) target = $region40
            $region39: #{_lambda_.22} parent=35 // pred_region
              %s261 = scalar_lea.vmem %s256, 8
              %s262 = scalar_lea.vmem %s250, 8 [#allocation3]
              loop: start=0, step=1, limit=1
              $region41: #{_lambda_.22} parent=39 // loop_pre_header
                _
              $region42: #{_lambda_.22} parent=39 // loop_header
                %s264 = sphi 0, %s268
                %p265 = scmp.ge.s32.totalorder %s264, 1
                %s269 = sphi %s256, %s256
                %s270 = sphi %s250, %s250
              $region43: #{_lambda_.22} parent=39 // loop_header_branch
                %267 = sbr.rel (%p265) target = $region47
              $region44: #{_lambda_.22} parent=39 // loop_body
                %v271 = vld [vmem:[%s269] sm:$0xff]
                %272 = vst [vmem:[%s270] sm:$0xff] %v271
                %v273 = vld [vmem:[%s269 + $0x48] sm:$0xff]
                %274 = vst [vmem:[%s270 + $0xc] sm:$0xff] %v273
              $region45: #{_lambda_.22} parent=39 // loop_footer
                %s268 = sadd.s32 1, %s264
              $region46: #{_lambda_.22} parent=39 // loop_footer_branch
                %263 = sbr.rel target = $region42
              $region47: #{_lambda_.22} parent=39 // loop_exit
                _
              loop: start=0, step=1, limit=1
              $region48: #{_lambda_.22} parent=39 // loop_pre_header
                _
              $region49: #{_lambda_.22} parent=39 // loop_header
                %s277 = sphi 0, %s281
                %p278 = scmp.ge.s32.totalorder %s277, 1
                %s282 = sphi %s261, %s261
                %s283 = sphi %s262, %s262
              $region50: #{_lambda_.22} parent=39 // loop_header_branch
                %280 = sbr.rel (%p278) target = $region54
              $region51: #{_lambda_.22} parent=39 // loop_body
                %v284 = vld [vmem:[%s282] sm:$0xf]
                %285 = vst [vmem:[%s283] sm:$0xf] %v284
                %v286 = vld [vmem:[%s282 + $0x48] sm:$0xf]
                %287 = vst [vmem:[%s283 + $0xc] sm:$0xf] %v286
              $region52: #{_lambda_.22} parent=39 // loop_footer
                %s281 = sadd.s32 1, %s277
              $region53: #{_lambda_.22} parent=39 // loop_footer_branch
                %276 = sbr.rel target = $region49
              $region54: #{_lambda_.22} parent=39 // loop_exit
                _
            $region40: #{_lambda_.22} parent=35 // pred_fallthru
              _
          $region36: #{_lambda_.22} parent=31 // pred_fallthru
            _
          %288 = vnop
        $region32: #{_lambda_.22} parent=27 // pred_fallthru
          _
        // Predicated region
        $region55: #{_lambda_.22} parent=27 // pred_check
          %p289 = pneg %p80
        $region56: #{_lambda_.22} parent=27 // pred_check_branch
          %291 = sbr.rel (%p289) target = $region58
        $region57: #{_lambda_.22} parent=27 // pred_region
          %s292 = smul.u32 48, %s20
          %s293 = smul.u32 2, %s19
          %p294 = scmp.lt.s32.totalorder %s292, 287
          %s295 = scalar_select %p294, %s292, 287
          %p296 = scmp.lt.s32.totalorder %s293, 1
          %s297 = scalar_select %p296, %s293, 1
          %s298 = smul.addr %s295, 2
          %s299 = sadd.s32 %s297, %s298
          %s300 = smul.addr %s299, 4
          %s301 = scalar_lea.vmem %s1, %s300
          %s302 = smul.u32 48, %s20
          %s303 = smul.u32 2, %s19
        $region58: #{_lambda_.22} parent=27 // pred_fallthru
          _
      $region28: #{_lambda_.22} parent=5 // pred_fallthru
        _
      %p304 = scmp.le.s32.totalorder 1, %s11
      %p305 = scmp.lt.s32.totalorder %s11, 7
      %p306 = pnand %p304, %p305
      %p307 = pneg %p306
      // Predicated region
      $region59: #{_lambda_.22} parent=5 // pred_check
        _
      $region60: #{_lambda_.22} parent=5 // pred_check_branch
        %309 = sbr.rel (%p306) target = $region62
      $region61: #{_lambda_.22} parent=5 // pred_region
        %s310 = ssub.s32 %s11, 1
        %s311 = sand.u32 %s45, 1
        %s312 = sand.u32 %s45, 1
        %s313 = smul.addr %s312, 24
        %s314 = scalar_lea.vmem [#allocation3], %s313
        // Predicated region
        $region63: #{_lambda_.22} parent=61 // pred_check
          %p315 = pneg %p58
        $region64: #{_lambda_.22} parent=61 // pred_check_branch
          %317 = sbr.rel (%p315) target = $region66
        $region65: #{_lambda_.22} parent=61 // pred_region
          _
        $region66: #{_lambda_.22} parent=61 // pred_fallthru
          _
        %s318 = sand.u32 %s45, 1
        %s319 = sand.u32 %s45, 1
        %s320 = smul.addr %s319, 24
        %s321 = scalar_lea.vmem [#allocation3], %s320
        %p322 = pneg %p58
        %p323 = pneg %p55
        %s324 = smul.u32 48, %s23
        %s325 = smul.u32 2, %s22
        %p326 = scmp.lt.s32.totalorder %s324, 287
        %s327 = scalar_select %p326, %s324, 287
        %p328 = scmp.lt.s32.totalorder %s325, 1
        %s329 = scalar_select %p328, %s325, 1
        %s330 = smul.addr %s327, 2
        %s331 = sadd.s32 %s329, %s330
        %s332 = smul.addr %s331, 4
        %s333 = scalar_lea.vmem %s1, %s332
        %p334 = pneg %p86
        %p335 = pneg %p83
        %s336 = smul.u32 2, %s22
        %p337 = scmp.lt.s32.totalorder %s336, 1
        %s338 = scalar_select %p337, %s336, 1
        %s339 = scalar_lea.vmem %s2, %s338
        %p340 = pneg %p112
        %p341 = pneg %p109
        %s342 = smul.u32 2, %s22
        %p343 = scmp.lt.s32.totalorder %s342, 1
        %s344 = scalar_select %p343, %s342, 1
        %s345 = scalar_lea.vmem %s3, %s344
        %p346 = pneg %p138
        %p347 = pneg %p135
        %s348 = smul.u32 2, %s21
        %s349 = smul.u32 2, %s22
        %p350 = scmp.lt.s32.totalorder %s348, 1
        %s351 = scalar_select %p350, %s348, 1
        %p352 = scmp.lt.s32.totalorder %s349, 1
        %s353 = scalar_select %p352, %s349, 1
        %s354 = smul.addr %s351, 2
        %s355 = sadd.s32 %s353, %s354
        %s356 = smul.addr %s355, 4
        %s357 = scalar_lea.vmem %s4, %s356
        %p358 = pneg %p166
        %p359 = pneg %p163
        %p360 = pneg %p194
        %p361 = pneg %p191
        %s362 = smul.u32 2, %s21
        %s363 = smul.u32 2, %s22
        %p364 = scmp.lt.s32.totalorder %s362, 1
        %s365 = scalar_select %p364, %s362, 1
        %p366 = scmp.lt.s32.totalorder %s363, 1
        %s367 = scalar_select %p366, %s363, 1
        %s368 = smul.addr %s365, 2
        %s369 = sadd.s32 %s367, %s368
        %s370 = smul.addr %s369, 4
        %s371 = scalar_lea.vmem %s5, %s370
        %s372 = smul.u32 2, %s21
        %s373 = smul.u32 3, %s23
        %s374 = smul.u32 48, %s23
        %s375 = smul.u32 2, %s22
        %p376 = scmp.lt.s32.totalorder %s374, 287
        %s377 = scalar_select %p376, %s374, 287
        %p378 = scmp.lt.s32.totalorder %s375, 1
        %s379 = scalar_select %p378, %s375, 1
        %s380 = smul.addr %s377, 2
        %s381 = sadd.s32 %s379, %s380
        %s382 = smul.addr %s381, 4
        %s383 = scalar_lea.vmem %s1, %s382
        %s384 = smul.u32 48, %s23
        %s385 = smul.u32 2, %s22
        %s386 = smul.u32 2, %s22
        %p387 = scmp.lt.s32.totalorder %s386, 1
        %s388 = scalar_select %p387, %s386, 1
        %s389 = scalar_lea.vmem %s2, %s388
        %s390 = smul.u32 2, %s22
        %s391 = smul.u32 2, %s22
        %p392 = scmp.lt.s32.totalorder %s391, 1
        %s393 = scalar_select %p392, %s391, 1
        %s394 = scalar_lea.vmem %s3, %s393
        %s395 = smul.u32 2, %s22
        %s396 = smul.u32 2, %s21
        %s397 = smul.u32 2, %s22
        %p398 = scmp.lt.s32.totalorder %s396, 1
        %s399 = scalar_select %p398, %s396, 1
        %p400 = scmp.lt.s32.totalorder %s397, 1
        %s401 = scalar_select %p400, %s397, 1
        %s402 = smul.addr %s399, 2
        %s403 = sadd.s32 %s401, %s402
        %s404 = smul.addr %s403, 4
        %s405 = scalar_lea.vmem %s4, %s404
        %s406 = smul.u32 2, %s21
        %s407 = smul.u32 2, %s22
        %s408 = smul.u32 2, %s21
        %s409 = smul.u32 2, %s22
        %p410 = scmp.lt.s32.totalorder %s408, 1
        %s411 = scalar_select %p410, %s408, 1
        %p412 = scmp.lt.s32.totalorder %s409, 1
        %s413 = scalar_select %p412, %s409, 1
        %s414 = smul.addr %s411, 2
        %s415 = sadd.s32 %s413, %s414
        %s416 = smul.addr %s415, 4
        %s417 = scalar_lea.vmem %s5, %s416
        %s418 = smul.u32 2, %s21
        %s419 = smul.u32 2, %s22
        %p421 = scmp.eq.s32.totalorder %s23, 0
        // Predicated region
        $region67: #{_lambda_.22} parent=61 // pred_check
          %p422 = pneg %p421
        $region68: #{_lambda_.22} parent=61 // pred_check_branch
          %424 = sbr.rel (%p422) target = $region70
        $region69: #{_lambda_.22} parent=61 // pred_region
          %425 = vst [vmem:[#allocation2] sm:$0xff] 0.0
          %426 = vst [vmem:[#allocation2 + $0x8] sm:$0xff] 0.0
          %427 = vst [vmem:[#allocation2 + $0x10] sm:$0xff] 0.0
          %428 = vst [vmem:[#allocation2 + $0x18] sm:$0xff] 0.0
        $region70: #{_lambda_.22} parent=61 // pred_fallthru
          _
        %v429 = vld [vmem:[#allocation2] sm:$0xff]
        %v430 = vld [vmem:[#allocation2 + $0x8] sm:$0xff]
        %v431 = vld [vmem:[#allocation2 + $0x10] sm:$0xff]
        %v432 = vld [vmem:[#allocation2 + $0x18] sm:$0xff]
        %v433 = vld [vmem:[%s314] sm:$0xff]
        %v434 = vld [vmem:[%s314 + $0x8] sm:$0xf]
        %v435 = vld [vmem:[%s314 + $0xc] sm:$0xff]
        %v436 = vld [vmem:[%s314 + $0x14] sm:$0xf]
        %v437 = vld [vmem:[%s383] sm:$0xff]
        %v438 = vld [vmem:[%s383 + $0x8] sm:$0xff]
        %v439 = vld [vmem:[%s383 + $0x10] sm:$0xff]
        %v440 = vld [vmem:[%s383 + $0x18] sm:$0xff]
        %v441 = vld [vmem:[%s383 + $0x20] sm:$0xff]
        %v442 = vld [vmem:[%s383 + $0x28] sm:$0xff]
        %v443 = vld [vmem:[%s383 + $0x30] sm:$0xff]
        %v444 = vld [vmem:[%s383 + $0x38] sm:$0xff]
        %v445 = vld [vmem:[%s383 + $0x40] sm:$0xff]
        %v446 = vld [vmem:[%s383 + $0x48] sm:$0xff]
        %v447 = vld [vmem:[%s383 + $0x50] sm:$0xff]
        %v448 = vld [vmem:[%s383 + $0x58] sm:$0xff]
        %v449 = vld [vmem:[%s383 + $0x60] sm:$0xff]
        %v450 = vld [vmem:[%s383 + $0x68] sm:$0xff]
        %v451 = vld [vmem:[%s383 + $0x70] sm:$0xff]
        %v452 = vld [vmem:[%s383 + $0x78] sm:$0xff]
        %v453 = vld [vmem:[%s383 + $0x80] sm:$0xff]
        %v454 = vld [vmem:[%s383 + $0x88] sm:$0xff]
        %v455 = vld [vmem:[%s383 + $0x90] sm:$0xff]
        %v456 = vld [vmem:[%s383 + $0x98] sm:$0xff]
        %v457 = vld [vmem:[%s383 + $0xa0] sm:$0xff]
        %v458 = vld [vmem:[%s383 + $0xa8] sm:$0xff]
        %v459 = vld [vmem:[%s383 + $0xb0] sm:$0xff]
        %v460 = vld [vmem:[%s383 + $0xb8] sm:$0xff]
        %v461 = vld [vmem:[%s383 + $0xc0] sm:$0xff]
        %v462 = vld [vmem:[%s383 + $0xc8] sm:$0xff]
        %v463 = vld [vmem:[%s383 + $0xd0] sm:$0xff]
        %v464 = vld [vmem:[%s383 + $0xd8] sm:$0xff]
        %v465 = vld [vmem:[%s383 + $0xe0] sm:$0xff]
        %v466 = vld [vmem:[%s383 + $0xe8] sm:$0xff]
        %v467 = vld [vmem:[%s383 + $0xf0] sm:$0xff]
        %v468 = vld [vmem:[%s383 + $0xf8] sm:$0xff]
        %v469 = vld [vmem:[%s383 + $0x100] sm:$0xff]
        %v470 = vld [vmem:[%s383 + $0x108] sm:$0xff]
        %v471 = vld [vmem:[%s383 + $0x110] sm:$0xff]
        %v472 = vld [vmem:[%s383 + $0x118] sm:$0xff]
        %v473 = vld [vmem:[%s383 + $0x120] sm:$0xff]
        %v474 = vld [vmem:[%s383 + $0x128] sm:$0xff]
        %v475 = vld [vmem:[%s383 + $0x130] sm:$0xff]
        %v476 = vld [vmem:[%s383 + $0x138] sm:$0xff]
        %v477 = vld [vmem:[%s383 + $0x140] sm:$0xff]
        %v478 = vld [vmem:[%s383 + $0x148] sm:$0xff]
        %v479 = vld [vmem:[%s383 + $0x150] sm:$0xff]
        %v480 = vld [vmem:[%s383 + $0x158] sm:$0xff]
        %v481 = vld [vmem:[%s383 + $0x160] sm:$0xff]
        %v482 = vld [vmem:[%s383 + $0x168] sm:$0xff]
        %v483 = vld [vmem:[%s383 + $0x170] sm:$0xff]
        %v484 = vld [vmem:[%s383 + $0x178] sm:$0xff]
        %v489 = vunpack.c.l.b16 %v433
        %v490 = vunpack.c.h.b16 %v433
        %v491 = vunpack.c.l.b16 %v434
        %v492 = vunpack.c.l.b16 %v435
        %v493 = vunpack.c.h.b16 %v435
        %v494 = vunpack.c.l.b16 %v436
        %v495 = vpack.c.b16 %v492, %v489
        %v496 = vpack.c.b16 %v493, %v490
        %v497 = vpack.c.b16 %v494, %v491
        %v549 = vunpack.c.l.b16 %v437
        %v550 = vunpack.c.h.b16 %v437
        %v551 = vunpack.c.l.b16 %v438
        %v552 = vunpack.c.h.b16 %v438
        %v553 = vunpack.c.l.b16 %v439
        %v554 = vunpack.c.h.b16 %v439
        %v555 = vunpack.c.l.b16 %v440
        %v556 = vunpack.c.h.b16 %v440
        %v557 = vunpack.c.l.b16 %v441
        %v558 = vunpack.c.h.b16 %v441
        %v559 = vunpack.c.l.b16 %v442
        %v560 = vunpack.c.h.b16 %v442
        %v561 = vunpack.c.l.b16 %v443
        %v562 = vunpack.c.h.b16 %v443
        %v563 = vunpack.c.l.b16 %v444
        %v564 = vunpack.c.h.b16 %v444
        %v565 = vunpack.c.l.b16 %v445
        %v566 = vunpack.c.h.b16 %v445
        %v567 = vunpack.c.l.b16 %v446
        %v568 = vunpack.c.h.b16 %v446
        %v569 = vunpack.c.l.b16 %v447
        %v570 = vunpack.c.h.b16 %v447
        %v571 = vunpack.c.l.b16 %v448
        %v572 = vunpack.c.h.b16 %v448
        %v573 = vunpack.c.l.b16 %v449
        %v574 = vunpack.c.h.b16 %v449
        %v575 = vunpack.c.l.b16 %v450
        %v576 = vunpack.c.h.b16 %v450
        %v577 = vunpack.c.l.b16 %v451
        %v578 = vunpack.c.h.b16 %v451
        %v579 = vunpack.c.l.b16 %v452
        %v580 = vunpack.c.h.b16 %v452
        %v581 = vunpack.c.l.b16 %v453
        %v582 = vunpack.c.h.b16 %v453
        %v583 = vunpack.c.l.b16 %v454
        %v584 = vunpack.c.h.b16 %v454
        %v585 = vunpack.c.l.b16 %v455
        %v586 = vunpack.c.h.b16 %v455
        %v587 = vunpack.c.l.b16 %v456
        %v588 = vunpack.c.h.b16 %v456
        %v589 = vunpack.c.l.b16 %v457
        %v590 = vunpack.c.h.b16 %v457
        %v591 = vunpack.c.l.b16 %v458
        %v592 = vunpack.c.h.b16 %v458
        %v593 = vunpack.c.l.b16 %v459
        %v594 = vunpack.c.h.b16 %v459
        %v595 = vunpack.c.l.b16 %v460
        %v596 = vunpack.c.h.b16 %v460
        %v597 = vunpack.c.l.b16 %v461
        %v598 = vunpack.c.h.b16 %v461
        %v599 = vunpack.c.l.b16 %v462
        %v600 = vunpack.c.h.b16 %v462
        %v601 = vunpack.c.l.b16 %v463
        %v602 = vunpack.c.h.b16 %v463
        %v603 = vunpack.c.l.b16 %v464
        %v604 = vunpack.c.h.b16 %v464
        %v605 = vunpack.c.l.b16 %v465
        %v606 = vunpack.c.h.b16 %v465
        %v607 = vunpack.c.l.b16 %v466
        %v608 = vunpack.c.h.b16 %v466
        %v609 = vunpack.c.l.b16 %v467
        %v610 = vunpack.c.h.b16 %v467
        %v611 = vunpack.c.l.b16 %v468
        %v612 = vunpack.c.h.b16 %v468
        %v613 = vunpack.c.l.b16 %v469
        %v614 = vunpack.c.h.b16 %v469
        %v615 = vunpack.c.l.b16 %v470
        %v616 = vunpack.c.h.b16 %v470
        %v617 = vunpack.c.l.b16 %v471
        %v618 = vunpack.c.h.b16 %v471
        %v619 = vunpack.c.l.b16 %v472
        %v620 = vunpack.c.h.b16 %v472
        %v621 = vunpack.c.l.b16 %v473
        %v622 = vunpack.c.h.b16 %v473
        %v623 = vunpack.c.l.b16 %v474
        %v624 = vunpack.c.h.b16 %v474
        %v625 = vunpack.c.l.b16 %v475
        %v626 = vunpack.c.h.b16 %v475
        %v627 = vunpack.c.l.b16 %v476
        %v628 = vunpack.c.h.b16 %v476
        %v629 = vunpack.c.l.b16 %v477
        %v630 = vunpack.c.h.b16 %v477
        %v631 = vunpack.c.l.b16 %v478
        %v632 = vunpack.c.h.b16 %v478
        %v633 = vunpack.c.l.b16 %v479
        %v634 = vunpack.c.h.b16 %v479
        %v635 = vunpack.c.l.b16 %v480
        %v636 = vunpack.c.h.b16 %v480
        %v637 = vunpack.c.l.b16 %v481
        %v638 = vunpack.c.h.b16 %v481
        %v639 = vunpack.c.l.b16 %v482
        %v640 = vunpack.c.h.b16 %v482
        %v641 = vunpack.c.l.b16 %v483
        %v642 = vunpack.c.h.b16 %v483
        %v643 = vunpack.c.l.b16 %v484
        %v644 = vunpack.c.h.b16 %v484
        %v645 = vpack.c.b16 %v551, %v549
        %v646 = vpack.c.b16 %v552, %v550
        %v647 = vpack.c.b16 %v555, %v553
        %v648 = vpack.c.b16 %v556, %v554
        %v649 = vpack.c.b16 %v559, %v557
        %v650 = vpack.c.b16 %v560, %v558
        %v651 = vpack.c.b16 %v563, %v561
        %v652 = vpack.c.b16 %v564, %v562
        %v653 = vpack.c.b16 %v567, %v565
        %v654 = vpack.c.b16 %v568, %v566
        %v655 = vpack.c.b16 %v571, %v569
        %v656 = vpack.c.b16 %v572, %v570
        %v657 = vpack.c.b16 %v575, %v573
        %v658 = vpack.c.b16 %v576, %v574
        %v659 = vpack.c.b16 %v579, %v577
        %v660 = vpack.c.b16 %v580, %v578
        %v661 = vpack.c.b16 %v583, %v581
        %v662 = vpack.c.b16 %v584, %v582
        %v663 = vpack.c.b16 %v587, %v585
        %v664 = vpack.c.b16 %v588, %v586
        %v665 = vpack.c.b16 %v591, %v589
        %v666 = vpack.c.b16 %v592, %v590
        %v667 = vpack.c.b16 %v595, %v593
        %v668 = vpack.c.b16 %v596, %v594
        %v669 = vpack.c.b16 %v599, %v597
        %v670 = vpack.c.b16 %v600, %v598
        %v671 = vpack.c.b16 %v603, %v601
        %v672 = vpack.c.b16 %v604, %v602
        %v673 = vpack.c.b16 %v607, %v605
        %v674 = vpack.c.b16 %v608, %v606
        %v675 = vpack.c.b16 %v611, %v609
        %v676 = vpack.c.b16 %v612, %v610
        %v677 = vpack.c.b16 %v615, %v613
        %v678 = vpack.c.b16 %v616, %v614
        %v679 = vpack.c.b16 %v619, %v617
        %v680 = vpack.c.b16 %v620, %v618
        %v681 = vpack.c.b16 %v623, %v621
        %v682 = vpack.c.b16 %v624, %v622
        %v683 = vpack.c.b16 %v627, %v625
        %v684 = vpack.c.b16 %v628, %v626
        %v685 = vpack.c.b16 %v631, %v629
        %v686 = vpack.c.b16 %v632, %v630
        %v687 = vpack.c.b16 %v635, %v633
        %v688 = vpack.c.b16 %v636, %v634
        %v689 = vpack.c.b16 %v639, %v637
        %v690 = vpack.c.b16 %v640, %v638
        %v691 = vpack.c.b16 %v643, %v641
        %v692 = vpack.c.b16 %v644, %v642
        %741 = vmatprep.subr.bf16.mxu0 %v646
        %742 = vmatpush1.bf16.msra.mxu0 %v645
        %743 = vmatprep.subr.bf16.mxu0 %v648
        %744 = vmatpush1.bf16.msra.mxu0 %v647
        %745 = vmatprep.subr.bf16.mxu0 %v650
        %746 = vmatpush1.bf16.msra.mxu0 %v649
        %747 = vmatprep.subr.bf16.mxu0 %v652
        %748 = vmatpush1.bf16.msra.mxu0 %v651
        %749 = vmatprep.subr.bf16.mxu0 %v654
        %750 = vmatpush1.bf16.msra.mxu0 %v653
        %751 = vmatprep.subr.bf16.mxu0 %v656
        %752 = vmatpush1.bf16.msra.mxu0 %v655
        %753 = vmatprep.subr.bf16.mxu0 %v658
        %754 = vmatpush1.bf16.msra.mxu0 %v657
        %755 = vmatprep.subr.bf16.mxu0 %v660
        %756 = vmatpush1.bf16.msra.mxu0 %v659
        %757 = vmatprep.subr.bf16.mxu0 %v662
        %758 = vmatpush1.bf16.msra.mxu0 %v661
        %759 = vmatprep.subr.bf16.mxu0 %v664
        %760 = vmatpush1.bf16.msra.mxu0 %v663
        %761 = vmatprep.subr.bf16.mxu0 %v666
        %762 = vmatpush1.bf16.msra.mxu0 %v665
        %763 = vmatprep.subr.bf16.mxu0 %v668
        %764 = vmatpush1.bf16.msra.mxu0 %v667
        %765 = vmatprep.subr.bf16.mxu0 %v670
        %766 = vmatpush1.bf16.msra.mxu0 %v669
        %767 = vmatprep.subr.bf16.mxu0 %v672
        %768 = vmatpush1.bf16.msra.mxu0 %v671
        %769 = vmatprep.subr.bf16.mxu0 %v674
        %770 = vmatpush1.bf16.msra.mxu0 %v673
        %771 = vmatprep.subr.bf16.mxu0 %v676
        %772 = vmatpush1.bf16.msra.mxu0 %v675
        %773 = vmatprep.mubr.bf16.mxu0 %v496
        %774 = vmatmul.mubr.bf16.gmra.mrb[0].mxu0 %v495
        %v775 = vpop.f32.mrb[0].mxu0
        %v776 = vadd.f32 0.0, %v775
        %v777 = vpop.f32.mrb[0].mxu0
        %v778 = vadd.f32 0.0, %v777
        %v779 = vpop.f32.mrb[0].mxu0
        %v780 = vadd.f32 0.0, %v779
        %v781 = vpop.f32.mrb[0].mxu0
        %v782 = vadd.f32 0.0, %v781
        %783 = vdwg.mxu0
        %784 = vmatprep.subr.bf16.mxu0 %v678
        %785 = vmatpush1.bf16.msra.mxu0 %v677
        %786 = vmatprep.subr.bf16.mxu0 %v680
        %787 = vmatpush1.bf16.msra.mxu0 %v679
        %788 = vmatprep.subr.bf16.mxu0 %v682
        %789 = vmatpush1.bf16.msra.mxu0 %v681
        %790 = vmatprep.subr.bf16.mxu0 %v684
        %791 = vmatpush1.bf16.msra.mxu0 %v683
        %792 = vmatprep.subr.bf16.mxu0 %v686
        %793 = vmatpush1.bf16.msra.mxu0 %v685
        %794 = vmatprep.subr.bf16.mxu0 %v688
        %795 = vmatpush1.bf16.msra.mxu0 %v687
        %796 = vmatprep.subr.bf16.mxu0 %v690
        %797 = vmatpush1.bf16.msra.mxu0 %v689
        %798 = vmatprep.subr.bf16.mxu0 %v692
        %799 = vmatpush1.bf16.msra.mxu0 %v691
        %800 = vmatprep.subr.bf16.mxu0 0
        %801 = vmatpush1.bf16.msra.mxu0 0
        %802 = vmatprep.subr.bf16.mxu0 0
        %803 = vmatpush1.bf16.msra.mxu0 0
        %804 = vmatprep.subr.bf16.mxu0 0
        %805 = vmatpush1.bf16.msra.mxu0 0
        %806 = vmatprep.subr.bf16.mxu0 0
        %807 = vmatpush1.bf16.msra.mxu0 0
        %808 = vmatprep.subr.bf16.mxu0 0
        %809 = vmatpush1.bf16.msra.mxu0 0
        %810 = vmatprep.subr.bf16.mxu0 0
        %811 = vmatpush1.bf16.msra.mxu0 0
        %812 = vmatprep.subr.bf16.mxu0 0
        %813 = vmatpush1.bf16.msra.mxu0 0
        %814 = vmatprep.subr.bf16.mxu0 0
        %815 = vmatpush1.bf16.msra.mxu0 0
        %816 = vmatprep.mubr.bf16.mxu0 0
        %817 = vmatmul.mubr.bf16.gmra.mrb[0].mxu0 %v497
        %v818 = vpop.f32.mrb[0].mxu0
        %v819 = vadd.f32 %v776, %v818
        %v820 = vpop.f32.mrb[0].mxu0
        %v821 = vadd.f32 %v778, %v820
        %v822 = vpop.f32.mrb[0].mxu0
        %v823 = vadd.f32 %v780, %v822
        %v824 = vpop.f32.mrb[0].mxu0
        %v825 = vadd.f32 %v782, %v824
        %826 = vdwg.mxu0
        %v827 = vadd.f32 %v429, %v819
        %v828 = vadd.f32 %v430, %v821
        %v829 = vadd.f32 %v431, %v823
        %v830 = vadd.f32 %v432, %v825
        %831 = vst [vmem:[#allocation2] sm:$0xff] %v827
        %832 = vst [vmem:[#allocation2 + $0x8] sm:$0xff] %v828
        %833 = vst [vmem:[#allocation2 + $0x10] sm:$0xff] %v829
        %834 = vst [vmem:[#allocation2 + $0x18] sm:$0xff] %v830
        %p835 = scmp.eq.s32.totalorder %s23, 5
        // Predicated region
        $region71: #{_lambda_.22} parent=61 // pred_check
          %p836 = pneg %p835
        $region72: #{_lambda_.22} parent=61 // pred_check_branch
          %838 = sbr.rel (%p836) target = $region74
        $region73: #{_lambda_.22} parent=61 // pred_region
          %v839 = vld [vmem:[#allocation2] sm:$0xff]
          %v840 = vld [vmem:[#allocation2 + $0x8] sm:$0xff]
          %v841 = vld [vmem:[#allocation2 + $0x10] sm:$0xff]
          %v842 = vld [vmem:[#allocation2 + $0x18] sm:$0xff]
          %v843 = vld [vmem:[%s389] sm:$0x3]
          %v845 = vlaneseq
          %v846 = vshrl.u32 %v845, 7
          %v847 = vsub.s32 0, %v846
          %v848 = vrot.slane %v843, %v847
          %v849 = vlaneseq
          %v850 = vshrl.u32 %v849, 7
          %v851 = vsub.s32 1, %v850
          %v852 = vrot.slane %v843, %v851
          %v855 = vmul.f32 %v839, %v848
          %v856 = vmul.f32 %v840, %v852
          %v857 = vmul.f32 %v841, %v848
          %v858 = vmul.f32 %v842, %v852
          %v859 = vld [vmem:[%s394] sm:$0x3]
          %v861 = vlaneseq
          %v862 = vshrl.u32 %v861, 7
          %v863 = vsub.s32 0, %v862
          %v864 = vrot.slane %v859, %v863
          %v865 = vlaneseq
          %v866 = vshrl.u32 %v865, 7
          %v867 = vsub.s32 1, %v866
          %v868 = vrot.slane %v859, %v867
          %v871 = vadd.f32 %v855, %v864
          %v872 = vadd.f32 %v856, %v868
          %v873 = vadd.f32 %v857, %v864
          %v874 = vadd.f32 %v858, %v868
          %v875 = vld [vmem:[%s405] sm:$0xff]
          %v876 = vld [vmem:[%s405 + $0x8] sm:$0xff]
          %v877 = vunpack.c.l.bf16 %v875
          %v878 = vunpack.c.h.bf16 %v875
          %v879 = vunpack.c.l.bf16 %v876
          %v880 = vunpack.c.h.bf16 %v876
          %v881 = vadd.f32 %v871, %v877
          %v882 = vadd.f32 %v872, %v878
          %v883 = vadd.f32 %v873, %v879
          %v884 = vadd.f32 %v874, %v880
          %v885 = vmax.f32 %v881, 0.0
          %v886 = vmax.f32 %v882, 0.0
          %v887 = vmax.f32 %v883, 0.0
          %v888 = vmax.f32 %v884, 0.0
          %v889 = vpack.c.bf16 %v887, %v885
          %v890 = vpack.c.bf16 %v888, %v886
          %v893 = vunpack.c.l.b16 %v889
          %v894 = vunpack.c.l.b16 %v890
          %v895 = vunpack.c.h.b16 %v889
          %v896 = vunpack.c.h.b16 %v890
          %v897 = vpack.c.b16 %v894, %v893
          %v898 = vpack.c.b16 %v896, %v895
          %901 = vst [vmem:[%s417] sm:$0xff] %v897
          %902 = vst [vmem:[%s417 + $0x8] sm:$0xff] %v898
        $region74: #{_lambda_.22} parent=61 // pred_fallthru
          _
        %s903 = smul.u32 2, %s21
        %s904 = smul.u32 2, %s22
        %p905 = scmp.lt.s32.totalorder %s903, 1
        %s906 = scalar_select %p905, %s903, 1
        %p907 = scmp.lt.s32.totalorder %s904, 1
        %s908 = scalar_select %p907, %s904, 1
        %s909 = smul.addr %s906, 2
        %s910 = sadd.s32 %s908, %s909
        %s911 = smul.addr %s910, 4
        %s912 = scalar_lea.vmem %s5, %s911
        // Predicated region
        $region75: #{_lambda_.22} parent=61 // pred_check
          %p913 = pneg %p191
        $region76: #{_lambda_.22} parent=61 // pred_check_branch
          %915 = sbr.rel (%p913) target = $region78
        $region77: #{_lambda_.22} parent=61 // pred_region
          %s916 = smul.u32 2, %s21
          %s917 = smul.u32 2, %s22
        $region78: #{_lambda_.22} parent=61 // pred_fallthru
          _
        // Predicated region
        $region79: #{_lambda_.22} parent=61 // pred_check
          %p918 = pneg %p191
        $region80: #{_lambda_.22} parent=61 // pred_check_branch
          %920 = sbr.rel (%p918) target = $region82
        $region81: #{_lambda_.22} parent=61 // pred_region
          %s921 = smul.u32 2, %s21
          %s922 = smul.u32 2, %s22
          %p923 = scmp.lt.s32.totalorder %s921, 1
          %s924 = scalar_select %p923, %s921, 1
          %p925 = scmp.lt.s32.totalorder %s922, 1
          %s926 = scalar_select %p925, %s922, 1
          %s927 = smul.addr %s924, 2
          %s928 = sadd.s32 %s926, %s927
          %s929 = smul.addr %s928, 4
          %s930 = scalar_lea.vmem %s5, %s929
        $region82: #{_lambda_.22} parent=61 // pred_fallthru
          _
      $region62: #{_lambda_.22} parent=5 // pred_fallthru
        _
      %p931 = scmp.le.s32.totalorder 2, %s11
      // Predicated region
      $region83: #{_lambda_.22} parent=5 // pred_check
        %p932 = pneg %p931
      $region84: #{_lambda_.22} parent=5 // pred_check_branch
        %934 = sbr.rel (%p932) target = $region86
      $region85: #{_lambda_.22} parent=5 // pred_region
        %s935 = ssub.s32 %s11, 2
      $region86: #{_lambda_.22} parent=5 // pred_fallthru
        _
    $region6: #{_lambda_.22} parent=1 // loop_footer
      %s15 = sadd.s32 1, %s11
    $region7: #{_lambda_.22} parent=1 // loop_footer_branch
      %10 = sbr.rel target = $region3
    $region8: #{_lambda_.22} parent=1 // loop_exit
      _

// kernel: _lambda_.24
$region0: #{_lambda_.24}
  #allocation0 [shape = 'u32[]', space=smem, size = 0x4, offset = 0x4, fixed_abs, tag = 'smem constant byte address 0x4 - core index']
  #allocation1 [shape = 'u32[144,128]{1,0:T(1,128)}', space=vmem, size = 0x12000, scoped, tag = 'internal scratch']
  #allocation2 [shape = 'f32[16,512]{1,0:T(8,128)}', space=vmem, size = 0x8000, scoped, tag = 'scratch operand']
  %s0 = inlined_call_operand.vmem [shape: bf16[16,256], index: 0, kind: input, shape index: {}]
  %s1 = inlined_call_operand.vmem [shape: bf16[256,512], index: 1, kind: input, shape index: {}]
  %s2 = inlined_call_operand.vmem [shape: f32[1,512], index: 2, kind: input, shape index: {}]
  %s3 = inlined_call_operand.vmem [shape: f32[1,512], index: 3, kind: input, shape index: {}]
  %s4 = inlined_call_operand.vmem [shape: bf16[16,512], index: 4, kind: output, shape index: {}]
  %s5 = sld [smem:[#allocation0]]
  $region34: #{_lambda_.24} parent=0
    _
  %s7 = ssub.s32 1, %s5
  %s8 = scalar_select 0, %s7, %s5
  // Predicated region
  $region2: #{_lambda_.24} parent=0 // pred_check
    _
  $region3: #{_lambda_.24} parent=0 // pred_check_branch
    %10 = sbr.rel (0) target = $region5
  $region4: #{_lambda_.24} parent=0 // pred_region
    _
  $region5: #{_lambda_.24} parent=0 // pred_fallthru
    _
  // Predicated region
  $region6: #{_lambda_.24} parent=0 // pred_check
    _
  $region7: #{_lambda_.24} parent=0 // pred_check_branch
    %12 = sbr.rel (0) target = $region9
  $region8: #{_lambda_.24} parent=0 // pred_region
    _
  $region9: #{_lambda_.24} parent=0 // pred_fallthru
    _
  // Predicated region
  $region10: #{_lambda_.24} parent=0 // pred_check
    _
  $region11: #{_lambda_.24} parent=0 // pred_check_branch
    %14 = sbr.rel (0) target = $region13
  $region12: #{_lambda_.24} parent=0 // pred_region
    _
  $region13: #{_lambda_.24} parent=0 // pred_fallthru
    _
  // Predicated region
  $region14: #{_lambda_.24} parent=0 // pred_check
    _
  $region15: #{_lambda_.24} parent=0 // pred_check_branch
    %16 = sbr.rel (0) target = $region17
  $region16: #{_lambda_.24} parent=0 // pred_region
    _
  $region17: #{_lambda_.24} parent=0 // pred_fallthru
    _
  %p17 = scmp.eq.s32.totalorder 0, 0
  // Predicated region
  $region18: #{_lambda_.24} parent=0 // pred_check
    %p18 = pneg %p17
  $region19: #{_lambda_.24} parent=0 // pred_check_branch
    %20 = sbr.rel (%p18) target = $region21
  $region20: #{_lambda_.24} parent=0 // pred_region
    %21 = vst [vmem:[#allocation2] sm:$0xff] 0.0
    %22 = vst [vmem:[#allocation2 + $0x8] sm:$0xff] 0.0
    %23 = vst [vmem:[#allocation2 + $0x10] sm:$0xff] 0.0
    %24 = vst [vmem:[#allocation2 + $0x18] sm:$0xff] 0.0
    %25 = vst [vmem:[#allocation2 + $0x20] sm:$0xff] 0.0
    %26 = vst [vmem:[#allocation2 + $0x28] sm:$0xff] 0.0
    %27 = vst [vmem:[#allocation2 + $0x30] sm:$0xff] 0.0
    %28 = vst [vmem:[#allocation2 + $0x38] sm:$0xff] 0.0
  $region21: #{_lambda_.24} parent=0 // pred_fallthru
    _
  %v29 = vld [vmem:[#allocation2] sm:$0xff]
  %v30 = vld [vmem:[#allocation2 + $0x8] sm:$0xff]
  %v31 = vld [vmem:[#allocation2 + $0x10] sm:$0xff]
  %v32 = vld [vmem:[#allocation2 + $0x18] sm:$0xff]
  %v33 = vld [vmem:[#allocation2 + $0x20] sm:$0xff]
  %v34 = vld [vmem:[#allocation2 + $0x28] sm:$0xff]
  %v35 = vld [vmem:[#allocation2 + $0x30] sm:$0xff]
  %v36 = vld [vmem:[#allocation2 + $0x38] sm:$0xff]
  %v37 = vld [vmem:[%s0] sm:$0xff]
  %v38 = vld [vmem:[%s0 + $0x8] sm:$0xff]
  %v39 = vld [vmem:[%s1] sm:$0xff]
  %v40 = vld [vmem:[%s1 + $0x8] sm:$0xff]
  %v41 = vld [vmem:[%s1 + $0x10] sm:$0xff]
  %v42 = vld [vmem:[%s1 + $0x18] sm:$0xff]
  %v43 = vld [vmem:[%s1 + $0x20] sm:$0xff]
  %v44 = vld [vmem:[%s1 + $0x28] sm:$0xff]
  %v45 = vld [vmem:[%s1 + $0x30] sm:$0xff]
  %v46 = vld [vmem:[%s1 + $0x38] sm:$0xff]
  %v47 = vld [vmem:[%s1 + $0x40] sm:$0xff]
  %v48 = vld [vmem:[%s1 + $0x48] sm:$0xff]
  %v49 = vld [vmem:[%s1 + $0x50] sm:$0xff]
  %v50 = vld [vmem:[%s1 + $0x58] sm:$0xff]
  %v51 = vld [vmem:[%s1 + $0x60] sm:$0xff]
  %v52 = vld [vmem:[%s1 + $0x68] sm:$0xff]
  %v53 = vld [vmem:[%s1 + $0x70] sm:$0xff]
  %v54 = vld [vmem:[%s1 + $0x78] sm:$0xff]
  %v55 = vld [vmem:[%s1 + $0x80] sm:$0xff]
  %v56 = vld [vmem:[%s1 + $0x88] sm:$0xff]
  %v57 = vld [vmem:[%s1 + $0x90] sm:$0xff]
  %v58 = vld [vmem:[%s1 + $0x98] sm:$0xff]
  %v59 = vld [vmem:[%s1 + $0xa0] sm:$0xff]
  %v60 = vld [vmem:[%s1 + $0xa8] sm:$0xff]
  %v61 = vld [vmem:[%s1 + $0xb0] sm:$0xff]
  %v62 = vld [vmem:[%s1 + $0xb8] sm:$0xff]
  %v63 = vld [vmem:[%s1 + $0xc0] sm:$0xff]
  %v64 = vld [vmem:[%s1 + $0xc8] sm:$0xff]
  %v65 = vld [vmem:[%s1 + $0xd0] sm:$0xff]
  %v66 = vld [vmem:[%s1 + $0xd8] sm:$0xff]
  %v67 = vld [vmem:[%s1 + $0xe0] sm:$0xff]
  %v68 = vld [vmem:[%s1 + $0xe8] sm:$0xff]
  %v69 = vld [vmem:[%s1 + $0xf0] sm:$0xff]
  %v70 = vld [vmem:[%s1 + $0xf8] sm:$0xff]
  %v71 = vld [vmem:[%s1 + $0x100] sm:$0xff]
  %v72 = vld [vmem:[%s1 + $0x108] sm:$0xff]
  %v73 = vld [vmem:[%s1 + $0x110] sm:$0xff]
  %v74 = vld [vmem:[%s1 + $0x118] sm:$0xff]
  %v75 = vld [vmem:[%s1 + $0x120] sm:$0xff]
  %v76 = vld [vmem:[%s1 + $0x128] sm:$0xff]
  %v77 = vld [vmem:[%s1 + $0x130] sm:$0xff]
  %v78 = vld [vmem:[%s1 + $0x138] sm:$0xff]
  %v79 = vld [vmem:[%s1 + $0x140] sm:$0xff]
  %v80 = vld [vmem:[%s1 + $0x148] sm:$0xff]
  %v81 = vld [vmem:[%s1 + $0x150] sm:$0xff]
  %v82 = vld [vmem:[%s1 + $0x158] sm:$0xff]
  %v83 = vld [vmem:[%s1 + $0x160] sm:$0xff]
  %v84 = vld [vmem:[%s1 + $0x168] sm:$0xff]
  %v85 = vld [vmem:[%s1 + $0x170] sm:$0xff]
  %v86 = vld [vmem:[%s1 + $0x178] sm:$0xff]
  %v87 = vld [vmem:[%s1 + $0x180] sm:$0xff]
  %v88 = vld [vmem:[%s1 + $0x188] sm:$0xff]
  %v89 = vld [vmem:[%s1 + $0x190] sm:$0xff]
  %v90 = vld [vmem:[%s1 + $0x198] sm:$0xff]
  %v91 = vld [vmem:[%s1 + $0x1a0] sm:$0xff]
  %v92 = vld [vmem:[%s1 + $0x1a8] sm:$0xff]
  %v93 = vld [vmem:[%s1 + $0x1b0] sm:$0xff]
  %v94 = vld [vmem:[%s1 + $0x1b8] sm:$0xff]
  %v95 = vld [vmem:[%s1 + $0x1c0] sm:$0xff]
  %v96 = vld [vmem:[%s1 + $0x1c8] sm:$0xff]
  %v97 = vld [vmem:[%s1 + $0x1d0] sm:$0xff]
  %v98 = vld [vmem:[%s1 + $0x1d8] sm:$0xff]
  %v99 = vld [vmem:[%s1 + $0x1e0] sm:$0xff]
  %v100 = vld [vmem:[%s1 + $0x1e8] sm:$0xff]
  %v101 = vld [vmem:[%s1 + $0x1f0] sm:$0xff]
  %v102 = vld [vmem:[%s1 + $0x1f8] sm:$0xff]
  %v105 = vunpack.c.l.b16 %v37
  %v106 = vunpack.c.h.b16 %v37
  %v107 = vunpack.c.l.b16 %v38
  %v108 = vunpack.c.h.b16 %v38
  %v109 = vpack.c.b16 %v107, %v105
  %v110 = vpack.c.b16 %v108, %v106
  %v177 = vunpack.c.l.b16 %v39
  %v178 = vunpack.c.h.b16 %v39
  %v179 = vunpack.c.l.b16 %v40
  %v180 = vunpack.c.h.b16 %v40
  %v181 = vunpack.c.l.b16 %v41
  %v182 = vunpack.c.h.b16 %v41
  %v183 = vunpack.c.l.b16 %v42
  %v184 = vunpack.c.h.b16 %v42
  %v185 = vunpack.c.l.b16 %v43
  %v186 = vunpack.c.h.b16 %v43
  %v187 = vunpack.c.l.b16 %v44
  %v188 = vunpack.c.h.b16 %v44
  %v189 = vunpack.c.l.b16 %v45
  %v190 = vunpack.c.h.b16 %v45
  %v191 = vunpack.c.l.b16 %v46
  %v192 = vunpack.c.h.b16 %v46
  %v193 = vunpack.c.l.b16 %v47
  %v194 = vunpack.c.h.b16 %v47
  %v195 = vunpack.c.l.b16 %v48
  %v196 = vunpack.c.h.b16 %v48
  %v197 = vunpack.c.l.b16 %v49
  %v198 = vunpack.c.h.b16 %v49
  %v199 = vunpack.c.l.b16 %v50
  %v200 = vunpack.c.h.b16 %v50
  %v201 = vunpack.c.l.b16 %v51
  %v202 = vunpack.c.h.b16 %v51
  %v203 = vunpack.c.l.b16 %v52
  %v204 = vunpack.c.h.b16 %v52
  %v205 = vunpack.c.l.b16 %v53
  %v206 = vunpack.c.h.b16 %v53
  %v207 = vunpack.c.l.b16 %v54
  %v208 = vunpack.c.h.b16 %v54
  %v209 = vunpack.c.l.b16 %v55
  %v210 = vunpack.c.h.b16 %v55
  %v211 = vunpack.c.l.b16 %v56
  %v212 = vunpack.c.h.b16 %v56
  %v213 = vunpack.c.l.b16 %v57
  %v214 = vunpack.c.h.b16 %v57
  %v215 = vunpack.c.l.b16 %v58
  %v216 = vunpack.c.h.b16 %v58
  %v217 = vunpack.c.l.b16 %v59
  %v218 = vunpack.c.h.b16 %v59
  %v219 = vunpack.c.l.b16 %v60
  %v220 = vunpack.c.h.b16 %v60
  %v221 = vunpack.c.l.b16 %v61
  %v222 = vunpack.c.h.b16 %v61
  %v223 = vunpack.c.l.b16 %v62
  %v224 = vunpack.c.h.b16 %v62
  %v225 = vunpack.c.l.b16 %v63
  %v226 = vunpack.c.h.b16 %v63
  %v227 = vunpack.c.l.b16 %v64
  %v228 = vunpack.c.h.b16 %v64
  %v229 = vunpack.c.l.b16 %v65
  %v230 = vunpack.c.h.b16 %v65
  %v231 = vunpack.c.l.b16 %v66
  %v232 = vunpack.c.h.b16 %v66
  %v233 = vunpack.c.l.b16 %v67
  %v234 = vunpack.c.h.b16 %v67
  %v235 = vunpack.c.l.b16 %v68
  %v236 = vunpack.c.h.b16 %v68
  %v237 = vunpack.c.l.b16 %v69
  %v238 = vunpack.c.h.b16 %v69
  %v239 = vunpack.c.l.b16 %v70
  %v240 = vunpack.c.h.b16 %v70
  %v241 = vunpack.c.l.b16 %v71
  %v242 = vunpack.c.h.b16 %v71
  %v243 = vunpack.c.l.b16 %v72
  %v244 = vunpack.c.h.b16 %v72
  %v245 = vunpack.c.l.b16 %v73
  %v246 = vunpack.c.h.b16 %v73
  %v247 = vunpack.c.l.b16 %v74
  %v248 = vunpack.c.h.b16 %v74
  %v249 = vunpack.c.l.b16 %v75
  %v250 = vunpack.c.h.b16 %v75
  %v251 = vunpack.c.l.b16 %v76
  %v252 = vunpack.c.h.b16 %v76
  %v253 = vunpack.c.l.b16 %v77
  %v254 = vunpack.c.h.b16 %v77
  %v255 = vunpack.c.l.b16 %v78
  %v256 = vunpack.c.h.b16 %v78
  %v257 = vunpack.c.l.b16 %v79
  %v258 = vunpack.c.h.b16 %v79
  %v259 = vunpack.c.l.b16 %v80
  %v260 = vunpack.c.h.b16 %v80
  %v261 = vunpack.c.l.b16 %v81
  %v262 = vunpack.c.h.b16 %v81
  %v263 = vunpack.c.l.b16 %v82
  %v264 = vunpack.c.h.b16 %v82
  %v265 = vunpack.c.l.b16 %v83
  %v266 = vunpack.c.h.b16 %v83
  %v267 = vunpack.c.l.b16 %v84
  %v268 = vunpack.c.h.b16 %v84
  %v269 = vunpack.c.l.b16 %v85
  %v270 = vunpack.c.h.b16 %v85
  %v271 = vunpack.c.l.b16 %v86
  %v272 = vunpack.c.h.b16 %v86
  %v273 = vunpack.c.l.b16 %v87
  %v274 = vunpack.c.h.b16 %v87
  %v275 = vunpack.c.l.b16 %v88
  %v276 = vunpack.c.h.b16 %v88
  %v277 = vunpack.c.l.b16 %v89
  %v278 = vunpack.c.h.b16 %v89
  %v279 = vunpack.c.l.b16 %v90
  %v280 = vunpack.c.h.b16 %v90
  %v281 = vunpack.c.l.b16 %v91
  %v282 = vunpack.c.h.b16 %v91
  %v283 = vunpack.c.l.b16 %v92
  %v284 = vunpack.c.h.b16 %v92
  %v285 = vunpack.c.l.b16 %v93
  %v286 = vunpack.c.h.b16 %v93
  %v287 = vunpack.c.l.b16 %v94
  %v288 = vunpack.c.h.b16 %v94
  %v289 = vunpack.c.l.b16 %v95
  %v290 = vunpack.c.h.b16 %v95
  %v291 = vunpack.c.l.b16 %v96
  %v292 = vunpack.c.h.b16 %v96
  %v293 = vunpack.c.l.b16 %v97
  %v294 = vunpack.c.h.b16 %v97
  %v295 = vunpack.c.l.b16 %v98
  %v296 = vunpack.c.h.b16 %v98
  %v297 = vunpack.c.l.b16 %v99
  %v298 = vunpack.c.h.b16 %v99
  %v299 = vunpack.c.l.b16 %v100
  %v300 = vunpack.c.h.b16 %v100
  %v301 = vunpack.c.l.b16 %v101
  %v302 = vunpack.c.h.b16 %v101
  %v303 = vunpack.c.l.b16 %v102
  %v304 = vunpack.c.h.b16 %v102
  %v305 = vpack.c.b16 %v181, %v177
  %v306 = vpack.c.b16 %v182, %v178
  %v307 = vpack.c.b16 %v183, %v179
  %v308 = vpack.c.b16 %v184, %v180
  %v309 = vpack.c.b16 %v189, %v185
  %v310 = vpack.c.b16 %v190, %v186
  %v311 = vpack.c.b16 %v191, %v187
  %v312 = vpack.c.b16 %v192, %v188
  %v313 = vpack.c.b16 %v197, %v193
  %v314 = vpack.c.b16 %v198, %v194
  %v315 = vpack.c.b16 %v199, %v195
  %v316 = vpack.c.b16 %v200, %v196
  %v317 = vpack.c.b16 %v205, %v201
  %v318 = vpack.c.b16 %v206, %v202
  %v319 = vpack.c.b16 %v207, %v203
  %v320 = vpack.c.b16 %v208, %v204
  %v321 = vpack.c.b16 %v213, %v209
  %v322 = vpack.c.b16 %v214, %v210
  %v323 = vpack.c.b16 %v215, %v211
  %v324 = vpack.c.b16 %v216, %v212
  %v325 = vpack.c.b16 %v221, %v217
  %v326 = vpack.c.b16 %v222, %v218
  %v327 = vpack.c.b16 %v223, %v219
  %v328 = vpack.c.b16 %v224, %v220
  %v329 = vpack.c.b16 %v229, %v225
  %v330 = vpack.c.b16 %v230, %v226
  %v331 = vpack.c.b16 %v231, %v227
  %v332 = vpack.c.b16 %v232, %v228
  %v333 = vpack.c.b16 %v237, %v233
  %v334 = vpack.c.b16 %v238, %v234
  %v335 = vpack.c.b16 %v239, %v235
  %v336 = vpack.c.b16 %v240, %v236
  %v337 = vpack.c.b16 %v245, %v241
  %v338 = vpack.c.b16 %v246, %v242
  %v339 = vpack.c.b16 %v247, %v243
  %v340 = vpack.c.b16 %v248, %v244
  %v341 = vpack.c.b16 %v253, %v249
  %v342 = vpack.c.b16 %v254, %v250
  %v343 = vpack.c.b16 %v255, %v251
  %v344 = vpack.c.b16 %v256, %v252
  %v345 = vpack.c.b16 %v261, %v257
  %v346 = vpack.c.b16 %v262, %v258
  %v347 = vpack.c.b16 %v263, %v259
  %v348 = vpack.c.b16 %v264, %v260
  %v349 = vpack.c.b16 %v269, %v265
  %v350 = vpack.c.b16 %v270, %v266
  %v351 = vpack.c.b16 %v271, %v267
  %v352 = vpack.c.b16 %v272, %v268
  %v353 = vpack.c.b16 %v277, %v273
  %v354 = vpack.c.b16 %v278, %v274
  %v355 = vpack.c.b16 %v279, %v275
  %v356 = vpack.c.b16 %v280, %v276
  %v357 = vpack.c.b16 %v285, %v281
  %v358 = vpack.c.b16 %v286, %v282
  %v359 = vpack.c.b16 %v287, %v283
  %v360 = vpack.c.b16 %v288, %v284
  %v361 = vpack.c.b16 %v293, %v289
  %v362 = vpack.c.b16 %v294, %v290
  %v363 = vpack.c.b16 %v295, %v291
  %v364 = vpack.c.b16 %v296, %v292
  %v365 = vpack.c.b16 %v301, %v297
  %v366 = vpack.c.b16 %v302, %v298
  %v367 = vpack.c.b16 %v303, %v299
  %v368 = vpack.c.b16 %v304, %v300
  %433 = vmatprep.subr.bf16.mxu0 %v306
  %434 = vmatpush1.bf16.msra.mxu0 %v305
  %435 = vmatprep.subr.bf16.mxu0 %v310
  %436 = vmatpush1.bf16.msra.mxu0 %v309
  %437 = vmatprep.subr.bf16.mxu0 %v314
  %438 = vmatpush1.bf16.msra.mxu0 %v313
  %439 = vmatprep.subr.bf16.mxu0 %v318
  %440 = vmatpush1.bf16.msra.mxu0 %v317
  %441 = vmatprep.subr.bf16.mxu0 %v322
  %442 = vmatpush1.bf16.msra.mxu0 %v321
  %443 = vmatprep.subr.bf16.mxu0 %v326
  %444 = vmatpush1.bf16.msra.mxu0 %v325
  %445 = vmatprep.subr.bf16.mxu0 %v330
  %446 = vmatpush1.bf16.msra.mxu0 %v329
  %447 = vmatprep.subr.bf16.mxu0 %v334
  %448 = vmatpush1.bf16.msra.mxu0 %v333
  %449 = vmatprep.subr.bf16.mxu0 %v338
  %450 = vmatpush1.bf16.msra.mxu0 %v337
  %451 = vmatprep.subr.bf16.mxu0 %v342
  %452 = vmatpush1.bf16.msra.mxu0 %v341
  %453 = vmatprep.subr.bf16.mxu0 %v346
  %454 = vmatpush1.bf16.msra.mxu0 %v345
  %455 = vmatprep.subr.bf16.mxu0 %v350
  %456 = vmatpush1.bf16.msra.mxu0 %v349
  %457 = vmatprep.subr.bf16.mxu0 %v354
  %458 = vmatpush1.bf16.msra.mxu0 %v353
  %459 = vmatprep.subr.bf16.mxu0 %v358
  %460 = vmatpush1.bf16.msra.mxu0 %v357
  %461 = vmatprep.subr.bf16.mxu0 %v362
  %462 = vmatpush1.bf16.msra.mxu0 %v361
  %463 = vmatprep.subr.bf16.mxu0 %v366
  %464 = vmatpush1.bf16.msra.mxu0 %v365
  %465 = vmatprep.mubr.bf16.mxu0 %v110
  %466 = vmatmul.mubr.bf16.gmra.mrb[0].mxu0 %v109
  %v467 = vpop.f32.mrb[0].mxu0
  %v468 = vadd.f32 0.0, %v467
  %v469 = vpop.f32.mrb[0].mxu0
  %v470 = vadd.f32 0.0, %v469
  %v471 = vpop.f32.mrb[0].mxu0
  %v472 = vadd.f32 0.0, %v471
  %v473 = vpop.f32.mrb[0].mxu0
  %v474 = vadd.f32 0.0, %v473
  %475 = vdwg.mxu0
  %476 = vmatprep.subr.bf16.mxu0 %v308
  %477 = vmatpush1.bf16.msra.mxu0 %v307
  %478 = vmatprep.subr.bf16.mxu0 %v312
  %479 = vmatpush1.bf16.msra.mxu0 %v311
  %480 = vmatprep.subr.bf16.mxu0 %v316
  %481 = vmatpush1.bf16.msra.mxu0 %v315
  %482 = vmatprep.subr.bf16.mxu0 %v320
  %483 = vmatpush1.bf16.msra.mxu0 %v319
  %484 = vmatprep.subr.bf16.mxu0 %v324
  %485 = vmatpush1.bf16.msra.mxu0 %v323
  %486 = vmatprep.subr.bf16.mxu0 %v328
  %487 = vmatpush1.bf16.msra.mxu0 %v327
  %488 = vmatprep.subr.bf16.mxu0 %v332
  %489 = vmatpush1.bf16.msra.mxu0 %v331
  %490 = vmatprep.subr.bf16.mxu0 %v336
  %491 = vmatpush1.bf16.msra.mxu0 %v335
  %492 = vmatprep.subr.bf16.mxu0 %v340
  %493 = vmatpush1.bf16.msra.mxu0 %v339
  %494 = vmatprep.subr.bf16.mxu0 %v344
  %495 = vmatpush1.bf16.msra.mxu0 %v343
  %496 = vmatprep.subr.bf16.mxu0 %v348
  %497 = vmatpush1.bf16.msra.mxu0 %v347
  %498 = vmatprep.subr.bf16.mxu0 %v352
  %499 = vmatpush1.bf16.msra.mxu0 %v351
  %500 = vmatprep.subr.bf16.mxu0 %v356
  %501 = vmatpush1.bf16.msra.mxu0 %v355
  %502 = vmatprep.subr.bf16.mxu0 %v360
  %503 = vmatpush1.bf16.msra.mxu0 %v359
  %504 = vmatprep.subr.bf16.mxu0 %v364
  %505 = vmatpush1.bf16.msra.mxu0 %v363
  %506 = vmatprep.subr.bf16.mxu0 %v368
  %507 = vmatpush1.bf16.msra.mxu0 %v367
  %508 = vmatprep.mubr.bf16.mxu0 %v110
  %509 = vmatmul.mubr.bf16.gmra.mrb[0].mxu0 %v109
  %v510 = vpop.f32.mrb[0].mxu0
  %v511 = vadd.f32 0.0, %v510
  %v512 = vpop.f32.mrb[0].mxu0
  %v513 = vadd.f32 0.0, %v512
  %v514 = vpop.f32.mrb[0].mxu0
  %v515 = vadd.f32 0.0, %v514
  %v516 = vpop.f32.mrb[0].mxu0
  %v517 = vadd.f32 0.0, %v516
  %518 = vdwg.mxu0
  %v519 = vadd.f32 %v29, %v468
  %v520 = vadd.f32 %v30, %v470
  %v521 = vadd.f32 %v31, %v511
  %v522 = vadd.f32 %v32, %v513
  %v523 = vadd.f32 %v33, %v472
  %v524 = vadd.f32 %v34, %v474
  %v525 = vadd.f32 %v35, %v515
  %v526 = vadd.f32 %v36, %v517
  %527 = vst [vmem:[#allocation2] sm:$0xff] %v519
  %528 = vst [vmem:[#allocation2 + $0x8] sm:$0xff] %v520
  %529 = vst [vmem:[#allocation2 + $0x10] sm:$0xff] %v521
  %530 = vst [vmem:[#allocation2 + $0x18] sm:$0xff] %v522
  %531 = vst [vmem:[#allocation2 + $0x20] sm:$0xff] %v523
  %532 = vst [vmem:[#allocation2 + $0x28] sm:$0xff] %v524
  %533 = vst [vmem:[#allocation2 + $0x30] sm:$0xff] %v525
  %534 = vst [vmem:[#allocation2 + $0x38] sm:$0xff] %v526
  // Predicated region
  $region22: #{_lambda_.24} parent=0 // pred_check
    %p535 = pneg %p17
  $region23: #{_lambda_.24} parent=0 // pred_check_branch
    %537 = sbr.rel (%p535) target = $region25
  $region24: #{_lambda_.24} parent=0 // pred_region
    %v538 = vld [vmem:[#allocation2] sm:$0xff]
    %v539 = vld [vmem:[#allocation2 + $0x8] sm:$0xff]
    %v540 = vld [vmem:[#allocation2 + $0x10] sm:$0xff]
    %v541 = vld [vmem:[#allocation2 + $0x18] sm:$0xff]
    %v542 = vld [vmem:[#allocation2 + $0x20] sm:$0xff]
    %v543 = vld [vmem:[#allocation2 + $0x28] sm:$0xff]
    %v544 = vld [vmem:[#allocation2 + $0x30] sm:$0xff]
    %v545 = vld [vmem:[#allocation2 + $0x38] sm:$0xff]
    %v546 = vld [vmem:[%s2] sm:$0xf]
    %v548 = vlaneseq
    %v549 = vshrl.u32 %v548, 7
    %v550 = vsub.s32 0, %v549
    %v551 = vrot.slane %v546, %v550
    %v552 = vlaneseq
    %v553 = vshrl.u32 %v552, 7
    %v554 = vsub.s32 1, %v553
    %v555 = vrot.slane %v546, %v554
    %v556 = vlaneseq
    %v557 = vshrl.u32 %v556, 7
    %v558 = vsub.s32 2, %v557
    %v559 = vrot.slane %v546, %v558
    %v560 = vlaneseq
    %v561 = vshrl.u32 %v560, 7
    %v562 = vsub.s32 3, %v561
    %v563 = vrot.slane %v546, %v562
    %v568 = vmul.f32 %v538, %v551
    %v569 = vmul.f32 %v539, %v555
    %v570 = vmul.f32 %v540, %v559
    %v571 = vmul.f32 %v541, %v563
    %v572 = vmul.f32 %v542, %v551
    %v573 = vmul.f32 %v543, %v555
    %v574 = vmul.f32 %v544, %v559
    %v575 = vmul.f32 %v545, %v563
    %v576 = vld [vmem:[%s3] sm:$0xf]
    %v578 = vlaneseq
    %v579 = vshrl.u32 %v578, 7
    %v580 = vsub.s32 0, %v579
    %v581 = vrot.slane %v576, %v580
    %v582 = vlaneseq
    %v583 = vshrl.u32 %v582, 7
    %v584 = vsub.s32 1, %v583
    %v585 = vrot.slane %v576, %v584
    %v586 = vlaneseq
    %v587 = vshrl.u32 %v586, 7
    %v588 = vsub.s32 2, %v587
    %v589 = vrot.slane %v576, %v588
    %v590 = vlaneseq
    %v591 = vshrl.u32 %v590, 7
    %v592 = vsub.s32 3, %v591
    %v593 = vrot.slane %v576, %v592
    %v598 = vadd.f32 %v568, %v581
    %v599 = vadd.f32 %v569, %v585
    %v600 = vadd.f32 %v570, %v589
    %v601 = vadd.f32 %v571, %v593
    %v602 = vadd.f32 %v572, %v581
    %v603 = vadd.f32 %v573, %v585
    %v604 = vadd.f32 %v574, %v589
    %v605 = vadd.f32 %v575, %v593
    %v606 = vpack.c.bf16 %v602, %v598
    %v607 = vpack.c.bf16 %v603, %v599
    %v608 = vpack.c.bf16 %v604, %v600
    %v609 = vpack.c.bf16 %v605, %v601
    %v614 = vunpack.c.l.b16 %v606
    %v615 = vunpack.c.l.b16 %v607
    %v616 = vunpack.c.l.b16 %v608
    %v617 = vunpack.c.l.b16 %v609
    %v618 = vunpack.c.h.b16 %v606
    %v619 = vunpack.c.h.b16 %v607
    %v620 = vunpack.c.h.b16 %v608
    %v621 = vunpack.c.h.b16 %v609
    %v622 = vpack.c.b16 %v615, %v614
    %v623 = vpack.c.b16 %v617, %v616
    %v624 = vpack.c.b16 %v619, %v618
    %v625 = vpack.c.b16 %v621, %v620
    %630 = vst [vmem:[%s4] sm:$0xff] %v622
    %631 = vst [vmem:[%s4 + $0x8] sm:$0xff] %v623
    %632 = vst [vmem:[%s4 + $0x10] sm:$0xff] %v624
    %633 = vst [vmem:[%s4 + $0x18] sm:$0xff] %v625
  $region25: #{_lambda_.24} parent=0 // pred_fallthru
    _
  // Predicated region
  $region26: #{_lambda_.24} parent=0 // pred_check
    _
  $region27: #{_lambda_.24} parent=0 // pred_check_branch
    %635 = sbr.rel (0) target = $region29
  $region28: #{_lambda_.24} parent=0 // pred_region
    _
  $region29: #{_lambda_.24} parent=0 // pred_fallthru
    _
  // Predicated region
  $region30: #{_lambda_.24} parent=0 // pred_check
    _
  $region31: #{_lambda_.24} parent=0 // pred_check_branch
    %637 = sbr.rel (0) target = $region33
  $region32: #{_lambda_.24} parent=0 // pred_region
    _
  $region33: #{_lambda_.24} parent=0 // pred_fallthru
    _

// kernel: _lambda_.23
$region0: #{_lambda_.23}
  #allocation0 [shape = 'u32[]', space=smem, size = 0x4, offset = 0x4, fixed_abs, tag = 'smem constant byte address 0x4 - core index']
  #allocation1 [shape = 'u32[144,128]{1,0:T(1,128)}', space=vmem, size = 0x12000, scoped, tag = 'internal scratch']
  #allocation2 [shape = 'f32[16,512]{1,0:T(8,128)}', space=vmem, size = 0x8000, scoped, tag = 'scratch operand']
  %s0 = inlined_call_operand.vmem [shape: bf16[16,2304], index: 0, kind: input, shape index: {}]
  %s1 = inlined_call_operand.vmem [shape: bf16[2304,512], index: 1, kind: input, shape index: {}]
  %s2 = inlined_call_operand.vmem [shape: f32[1,512], index: 2, kind: input, shape index: {}]
  %s3 = inlined_call_operand.vmem [shape: f32[1,512], index: 3, kind: input, shape index: {}]
  %s4 = inlined_call_operand.vmem [shape: bf16[16,512], index: 4, kind: output, shape index: {}]
  %s5 = sld [smem:[#allocation0]]
  $region83: #{_lambda_.23} parent=0
    _
  %s7 = ssub.s32 1, %s5
  %s8 = scalar_select 0, %s7, %s5
  $region1: #{_lambda_.23} parent=0
    #allocation3 [shape = 'u8[24576]{0}', space=vmem, size = 0x6000, scoped, tag = 'input window, operand 0']
    loop: start=0, step=1, limit=8
    $region2: #{_lambda_.23} parent=1 // loop_pre_header
      _
    $region3: #{_lambda_.23} parent=1 // loop_header
      %s10 = sphi 0, %s14
      %p11 = scmp.ge.s32.totalorder %s10, 8
      %s17 = sphi 0, %s36
      %s18 = sphi 0, %s32
      %s19 = sphi 0, %s28
      %s20 = sphi 0, %s17
      %s21 = sphi 0, %s18
      %s22 = sphi 0, %s19
      %s23 = sphi 0, %s20
      %s24 = sphi 0, %s21
      %s25 = sphi 0, %s22
      %s41 = sphi 0, %s43
      %s44 = sphi 0, %s41
      %s45 = sphi 0, %s44
      %s61 = sphi 0, %s45
      %s69 = sphi 0, %s71
      %s72 = sphi 0, %s69
      %s73 = sphi 0, %s72
      %s89 = sphi 0, %s73
      %s95 = sphi 0, %s97
      %s98 = sphi 0, %s95
      %s99 = sphi 0, %s98
      %s115 = sphi 0, %s99
      %s121 = sphi 0, %s123
      %s124 = sphi 0, %s121
      %s125 = sphi 0, %s124
      %s141 = sphi 0, %s125
      %s149 = sphi 0, %s151
      %s152 = sphi 0, %s149
      %s153 = sphi 0, %s152
      %s169 = sphi 0, %s153
    $region4: #{_lambda_.23} parent=1 // loop_header_branch
      %13 = sbr.rel (%p11) target = $region8
    $region5: #{_lambda_.23} parent=1 // loop_body
      %s15 = ssub.s32 %s10, 1
      %s16 = ssub.s32 %s10, 2
      %s26 = sadd.s32 1, %s19
      %p27 = scmp.ge.s32.totalorder %s26, 6
      %s28 = scalar_select %p27, 0, %s26
      %s29 = sadd.s32 1, %s18
      %s30 = scalar_select %p27, %s29, %s18
      %p31 = scmp.ge.s32.totalorder %s30, 1
      %s32 = scalar_select %p31, 0, %s30
      %s33 = sadd.s32 1, %s17
      %s34 = scalar_select %p31, %s33, %s17
      %p35 = scmp.ge.s32.totalorder %s34, 1
      %s36 = scalar_select %p35, 0, %s34
      %s37 = ssub.s32 %s17, %s36
      %s38 = ssub.s32 %s19, %s28
      %s39 = sor.u32 %s37, %s38
      %p40 = scmp.eq.s32.totalorder %s39, 0
      %s42 = sadd.s32 %s41, 1
      %s43 = scalar_select %p40, %s41, %s42
      %p46 = pneg %p40
      %p47 = scmp.eq.s32.totalorder %s10, 5
      %p48 = por %p46, %p47
      %p49 = scmp.ne.s32.totalorder %s41, %s44
      %p50 = scmp.eq.s32.totalorder %s10, 0
      %p51 = por %p49, %p50
      %p52 = scmp.ne.s32.totalorder %s41, %s44
      %p53 = scmp.eq.s32.totalorder %s15, 5
      %p54 = por %p52, %p53
      %p55 = scmp.ne.s32.totalorder %s44, %s45
      %p56 = scmp.eq.s32.totalorder %s15, 0
      %p57 = por %p55, %p56
      %p58 = scmp.ne.s32.totalorder %s44, %s45
      %p59 = scmp.eq.s32.totalorder %s16, 5
      %p60 = por %p58, %p59
      %p62 = scmp.ne.s32.totalorder %s45, %s61
      %p63 = scmp.eq.s32.totalorder %s16, 0
      %p64 = por %p62, %p63
      %s65 = ssub.s32 %s19, %s28
      %s66 = ssub.s32 %s18, %s32
      %s67 = sor.u32 %s65, %s66
      %p68 = scmp.eq.s32.totalorder %s67, 0
      %s70 = sadd.s32 %s69, 1
      %s71 = scalar_select %p68, %s69, %s70
      %p74 = pneg %p68
      %p75 = scmp.eq.s32.totalorder %s10, 5
      %p76 = por %p74, %p75
      %p77 = scmp.ne.s32.totalorder %s69, %s72
      %p78 = scmp.eq.s32.totalorder %s10, 0
      %p79 = por %p77, %p78
      %p80 = scmp.ne.s32.totalorder %s69, %s72
      %p81 = scmp.eq.s32.totalorder %s15, 5
      %p82 = por %p80, %p81
      %p83 = scmp.ne.s32.totalorder %s72, %s73
      %p84 = scmp.eq.s32.totalorder %s15, 0
      %p85 = por %p83, %p84
      %p86 = scmp.ne.s32.totalorder %s72, %s73
      %p87 = scmp.eq.s32.totalorder %s16, 5
      %p88 = por %p86, %p87
      %p90 = scmp.ne.s32.totalorder %s73, %s89
      %p91 = scmp.eq.s32.totalorder %s16, 0
      %p92 = por %p90, %p91
      %s93 = ssub.s32 %s18, %s32
      %p94 = scmp.eq.s32.totalorder %s93, 0
      %s96 = sadd.s32 %s95, 1
      %s97 = scalar_select %p94, %s95, %s96
      %p100 = pneg %p94
      %p101 = scmp.eq.s32.totalorder %s10, 5
      %p102 = por %p100, %p101
      %p103 = scmp.ne.s32.totalorder %s95, %s98
      %p104 = scmp.eq.s32.totalorder %s10, 0
      %p105 = por %p103, %p104
      %p106 = scmp.ne.s32.totalorder %s95, %s98
      %p107 = scmp.eq.s32.totalorder %s15, 5
      %p108 = por %p106, %p107
      %p109 = scmp.ne.s32.totalorder %s98, %s99
      %p110 = scmp.eq.s32.totalorder %s15, 0
      %p111 = por %p109, %p110
      %p112 = scmp.ne.s32.totalorder %s98, %s99
      %p113 = scmp.eq.s32.totalorder %s16, 5
      %p114 = por %p112, %p113
      %p116 = scmp.ne.s32.totalorder %s99, %s115
      %p117 = scmp.eq.s32.totalorder %s16, 0
      %p118 = por %p116, %p117
      %s119 = ssub.s32 %s18, %s32
      %p120 = scmp.eq.s32.totalorder %s119, 0
      %s122 = sadd.s32 %s121, 1
      %s123 = scalar_select %p120, %s121, %s122
      %p126 = pneg %p120
      %p127 = scmp.eq.s32.totalorder %s10, 5
      %p128 = por %p126, %p127
      %p129 = scmp.ne.s32.totalorder %s121, %s124
      %p130 = scmp.eq.s32.totalorder %s10, 0
      %p131 = por %p129, %p130
      %p132 = scmp.ne.s32.totalorder %s121, %s124
      %p133 = scmp.eq.s32.totalorder %s15, 5
      %p134 = por %p132, %p133
      %p135 = scmp.ne.s32.totalorder %s124, %s125
      %p136 = scmp.eq.s32.totalorder %s15, 0
      %p137 = por %p135, %p136
      %p138 = scmp.ne.s32.totalorder %s124, %s125
      %p139 = scmp.eq.s32.totalorder %s16, 5
      %p140 = por %p138, %p139
      %p142 = scmp.ne.s32.totalorder %s125, %s141
      %p143 = scmp.eq.s32.totalorder %s16, 0
      %p144 = por %p142, %p143
      %s145 = ssub.s32 %s17, %s36
      %s146 = ssub.s32 %s18, %s32
      %s147 = sor.u32 %s145, %s146
      %p148 = scmp.eq.s32.totalorder %s147, 0
      %s150 = sadd.s32 %s149, 1
      %s151 = scalar_select %p148, %s149, %s150
      %p154 = pneg %p148
      %p155 = scmp.eq.s32.totalorder %s10, 5
      %p156 = por %p154, %p155
      %p157 = scmp.ne.s32.totalorder %s149, %s152
      %p158 = scmp.eq.s32.totalorder %s10, 0
      %p159 = por %p157, %p158
      %p160 = scmp.ne.s32.totalorder %s149, %s152
      %p161 = scmp.eq.s32.totalorder %s15, 5
      %p162 = por %p160, %p161
      %p163 = scmp.ne.s32.totalorder %s152, %s153
      %p164 = scmp.eq.s32.totalorder %s15, 0
      %p165 = por %p163, %p164
      %p166 = scmp.ne.s32.totalorder %s152, %s153
      %p167 = scmp.eq.s32.totalorder %s16, 5
      %p168 = por %p166, %p167
      %p170 = scmp.ne.s32.totalorder %s153, %s169
      %p171 = scmp.eq.s32.totalorder %s16, 0
      %p172 = por %p170, %p171
      %p173 = scmp.le.s32.totalorder 1, %s10
      %p174 = scmp.lt.s32.totalorder %s10, 7
      %p175 = pnand %p173, %p174
      %p176 = pneg %p175
      // Predicated region
      $region9: #{_lambda_.23} parent=5 // pred_check
        _
      $region10: #{_lambda_.23} parent=5 // pred_check_branch
        %178 = sbr.rel (%p175) target = $region12
      $region11: #{_lambda_.23} parent=5 // pred_region
        %s179 = ssub.s32 %s10, 1
        // Predicated region
        $region13: #{_lambda_.23} parent=11 // pred_check
          %p180 = pneg %p111
        $region14: #{_lambda_.23} parent=11 // pred_check_branch
          %182 = sbr.rel (%p180) target = $region16
        $region15: #{_lambda_.23} parent=11 // pred_region
          %s183 = smul.u32 4, %s21
          %p184 = scmp.lt.s32.totalorder %s183, 3
          %s185 = scalar_select %p184, %s183, 3
          %s186 = scalar_lea.vmem %s2, %s185
          %s187 = smul.u32 4, %s21
        $region16: #{_lambda_.23} parent=11 // pred_fallthru
          _
        // Predicated region
        $region17: #{_lambda_.23} parent=11 // pred_check
          %p188 = pneg %p137
        $region18: #{_lambda_.23} parent=11 // pred_check_branch
          %190 = sbr.rel (%p188) target = $region20
        $region19: #{_lambda_.23} parent=11 // pred_region
          %s191 = smul.u32 4, %s21
          %p192 = scmp.lt.s32.totalorder %s191, 3
          %s193 = scalar_select %p192, %s191, 3
          %s194 = scalar_lea.vmem %s3, %s193
          %s195 = smul.u32 4, %s21
        $region20: #{_lambda_.23} parent=11 // pred_fallthru
          _
      $region12: #{_lambda_.23} parent=5 // pred_fallthru
        _
      %p196 = scmp.lt.s32.totalorder %s10, 6
      // Predicated region
      $region21: #{_lambda_.23} parent=5 // pred_check
        %p197 = pneg %p196
      $region22: #{_lambda_.23} parent=5 // pred_check_branch
        %199 = sbr.rel (%p197) target = $region24
      $region23: #{_lambda_.23} parent=5 // pred_region
        // Predicated region
        $region25: #{_lambda_.23} parent=23 // pred_check
          %p200 = pneg %p51
        $region26: #{_lambda_.23} parent=23 // pred_check_branch
          %202 = sbr.rel (%p200) target = $region28
        $region27: #{_lambda_.23} parent=23 // pred_region
          %s203 = sand.u32 %s41, 1
          %s204 = sand.u32 %s41, 1
          %s205 = smul.addr %s204, 24
          %s206 = scalar_lea.vmem [#allocation3], %s205
          %s207 = smul.u32 2, %s17
          %s208 = smul.u32 3, %s19
          %s209 = smul.addr %s207, 18
          %s210 = sadd.s32 %s208, %s209
          %s211 = smul.addr %s210, 4
          %s212 = scalar_lea.vmem %s0, %s211
          // Predicated region
          $region29: #{_lambda_.23} parent=27 // pred_check
            _
          $region30: #{_lambda_.23} parent=27 // pred_check_branch
            %214 = sbr.rel (0) target = $region32
          $region31: #{_lambda_.23} parent=27 // pred_region
            // Predicated region
            $region33: #{_lambda_.23} parent=31 // pred_check
              _
            $region34: #{_lambda_.23} parent=31 // pred_check_branch
              %216 = sbr.rel (0) target = $region36
            $region35: #{_lambda_.23} parent=31 // pred_region
              %s217 = scalar_lea.vmem %s212, 8
              %s218 = scalar_lea.vmem %s206, 8 [#allocation3]
              loop: start=0, step=1, limit=1
              $region37: #{_lambda_.23} parent=35 // loop_pre_header
                _
              $region38: #{_lambda_.23} parent=35 // loop_header
                %s220 = sphi 0, %s224
                %p221 = scmp.ge.s32.totalorder %s220, 1
                %s225 = sphi %s212, %s212
                %s226 = sphi %s206, %s206
              $region39: #{_lambda_.23} parent=35 // loop_header_branch
                %223 = sbr.rel (%p221) target = $region43
              $region40: #{_lambda_.23} parent=35 // loop_body
                %v227 = vld [vmem:[%s225] sm:$0xff]
                %228 = vst [vmem:[%s226] sm:$0xff] %v227
                %v229 = vld [vmem:[%s225 + $0x48] sm:$0xff]
                %230 = vst [vmem:[%s226 + $0xc] sm:$0xff] %v229
              $region41: #{_lambda_.23} parent=35 // loop_footer
                %s224 = sadd.s32 1, %s220
              $region42: #{_lambda_.23} parent=35 // loop_footer_branch
                %219 = sbr.rel target = $region38
              $region43: #{_lambda_.23} parent=35 // loop_exit
                _
              loop: start=0, step=1, limit=1
              $region44: #{_lambda_.23} parent=35 // loop_pre_header
                _
              $region45: #{_lambda_.23} parent=35 // loop_header
                %s233 = sphi 0, %s237
                %p234 = scmp.ge.s32.totalorder %s233, 1
                %s238 = sphi %s217, %s217
                %s239 = sphi %s218, %s218
              $region46: #{_lambda_.23} parent=35 // loop_header_branch
                %236 = sbr.rel (%p234) target = $region50
              $region47: #{_lambda_.23} parent=35 // loop_body
                %v240 = vld [vmem:[%s238] sm:$0xf]
                %241 = vst [vmem:[%s239] sm:$0xf] %v240
                %v242 = vld [vmem:[%s238 + $0x48] sm:$0xf]
                %243 = vst [vmem:[%s239 + $0xc] sm:$0xf] %v242
              $region48: #{_lambda_.23} parent=35 // loop_footer
                %s237 = sadd.s32 1, %s233
              $region49: #{_lambda_.23} parent=35 // loop_footer_branch
                %232 = sbr.rel target = $region45
              $region50: #{_lambda_.23} parent=35 // loop_exit
                _
            $region36: #{_lambda_.23} parent=31 // pred_fallthru
              _
          $region32: #{_lambda_.23} parent=27 // pred_fallthru
            _
          %244 = vnop
        $region28: #{_lambda_.23} parent=23 // pred_fallthru
          _
        // Predicated region
        $region51: #{_lambda_.23} parent=23 // pred_check
          %p245 = pneg %p79
        $region52: #{_lambda_.23} parent=23 // pred_check_branch
          %247 = sbr.rel (%p245) target = $region54
        $region53: #{_lambda_.23} parent=23 // pred_region
          %s248 = smul.u32 48, %s19
          %s249 = smul.u32 4, %s18
          %p250 = scmp.lt.s32.totalorder %s248, 287
          %s251 = scalar_select %p250, %s248, 287
          %p252 = scmp.lt.s32.totalorder %s249, 3
          %s253 = scalar_select %p252, %s249, 3
          %s254 = smul.addr %s251, 4
          %s255 = sadd.s32 %s253, %s254
          %s256 = smul.addr %s255, 4
          %s257 = scalar_lea.vmem %s1, %s256
          %s258 = smul.u32 48, %s19
          %s259 = smul.u32 4, %s18
        $region54: #{_lambda_.23} parent=23 // pred_fallthru
          _
      $region24: #{_lambda_.23} parent=5 // pred_fallthru
        _
      %p260 = scmp.le.s32.totalorder 1, %s10
      %p261 = scmp.lt.s32.totalorder %s10, 7
      %p262 = pnand %p260, %p261
      %p263 = pneg %p262
      // Predicated region
      $region55: #{_lambda_.23} parent=5 // pred_check
        _
      $region56: #{_lambda_.23} parent=5 // pred_check_branch
        %265 = sbr.rel (%p262) target = $region58
      $region57: #{_lambda_.23} parent=5 // pred_region
        %s266 = ssub.s32 %s10, 1
        %s267 = sand.u32 %s44, 1
        %s268 = sand.u32 %s44, 1
        %s269 = smul.addr %s268, 24
        %s270 = scalar_lea.vmem [#allocation3], %s269
        // Predicated region
        $region59: #{_lambda_.23} parent=57 // pred_check
          %p271 = pneg %p57
        $region60: #{_lambda_.23} parent=57 // pred_check_branch
          %273 = sbr.rel (%p271) target = $region62
        $region61: #{_lambda_.23} parent=57 // pred_region
          _
        $region62: #{_lambda_.23} parent=57 // pred_fallthru
          _
        %s274 = sand.u32 %s44, 1
        %s275 = sand.u32 %s44, 1
        %s276 = smul.addr %s275, 24
        %s277 = scalar_lea.vmem [#allocation3], %s276
        %p278 = pneg %p57
        %p279 = pneg %p54
        %s280 = smul.u32 48, %s22
        %s281 = smul.u32 4, %s21
        %p282 = scmp.lt.s32.totalorder %s280, 287
        %s283 = scalar_select %p282, %s280, 287
        %p284 = scmp.lt.s32.totalorder %s281, 3
        %s285 = scalar_select %p284, %s281, 3
        %s286 = smul.addr %s283, 4
        %s287 = sadd.s32 %s285, %s286
        %s288 = smul.addr %s287, 4
        %s289 = scalar_lea.vmem %s1, %s288
        %p290 = pneg %p85
        %p291 = pneg %p82
        %s292 = smul.u32 4, %s21
        %p293 = scmp.lt.s32.totalorder %s292, 3
        %s294 = scalar_select %p293, %s292, 3
        %s295 = scalar_lea.vmem %s2, %s294
        %p296 = pneg %p111
        %p297 = pneg %p108
        %s298 = smul.u32 4, %s21
        %p299 = scmp.lt.s32.totalorder %s298, 3
        %s300 = scalar_select %p299, %s298, 3
        %s301 = scalar_lea.vmem %s3, %s300
        %p302 = pneg %p137
        %p303 = pneg %p134
        %p304 = pneg %p165
        %p305 = pneg %p162
        %s306 = smul.u32 2, %s20
        %s307 = smul.u32 4, %s21
        %p308 = scmp.lt.s32.totalorder %s306, 1
        %s309 = scalar_select %p308, %s306, 1
        %p310 = scmp.lt.s32.totalorder %s307, 3
        %s311 = scalar_select %p310, %s307, 3
        %s312 = smul.addr %s309, 4
        %s313 = sadd.s32 %s311, %s312
        %s314 = smul.addr %s313, 4
        %s315 = scalar_lea.vmem %s4, %s314
        %s316 = smul.u32 2, %s20
        %s317 = smul.u32 3, %s22
        %s318 = smul.u32 48, %s22
        %s319 = smul.u32 4, %s21
        %p320 = scmp.lt.s32.totalorder %s318, 287
        %s321 = scalar_select %p320, %s318, 287
        %p322 = scmp.lt.s32.totalorder %s319, 3
        %s323 = scalar_select %p322, %s319, 3
        %s324 = smul.addr %s321, 4
        %s325 = sadd.s32 %s323, %s324
        %s326 = smul.addr %s325, 4
        %s327 = scalar_lea.vmem %s1, %s326
        %s328 = smul.u32 48, %s22
        %s329 = smul.u32 4, %s21
        %s330 = smul.u32 4, %s21
        %p331 = scmp.lt.s32.totalorder %s330, 3
        %s332 = scalar_select %p331, %s330, 3
        %s333 = scalar_lea.vmem %s2, %s332
        %s334 = smul.u32 4, %s21
        %s335 = smul.u32 4, %s21
        %p336 = scmp.lt.s32.totalorder %s335, 3
        %s337 = scalar_select %p336, %s335, 3
        %s338 = scalar_lea.vmem %s3, %s337
        %s339 = smul.u32 4, %s21
        %s340 = smul.u32 2, %s20
        %s341 = smul.u32 4, %s21
        %p342 = scmp.lt.s32.totalorder %s340, 1
        %s343 = scalar_select %p342, %s340, 1
        %p344 = scmp.lt.s32.totalorder %s341, 3
        %s345 = scalar_select %p344, %s341, 3
        %s346 = smul.addr %s343, 4
        %s347 = sadd.s32 %s345, %s346
        %s348 = smul.addr %s347, 4
        %s349 = scalar_lea.vmem %s4, %s348
        %s350 = smul.u32 2, %s20
        %s351 = smul.u32 4, %s21
        %p353 = scmp.eq.s32.totalorder %s22, 0
        // Predicated region
        $region63: #{_lambda_.23} parent=57 // pred_check
          %p354 = pneg %p353
        $region64: #{_lambda_.23} parent=57 // pred_check_branch
          %356 = sbr.rel (%p354) target = $region66
        $region65: #{_lambda_.23} parent=57 // pred_region
          %357 = vst [vmem:[#allocation2] sm:$0xff] 0.0
          %358 = vst [vmem:[#allocation2 + $0x8] sm:$0xff] 0.0
          %359 = vst [vmem:[#allocation2 + $0x10] sm:$0xff] 0.0
          %360 = vst [vmem:[#allocation2 + $0x18] sm:$0xff] 0.0
          %361 = vst [vmem:[#allocation2 + $0x20] sm:$0xff] 0.0
          %362 = vst [vmem:[#allocation2 + $0x28] sm:$0xff] 0.0
          %363 = vst [vmem:[#allocation2 + $0x30] sm:$0xff] 0.0
          %364 = vst [vmem:[#allocation2 + $0x38] sm:$0xff] 0.0
        $region66: #{_lambda_.23} parent=57 // pred_fallthru
          _
        %v365 = vld [vmem:[#allocation2] sm:$0xff]
        %v366 = vld [vmem:[#allocation2 + $0x8] sm:$0xff]
        %v367 = vld [vmem:[#allocation2 + $0x10] sm:$0xff]
        %v368 = vld [vmem:[#allocation2 + $0x18] sm:$0xff]
        %v369 = vld [vmem:[#allocation2 + $0x20] sm:$0xff]
        %v370 = vld [vmem:[#allocation2 + $0x28] sm:$0xff]
        %v371 = vld [vmem:[#allocation2 + $0x30] sm:$0xff]
        %v372 = vld [vmem:[#allocation2 + $0x38] sm:$0xff]
        %v373 = vld [vmem:[%s270] sm:$0xff]
        %v374 = vld [vmem:[%s270 + $0x8] sm:$0xf]
        %v375 = vld [vmem:[%s270 + $0xc] sm:$0xff]
        %v376 = vld [vmem:[%s270 + $0x14] sm:$0xf]
        %v377 = vld [vmem:[%s327] sm:$0xff]
        %v378 = vld [vmem:[%s327 + $0x8] sm:$0xff]
        %v379 = vld [vmem:[%s327 + $0x10] sm:$0xff]
        %v380 = vld [vmem:[%s327 + $0x18] sm:$0xff]
        %v381 = vld [vmem:[%s327 + $0x20] sm:$0xff]
        %v382 = vld [vmem:[%s327 + $0x28] sm:$0xff]
        %v383 = vld [vmem:[%s327 + $0x30] sm:$0xff]
        %v384 = vld [vmem:[%s327 + $0x38] sm:$0xff]
        %v385 = vld [vmem:[%s327 + $0x40] sm:$0xff]
        %v386 = vld [vmem:[%s327 + $0x48] sm:$0xff]
        %v387 = vld [vmem:[%s327 + $0x50] sm:$0xff]
        %v388 = vld [vmem:[%s327 + $0x58] sm:$0xff]
        %v389 = vld [vmem:[%s327 + $0x60] sm:$0xff]
        %v390 = vld [vmem:[%s327 + $0x68] sm:$0xff]
        %v391 = vld [vmem:[%s327 + $0x70] sm:$0xff]
        %v392 = vld [vmem:[%s327 + $0x78] sm:$0xff]
        %v393 = vld [vmem:[%s327 + $0x80] sm:$0xff]
        %v394 = vld [vmem:[%s327 + $0x88] sm:$0xff]
        %v395 = vld [vmem:[%s327 + $0x90] sm:$0xff]
        %v396 = vld [vmem:[%s327 + $0x98] sm:$0xff]
        %v397 = vld [vmem:[%s327 + $0xa0] sm:$0xff]
        %v398 = vld [vmem:[%s327 + $0xa8] sm:$0xff]
        %v399 = vld [vmem:[%s327 + $0xb0] sm:$0xff]
        %v400 = vld [vmem:[%s327 + $0xb8] sm:$0xff]
        %v401 = vld [vmem:[%s327 + $0xc0] sm:$0xff]
        %v402 = vld [vmem:[%s327 + $0xc8] sm:$0xff]
        %v403 = vld [vmem:[%s327 + $0xd0] sm:$0xff]
        %v404 = vld [vmem:[%s327 + $0xd8] sm:$0xff]
        %v405 = vld [vmem:[%s327 + $0xe0] sm:$0xff]
        %v406 = vld [vmem:[%s327 + $0xe8] sm:$0xff]
        %v407 = vld [vmem:[%s327 + $0xf0] sm:$0xff]
        %v408 = vld [vmem:[%s327 + $0xf8] sm:$0xff]
        %v409 = vld [vmem:[%s327 + $0x100] sm:$0xff]
        %v410 = vld [vmem:[%s327 + $0x108] sm:$0xff]
        %v411 = vld [vmem:[%s327 + $0x110] sm:$0xff]
        %v412 = vld [vmem:[%s327 + $0x118] sm:$0xff]
        %v413 = vld [vmem:[%s327 + $0x120] sm:$0xff]
        %v414 = vld [vmem:[%s327 + $0x128] sm:$0xff]
        %v415 = vld [vmem:[%s327 + $0x130] sm:$0xff]
        %v416 = vld [vmem:[%s327 + $0x138] sm:$0xff]
        %v417 = vld [vmem:[%s327 + $0x140] sm:$0xff]
        %v418 = vld [vmem:[%s327 + $0x148] sm:$0xff]
        %v419 = vld [vmem:[%s327 + $0x150] sm:$0xff]
        %v420 = vld [vmem:[%s327 + $0x158] sm:$0xff]
        %v421 = vld [vmem:[%s327 + $0x160] sm:$0xff]
        %v422 = vld [vmem:[%s327 + $0x168] sm:$0xff]
        %v423 = vld [vmem:[%s327 + $0x170] sm:$0xff]
        %v424 = vld [vmem:[%s327 + $0x178] sm:$0xff]
        %v425 = vld [vmem:[%s327 + $0x180] sm:$0xff]
        %v426 = vld [vmem:[%s327 + $0x188] sm:$0xff]
        %v427 = vld [vmem:[%s327 + $0x190] sm:$0xff]
        %v428 = vld [vmem:[%s327 + $0x198] sm:$0xff]
        %v429 = vld [vmem:[%s327 + $0x1a0] sm:$0xff]
        %v430 = vld [vmem:[%s327 + $0x1a8] sm:$0xff]
        %v431 = vld [vmem:[%s327 + $0x1b0] sm:$0xff]
        %v432 = vld [vmem:[%s327 + $0x1b8] sm:$0xff]
        %v433 = vld [vmem:[%s327 + $0x1c0] sm:$0xff]
        %v434 = vld [vmem:[%s327 + $0x1c8] sm:$0xff]
        %v435 = vld [vmem:[%s327 + $0x1d0] sm:$0xff]
        %v436 = vld [vmem:[%s327 + $0x1d8] sm:$0xff]
        %v437 = vld [vmem:[%s327 + $0x1e0] sm:$0xff]
        %v438 = vld [vmem:[%s327 + $0x1e8] sm:$0xff]
        %v439 = vld [vmem:[%s327 + $0x1f0] sm:$0xff]
        %v440 = vld [vmem:[%s327 + $0x1f8] sm:$0xff]
        %v441 = vld [vmem:[%s327 + $0x200] sm:$0xff]
        %v442 = vld [vmem:[%s327 + $0x208] sm:$0xff]
        %v443 = vld [vmem:[%s327 + $0x210] sm:$0xff]
        %v444 = vld [vmem:[%s327 + $0x218] sm:$0xff]
        %v445 = vld [vmem:[%s327 + $0x220] sm:$0xff]
        %v446 = vld [vmem:[%s327 + $0x228] sm:$0xff]
        %v447 = vld [vmem:[%s327 + $0x230] sm:$0xff]
        %v448 = vld [vmem:[%s327 + $0x238] sm:$0xff]
        %v449 = vld [vmem:[%s327 + $0x240] sm:$0xff]
        %v450 = vld [vmem:[%s327 + $0x248] sm:$0xff]
        %v451 = vld [vmem:[%s327 + $0x250] sm:$0xff]
        %v452 = vld [vmem:[%s327 + $0x258] sm:$0xff]
        %v453 = vld [vmem:[%s327 + $0x260] sm:$0xff]
        %v454 = vld [vmem:[%s327 + $0x268] sm:$0xff]
        %v455 = vld [vmem:[%s327 + $0x270] sm:$0xff]
        %v456 = vld [vmem:[%s327 + $0x278] sm:$0xff]
        %v457 = vld [vmem:[%s327 + $0x280] sm:$0xff]
        %v458 = vld [vmem:[%s327 + $0x288] sm:$0xff]
        %v459 = vld [vmem:[%s327 + $0x290] sm:$0xff]
        %v460 = vld [vmem:[%s327 + $0x298] sm:$0xff]
        %v461 = vld [vmem:[%s327 + $0x2a0] sm:$0xff]
        %v462 = vld [vmem:[%s327 + $0x2a8] sm:$0xff]
        %v463 = vld [vmem:[%s327 + $0x2b0] sm:$0xff]
        %v464 = vld [vmem:[%s327 + $0x2b8] sm:$0xff]
        %v465 = vld [vmem:[%s327 + $0x2c0] sm:$0xff]
        %v466 = vld [vmem:[%s327 + $0x2c8] sm:$0xff]
        %v467 = vld [vmem:[%s327 + $0x2d0] sm:$0xff]
        %v468 = vld [vmem:[%s327 + $0x2d8] sm:$0xff]
        %v469 = vld [vmem:[%s327 + $0x2e0] sm:$0xff]
        %v470 = vld [vmem:[%s327 + $0x2e8] sm:$0xff]
        %v471 = vld [vmem:[%s327 + $0x2f0] sm:$0xff]
        %v472 = vld [vmem:[%s327 + $0x2f8] sm:$0xff]
        %v477 = vunpack.c.l.b16 %v373
        %v478 = vunpack.c.h.b16 %v373
        %v479 = vunpack.c.l.b16 %v374
        %v480 = vunpack.c.l.b16 %v375
        %v481 = vunpack.c.h.b16 %v375
        %v482 = vunpack.c.l.b16 %v376
        %v483 = vpack.c.b16 %v480, %v477
        %v484 = vpack.c.b16 %v481, %v478
        %v485 = vpack.c.b16 %v482, %v479
        %v585 = vunpack.c.l.b16 %v377
        %v586 = vunpack.c.h.b16 %v377
        %v587 = vunpack.c.l.b16 %v378
        %v588 = vunpack.c.h.b16 %v378
        %v589 = vunpack.c.l.b16 %v379
        %v590 = vunpack.c.h.b16 %v379
        %v591 = vunpack.c.l.b16 %v380
        %v592 = vunpack.c.h.b16 %v380
        %v593 = vunpack.c.l.b16 %v381
        %v594 = vunpack.c.h.b16 %v381
        %v595 = vunpack.c.l.b16 %v382
        %v596 = vunpack.c.h.b16 %v382
        %v597 = vunpack.c.l.b16 %v383
        %v598 = vunpack.c.h.b16 %v383
        %v599 = vunpack.c.l.b16 %v384
        %v600 = vunpack.c.h.b16 %v384
        %v601 = vunpack.c.l.b16 %v385
        %v602 = vunpack.c.h.b16 %v385
        %v603 = vunpack.c.l.b16 %v386
        %v604 = vunpack.c.h.b16 %v386
        %v605 = vunpack.c.l.b16 %v387
        %v606 = vunpack.c.h.b16 %v387
        %v607 = vunpack.c.l.b16 %v388
        %v608 = vunpack.c.h.b16 %v388
        %v609 = vunpack.c.l.b16 %v389
        %v610 = vunpack.c.h.b16 %v389
        %v611 = vunpack.c.l.b16 %v390
        %v612 = vunpack.c.h.b16 %v390
        %v613 = vunpack.c.l.b16 %v391
        %v614 = vunpack.c.h.b16 %v391
        %v615 = vunpack.c.l.b16 %v392
        %v616 = vunpack.c.h.b16 %v392
        %v617 = vunpack.c.l.b16 %v393
        %v618 = vunpack.c.h.b16 %v393
        %v619 = vunpack.c.l.b16 %v394
        %v620 = vunpack.c.h.b16 %v394
        %v621 = vunpack.c.l.b16 %v395
        %v622 = vunpack.c.h.b16 %v395
        %v623 = vunpack.c.l.b16 %v396
        %v624 = vunpack.c.h.b16 %v396
        %v625 = vunpack.c.l.b16 %v397
        %v626 = vunpack.c.h.b16 %v397
        %v627 = vunpack.c.l.b16 %v398
        %v628 = vunpack.c.h.b16 %v398
        %v629 = vunpack.c.l.b16 %v399
        %v630 = vunpack.c.h.b16 %v399
        %v631 = vunpack.c.l.b16 %v400
        %v632 = vunpack.c.h.b16 %v400
        %v633 = vunpack.c.l.b16 %v401
        %v634 = vunpack.c.h.b16 %v401
        %v635 = vunpack.c.l.b16 %v402
        %v636 = vunpack.c.h.b16 %v402
        %v637 = vunpack.c.l.b16 %v403
        %v638 = vunpack.c.h.b16 %v403
        %v639 = vunpack.c.l.b16 %v404
        %v640 = vunpack.c.h.b16 %v404
        %v641 = vunpack.c.l.b16 %v405
        %v642 = vunpack.c.h.b16 %v405
        %v643 = vunpack.c.l.b16 %v406
        %v644 = vunpack.c.h.b16 %v406
        %v645 = vunpack.c.l.b16 %v407
        %v646 = vunpack.c.h.b16 %v407
        %v647 = vunpack.c.l.b16 %v408
        %v648 = vunpack.c.h.b16 %v408
        %v649 = vunpack.c.l.b16 %v409
        %v650 = vunpack.c.h.b16 %v409
        %v651 = vunpack.c.l.b16 %v410
        %v652 = vunpack.c.h.b16 %v410
        %v653 = vunpack.c.l.b16 %v411
        %v654 = vunpack.c.h.b16 %v411
        %v655 = vunpack.c.l.b16 %v412
        %v656 = vunpack.c.h.b16 %v412
        %v657 = vunpack.c.l.b16 %v413
        %v658 = vunpack.c.h.b16 %v413
        %v659 = vunpack.c.l.b16 %v414
        %v660 = vunpack.c.h.b16 %v414
        %v661 = vunpack.c.l.b16 %v415
        %v662 = vunpack.c.h.b16 %v415
        %v663 = vunpack.c.l.b16 %v416
        %v664 = vunpack.c.h.b16 %v416
        %v665 = vunpack.c.l.b16 %v417
        %v666 = vunpack.c.h.b16 %v417
        %v667 = vunpack.c.l.b16 %v418
        %v668 = vunpack.c.h.b16 %v418
        %v669 = vunpack.c.l.b16 %v419
        %v670 = vunpack.c.h.b16 %v419
        %v671 = vunpack.c.l.b16 %v420
        %v672 = vunpack.c.h.b16 %v420
        %v673 = vunpack.c.l.b16 %v421
        %v674 = vunpack.c.h.b16 %v421
        %v675 = vunpack.c.l.b16 %v422
        %v676 = vunpack.c.h.b16 %v422
        %v677 = vunpack.c.l.b16 %v423
        %v678 = vunpack.c.h.b16 %v423
        %v679 = vunpack.c.l.b16 %v424
        %v680 = vunpack.c.h.b16 %v424
        %v681 = vunpack.c.l.b16 %v425
        %v682 = vunpack.c.h.b16 %v425
        %v683 = vunpack.c.l.b16 %v426
        %v684 = vunpack.c.h.b16 %v426
        %v685 = vunpack.c.l.b16 %v427
        %v686 = vunpack.c.h.b16 %v427
        %v687 = vunpack.c.l.b16 %v428
        %v688 = vunpack.c.h.b16 %v428
        %v689 = vunpack.c.l.b16 %v429
        %v690 = vunpack.c.h.b16 %v429
        %v691 = vunpack.c.l.b16 %v430
        %v692 = vunpack.c.h.b16 %v430
        %v693 = vunpack.c.l.b16 %v431
        %v694 = vunpack.c.h.b16 %v431
        %v695 = vunpack.c.l.b16 %v432
        %v696 = vunpack.c.h.b16 %v432
        %v697 = vunpack.c.l.b16 %v433
        %v698 = vunpack.c.h.b16 %v433
        %v699 = vunpack.c.l.b16 %v434
        %v700 = vunpack.c.h.b16 %v434
        %v701 = vunpack.c.l.b16 %v435
        %v702 = vunpack.c.h.b16 %v435
        %v703 = vunpack.c.l.b16 %v436
        %v704 = vunpack.c.h.b16 %v436
        %v705 = vunpack.c.l.b16 %v437
        %v706 = vunpack.c.h.b16 %v437
        %v707 = vunpack.c.l.b16 %v438
        %v708 = vunpack.c.h.b16 %v438
        %v709 = vunpack.c.l.b16 %v439
        %v710 = vunpack.c.h.b16 %v439
        %v711 = vunpack.c.l.b16 %v440
        %v712 = vunpack.c.h.b16 %v440
        %v713 = vunpack.c.l.b16 %v441
        %v714 = vunpack.c.h.b16 %v441
        %v715 = vunpack.c.l.b16 %v442
        %v716 = vunpack.c.h.b16 %v442
        %v717 = vunpack.c.l.b16 %v443
        %v718 = vunpack.c.h.b16 %v443
        %v719 = vunpack.c.l.b16 %v444
        %v720 = vunpack.c.h.b16 %v444
        %v721 = vunpack.c.l.b16 %v445
        %v722 = vunpack.c.h.b16 %v445
        %v723 = vunpack.c.l.b16 %v446
        %v724 = vunpack.c.h.b16 %v446
        %v725 = vunpack.c.l.b16 %v447
        %v726 = vunpack.c.h.b16 %v447
        %v727 = vunpack.c.l.b16 %v448
        %v728 = vunpack.c.h.b16 %v448
        %v729 = vunpack.c.l.b16 %v449
        %v730 = vunpack.c.h.b16 %v449
        %v731 = vunpack.c.l.b16 %v450
        %v732 = vunpack.c.h.b16 %v450
        %v733 = vunpack.c.l.b16 %v451
        %v734 = vunpack.c.h.b16 %v451
        %v735 = vunpack.c.l.b16 %v452
        %v736 = vunpack.c.h.b16 %v452
        %v737 = vunpack.c.l.b16 %v453
        %v738 = vunpack.c.h.b16 %v453
        %v739 = vunpack.c.l.b16 %v454
        %v740 = vunpack.c.h.b16 %v454
        %v741 = vunpack.c.l.b16 %v455
        %v742 = vunpack.c.h.b16 %v455
        %v743 = vunpack.c.l.b16 %v456
        %v744 = vunpack.c.h.b16 %v456
        %v745 = vunpack.c.l.b16 %v457
        %v746 = vunpack.c.h.b16 %v457
        %v747 = vunpack.c.l.b16 %v458
        %v748 = vunpack.c.h.b16 %v458
        %v749 = vunpack.c.l.b16 %v459
        %v750 = vunpack.c.h.b16 %v459
        %v751 = vunpack.c.l.b16 %v460
        %v752 = vunpack.c.h.b16 %v460
        %v753 = vunpack.c.l.b16 %v461
        %v754 = vunpack.c.h.b16 %v461
        %v755 = vunpack.c.l.b16 %v462
        %v756 = vunpack.c.h.b16 %v462
        %v757 = vunpack.c.l.b16 %v463
        %v758 = vunpack.c.h.b16 %v463
        %v759 = vunpack.c.l.b16 %v464
        %v760 = vunpack.c.h.b16 %v464
        %v761 = vunpack.c.l.b16 %v465
        %v762 = vunpack.c.h.b16 %v465
        %v763 = vunpack.c.l.b16 %v466
        %v764 = vunpack.c.h.b16 %v466
        %v765 = vunpack.c.l.b16 %v467
        %v766 = vunpack.c.h.b16 %v467
        %v767 = vunpack.c.l.b16 %v468
        %v768 = vunpack.c.h.b16 %v468
        %v769 = vunpack.c.l.b16 %v469
        %v770 = vunpack.c.h.b16 %v469
        %v771 = vunpack.c.l.b16 %v470
        %v772 = vunpack.c.h.b16 %v470
        %v773 = vunpack.c.l.b16 %v471
        %v774 = vunpack.c.h.b16 %v471
        %v775 = vunpack.c.l.b16 %v472
        %v776 = vunpack.c.h.b16 %v472
        %v777 = vpack.c.b16 %v589, %v585
        %v778 = vpack.c.b16 %v590, %v586
        %v779 = vpack.c.b16 %v591, %v587
        %v780 = vpack.c.b16 %v592, %v588
        %v781 = vpack.c.b16 %v597, %v593
        %v782 = vpack.c.b16 %v598, %v594
        %v783 = vpack.c.b16 %v599, %v595
        %v784 = vpack.c.b16 %v600, %v596
        %v785 = vpack.c.b16 %v605, %v601
        %v786 = vpack.c.b16 %v606, %v602
        %v787 = vpack.c.b16 %v607, %v603
        %v788 = vpack.c.b16 %v608, %v604
        %v789 = vpack.c.b16 %v613, %v609
        %v790 = vpack.c.b16 %v614, %v610
        %v791 = vpack.c.b16 %v615, %v611
        %v792 = vpack.c.b16 %v616, %v612
        %v793 = vpack.c.b16 %v621, %v617
        %v794 = vpack.c.b16 %v622, %v618
        %v795 = vpack.c.b16 %v623, %v619
        %v796 = vpack.c.b16 %v624, %v620
        %v797 = vpack.c.b16 %v629, %v625
        %v798 = vpack.c.b16 %v630, %v626
        %v799 = vpack.c.b16 %v631, %v627
        %v800 = vpack.c.b16 %v632, %v628
        %v801 = vpack.c.b16 %v637, %v633
        %v802 = vpack.c.b16 %v638, %v634
        %v803 = vpack.c.b16 %v639, %v635
        %v804 = vpack.c.b16 %v640, %v636
        %v805 = vpack.c.b16 %v645, %v641
        %v806 = vpack.c.b16 %v646, %v642
        %v807 = vpack.c.b16 %v647, %v643
        %v808 = vpack.c.b16 %v648, %v644
        %v809 = vpack.c.b16 %v653, %v649
        %v810 = vpack.c.b16 %v654, %v650
        %v811 = vpack.c.b16 %v655, %v651
        %v812 = vpack.c.b16 %v656, %v652
        %v813 = vpack.c.b16 %v661, %v657
        %v814 = vpack.c.b16 %v662, %v658
        %v815 = vpack.c.b16 %v663, %v659
        %v816 = vpack.c.b16 %v664, %v660
        %v817 = vpack.c.b16 %v669, %v665
        %v818 = vpack.c.b16 %v670, %v666
        %v819 = vpack.c.b16 %v671, %v667
        %v820 = vpack.c.b16 %v672, %v668
        %v821 = vpack.c.b16 %v677, %v673
        %v822 = vpack.c.b16 %v678, %v674
        %v823 = vpack.c.b16 %v679, %v675
        %v824 = vpack.c.b16 %v680, %v676
        %v825 = vpack.c.b16 %v685, %v681
        %v826 = vpack.c.b16 %v686, %v682
        %v827 = vpack.c.b16 %v687, %v683
        %v828 = vpack.c.b16 %v688, %v684
        %v829 = vpack.c.b16 %v693, %v689
        %v830 = vpack.c.b16 %v694, %v690
        %v831 = vpack.c.b16 %v695, %v691
        %v832 = vpack.c.b16 %v696, %v692
        %v833 = vpack.c.b16 %v701, %v697
        %v834 = vpack.c.b16 %v702, %v698
        %v835 = vpack.c.b16 %v703, %v699
        %v836 = vpack.c.b16 %v704, %v700
        %v837 = vpack.c.b16 %v709, %v705
        %v838 = vpack.c.b16 %v710, %v706
        %v839 = vpack.c.b16 %v711, %v707
        %v840 = vpack.c.b16 %v712, %v708
        %v841 = vpack.c.b16 %v717, %v713
        %v842 = vpack.c.b16 %v718, %v714
        %v843 = vpack.c.b16 %v719, %v715
        %v844 = vpack.c.b16 %v720, %v716
        %v845 = vpack.c.b16 %v725, %v721
        %v846 = vpack.c.b16 %v726, %v722
        %v847 = vpack.c.b16 %v727, %v723
        %v848 = vpack.c.b16 %v728, %v724
        %v849 = vpack.c.b16 %v733, %v729
        %v850 = vpack.c.b16 %v734, %v730
        %v851 = vpack.c.b16 %v735, %v731
        %v852 = vpack.c.b16 %v736, %v732
        %v853 = vpack.c.b16 %v741, %v737
        %v854 = vpack.c.b16 %v742, %v738
        %v855 = vpack.c.b16 %v743, %v739
        %v856 = vpack.c.b16 %v744, %v740
        %v857 = vpack.c.b16 %v749, %v745
        %v858 = vpack.c.b16 %v750, %v746
        %v859 = vpack.c.b16 %v751, %v747
        %v860 = vpack.c.b16 %v752, %v748
        %v861 = vpack.c.b16 %v757, %v753
        %v862 = vpack.c.b16 %v758, %v754
        %v863 = vpack.c.b16 %v759, %v755
        %v864 = vpack.c.b16 %v760, %v756
        %v865 = vpack.c.b16 %v765, %v761
        %v866 = vpack.c.b16 %v766, %v762
        %v867 = vpack.c.b16 %v767, %v763
        %v868 = vpack.c.b16 %v768, %v764
        %v869 = vpack.c.b16 %v773, %v769
        %v870 = vpack.c.b16 %v774, %v770
        %v871 = vpack.c.b16 %v775, %v771
        %v872 = vpack.c.b16 %v776, %v772
        %969 = vmatprep.subr.bf16.mxu0 %v778
        %970 = vmatpush1.bf16.msra.mxu0 %v777
        %971 = vmatprep.subr.bf16.mxu0 %v782
        %972 = vmatpush1.bf16.msra.mxu0 %v781
        %973 = vmatprep.subr.bf16.mxu0 %v786
        %974 = vmatpush1.bf16.msra.mxu0 %v785
        %975 = vmatprep.subr.bf16.mxu0 %v790
        %976 = vmatpush1.bf16.msra.mxu0 %v789
        %977 = vmatprep.subr.bf16.mxu0 %v794
        %978 = vmatpush1.bf16.msra.mxu0 %v793
        %979 = vmatprep.subr.bf16.mxu0 %v798
        %980 = vmatpush1.bf16.msra.mxu0 %v797
        %981 = vmatprep.subr.bf16.mxu0 %v802
        %982 = vmatpush1.bf16.msra.mxu0 %v801
        %983 = vmatprep.subr.bf16.mxu0 %v806
        %984 = vmatpush1.bf16.msra.mxu0 %v805
        %985 = vmatprep.subr.bf16.mxu0 %v810
        %986 = vmatpush1.bf16.msra.mxu0 %v809
        %987 = vmatprep.subr.bf16.mxu0 %v814
        %988 = vmatpush1.bf16.msra.mxu0 %v813
        %989 = vmatprep.subr.bf16.mxu0 %v818
        %990 = vmatpush1.bf16.msra.mxu0 %v817
        %991 = vmatprep.subr.bf16.mxu0 %v822
        %992 = vmatpush1.bf16.msra.mxu0 %v821
        %993 = vmatprep.subr.bf16.mxu0 %v826
        %994 = vmatpush1.bf16.msra.mxu0 %v825
        %995 = vmatprep.subr.bf16.mxu0 %v830
        %996 = vmatpush1.bf16.msra.mxu0 %v829
        %997 = vmatprep.subr.bf16.mxu0 %v834
        %998 = vmatpush1.bf16.msra.mxu0 %v833
        %999 = vmatprep.subr.bf16.mxu0 %v838
        %1000 = vmatpush1.bf16.msra.mxu0 %v837
        %1001 = vmatprep.mubr.bf16.mxu0 %v484
        %1002 = vmatmul.mubr.bf16.gmra.mrb[0].mxu0 %v483
        %v1003 = vpop.f32.mrb[0].mxu0
        %v1004 = vadd.f32 0.0, %v1003
        %v1005 = vpop.f32.mrb[0].mxu0
        %v1006 = vadd.f32 0.0, %v1005
        %v1007 = vpop.f32.mrb[0].mxu0
        %v1008 = vadd.f32 0.0, %v1007
        %v1009 = vpop.f32.mrb[0].mxu0
        %v1010 = vadd.f32 0.0, %v1009
        %1011 = vdwg.mxu0
        %1012 = vmatprep.subr.bf16.mxu0 %v842
        %1013 = vmatpush1.bf16.msra.mxu0 %v841
        %1014 = vmatprep.subr.bf16.mxu0 %v846
        %1015 = vmatpush1.bf16.msra.mxu0 %v845
        %1016 = vmatprep.subr.bf16.mxu0 %v850
        %1017 = vmatpush1.bf16.msra.mxu0 %v849
        %1018 = vmatprep.subr.bf16.mxu0 %v854
        %1019 = vmatpush1.bf16.msra.mxu0 %v853
        %1020 = vmatprep.subr.bf16.mxu0 %v858
        %1021 = vmatpush1.bf16.msra.mxu0 %v857
        %1022 = vmatprep.subr.bf16.mxu0 %v862
        %1023 = vmatpush1.bf16.msra.mxu0 %v861
        %1024 = vmatprep.subr.bf16.mxu0 %v866
        %1025 = vmatpush1.bf16.msra.mxu0 %v865
        %1026 = vmatprep.subr.bf16.mxu0 %v870
        %1027 = vmatpush1.bf16.msra.mxu0 %v869
        %1028 = vmatprep.subr.bf16.mxu0 0
        %1029 = vmatpush1.bf16.msra.mxu0 0
        %1030 = vmatprep.subr.bf16.mxu0 0
        %1031 = vmatpush1.bf16.msra.mxu0 0
        %1032 = vmatprep.subr.bf16.mxu0 0
        %1033 = vmatpush1.bf16.msra.mxu0 0
        %1034 = vmatprep.subr.bf16.mxu0 0
        %1035 = vmatpush1.bf16.msra.mxu0 0
        %1036 = vmatprep.subr.bf16.mxu0 0
        %1037 = vmatpush1.bf16.msra.mxu0 0
        %1038 = vmatprep.subr.bf16.mxu0 0
        %1039 = vmatpush1.bf16.msra.mxu0 0
        %1040 = vmatprep.subr.bf16.mxu0 0
        %1041 = vmatpush1.bf16.msra.mxu0 0
        %1042 = vmatprep.subr.bf16.mxu0 0
        %1043 = vmatpush1.bf16.msra.mxu0 0
        %1044 = vmatprep.mubr.bf16.mxu0 0
        %1045 = vmatmul.mubr.bf16.gmra.mrb[0].mxu0 %v485
        %v1046 = vpop.f32.mrb[0].mxu0
        %v1047 = vadd.f32 %v1004, %v1046
        %v1048 = vpop.f32.mrb[0].mxu0
        %v1049 = vadd.f32 %v1006, %v1048
        %v1050 = vpop.f32.mrb[0].mxu0
        %v1051 = vadd.f32 %v1008, %v1050
        %v1052 = vpop.f32.mrb[0].mxu0
        %v1053 = vadd.f32 %v1010, %v1052
        %1054 = vdwg.mxu0
        %1055 = vmatprep.subr.bf16.mxu0 %v780
        %1056 = vmatpush1.bf16.msra.mxu0 %v779
        %1057 = vmatprep.subr.bf16.mxu0 %v784
        %1058 = vmatpush1.bf16.msra.mxu0 %v783
        %1059 = vmatprep.subr.bf16.mxu0 %v788
        %1060 = vmatpush1.bf16.msra.mxu0 %v787
        %1061 = vmatprep.subr.bf16.mxu0 %v792
        %1062 = vmatpush1.bf16.msra.mxu0 %v791
        %1063 = vmatprep.subr.bf16.mxu0 %v796
        %1064 = vmatpush1.bf16.msra.mxu0 %v795
        %1065 = vmatprep.subr.bf16.mxu0 %v800
        %1066 = vmatpush1.bf16.msra.mxu0 %v799
        %1067 = vmatprep.subr.bf16.mxu0 %v804
        %1068 = vmatpush1.bf16.msra.mxu0 %v803
        %1069 = vmatprep.subr.bf16.mxu0 %v808
        %1070 = vmatpush1.bf16.msra.mxu0 %v807
        %1071 = vmatprep.subr.bf16.mxu0 %v812
        %1072 = vmatpush1.bf16.msra.mxu0 %v811
        %1073 = vmatprep.subr.bf16.mxu0 %v816
        %1074 = vmatpush1.bf16.msra.mxu0 %v815
        %1075 = vmatprep.subr.bf16.mxu0 %v820
        %1076 = vmatpush1.bf16.msra.mxu0 %v819
        %1077 = vmatprep.subr.bf16.mxu0 %v824
        %1078 = vmatpush1.bf16.msra.mxu0 %v823
        %1079 = vmatprep.subr.bf16.mxu0 %v828
        %1080 = vmatpush1.bf16.msra.mxu0 %v827
        %1081 = vmatprep.subr.bf16.mxu0 %v832
        %1082 = vmatpush1.bf16.msra.mxu0 %v831
        %1083 = vmatprep.subr.bf16.mxu0 %v836
        %1084 = vmatpush1.bf16.msra.mxu0 %v835
        %1085 = vmatprep.subr.bf16.mxu0 %v840
        %1086 = vmatpush1.bf16.msra.mxu0 %v839
        %1087 = vmatprep.mubr.bf16.mxu0 %v484
        %1088 = vmatmul.mubr.bf16.gmra.mrb[0].mxu0 %v483
        %v1089 = vpop.f32.mrb[0].mxu0
        %v1090 = vadd.f32 0.0, %v1089
        %v1091 = vpop.f32.mrb[0].mxu0
        %v1092 = vadd.f32 0.0, %v1091
        %v1093 = vpop.f32.mrb[0].mxu0
        %v1094 = vadd.f32 0.0, %v1093
        %v1095 = vpop.f32.mrb[0].mxu0
        %v1096 = vadd.f32 0.0, %v1095
        %1097 = vdwg.mxu0
        %1098 = vmatprep.subr.bf16.mxu0 %v844
        %1099 = vmatpush1.bf16.msra.mxu0 %v843
        %1100 = vmatprep.subr.bf16.mxu0 %v848
        %1101 = vmatpush1.bf16.msra.mxu0 %v847
        %1102 = vmatprep.subr.bf16.mxu0 %v852
        %1103 = vmatpush1.bf16.msra.mxu0 %v851
        %1104 = vmatprep.subr.bf16.mxu0 %v856
        %1105 = vmatpush1.bf16.msra.mxu0 %v855
        %1106 = vmatprep.subr.bf16.mxu0 %v860
        %1107 = vmatpush1.bf16.msra.mxu0 %v859
        %1108 = vmatprep.subr.bf16.mxu0 %v864
        %1109 = vmatpush1.bf16.msra.mxu0 %v863
        %1110 = vmatprep.subr.bf16.mxu0 %v868
        %1111 = vmatpush1.bf16.msra.mxu0 %v867
        %1112 = vmatprep.subr.bf16.mxu0 %v872
        %1113 = vmatpush1.bf16.msra.mxu0 %v871
        %1114 = vmatprep.subr.bf16.mxu0 0
        %1115 = vmatpush1.bf16.msra.mxu0 0
        %1116 = vmatprep.subr.bf16.mxu0 0
        %1117 = vmatpush1.bf16.msra.mxu0 0
        %1118 = vmatprep.subr.bf16.mxu0 0
        %1119 = vmatpush1.bf16.msra.mxu0 0
        %1120 = vmatprep.subr.bf16.mxu0 0
        %1121 = vmatpush1.bf16.msra.mxu0 0
        %1122 = vmatprep.subr.bf16.mxu0 0
        %1123 = vmatpush1.bf16.msra.mxu0 0
        %1124 = vmatprep.subr.bf16.mxu0 0
        %1125 = vmatpush1.bf16.msra.mxu0 0
        %1126 = vmatprep.subr.bf16.mxu0 0
        %1127 = vmatpush1.bf16.msra.mxu0 0
        %1128 = vmatprep.subr.bf16.mxu0 0
        %1129 = vmatpush1.bf16.msra.mxu0 0
        %1130 = vmatprep.mubr.bf16.mxu0 0
        %1131 = vmatmul.mubr.bf16.gmra.mrb[0].mxu0 %v485
        %v1132 = vpop.f32.mrb[0].mxu0
        %v1133 = vadd.f32 %v1090, %v1132
        %v1134 = vpop.f32.mrb[0].mxu0
        %v1135 = vadd.f32 %v1092, %v1134
        %v1136 = vpop.f32.mrb[0].mxu0
        %v1137 = vadd.f32 %v1094, %v1136
        %v1138 = vpop.f32.mrb[0].mxu0
        %v1139 = vadd.f32 %v1096, %v1138
        %1140 = vdwg.mxu0
        %v1141 = vadd.f32 %v365, %v1047
        %v1142 = vadd.f32 %v366, %v1049
        %v1143 = vadd.f32 %v367, %v1133
        %v1144 = vadd.f32 %v368, %v1135
        %v1145 = vadd.f32 %v369, %v1051
        %v1146 = vadd.f32 %v370, %v1053
        %v1147 = vadd.f32 %v371, %v1137
        %v1148 = vadd.f32 %v372, %v1139
        %1149 = vst [vmem:[#allocation2] sm:$0xff] %v1141
        %1150 = vst [vmem:[#allocation2 + $0x8] sm:$0xff] %v1142
        %1151 = vst [vmem:[#allocation2 + $0x10] sm:$0xff] %v1143
        %1152 = vst [vmem:[#allocation2 + $0x18] sm:$0xff] %v1144
        %1153 = vst [vmem:[#allocation2 + $0x20] sm:$0xff] %v1145
        %1154 = vst [vmem:[#allocation2 + $0x28] sm:$0xff] %v1146
        %1155 = vst [vmem:[#allocation2 + $0x30] sm:$0xff] %v1147
        %1156 = vst [vmem:[#allocation2 + $0x38] sm:$0xff] %v1148
        %p1157 = scmp.eq.s32.totalorder %s22, 5
        // Predicated region
        $region67: #{_lambda_.23} parent=57 // pred_check
          %p1158 = pneg %p1157
        $region68: #{_lambda_.23} parent=57 // pred_check_branch
          %1160 = sbr.rel (%p1158) target = $region70
        $region69: #{_lambda_.23} parent=57 // pred_region
          %v1161 = vld [vmem:[#allocation2] sm:$0xff]
          %v1162 = vld [vmem:[#allocation2 + $0x8] sm:$0xff]
          %v1163 = vld [vmem:[#allocation2 + $0x10] sm:$0xff]
          %v1164 = vld [vmem:[#allocation2 + $0x18] sm:$0xff]
          %v1165 = vld [vmem:[#allocation2 + $0x20] sm:$0xff]
          %v1166 = vld [vmem:[#allocation2 + $0x28] sm:$0xff]
          %v1167 = vld [vmem:[#allocation2 + $0x30] sm:$0xff]
          %v1168 = vld [vmem:[#allocation2 + $0x38] sm:$0xff]
          %v1169 = vld [vmem:[%s333] sm:$0xf]
          %v1171 = vlaneseq
          %v1172 = vshrl.u32 %v1171, 7
          %v1173 = vsub.s32 0, %v1172
          %v1174 = vrot.slane %v1169, %v1173
          %v1175 = vlaneseq
          %v1176 = vshrl.u32 %v1175, 7
          %v1177 = vsub.s32 1, %v1176
          %v1178 = vrot.slane %v1169, %v1177
          %v1179 = vlaneseq
          %v1180 = vshrl.u32 %v1179, 7
          %v1181 = vsub.s32 2, %v1180
          %v1182 = vrot.slane %v1169, %v1181
          %v1183 = vlaneseq
          %v1184 = vshrl.u32 %v1183, 7
          %v1185 = vsub.s32 3, %v1184
          %v1186 = vrot.slane %v1169, %v1185
          %v1191 = vmul.f32 %v1161, %v1174
          %v1192 = vmul.f32 %v1162, %v1178
          %v1193 = vmul.f32 %v1163, %v1182
          %v1194 = vmul.f32 %v1164, %v1186
          %v1195 = vmul.f32 %v1165, %v1174
          %v1196 = vmul.f32 %v1166, %v1178
          %v1197 = vmul.f32 %v1167, %v1182
          %v1198 = vmul.f32 %v1168, %v1186
          %v1199 = vld [vmem:[%s338] sm:$0xf]
          %v1201 = vlaneseq
          %v1202 = vshrl.u32 %v1201, 7
          %v1203 = vsub.s32 0, %v1202
          %v1204 = vrot.slane %v1199, %v1203
          %v1205 = vlaneseq
          %v1206 = vshrl.u32 %v1205, 7
          %v1207 = vsub.s32 1, %v1206
          %v1208 = vrot.slane %v1199, %v1207
          %v1209 = vlaneseq
          %v1210 = vshrl.u32 %v1209, 7
          %v1211 = vsub.s32 2, %v1210
          %v1212 = vrot.slane %v1199, %v1211
          %v1213 = vlaneseq
          %v1214 = vshrl.u32 %v1213, 7
          %v1215 = vsub.s32 3, %v1214
          %v1216 = vrot.slane %v1199, %v1215
          %v1221 = vadd.f32 %v1191, %v1204
          %v1222 = vadd.f32 %v1192, %v1208
          %v1223 = vadd.f32 %v1193, %v1212
          %v1224 = vadd.f32 %v1194, %v1216
          %v1225 = vadd.f32 %v1195, %v1204
          %v1226 = vadd.f32 %v1196, %v1208
          %v1227 = vadd.f32 %v1197, %v1212
          %v1228 = vadd.f32 %v1198, %v1216
          %v1229 = vmax.f32 %v1221, 0.0
          %v1230 = vmax.f32 %v1222, 0.0
          %v1231 = vmax.f32 %v1223, 0.0
          %v1232 = vmax.f32 %v1224, 0.0
          %v1233 = vmax.f32 %v1225, 0.0
          %v1234 = vmax.f32 %v1226, 0.0
          %v1235 = vmax.f32 %v1227, 0.0
          %v1236 = vmax.f32 %v1228, 0.0
          %v1237 = vpack.c.bf16 %v1233, %v1229
          %v1238 = vpack.c.bf16 %v1234, %v1230
          %v1239 = vpack.c.bf16 %v1235, %v1231
          %v1240 = vpack.c.bf16 %v1236, %v1232
          %v1245 = vunpack.c.l.b16 %v1237
          %v1246 = vunpack.c.l.b16 %v1238
          %v1247 = vunpack.c.l.b16 %v1239
          %v1248 = vunpack.c.l.b16 %v1240
          %v1249 = vunpack.c.h.b16 %v1237
          %v1250 = vunpack.c.h.b16 %v1238
          %v1251 = vunpack.c.h.b16 %v1239
          %v1252 = vunpack.c.h.b16 %v1240
          %v1253 = vpack.c.b16 %v1246, %v1245
          %v1254 = vpack.c.b16 %v1248, %v1247
          %v1255 = vpack.c.b16 %v1250, %v1249
          %v1256 = vpack.c.b16 %v1252, %v1251
          %1261 = vst [vmem:[%s349] sm:$0xff] %v1253
          %1262 = vst [vmem:[%s349 + $0x8] sm:$0xff] %v1254
          %1263 = vst [vmem:[%s349 + $0x10] sm:$0xff] %v1255
          %1264 = vst [vmem:[%s349 + $0x18] sm:$0xff] %v1256
        $region70: #{_lambda_.23} parent=57 // pred_fallthru
          _
        %s1265 = smul.u32 2, %s20
        %s1266 = smul.u32 4, %s21
        %p1267 = scmp.lt.s32.totalorder %s1265, 1
        %s1268 = scalar_select %p1267, %s1265, 1
        %p1269 = scmp.lt.s32.totalorder %s1266, 3
        %s1270 = scalar_select %p1269, %s1266, 3
        %s1271 = smul.addr %s1268, 4
        %s1272 = sadd.s32 %s1270, %s1271
        %s1273 = smul.addr %s1272, 4
        %s1274 = scalar_lea.vmem %s4, %s1273
        // Predicated region
        $region71: #{_lambda_.23} parent=57 // pred_check
          %p1275 = pneg %p162
        $region72: #{_lambda_.23} parent=57 // pred_check_branch
          %1277 = sbr.rel (%p1275) target = $region74
        $region73: #{_lambda_.23} parent=57 // pred_region
          %s1278 = smul.u32 2, %s20
          %s1279 = smul.u32 4, %s21
        $region74: #{_lambda_.23} parent=57 // pred_fallthru
          _
        // Predicated region
        $region75: #{_lambda_.23} parent=57 // pred_check
          %p1280 = pneg %p162
        $region76: #{_lambda_.23} parent=57 // pred_check_branch
          %1282 = sbr.rel (%p1280) target = $region78
        $region77: #{_lambda_.23} parent=57 // pred_region
          %s1283 = smul.u32 2, %s20
          %s1284 = smul.u32 4, %s21
          %p1285 = scmp.lt.s32.totalorder %s1283, 1
          %s1286 = scalar_select %p1285, %s1283, 1
          %p1287 = scmp.lt.s32.totalorder %s1284, 3
          %s1288 = scalar_select %p1287, %s1284, 3
          %s1289 = smul.addr %s1286, 4
          %s1290 = sadd.s32 %s1288, %s1289
          %s1291 = smul.addr %s1290, 4
          %s1292 = scalar_lea.vmem %s4, %s1291
        $region78: #{_lambda_.23} parent=57 // pred_fallthru
          _
      $region58: #{_lambda_.23} parent=5 // pred_fallthru
        _
      %p1293 = scmp.le.s32.totalorder 2, %s10
      // Predicated region
      $region79: #{_lambda_.23} parent=5 // pred_check
        %p1294 = pneg %p1293
      $region80: #{_lambda_.23} parent=5 // pred_check_branch
        %1296 = sbr.rel (%p1294) target = $region82
      $region81: #{_lambda_.23} parent=5 // pred_region
        %s1297 = ssub.s32 %s10, 2
      $region82: #{_lambda_.23} parent=5 // pred_fallthru
        _
    $region6: #{_lambda_.23} parent=1 // loop_footer
      %s14 = sadd.s32 1, %s10
    $region7: #{_lambda_.23} parent=1 // loop_footer_branch
      %9 = sbr.rel target = $region3
    $region8: #{_lambda_.23} parent=1 // loop_exit
      _

// kernel: _lambda_.25
$region0: #{_lambda_.25}
  #allocation0 [shape = 'u32[]', space=smem, size = 0x4, offset = 0x4, fixed_abs, tag = 'smem constant byte address 0x4 - core index']
  #allocation1 [shape = 'u32[144,128]{1,0:T(1,128)}', space=vmem, size = 0x12000, scoped, tag = 'internal scratch']
  #allocation2 [shape = 'f32[16,512]{1,0:T(8,128)}', space=vmem, size = 0x8000, scoped, tag = 'scratch operand']
  %s0 = inlined_call_operand.vmem [shape: bf16[16,4608], index: 0, kind: input, shape index: {}]
  %s1 = inlined_call_operand.vmem [shape: bf16[4608,512], index: 1, kind: input, shape index: {}]
  %s2 = inlined_call_operand.vmem [shape: f32[1,512], index: 2, kind: input, shape index: {}]
  %s3 = inlined_call_operand.vmem [shape: f32[1,512], index: 3, kind: input, shape index: {}]
  %s4 = inlined_call_operand.vmem [shape: bf16[16,512], index: 4, kind: input, shape index: {}]
  %s5 = inlined_call_operand.vmem [shape: bf16[16,512], index: 5, kind: output, shape index: {}]
  %s6 = sld [smem:[#allocation0]]
  $region84: #{_lambda_.25} parent=0
    _
  %s8 = ssub.s32 1, %s6
  %s9 = scalar_select 0, %s8, %s6
  $region1: #{_lambda_.25} parent=0
    #allocation3 [shape = 'u8[32768]{0}', space=vmem, size = 0x8000, scoped, tag = 'input window, operand 0']
    loop: start=0, step=1, limit=11
    $region2: #{_lambda_.25} parent=1 // loop_pre_header
      _
    $region3: #{_lambda_.25} parent=1 // loop_header
      %s11 = sphi 0, %s15
      %p12 = scmp.ge.s32.totalorder %s11, 11
      %s18 = sphi 0, %s37
      %s19 = sphi 0, %s33
      %s20 = sphi 0, %s29
      %s21 = sphi 0, %s18
      %s22 = sphi 0, %s19
      %s23 = sphi 0, %s20
      %s24 = sphi 0, %s21
      %s25 = sphi 0, %s22
      %s26 = sphi 0, %s23
      %s42 = sphi 0, %s44
      %s45 = sphi 0, %s42
      %s46 = sphi 0, %s45
      %s62 = sphi 0, %s46
      %s70 = sphi 0, %s72
      %s73 = sphi 0, %s70
      %s74 = sphi 0, %s73
      %s90 = sphi 0, %s74
      %s96 = sphi 0, %s98
      %s99 = sphi 0, %s96
      %s100 = sphi 0, %s99
      %s116 = sphi 0, %s100
      %s122 = sphi 0, %s124
      %s125 = sphi 0, %s122
      %s126 = sphi 0, %s125
      %s142 = sphi 0, %s126
      %s150 = sphi 0, %s152
      %s153 = sphi 0, %s150
      %s154 = sphi 0, %s153
      %s170 = sphi 0, %s154
      %s178 = sphi 0, %s180
      %s181 = sphi 0, %s178
      %s182 = sphi 0, %s181
      %s198 = sphi 0, %s182
    $region4: #{_lambda_.25} parent=1 // loop_header_branch
      %14 = sbr.rel (%p12) target = $region8
    $region5: #{_lambda_.25} parent=1 // loop_body
      %s16 = ssub.s32 %s11, 1
      %s17 = ssub.s32 %s11, 2
      %s27 = sadd.s32 1, %s20
      %p28 = scmp.ge.s32.totalorder %s27, 9
      %s29 = scalar_select %p28, 0, %s27
      %s30 = sadd.s32 1, %s19
      %s31 = scalar_select %p28, %s30, %s19
      %p32 = scmp.ge.s32.totalorder %s31, 1
      %s33 = scalar_select %p32, 0, %s31
      %s34 = sadd.s32 1, %s18
      %s35 = scalar_select %p32, %s34, %s18
      %p36 = scmp.ge.s32.totalorder %s35, 1
      %s37 = scalar_select %p36, 0, %s35
      %s38 = ssub.s32 %s18, %s37
      %s39 = ssub.s32 %s20, %s29
      %s40 = sor.u32 %s38, %s39
      %p41 = scmp.eq.s32.totalorder %s40, 0
      %s43 = sadd.s32 %s42, 1
      %s44 = scalar_select %p41, %s42, %s43
      %p47 = pneg %p41
      %p48 = scmp.eq.s32.totalorder %s11, 8
      %p49 = por %p47, %p48
      %p50 = scmp.ne.s32.totalorder %s42, %s45
      %p51 = scmp.eq.s32.totalorder %s11, 0
      %p52 = por %p50, %p51
      %p53 = scmp.ne.s32.totalorder %s42, %s45
      %p54 = scmp.eq.s32.totalorder %s16, 8
      %p55 = por %p53, %p54
      %p56 = scmp.ne.s32.totalorder %s45, %s46
      %p57 = scmp.eq.s32.totalorder %s16, 0
      %p58 = por %p56, %p57
      %p59 = scmp.ne.s32.totalorder %s45, %s46
      %p60 = scmp.eq.s32.totalorder %s17, 8
      %p61 = por %p59, %p60
      %p63 = scmp.ne.s32.totalorder %s46, %s62
      %p64 = scmp.eq.s32.totalorder %s17, 0
      %p65 = por %p63, %p64
      %s66 = ssub.s32 %s20, %s29
      %s67 = ssub.s32 %s19, %s33
      %s68 = sor.u32 %s66, %s67
      %p69 = scmp.eq.s32.totalorder %s68, 0
      %s71 = sadd.s32 %s70, 1
      %s72 = scalar_select %p69, %s70, %s71
      %p75 = pneg %p69
      %p76 = scmp.eq.s32.totalorder %s11, 8
      %p77 = por %p75, %p76
      %p78 = scmp.ne.s32.totalorder %s70, %s73
      %p79 = scmp.eq.s32.totalorder %s11, 0
      %p80 = por %p78, %p79
      %p81 = scmp.ne.s32.totalorder %s70, %s73
      %p82 = scmp.eq.s32.totalorder %s16, 8
      %p83 = por %p81, %p82
      %p84 = scmp.ne.s32.totalorder %s73, %s74
      %p85 = scmp.eq.s32.totalorder %s16, 0
      %p86 = por %p84, %p85
      %p87 = scmp.ne.s32.totalorder %s73, %s74
      %p88 = scmp.eq.s32.totalorder %s17, 8
      %p89 = por %p87, %p88
      %p91 = scmp.ne.s32.totalorder %s74, %s90
      %p92 = scmp.eq.s32.totalorder %s17, 0
      %p93 = por %p91, %p92
      %s94 = ssub.s32 %s19, %s33
      %p95 = scmp.eq.s32.totalorder %s94, 0
      %s97 = sadd.s32 %s96, 1
      %s98 = scalar_select %p95, %s96, %s97
      %p101 = pneg %p95
      %p102 = scmp.eq.s32.totalorder %s11, 8
      %p103 = por %p101, %p102
      %p104 = scmp.ne.s32.totalorder %s96, %s99
      %p105 = scmp.eq.s32.totalorder %s11, 0
      %p106 = por %p104, %p105
      %p107 = scmp.ne.s32.totalorder %s96, %s99
      %p108 = scmp.eq.s32.totalorder %s16, 8
      %p109 = por %p107, %p108
      %p110 = scmp.ne.s32.totalorder %s99, %s100
      %p111 = scmp.eq.s32.totalorder %s16, 0
      %p112 = por %p110, %p111
      %p113 = scmp.ne.s32.totalorder %s99, %s100
      %p114 = scmp.eq.s32.totalorder %s17, 8
      %p115 = por %p113, %p114
      %p117 = scmp.ne.s32.totalorder %s100, %s116
      %p118 = scmp.eq.s32.totalorder %s17, 0
      %p119 = por %p117, %p118
      %s120 = ssub.s32 %s19, %s33
      %p121 = scmp.eq.s32.totalorder %s120, 0
      %s123 = sadd.s32 %s122, 1
      %s124 = scalar_select %p121, %s122, %s123
      %p127 = pneg %p121
      %p128 = scmp.eq.s32.totalorder %s11, 8
      %p129 = por %p127, %p128
      %p130 = scmp.ne.s32.totalorder %s122, %s125
      %p131 = scmp.eq.s32.totalorder %s11, 0
      %p132 = por %p130, %p131
      %p133 = scmp.ne.s32.totalorder %s122, %s125
      %p134 = scmp.eq.s32.totalorder %s16, 8
      %p135 = por %p133, %p134
      %p136 = scmp.ne.s32.totalorder %s125, %s126
      %p137 = scmp.eq.s32.totalorder %s16, 0
      %p138 = por %p136, %p137
      %p139 = scmp.ne.s32.totalorder %s125, %s126
      %p140 = scmp.eq.s32.totalorder %s17, 8
      %p141 = por %p139, %p140
      %p143 = scmp.ne.s32.totalorder %s126, %s142
      %p144 = scmp.eq.s32.totalorder %s17, 0
      %p145 = por %p143, %p144
      %s146 = ssub.s32 %s18, %s37
      %s147 = ssub.s32 %s19, %s33
      %s148 = sor.u32 %s146, %s147
      %p149 = scmp.eq.s32.totalorder %s148, 0
      %s151 = sadd.s32 %s150, 1
      %s152 = scalar_select %p149, %s150, %s151
      %p155 = pneg %p149
      %p156 = scmp.eq.s32.totalorder %s11, 8
      %p157 = por %p155, %p156
      %p158 = scmp.ne.s32.totalorder %s150, %s153
      %p159 = scmp.eq.s32.totalorder %s11, 0
      %p160 = por %p158, %p159
      %p161 = scmp.ne.s32.totalorder %s150, %s153
      %p162 = scmp.eq.s32.totalorder %s16, 8
      %p163 = por %p161, %p162
      %p164 = scmp.ne.s32.totalorder %s153, %s154
      %p165 = scmp.eq.s32.totalorder %s16, 0
      %p166 = por %p164, %p165
      %p167 = scmp.ne.s32.totalorder %s153, %s154
      %p168 = scmp.eq.s32.totalorder %s17, 8
      %p169 = por %p167, %p168
      %p171 = scmp.ne.s32.totalorder %s154, %s170
      %p172 = scmp.eq.s32.totalorder %s17, 0
      %p173 = por %p171, %p172
      %s174 = ssub.s32 %s18, %s37
      %s175 = ssub.s32 %s19, %s33
      %s176 = sor.u32 %s174, %s175
      %p177 = scmp.eq.s32.totalorder %s176, 0
      %s179 = sadd.s32 %s178, 1
      %s180 = scalar_select %p177, %s178, %s179
      %p183 = pneg %p177
      %p184 = scmp.eq.s32.totalorder %s11, 8
      %p185 = por %p183, %p184
      %p186 = scmp.ne.s32.totalorder %s178, %s181
      %p187 = scmp.eq.s32.totalorder %s11, 0
      %p188 = por %p186, %p187
      %p189 = scmp.ne.s32.totalorder %s178, %s181
      %p190 = scmp.eq.s32.totalorder %s16, 8
      %p191 = por %p189, %p190
      %p192 = scmp.ne.s32.totalorder %s181, %s182
      %p193 = scmp.eq.s32.totalorder %s16, 0
      %p194 = por %p192, %p193
      %p195 = scmp.ne.s32.totalorder %s181, %s182
      %p196 = scmp.eq.s32.totalorder %s17, 8
      %p197 = por %p195, %p196
      %p199 = scmp.ne.s32.totalorder %s182, %s198
      %p200 = scmp.eq.s32.totalorder %s17, 0
      %p201 = por %p199, %p200
      %p202 = scmp.le.s32.totalorder 1, %s11
      %p203 = scmp.lt.s32.totalorder %s11, 10
      %p204 = pnand %p202, %p203
      %p205 = pneg %p204
      // Predicated region
      $region9: #{_lambda_.25} parent=5 // pred_check
        _
      $region10: #{_lambda_.25} parent=5 // pred_check_branch
        %207 = sbr.rel (%p204) target = $region12
      $region11: #{_lambda_.25} parent=5 // pred_region
        %s208 = ssub.s32 %s11, 1
        // Predicated region
        $region13: #{_lambda_.25} parent=11 // pred_check
          %p209 = pneg %p112
        $region14: #{_lambda_.25} parent=11 // pred_check_branch
          %211 = sbr.rel (%p209) target = $region16
        $region15: #{_lambda_.25} parent=11 // pred_region
          %s212 = smul.u32 4, %s22
          %p213 = scmp.lt.s32.totalorder %s212, 3
          %s214 = scalar_select %p213, %s212, 3
          %s215 = scalar_lea.vmem %s2, %s214
          %s216 = smul.u32 4, %s22
        $region16: #{_lambda_.25} parent=11 // pred_fallthru
          _
        // Predicated region
        $region17: #{_lambda_.25} parent=11 // pred_check
          %p217 = pneg %p138
        $region18: #{_lambda_.25} parent=11 // pred_check_branch
          %219 = sbr.rel (%p217) target = $region20
        $region19: #{_lambda_.25} parent=11 // pred_region
          %s220 = smul.u32 4, %s22
          %p221 = scmp.lt.s32.totalorder %s220, 3
          %s222 = scalar_select %p221, %s220, 3
          %s223 = scalar_lea.vmem %s3, %s222
          %s224 = smul.u32 4, %s22
        $region20: #{_lambda_.25} parent=11 // pred_fallthru
          _
        // Predicated region
        $region21: #{_lambda_.25} parent=11 // pred_check
          %p225 = pneg %p166
        $region22: #{_lambda_.25} parent=11 // pred_check_branch
          %227 = sbr.rel (%p225) target = $region24
        $region23: #{_lambda_.25} parent=11 // pred_region
          %s228 = smul.u32 2, %s21
          %s229 = smul.u32 4, %s22
          %p230 = scmp.lt.s32.totalorder %s228, 1
          %s231 = scalar_select %p230, %s228, 1
          %p232 = scmp.lt.s32.totalorder %s229, 3
          %s233 = scalar_select %p232, %s229, 3
          %s234 = smul.addr %s231, 4
          %s235 = sadd.s32 %s233, %s234
          %s236 = smul.addr %s235, 4
          %s237 = scalar_lea.vmem %s4, %s236
          %s238 = smul.u32 2, %s21
          %s239 = smul.u32 4, %s22
        $region24: #{_lambda_.25} parent=11 // pred_fallthru
          _
      $region12: #{_lambda_.25} parent=5 // pred_fallthru
        _
      %p240 = scmp.lt.s32.totalorder %s11, 9
      // Predicated region
      $region25: #{_lambda_.25} parent=5 // pred_check
        %p241 = pneg %p240
      $region26: #{_lambda_.25} parent=5 // pred_check_branch
        %243 = sbr.rel (%p241) target = $region28
      $region27: #{_lambda_.25} parent=5 // pred_region
        // Predicated region
        $region29: #{_lambda_.25} parent=27 // pred_check
          %p244 = pneg %p52
        $region30: #{_lambda_.25} parent=27 // pred_check_branch
          %246 = sbr.rel (%p244) target = $region32
        $region31: #{_lambda_.25} parent=27 // pred_region
          %s247 = sand.u32 %s42, 1
          %s248 = sand.u32 %s42, 1
          %s249 = smul.addr %s248, 32
          %s250 = scalar_lea.vmem [#allocation3], %s249
          %s251 = smul.u32 2, %s18
          %s252 = smul.u32 4, %s20
          %s253 = smul.addr %s251, 36
          %s254 = sadd.s32 %s252, %s253
          %s255 = smul.addr %s254, 4
          %s256 = scalar_lea.vmem %s0, %s255
          // Predicated region
          $region33: #{_lambda_.25} parent=31 // pred_check
            _
          $region34: #{_lambda_.25} parent=31 // pred_check_branch
            %258 = sbr.rel (0) target = $region36
          $region35: #{_lambda_.25} parent=31 // pred_region
            // Predicated region
            $region37: #{_lambda_.25} parent=35 // pred_check
              _
            $region38: #{_lambda_.25} parent=35 // pred_check_branch
              %260 = sbr.rel (0) target = $region40
            $region39: #{_lambda_.25} parent=35 // pred_region
              loop: start=0, step=1, limit=1
              $region41: #{_lambda_.25} parent=39 // loop_pre_header
                _
              $region42: #{_lambda_.25} parent=39 // loop_header
                %s262 = sphi 0, %s266
                %p263 = scmp.ge.s32.totalorder %s262, 1
                %s267 = sphi %s256, %s256
                %s268 = sphi %s250, %s250
              $region43: #{_lambda_.25} parent=39 // loop_header_branch
                %265 = sbr.rel (%p263) target = $region47
              $region44: #{_lambda_.25} parent=39 // loop_body
                %v269 = vld [vmem:[%s267] sm:$0xff]
                %270 = vst [vmem:[%s268] sm:$0xff] %v269
                %v271 = vld [vmem:[%s267 + $0x8] sm:$0xff]
                %272 = vst [vmem:[%s268 + $0x8] sm:$0xff] %v271
                %v273 = vld [vmem:[%s267 + $0x90] sm:$0xff]
                %274 = vst [vmem:[%s268 + $0x10] sm:$0xff] %v273
                %v275 = vld [vmem:[%s267 + $0x98] sm:$0xff]
                %276 = vst [vmem:[%s268 + $0x18] sm:$0xff] %v275
              $region45: #{_lambda_.25} parent=39 // loop_footer
                %s266 = sadd.s32 1, %s262
              $region46: #{_lambda_.25} parent=39 // loop_footer_branch
                %261 = sbr.rel target = $region42
              $region47: #{_lambda_.25} parent=39 // loop_exit
                _
            $region40: #{_lambda_.25} parent=35 // pred_fallthru
              _
            // Predicated region
            $region48: #{_lambda_.25} parent=35 // pred_check
              _
            $region49: #{_lambda_.25} parent=35 // pred_check_branch
              %278 = sbr.rel target = $region51
            $region50: #{_lambda_.25} parent=35 // pred_region
              _
            $region51: #{_lambda_.25} parent=35 // pred_fallthru
              _
          $region36: #{_lambda_.25} parent=31 // pred_fallthru
            _
          %279 = vnop
        $region32: #{_lambda_.25} parent=27 // pred_fallthru
          _
        // Predicated region
        $region52: #{_lambda_.25} parent=27 // pred_check
          %p280 = pneg %p80
        $region53: #{_lambda_.25} parent=27 // pred_check_branch
          %282 = sbr.rel (%p280) target = $region55
        $region54: #{_lambda_.25} parent=27 // pred_region
          %s283 = smul.u32 64, %s20
          %s284 = smul.u32 4, %s19
          %p285 = scmp.lt.s32.totalorder %s283, 575
          %s286 = scalar_select %p285, %s283, 575
          %p287 = scmp.lt.s32.totalorder %s284, 3
          %s288 = scalar_select %p287, %s284, 3
          %s289 = smul.addr %s286, 4
          %s290 = sadd.s32 %s288, %s289
          %s291 = smul.addr %s290, 4
          %s292 = scalar_lea.vmem %s1, %s291
          %s293 = smul.u32 64, %s20
          %s294 = smul.u32 4, %s19
        $region55: #{_lambda_.25} parent=27 // pred_fallthru
          _
      $region28: #{_lambda_.25} parent=5 // pred_fallthru
        _
      %p295 = scmp.le.s32.totalorder 1, %s11
      %p296 = scmp.lt.s32.totalorder %s11, 10
      %p297 = pnand %p295, %p296
      %p298 = pneg %p297
      // Predicated region
      $region56: #{_lambda_.25} parent=5 // pred_check
        _
      $region57: #{_lambda_.25} parent=5 // pred_check_branch
        %300 = sbr.rel (%p297) target = $region59
      $region58: #{_lambda_.25} parent=5 // pred_region
        %s301 = ssub.s32 %s11, 1
        %s302 = sand.u32 %s45, 1
        %s303 = sand.u32 %s45, 1
        %s304 = smul.addr %s303, 32
        %s305 = scalar_lea.vmem [#allocation3], %s304
        // Predicated region
        $region60: #{_lambda_.25} parent=58 // pred_check
          %p306 = pneg %p58
        $region61: #{_lambda_.25} parent=58 // pred_check_branch
          %308 = sbr.rel (%p306) target = $region63
        $region62: #{_lambda_.25} parent=58 // pred_region
          _
        $region63: #{_lambda_.25} parent=58 // pred_fallthru
          _
        %s309 = sand.u32 %s45, 1
        %s310 = sand.u32 %s45, 1
        %s311 = smul.addr %s310, 32
        %s312 = scalar_lea.vmem [#allocation3], %s311
        %p313 = pneg %p58
        %p314 = pneg %p55
        %s315 = smul.u32 64, %s23
        %s316 = smul.u32 4, %s22
        %p317 = scmp.lt.s32.totalorder %s315, 575
        %s318 = scalar_select %p317, %s315, 575
        %p319 = scmp.lt.s32.totalorder %s316, 3
        %s320 = scalar_select %p319, %s316, 3
        %s321 = smul.addr %s318, 4
        %s322 = sadd.s32 %s320, %s321
        %s323 = smul.addr %s322, 4
        %s324 = scalar_lea.vmem %s1, %s323
        %p325 = pneg %p86
        %p326 = pneg %p83
        %s327 = smul.u32 4, %s22
        %p328 = scmp.lt.s32.totalorder %s327, 3
        %s329 = scalar_select %p328, %s327, 3
        %s330 = scalar_lea.vmem %s2, %s329
        %p331 = pneg %p112
        %p332 = pneg %p109
        %s333 = smul.u32 4, %s22
        %p334 = scmp.lt.s32.totalorder %s333, 3
        %s335 = scalar_select %p334, %s333, 3
        %s336 = scalar_lea.vmem %s3, %s335
        %p337 = pneg %p138
        %p338 = pneg %p135
        %s339 = smul.u32 2, %s21
        %s340 = smul.u32 4, %s22
        %p341 = scmp.lt.s32.totalorder %s339, 1
        %s342 = scalar_select %p341, %s339, 1
        %p343 = scmp.lt.s32.totalorder %s340, 3
        %s344 = scalar_select %p343, %s340, 3
        %s345 = smul.addr %s342, 4
        %s346 = sadd.s32 %s344, %s345
        %s347 = smul.addr %s346, 4
        %s348 = scalar_lea.vmem %s4, %s347
        %p349 = pneg %p166
        %p350 = pneg %p163
        %p351 = pneg %p194
        %p352 = pneg %p191
        %s353 = smul.u32 2, %s21
        %s354 = smul.u32 4, %s22
        %p355 = scmp.lt.s32.totalorder %s353, 1
        %s356 = scalar_select %p355, %s353, 1
        %p357 = scmp.lt.s32.totalorder %s354, 3
        %s358 = scalar_select %p357, %s354, 3
        %s359 = smul.addr %s356, 4
        %s360 = sadd.s32 %s358, %s359
        %s361 = smul.addr %s360, 4
        %s362 = scalar_lea.vmem %s5, %s361
        %s363 = smul.u32 2, %s21
        %s364 = smul.u32 4, %s23
        %s365 = smul.u32 64, %s23
        %s366 = smul.u32 4, %s22
        %p367 = scmp.lt.s32.totalorder %s365, 575
        %s368 = scalar_select %p367, %s365, 575
        %p369 = scmp.lt.s32.totalorder %s366, 3
        %s370 = scalar_select %p369, %s366, 3
        %s371 = smul.addr %s368, 4
        %s372 = sadd.s32 %s370, %s371
        %s373 = smul.addr %s372, 4
        %s374 = scalar_lea.vmem %s1, %s373
        %s375 = smul.u32 64, %s23
        %s376 = smul.u32 4, %s22
        %s377 = smul.u32 4, %s22
        %p378 = scmp.lt.s32.totalorder %s377, 3
        %s379 = scalar_select %p378, %s377, 3
        %s380 = scalar_lea.vmem %s2, %s379
        %s381 = smul.u32 4, %s22
        %s382 = smul.u32 4, %s22
        %p383 = scmp.lt.s32.totalorder %s382, 3
        %s384 = scalar_select %p383, %s382, 3
        %s385 = scalar_lea.vmem %s3, %s384
        %s386 = smul.u32 4, %s22
        %s387 = smul.u32 2, %s21
        %s388 = smul.u32 4, %s22
        %p389 = scmp.lt.s32.totalorder %s387, 1
        %s390 = scalar_select %p389, %s387, 1
        %p391 = scmp.lt.s32.totalorder %s388, 3
        %s392 = scalar_select %p391, %s388, 3
        %s393 = smul.addr %s390, 4
        %s394 = sadd.s32 %s392, %s393
        %s395 = smul.addr %s394, 4
        %s396 = scalar_lea.vmem %s4, %s395
        %s397 = smul.u32 2, %s21
        %s398 = smul.u32 4, %s22
        %s399 = smul.u32 2, %s21
        %s400 = smul.u32 4, %s22
        %p401 = scmp.lt.s32.totalorder %s399, 1
        %s402 = scalar_select %p401, %s399, 1
        %p403 = scmp.lt.s32.totalorder %s400, 3
        %s404 = scalar_select %p403, %s400, 3
        %s405 = smul.addr %s402, 4
        %s406 = sadd.s32 %s404, %s405
        %s407 = smul.addr %s406, 4
        %s408 = scalar_lea.vmem %s5, %s407
        %s409 = smul.u32 2, %s21
        %s410 = smul.u32 4, %s22
        %p411 = scmp.eq.s32.totalorder %s23, 0
        // Predicated region
        $region64: #{_lambda_.25} parent=58 // pred_check
          %p412 = pneg %p411
        $region65: #{_lambda_.25} parent=58 // pred_check_branch
          %414 = sbr.rel (%p412) target = $region67
        $region66: #{_lambda_.25} parent=58 // pred_region
          %415 = vst [vmem:[#allocation2] sm:$0xff] 0.0
          %416 = vst [vmem:[#allocation2 + $0x8] sm:$0xff] 0.0
          %417 = vst [vmem:[#allocation2 + $0x10] sm:$0xff] 0.0
          %418 = vst [vmem:[#allocation2 + $0x18] sm:$0xff] 0.0
          %419 = vst [vmem:[#allocation2 + $0x20] sm:$0xff] 0.0
          %420 = vst [vmem:[#allocation2 + $0x28] sm:$0xff] 0.0
          %421 = vst [vmem:[#allocation2 + $0x30] sm:$0xff] 0.0
          %422 = vst [vmem:[#allocation2 + $0x38] sm:$0xff] 0.0
        $region67: #{_lambda_.25} parent=58 // pred_fallthru
          _
        %v423 = vld [vmem:[#allocation2] sm:$0xff]
        %v424 = vld [vmem:[#allocation2 + $0x8] sm:$0xff]
        %v425 = vld [vmem:[#allocation2 + $0x10] sm:$0xff]
        %v426 = vld [vmem:[#allocation2 + $0x18] sm:$0xff]
        %v427 = vld [vmem:[#allocation2 + $0x20] sm:$0xff]
        %v428 = vld [vmem:[#allocation2 + $0x28] sm:$0xff]
        %v429 = vld [vmem:[#allocation2 + $0x30] sm:$0xff]
        %v430 = vld [vmem:[#allocation2 + $0x38] sm:$0xff]
        %v431 = vld [vmem:[%s305] sm:$0xff]
        %v432 = vld [vmem:[%s305 + $0x8] sm:$0xff]
        %v433 = vld [vmem:[%s305 + $0x10] sm:$0xff]
        %v434 = vld [vmem:[%s305 + $0x18] sm:$0xff]
        %v435 = vld [vmem:[%s374] sm:$0xff]
        %v436 = vld [vmem:[%s374 + $0x8] sm:$0xff]
        %v437 = vld [vmem:[%s374 + $0x10] sm:$0xff]
        %v438 = vld [vmem:[%s374 + $0x18] sm:$0xff]
        %v439 = vld [vmem:[%s374 + $0x20] sm:$0xff]
        %v440 = vld [vmem:[%s374 + $0x28] sm:$0xff]
        %v441 = vld [vmem:[%s374 + $0x30] sm:$0xff]
        %v442 = vld [vmem:[%s374 + $0x38] sm:$0xff]
        %v443 = vld [vmem:[%s374 + $0x40] sm:$0xff]
        %v444 = vld [vmem:[%s374 + $0x48] sm:$0xff]
        %v445 = vld [vmem:[%s374 + $0x50] sm:$0xff]
        %v446 = vld [vmem:[%s374 + $0x58] sm:$0xff]
        %v447 = vld [vmem:[%s374 + $0x60] sm:$0xff]
        %v448 = vld [vmem:[%s374 + $0x68] sm:$0xff]
        %v449 = vld [vmem:[%s374 + $0x70] sm:$0xff]
        %v450 = vld [vmem:[%s374 + $0x78] sm:$0xff]
        %v451 = vld [vmem:[%s374 + $0x80] sm:$0xff]
        %v452 = vld [vmem:[%s374 + $0x88] sm:$0xff]
        %v453 = vld [vmem:[%s374 + $0x90] sm:$0xff]
        %v454 = vld [vmem:[%s374 + $0x98] sm:$0xff]
        %v455 = vld [vmem:[%s374 + $0xa0] sm:$0xff]
        %v456 = vld [vmem:[%s374 + $0xa8] sm:$0xff]
        %v457 = vld [vmem:[%s374 + $0xb0] sm:$0xff]
        %v458 = vld [vmem:[%s374 + $0xb8] sm:$0xff]
        %v459 = vld [vmem:[%s374 + $0xc0] sm:$0xff]
        %v460 = vld [vmem:[%s374 + $0xc8] sm:$0xff]
        %v461 = vld [vmem:[%s374 + $0xd0] sm:$0xff]
        %v462 = vld [vmem:[%s374 + $0xd8] sm:$0xff]
        %v463 = vld [vmem:[%s374 + $0xe0] sm:$0xff]
        %v464 = vld [vmem:[%s374 + $0xe8] sm:$0xff]
        %v465 = vld [vmem:[%s374 + $0xf0] sm:$0xff]
        %v466 = vld [vmem:[%s374 + $0xf8] sm:$0xff]
        %v467 = vld [vmem:[%s374 + $0x100] sm:$0xff]
        %v468 = vld [vmem:[%s374 + $0x108] sm:$0xff]
        %v469 = vld [vmem:[%s374 + $0x110] sm:$0xff]
        %v470 = vld [vmem:[%s374 + $0x118] sm:$0xff]
        %v471 = vld [vmem:[%s374 + $0x120] sm:$0xff]
        %v472 = vld [vmem:[%s374 + $0x128] sm:$0xff]
        %v473 = vld [vmem:[%s374 + $0x130] sm:$0xff]
        %v474 = vld [vmem:[%s374 + $0x138] sm:$0xff]
        %v475 = vld [vmem:[%s374 + $0x140] sm:$0xff]
        %v476 = vld [vmem:[%s374 + $0x148] sm:$0xff]
        %v477 = vld [vmem:[%s374 + $0x150] sm:$0xff]
        %v478 = vld [vmem:[%s374 + $0x158] sm:$0xff]
        %v479 = vld [vmem:[%s374 + $0x160] sm:$0xff]
        %v480 = vld [vmem:[%s374 + $0x168] sm:$0xff]
        %v481 = vld [vmem:[%s374 + $0x170] sm:$0xff]
        %v482 = vld [vmem:[%s374 + $0x178] sm:$0xff]
        %v483 = vld [vmem:[%s374 + $0x180] sm:$0xff]
        %v484 = vld [vmem:[%s374 + $0x188] sm:$0xff]
        %v485 = vld [vmem:[%s374 + $0x190] sm:$0xff]
        %v486 = vld [vmem:[%s374 + $0x198] sm:$0xff]
        %v487 = vld [vmem:[%s374 + $0x1a0] sm:$0xff]
        %v488 = vld [vmem:[%s374 + $0x1a8] sm:$0xff]
        %v489 = vld [vmem:[%s374 + $0x1b0] sm:$0xff]
        %v490 = vld [vmem:[%s374 + $0x1b8] sm:$0xff]
        %v491 = vld [vmem:[%s374 + $0x1c0] sm:$0xff]
        %v492 = vld [vmem:[%s374 + $0x1c8] sm:$0xff]
        %v493 = vld [vmem:[%s374 + $0x1d0] sm:$0xff]
        %v494 = vld [vmem:[%s374 + $0x1d8] sm:$0xff]
        %v495 = vld [vmem:[%s374 + $0x1e0] sm:$0xff]
        %v496 = vld [vmem:[%s374 + $0x1e8] sm:$0xff]
        %v497 = vld [vmem:[%s374 + $0x1f0] sm:$0xff]
        %v498 = vld [vmem:[%s374 + $0x1f8] sm:$0xff]
        %v499 = vld [vmem:[%s374 + $0x200] sm:$0xff]
        %v500 = vld [vmem:[%s374 + $0x208] sm:$0xff]
        %v501 = vld [vmem:[%s374 + $0x210] sm:$0xff]
        %v502 = vld [vmem:[%s374 + $0x218] sm:$0xff]
        %v503 = vld [vmem:[%s374 + $0x220] sm:$0xff]
        %v504 = vld [vmem:[%s374 + $0x228] sm:$0xff]
        %v505 = vld [vmem:[%s374 + $0x230] sm:$0xff]
        %v506 = vld [vmem:[%s374 + $0x238] sm:$0xff]
        %v507 = vld [vmem:[%s374 + $0x240] sm:$0xff]
        %v508 = vld [vmem:[%s374 + $0x248] sm:$0xff]
        %v509 = vld [vmem:[%s374 + $0x250] sm:$0xff]
        %v510 = vld [vmem:[%s374 + $0x258] sm:$0xff]
        %v511 = vld [vmem:[%s374 + $0x260] sm:$0xff]
        %v512 = vld [vmem:[%s374 + $0x268] sm:$0xff]
        %v513 = vld [vmem:[%s374 + $0x270] sm:$0xff]
        %v514 = vld [vmem:[%s374 + $0x278] sm:$0xff]
        %v515 = vld [vmem:[%s374 + $0x280] sm:$0xff]
        %v516 = vld [vmem:[%s374 + $0x288] sm:$0xff]
        %v517 = vld [vmem:[%s374 + $0x290] sm:$0xff]
        %v518 = vld [vmem:[%s374 + $0x298] sm:$0xff]
        %v519 = vld [vmem:[%s374 + $0x2a0] sm:$0xff]
        %v520 = vld [vmem:[%s374 + $0x2a8] sm:$0xff]
        %v521 = vld [vmem:[%s374 + $0x2b0] sm:$0xff]
        %v522 = vld [vmem:[%s374 + $0x2b8] sm:$0xff]
        %v523 = vld [vmem:[%s374 + $0x2c0] sm:$0xff]
        %v524 = vld [vmem:[%s374 + $0x2c8] sm:$0xff]
        %v525 = vld [vmem:[%s374 + $0x2d0] sm:$0xff]
        %v526 = vld [vmem:[%s374 + $0x2d8] sm:$0xff]
        %v527 = vld [vmem:[%s374 + $0x2e0] sm:$0xff]
        %v528 = vld [vmem:[%s374 + $0x2e8] sm:$0xff]
        %v529 = vld [vmem:[%s374 + $0x2f0] sm:$0xff]
        %v530 = vld [vmem:[%s374 + $0x2f8] sm:$0xff]
        %v531 = vld [vmem:[%s374 + $0x300] sm:$0xff]
        %v532 = vld [vmem:[%s374 + $0x308] sm:$0xff]
        %v533 = vld [vmem:[%s374 + $0x310] sm:$0xff]
        %v534 = vld [vmem:[%s374 + $0x318] sm:$0xff]
        %v535 = vld [vmem:[%s374 + $0x320] sm:$0xff]
        %v536 = vld [vmem:[%s374 + $0x328] sm:$0xff]
        %v537 = vld [vmem:[%s374 + $0x330] sm:$0xff]
        %v538 = vld [vmem:[%s374 + $0x338] sm:$0xff]
        %v539 = vld [vmem:[%s374 + $0x340] sm:$0xff]
        %v540 = vld [vmem:[%s374 + $0x348] sm:$0xff]
        %v541 = vld [vmem:[%s374 + $0x350] sm:$0xff]
        %v542 = vld [vmem:[%s374 + $0x358] sm:$0xff]
        %v543 = vld [vmem:[%s374 + $0x360] sm:$0xff]
        %v544 = vld [vmem:[%s374 + $0x368] sm:$0xff]
        %v545 = vld [vmem:[%s374 + $0x370] sm:$0xff]
        %v546 = vld [vmem:[%s374 + $0x378] sm:$0xff]
        %v547 = vld [vmem:[%s374 + $0x380] sm:$0xff]
        %v548 = vld [vmem:[%s374 + $0x388] sm:$0xff]
        %v549 = vld [vmem:[%s374 + $0x390] sm:$0xff]
        %v550 = vld [vmem:[%s374 + $0x398] sm:$0xff]
        %v551 = vld [vmem:[%s374 + $0x3a0] sm:$0xff]
        %v552 = vld [vmem:[%s374 + $0x3a8] sm:$0xff]
        %v553 = vld [vmem:[%s374 + $0x3b0] sm:$0xff]
        %v554 = vld [vmem:[%s374 + $0x3b8] sm:$0xff]
        %v555 = vld [vmem:[%s374 + $0x3c0] sm:$0xff]
        %v556 = vld [vmem:[%s374 + $0x3c8] sm:$0xff]
        %v557 = vld [vmem:[%s374 + $0x3d0] sm:$0xff]
        %v558 = vld [vmem:[%s374 + $0x3d8] sm:$0xff]
        %v559 = vld [vmem:[%s374 + $0x3e0] sm:$0xff]
        %v560 = vld [vmem:[%s374 + $0x3e8] sm:$0xff]
        %v561 = vld [vmem:[%s374 + $0x3f0] sm:$0xff]
        %v562 = vld [vmem:[%s374 + $0x3f8] sm:$0xff]
        %v567 = vunpack.c.l.b16 %v431
        %v568 = vunpack.c.h.b16 %v431
        %v569 = vunpack.c.l.b16 %v432
        %v570 = vunpack.c.h.b16 %v432
        %v571 = vunpack.c.l.b16 %v433
        %v572 = vunpack.c.h.b16 %v433
        %v573 = vunpack.c.l.b16 %v434
        %v574 = vunpack.c.h.b16 %v434
        %v575 = vpack.c.b16 %v571, %v567
        %v576 = vpack.c.b16 %v572, %v568
        %v577 = vpack.c.b16 %v573, %v569
        %v578 = vpack.c.b16 %v574, %v570
        %v711 = vunpack.c.l.b16 %v435
        %v712 = vunpack.c.h.b16 %v435
        %v713 = vunpack.c.l.b16 %v436
        %v714 = vunpack.c.h.b16 %v436
        %v715 = vunpack.c.l.b16 %v437
        %v716 = vunpack.c.h.b16 %v437
        %v717 = vunpack.c.l.b16 %v438
        %v718 = vunpack.c.h.b16 %v438
        %v719 = vunpack.c.l.b16 %v439
        %v720 = vunpack.c.h.b16 %v439
        %v721 = vunpack.c.l.b16 %v440
        %v722 = vunpack.c.h.b16 %v440
        %v723 = vunpack.c.l.b16 %v441
        %v724 = vunpack.c.h.b16 %v441
        %v725 = vunpack.c.l.b16 %v442
        %v726 = vunpack.c.h.b16 %v442
        %v727 = vunpack.c.l.b16 %v443
        %v728 = vunpack.c.h.b16 %v443
        %v729 = vunpack.c.l.b16 %v444
        %v730 = vunpack.c.h.b16 %v444
        %v731 = vunpack.c.l.b16 %v445
        %v732 = vunpack.c.h.b16 %v445
        %v733 = vunpack.c.l.b16 %v446
        %v734 = vunpack.c.h.b16 %v446
        %v735 = vunpack.c.l.b16 %v447
        %v736 = vunpack.c.h.b16 %v447
        %v737 = vunpack.c.l.b16 %v448
        %v738 = vunpack.c.h.b16 %v448
        %v739 = vunpack.c.l.b16 %v449
        %v740 = vunpack.c.h.b16 %v449
        %v741 = vunpack.c.l.b16 %v450
        %v742 = vunpack.c.h.b16 %v450
        %v743 = vunpack.c.l.b16 %v451
        %v744 = vunpack.c.h.b16 %v451
        %v745 = vunpack.c.l.b16 %v452
        %v746 = vunpack.c.h.b16 %v452
        %v747 = vunpack.c.l.b16 %v453
        %v748 = vunpack.c.h.b16 %v453
        %v749 = vunpack.c.l.b16 %v454
        %v750 = vunpack.c.h.b16 %v454
        %v751 = vunpack.c.l.b16 %v455
        %v752 = vunpack.c.h.b16 %v455
        %v753 = vunpack.c.l.b16 %v456
        %v754 = vunpack.c.h.b16 %v456
        %v755 = vunpack.c.l.b16 %v457
        %v756 = vunpack.c.h.b16 %v457
        %v757 = vunpack.c.l.b16 %v458
        %v758 = vunpack.c.h.b16 %v458
        %v759 = vunpack.c.l.b16 %v459
        %v760 = vunpack.c.h.b16 %v459
        %v761 = vunpack.c.l.b16 %v460
        %v762 = vunpack.c.h.b16 %v460
        %v763 = vunpack.c.l.b16 %v461
        %v764 = vunpack.c.h.b16 %v461
        %v765 = vunpack.c.l.b16 %v462
        %v766 = vunpack.c.h.b16 %v462
        %v767 = vunpack.c.l.b16 %v463
        %v768 = vunpack.c.h.b16 %v463
        %v769 = vunpack.c.l.b16 %v464
        %v770 = vunpack.c.h.b16 %v464
        %v771 = vunpack.c.l.b16 %v465
        %v772 = vunpack.c.h.b16 %v465
        %v773 = vunpack.c.l.b16 %v466
        %v774 = vunpack.c.h.b16 %v466
        %v775 = vunpack.c.l.b16 %v467
        %v776 = vunpack.c.h.b16 %v467
        %v777 = vunpack.c.l.b16 %v468
        %v778 = vunpack.c.h.b16 %v468
        %v779 = vunpack.c.l.b16 %v469
        %v780 = vunpack.c.h.b16 %v469
        %v781 = vunpack.c.l.b16 %v470
        %v782 = vunpack.c.h.b16 %v470
        %v783 = vunpack.c.l.b16 %v471
        %v784 = vunpack.c.h.b16 %v471
        %v785 = vunpack.c.l.b16 %v472
        %v786 = vunpack.c.h.b16 %v472
        %v787 = vunpack.c.l.b16 %v473
        %v788 = vunpack.c.h.b16 %v473
        %v789 = vunpack.c.l.b16 %v474
        %v790 = vunpack.c.h.b16 %v474
        %v791 = vunpack.c.l.b16 %v475
        %v792 = vunpack.c.h.b16 %v475
        %v793 = vunpack.c.l.b16 %v476
        %v794 = vunpack.c.h.b16 %v476
        %v795 = vunpack.c.l.b16 %v477
        %v796 = vunpack.c.h.b16 %v477
        %v797 = vunpack.c.l.b16 %v478
        %v798 = vunpack.c.h.b16 %v478
        %v799 = vunpack.c.l.b16 %v479
        %v800 = vunpack.c.h.b16 %v479
        %v801 = vunpack.c.l.b16 %v480
        %v802 = vunpack.c.h.b16 %v480
        %v803 = vunpack.c.l.b16 %v481
        %v804 = vunpack.c.h.b16 %v481
        %v805 = vunpack.c.l.b16 %v482
        %v806 = vunpack.c.h.b16 %v482
        %v807 = vunpack.c.l.b16 %v483
        %v808 = vunpack.c.h.b16 %v483
        %v809 = vunpack.c.l.b16 %v484
        %v810 = vunpack.c.h.b16 %v484
        %v811 = vunpack.c.l.b16 %v485
        %v812 = vunpack.c.h.b16 %v485
        %v813 = vunpack.c.l.b16 %v486
        %v814 = vunpack.c.h.b16 %v486
        %v815 = vunpack.c.l.b16 %v487
        %v816 = vunpack.c.h.b16 %v487
        %v817 = vunpack.c.l.b16 %v488
        %v818 = vunpack.c.h.b16 %v488
        %v819 = vunpack.c.l.b16 %v489
        %v820 = vunpack.c.h.b16 %v489
        %v821 = vunpack.c.l.b16 %v490
        %v822 = vunpack.c.h.b16 %v490
        %v823 = vunpack.c.l.b16 %v491
        %v824 = vunpack.c.h.b16 %v491
        %v825 = vunpack.c.l.b16 %v492
        %v826 = vunpack.c.h.b16 %v492
        %v827 = vunpack.c.l.b16 %v493
        %v828 = vunpack.c.h.b16 %v493
        %v829 = vunpack.c.l.b16 %v494
        %v830 = vunpack.c.h.b16 %v494
        %v831 = vunpack.c.l.b16 %v495
        %v832 = vunpack.c.h.b16 %v495
        %v833 = vunpack.c.l.b16 %v496
        %v834 = vunpack.c.h.b16 %v496
        %v835 = vunpack.c.l.b16 %v497
        %v836 = vunpack.c.h.b16 %v497
        %v837 = vunpack.c.l.b16 %v498
        %v838 = vunpack.c.h.b16 %v498
        %v839 = vunpack.c.l.b16 %v499
        %v840 = vunpack.c.h.b16 %v499
        %v841 = vunpack.c.l.b16 %v500
        %v842 = vunpack.c.h.b16 %v500
        %v843 = vunpack.c.l.b16 %v501
        %v844 = vunpack.c.h.b16 %v501
        %v845 = vunpack.c.l.b16 %v502
        %v846 = vunpack.c.h.b16 %v502
        %v847 = vunpack.c.l.b16 %v503
        %v848 = vunpack.c.h.b16 %v503
        %v849 = vunpack.c.l.b16 %v504
        %v850 = vunpack.c.h.b16 %v504
        %v851 = vunpack.c.l.b16 %v505
        %v852 = vunpack.c.h.b16 %v505
        %v853 = vunpack.c.l.b16 %v506
        %v854 = vunpack.c.h.b16 %v506
        %v855 = vunpack.c.l.b16 %v507
        %v856 = vunpack.c.h.b16 %v507
        %v857 = vunpack.c.l.b16 %v508
        %v858 = vunpack.c.h.b16 %v508
        %v859 = vunpack.c.l.b16 %v509
        %v860 = vunpack.c.h.b16 %v509
        %v861 = vunpack.c.l.b16 %v510
        %v862 = vunpack.c.h.b16 %v510
        %v863 = vunpack.c.l.b16 %v511
        %v864 = vunpack.c.h.b16 %v511
        %v865 = vunpack.c.l.b16 %v512
        %v866 = vunpack.c.h.b16 %v512
        %v867 = vunpack.c.l.b16 %v513
        %v868 = vunpack.c.h.b16 %v513
        %v869 = vunpack.c.l.b16 %v514
        %v870 = vunpack.c.h.b16 %v514
        %v871 = vunpack.c.l.b16 %v515
        %v872 = vunpack.c.h.b16 %v515
        %v873 = vunpack.c.l.b16 %v516
        %v874 = vunpack.c.h.b16 %v516
        %v875 = vunpack.c.l.b16 %v517
        %v876 = vunpack.c.h.b16 %v517
        %v877 = vunpack.c.l.b16 %v518
        %v878 = vunpack.c.h.b16 %v518
        %v879 = vunpack.c.l.b16 %v519
        %v880 = vunpack.c.h.b16 %v519
        %v881 = vunpack.c.l.b16 %v520
        %v882 = vunpack.c.h.b16 %v520
        %v883 = vunpack.c.l.b16 %v521
        %v884 = vunpack.c.h.b16 %v521
        %v885 = vunpack.c.l.b16 %v522
        %v886 = vunpack.c.h.b16 %v522
        %v887 = vunpack.c.l.b16 %v523
        %v888 = vunpack.c.h.b16 %v523
        %v889 = vunpack.c.l.b16 %v524
        %v890 = vunpack.c.h.b16 %v524
        %v891 = vunpack.c.l.b16 %v525
        %v892 = vunpack.c.h.b16 %v525
        %v893 = vunpack.c.l.b16 %v526
        %v894 = vunpack.c.h.b16 %v526
        %v895 = vunpack.c.l.b16 %v527
        %v896 = vunpack.c.h.b16 %v527
        %v897 = vunpack.c.l.b16 %v528
        %v898 = vunpack.c.h.b16 %v528
        %v899 = vunpack.c.l.b16 %v529
        %v900 = vunpack.c.h.b16 %v529
        %v901 = vunpack.c.l.b16 %v530
        %v902 = vunpack.c.h.b16 %v530
        %v903 = vunpack.c.l.b16 %v531
        %v904 = vunpack.c.h.b16 %v531
        %v905 = vunpack.c.l.b16 %v532
        %v906 = vunpack.c.h.b16 %v532
        %v907 = vunpack.c.l.b16 %v533
        %v908 = vunpack.c.h.b16 %v533
        %v909 = vunpack.c.l.b16 %v534
        %v910 = vunpack.c.h.b16 %v534
        %v911 = vunpack.c.l.b16 %v535
        %v912 = vunpack.c.h.b16 %v535
        %v913 = vunpack.c.l.b16 %v536
        %v914 = vunpack.c.h.b16 %v536
        %v915 = vunpack.c.l.b16 %v537
        %v916 = vunpack.c.h.b16 %v537
        %v917 = vunpack.c.l.b16 %v538
        %v918 = vunpack.c.h.b16 %v538
        %v919 = vunpack.c.l.b16 %v539
        %v920 = vunpack.c.h.b16 %v539
        %v921 = vunpack.c.l.b16 %v540
        %v922 = vunpack.c.h.b16 %v540
        %v923 = vunpack.c.l.b16 %v541
        %v924 = vunpack.c.h.b16 %v541
        %v925 = vunpack.c.l.b16 %v542
        %v926 = vunpack.c.h.b16 %v542
        %v927 = vunpack.c.l.b16 %v543
        %v928 = vunpack.c.h.b16 %v543
        %v929 = vunpack.c.l.b16 %v544
        %v930 = vunpack.c.h.b16 %v544
        %v931 = vunpack.c.l.b16 %v545
        %v932 = vunpack.c.h.b16 %v545
        %v933 = vunpack.c.l.b16 %v546
        %v934 = vunpack.c.h.b16 %v546
        %v935 = vunpack.c.l.b16 %v547
        %v936 = vunpack.c.h.b16 %v547
        %v937 = vunpack.c.l.b16 %v548
        %v938 = vunpack.c.h.b16 %v548
        %v939 = vunpack.c.l.b16 %v549
        %v940 = vunpack.c.h.b16 %v549
        %v941 = vunpack.c.l.b16 %v550
        %v942 = vunpack.c.h.b16 %v550
        %v943 = vunpack.c.l.b16 %v551
        %v944 = vunpack.c.h.b16 %v551
        %v945 = vunpack.c.l.b16 %v552
        %v946 = vunpack.c.h.b16 %v552
        %v947 = vunpack.c.l.b16 %v553
        %v948 = vunpack.c.h.b16 %v553
        %v949 = vunpack.c.l.b16 %v554
        %v950 = vunpack.c.h.b16 %v554
        %v951 = vunpack.c.l.b16 %v555
        %v952 = vunpack.c.h.b16 %v555
        %v953 = vunpack.c.l.b16 %v556
        %v954 = vunpack.c.h.b16 %v556
        %v955 = vunpack.c.l.b16 %v557
        %v956 = vunpack.c.h.b16 %v557
        %v957 = vunpack.c.l.b16 %v558
        %v958 = vunpack.c.h.b16 %v558
        %v959 = vunpack.c.l.b16 %v559
        %v960 = vunpack.c.h.b16 %v559
        %v961 = vunpack.c.l.b16 %v560
        %v962 = vunpack.c.h.b16 %v560
        %v963 = vunpack.c.l.b16 %v561
        %v964 = vunpack.c.h.b16 %v561
        %v965 = vunpack.c.l.b16 %v562
        %v966 = vunpack.c.h.b16 %v562
        %v967 = vpack.c.b16 %v715, %v711
        %v968 = vpack.c.b16 %v716, %v712
        %v969 = vpack.c.b16 %v717, %v713
        %v970 = vpack.c.b16 %v718, %v714
        %v971 = vpack.c.b16 %v723, %v719
        %v972 = vpack.c.b16 %v724, %v720
        %v973 = vpack.c.b16 %v725, %v721
        %v974 = vpack.c.b16 %v726, %v722
        %v975 = vpack.c.b16 %v731, %v727
        %v976 = vpack.c.b16 %v732, %v728
        %v977 = vpack.c.b16 %v733, %v729
        %v978 = vpack.c.b16 %v734, %v730
        %v979 = vpack.c.b16 %v739, %v735
        %v980 = vpack.c.b16 %v740, %v736
        %v981 = vpack.c.b16 %v741, %v737
        %v982 = vpack.c.b16 %v742, %v738
        %v983 = vpack.c.b16 %v747, %v743
        %v984 = vpack.c.b16 %v748, %v744
        %v985 = vpack.c.b16 %v749, %v745
        %v986 = vpack.c.b16 %v750, %v746
        %v987 = vpack.c.b16 %v755, %v751
        %v988 = vpack.c.b16 %v756, %v752
        %v989 = vpack.c.b16 %v757, %v753
        %v990 = vpack.c.b16 %v758, %v754
        %v991 = vpack.c.b16 %v763, %v759
        %v992 = vpack.c.b16 %v764, %v760
        %v993 = vpack.c.b16 %v765, %v761
        %v994 = vpack.c.b16 %v766, %v762
        %v995 = vpack.c.b16 %v771, %v767
        %v996 = vpack.c.b16 %v772, %v768
        %v997 = vpack.c.b16 %v773, %v769
        %v998 = vpack.c.b16 %v774, %v770
        %v999 = vpack.c.b16 %v779, %v775
        %v1000 = vpack.c.b16 %v780, %v776
        %v1001 = vpack.c.b16 %v781, %v777
        %v1002 = vpack.c.b16 %v782, %v778
        %v1003 = vpack.c.b16 %v787, %v783
        %v1004 = vpack.c.b16 %v788, %v784
        %v1005 = vpack.c.b16 %v789, %v785
        %v1006 = vpack.c.b16 %v790, %v786
        %v1007 = vpack.c.b16 %v795, %v791
        %v1008 = vpack.c.b16 %v796, %v792
        %v1009 = vpack.c.b16 %v797, %v793
        %v1010 = vpack.c.b16 %v798, %v794
        %v1011 = vpack.c.b16 %v803, %v799
        %v1012 = vpack.c.b16 %v804, %v800
        %v1013 = vpack.c.b16 %v805, %v801
        %v1014 = vpack.c.b16 %v806, %v802
        %v1015 = vpack.c.b16 %v811, %v807
        %v1016 = vpack.c.b16 %v812, %v808
        %v1017 = vpack.c.b16 %v813, %v809
        %v1018 = vpack.c.b16 %v814, %v810
        %v1019 = vpack.c.b16 %v819, %v815
        %v1020 = vpack.c.b16 %v820, %v816
        %v1021 = vpack.c.b16 %v821, %v817
        %v1022 = vpack.c.b16 %v822, %v818
        %v1023 = vpack.c.b16 %v827, %v823
        %v1024 = vpack.c.b16 %v828, %v824
        %v1025 = vpack.c.b16 %v829, %v825
        %v1026 = vpack.c.b16 %v830, %v826
        %v1027 = vpack.c.b16 %v835, %v831
        %v1028 = vpack.c.b16 %v836, %v832
        %v1029 = vpack.c.b16 %v837, %v833
        %v1030 = vpack.c.b16 %v838, %v834
        %v1031 = vpack.c.b16 %v843, %v839
        %v1032 = vpack.c.b16 %v844, %v840
        %v1033 = vpack.c.b16 %v845, %v841
        %v1034 = vpack.c.b16 %v846, %v842
        %v1035 = vpack.c.b16 %v851, %v847
        %v1036 = vpack.c.b16 %v852, %v848
        %v1037 = vpack.c.b16 %v853, %v849
        %v1038 = vpack.c.b16 %v854, %v850
        %v1039 = vpack.c.b16 %v859, %v855
        %v1040 = vpack.c.b16 %v860, %v856
        %v1041 = vpack.c.b16 %v861, %v857
        %v1042 = vpack.c.b16 %v862, %v858
        %v1043 = vpack.c.b16 %v867, %v863
        %v1044 = vpack.c.b16 %v868, %v864
        %v1045 = vpack.c.b16 %v869, %v865
        %v1046 = vpack.c.b16 %v870, %v866
        %v1047 = vpack.c.b16 %v875, %v871
        %v1048 = vpack.c.b16 %v876, %v872
        %v1049 = vpack.c.b16 %v877, %v873
        %v1050 = vpack.c.b16 %v878, %v874
        %v1051 = vpack.c.b16 %v883, %v879
        %v1052 = vpack.c.b16 %v884, %v880
        %v1053 = vpack.c.b16 %v885, %v881
        %v1054 = vpack.c.b16 %v886, %v882
        %v1055 = vpack.c.b16 %v891, %v887
        %v1056 = vpack.c.b16 %v892, %v888
        %v1057 = vpack.c.b16 %v893, %v889
        %v1058 = vpack.c.b16 %v894, %v890
        %v1059 = vpack.c.b16 %v899, %v895
        %v1060 = vpack.c.b16 %v900, %v896
        %v1061 = vpack.c.b16 %v901, %v897
        %v1062 = vpack.c.b16 %v902, %v898
        %v1063 = vpack.c.b16 %v907, %v903
        %v1064 = vpack.c.b16 %v908, %v904
        %v1065 = vpack.c.b16 %v909, %v905
        %v1066 = vpack.c.b16 %v910, %v906
        %v1067 = vpack.c.b16 %v915, %v911
        %v1068 = vpack.c.b16 %v916, %v912
        %v1069 = vpack.c.b16 %v917, %v913
        %v1070 = vpack.c.b16 %v918, %v914
        %v1071 = vpack.c.b16 %v923, %v919
        %v1072 = vpack.c.b16 %v924, %v920
        %v1073 = vpack.c.b16 %v925, %v921
        %v1074 = vpack.c.b16 %v926, %v922
        %v1075 = vpack.c.b16 %v931, %v927
        %v1076 = vpack.c.b16 %v932, %v928
        %v1077 = vpack.c.b16 %v933, %v929
        %v1078 = vpack.c.b16 %v934, %v930
        %v1079 = vpack.c.b16 %v939, %v935
        %v1080 = vpack.c.b16 %v940, %v936
        %v1081 = vpack.c.b16 %v941, %v937
        %v1082 = vpack.c.b16 %v942, %v938
        %v1083 = vpack.c.b16 %v947, %v943
        %v1084 = vpack.c.b16 %v948, %v944
        %v1085 = vpack.c.b16 %v949, %v945
        %v1086 = vpack.c.b16 %v950, %v946
        %v1087 = vpack.c.b16 %v955, %v951
        %v1088 = vpack.c.b16 %v956, %v952
        %v1089 = vpack.c.b16 %v957, %v953
        %v1090 = vpack.c.b16 %v958, %v954
        %v1091 = vpack.c.b16 %v963, %v959
        %v1092 = vpack.c.b16 %v964, %v960
        %v1093 = vpack.c.b16 %v965, %v961
        %v1094 = vpack.c.b16 %v966, %v962
        %1223 = vmatprep.subr.bf16.mxu0 %v968
        %1224 = vmatpush1.bf16.msra.mxu0 %v967
        %1225 = vmatprep.subr.bf16.mxu0 %v972
        %1226 = vmatpush1.bf16.msra.mxu0 %v971
        %1227 = vmatprep.subr.bf16.mxu0 %v976
        %1228 = vmatpush1.bf16.msra.mxu0 %v975
        %1229 = vmatprep.subr.bf16.mxu0 %v980
        %1230 = vmatpush1.bf16.msra.mxu0 %v979
        %1231 = vmatprep.subr.bf16.mxu0 %v984
        %1232 = vmatpush1.bf16.msra.mxu0 %v983
        %1233 = vmatprep.subr.bf16.mxu0 %v988
        %1234 = vmatpush1.bf16.msra.mxu0 %v987
        %1235 = vmatprep.subr.bf16.mxu0 %v992
        %1236 = vmatpush1.bf16.msra.mxu0 %v991
        %1237 = vmatprep.subr.bf16.mxu0 %v996
        %1238 = vmatpush1.bf16.msra.mxu0 %v995
        %1239 = vmatprep.subr.bf16.mxu0 %v1000
        %1240 = vmatpush1.bf16.msra.mxu0 %v999
        %1241 = vmatprep.subr.bf16.mxu0 %v1004
        %1242 = vmatpush1.bf16.msra.mxu0 %v1003
        %1243 = vmatprep.subr.bf16.mxu0 %v1008
        %1244 = vmatpush1.bf16.msra.mxu0 %v1007
        %1245 = vmatprep.subr.bf16.mxu0 %v1012
        %1246 = vmatpush1.bf16.msra.mxu0 %v1011
        %1247 = vmatprep.subr.bf16.mxu0 %v1016
        %1248 = vmatpush1.bf16.msra.mxu0 %v1015
        %1249 = vmatprep.subr.bf16.mxu0 %v1020
        %1250 = vmatpush1.bf16.msra.mxu0 %v1019
        %1251 = vmatprep.subr.bf16.mxu0 %v1024
        %1252 = vmatpush1.bf16.msra.mxu0 %v1023
        %1253 = vmatprep.subr.bf16.mxu0 %v1028
        %1254 = vmatpush1.bf16.msra.mxu0 %v1027
        %1255 = vmatprep.mubr.bf16.mxu0 %v576
        %1256 = vmatmul.mubr.bf16.gmra.mrb[0].mxu0 %v575
        %v1257 = vpop.f32.mrb[0].mxu0
        %v1258 = vadd.f32 0.0, %v1257
        %v1259 = vpop.f32.mrb[0].mxu0
        %v1260 = vadd.f32 0.0, %v1259
        %v1261 = vpop.f32.mrb[0].mxu0
        %v1262 = vadd.f32 0.0, %v1261
        %v1263 = vpop.f32.mrb[0].mxu0
        %v1264 = vadd.f32 0.0, %v1263
        %1265 = vdwg.mxu0
        %1266 = vmatprep.subr.bf16.mxu0 %v1032
        %1267 = vmatpush1.bf16.msra.mxu0 %v1031
        %1268 = vmatprep.subr.bf16.mxu0 %v1036
        %1269 = vmatpush1.bf16.msra.mxu0 %v1035
        %1270 = vmatprep.subr.bf16.mxu0 %v1040
        %1271 = vmatpush1.bf16.msra.mxu0 %v1039
        %1272 = vmatprep.subr.bf16.mxu0 %v1044
        %1273 = vmatpush1.bf16.msra.mxu0 %v1043
        %1274 = vmatprep.subr.bf16.mxu0 %v1048
        %1275 = vmatpush1.bf16.msra.mxu0 %v1047
        %1276 = vmatprep.subr.bf16.mxu0 %v1052
        %1277 = vmatpush1.bf16.msra.mxu0 %v1051
        %1278 = vmatprep.subr.bf16.mxu0 %v1056
        %1279 = vmatpush1.bf16.msra.mxu0 %v1055
        %1280 = vmatprep.subr.bf16.mxu0 %v1060
        %1281 = vmatpush1.bf16.msra.mxu0 %v1059
        %1282 = vmatprep.subr.bf16.mxu0 %v1064
        %1283 = vmatpush1.bf16.msra.mxu0 %v1063
        %1284 = vmatprep.subr.bf16.mxu0 %v1068
        %1285 = vmatpush1.bf16.msra.mxu0 %v1067
        %1286 = vmatprep.subr.bf16.mxu0 %v1072
        %1287 = vmatpush1.bf16.msra.mxu0 %v1071
        %1288 = vmatprep.subr.bf16.mxu0 %v1076
        %1289 = vmatpush1.bf16.msra.mxu0 %v1075
        %1290 = vmatprep.subr.bf16.mxu0 %v1080
        %1291 = vmatpush1.bf16.msra.mxu0 %v1079
        %1292 = vmatprep.subr.bf16.mxu0 %v1084
        %1293 = vmatpush1.bf16.msra.mxu0 %v1083
        %1294 = vmatprep.subr.bf16.mxu0 %v1088
        %1295 = vmatpush1.bf16.msra.mxu0 %v1087
        %1296 = vmatprep.subr.bf16.mxu0 %v1092
        %1297 = vmatpush1.bf16.msra.mxu0 %v1091
        %1298 = vmatprep.mubr.bf16.mxu0 %v578
        %1299 = vmatmul.mubr.bf16.gmra.mrb[0].mxu0 %v577
        %v1300 = vpop.f32.mrb[0].mxu0
        %v1301 = vadd.f32 %v1258, %v1300
        %v1302 = vpop.f32.mrb[0].mxu0
        %v1303 = vadd.f32 %v1260, %v1302
        %v1304 = vpop.f32.mrb[0].mxu0
        %v1305 = vadd.f32 %v1262, %v1304
        %v1306 = vpop.f32.mrb[0].mxu0
        %v1307 = vadd.f32 %v1264, %v1306
        %1308 = vdwg.mxu0
        %1309 = vmatprep.subr.bf16.mxu0 %v970
        %1310 = vmatpush1.bf16.msra.mxu0 %v969
        %1311 = vmatprep.subr.bf16.mxu0 %v974
        %1312 = vmatpush1.bf16.msra.mxu0 %v973
        %1313 = vmatprep.subr.bf16.mxu0 %v978
        %1314 = vmatpush1.bf16.msra.mxu0 %v977
        %1315 = vmatprep.subr.bf16.mxu0 %v982
        %1316 = vmatpush1.bf16.msra.mxu0 %v981
        %1317 = vmatprep.subr.bf16.mxu0 %v986
        %1318 = vmatpush1.bf16.msra.mxu0 %v985
        %1319 = vmatprep.subr.bf16.mxu0 %v990
        %1320 = vmatpush1.bf16.msra.mxu0 %v989
        %1321 = vmatprep.subr.bf16.mxu0 %v994
        %1322 = vmatpush1.bf16.msra.mxu0 %v993
        %1323 = vmatprep.subr.bf16.mxu0 %v998
        %1324 = vmatpush1.bf16.msra.mxu0 %v997
        %1325 = vmatprep.subr.bf16.mxu0 %v1002
        %1326 = vmatpush1.bf16.msra.mxu0 %v1001
        %1327 = vmatprep.subr.bf16.mxu0 %v1006
        %1328 = vmatpush1.bf16.msra.mxu0 %v1005
        %1329 = vmatprep.subr.bf16.mxu0 %v1010
        %1330 = vmatpush1.bf16.msra.mxu0 %v1009
        %1331 = vmatprep.subr.bf16.mxu0 %v1014
        %1332 = vmatpush1.bf16.msra.mxu0 %v1013
        %1333 = vmatprep.subr.bf16.mxu0 %v1018
        %1334 = vmatpush1.bf16.msra.mxu0 %v1017
        %1335 = vmatprep.subr.bf16.mxu0 %v1022
        %1336 = vmatpush1.bf16.msra.mxu0 %v1021
        %1337 = vmatprep.subr.bf16.mxu0 %v1026
        %1338 = vmatpush1.bf16.msra.mxu0 %v1025
        %1339 = vmatprep.subr.bf16.mxu0 %v1030
        %1340 = vmatpush1.bf16.msra.mxu0 %v1029
        %1341 = vmatprep.mubr.bf16.mxu0 %v576
        %1342 = vmatmul.mubr.bf16.gmra.mrb[0].mxu0 %v575
        %v1343 = vpop.f32.mrb[0].mxu0
        %v1344 = vadd.f32 0.0, %v1343
        %v1345 = vpop.f32.mrb[0].mxu0
        %v1346 = vadd.f32 0.0, %v1345
        %v1347 = vpop.f32.mrb[0].mxu0
        %v1348 = vadd.f32 0.0, %v1347
        %v1349 = vpop.f32.mrb[0].mxu0
        %v1350 = vadd.f32 0.0, %v1349
        %1351 = vdwg.mxu0
        %1352 = vmatprep.subr.bf16.mxu0 %v1034
        %1353 = vmatpush1.bf16.msra.mxu0 %v1033
        %1354 = vmatprep.subr.bf16.mxu0 %v1038
        %1355 = vmatpush1.bf16.msra.mxu0 %v1037
        %1356 = vmatprep.subr.bf16.mxu0 %v1042
        %1357 = vmatpush1.bf16.msra.mxu0 %v1041
        %1358 = vmatprep.subr.bf16.mxu0 %v1046
        %1359 = vmatpush1.bf16.msra.mxu0 %v1045
        %1360 = vmatprep.subr.bf16.mxu0 %v1050
        %1361 = vmatpush1.bf16.msra.mxu0 %v1049
        %1362 = vmatprep.subr.bf16.mxu0 %v1054
        %1363 = vmatpush1.bf16.msra.mxu0 %v1053
        %1364 = vmatprep.subr.bf16.mxu0 %v1058
        %1365 = vmatpush1.bf16.msra.mxu0 %v1057
        %1366 = vmatprep.subr.bf16.mxu0 %v1062
        %1367 = vmatpush1.bf16.msra.mxu0 %v1061
        %1368 = vmatprep.subr.bf16.mxu0 %v1066
        %1369 = vmatpush1.bf16.msra.mxu0 %v1065
        %1370 = vmatprep.subr.bf16.mxu0 %v1070
        %1371 = vmatpush1.bf16.msra.mxu0 %v1069
        %1372 = vmatprep.subr.bf16.mxu0 %v1074
        %1373 = vmatpush1.bf16.msra.mxu0 %v1073
        %1374 = vmatprep.subr.bf16.mxu0 %v1078
        %1375 = vmatpush1.bf16.msra.mxu0 %v1077
        %1376 = vmatprep.subr.bf16.mxu0 %v1082
        %1377 = vmatpush1.bf16.msra.mxu0 %v1081
        %1378 = vmatprep.subr.bf16.mxu0 %v1086
        %1379 = vmatpush1.bf16.msra.mxu0 %v1085
        %1380 = vmatprep.subr.bf16.mxu0 %v1090
        %1381 = vmatpush1.bf16.msra.mxu0 %v1089
        %1382 = vmatprep.subr.bf16.mxu0 %v1094
        %1383 = vmatpush1.bf16.msra.mxu0 %v1093
        %1384 = vmatprep.mubr.bf16.mxu0 %v578
        %1385 = vmatmul.mubr.bf16.gmra.mrb[0].mxu0 %v577
        %v1386 = vpop.f32.mrb[0].mxu0
        %v1387 = vadd.f32 %v1344, %v1386
        %v1388 = vpop.f32.mrb[0].mxu0
        %v1389 = vadd.f32 %v1346, %v1388
        %v1390 = vpop.f32.mrb[0].mxu0
        %v1391 = vadd.f32 %v1348, %v1390
        %v1392 = vpop.f32.mrb[0].mxu0
        %v1393 = vadd.f32 %v1350, %v1392
        %1394 = vdwg.mxu0
        %v1395 = vadd.f32 %v423, %v1301
        %v1396 = vadd.f32 %v424, %v1303
        %v1397 = vadd.f32 %v425, %v1387
        %v1398 = vadd.f32 %v426, %v1389
        %v1399 = vadd.f32 %v427, %v1305
        %v1400 = vadd.f32 %v428, %v1307
        %v1401 = vadd.f32 %v429, %v1391
        %v1402 = vadd.f32 %v430, %v1393
        %1403 = vst [vmem:[#allocation2] sm:$0xff] %v1395
        %1404 = vst [vmem:[#allocation2 + $0x8] sm:$0xff] %v1396
        %1405 = vst [vmem:[#allocation2 + $0x10] sm:$0xff] %v1397
        %1406 = vst [vmem:[#allocation2 + $0x18] sm:$0xff] %v1398
        %1407 = vst [vmem:[#allocation2 + $0x20] sm:$0xff] %v1399
        %1408 = vst [vmem:[#allocation2 + $0x28] sm:$0xff] %v1400
        %1409 = vst [vmem:[#allocation2 + $0x30] sm:$0xff] %v1401
        %1410 = vst [vmem:[#allocation2 + $0x38] sm:$0xff] %v1402
        %p1411 = scmp.eq.s32.totalorder %s23, 8
        // Predicated region
        $region68: #{_lambda_.25} parent=58 // pred_check
          %p1412 = pneg %p1411
        $region69: #{_lambda_.25} parent=58 // pred_check_branch
          %1414 = sbr.rel (%p1412) target = $region71
        $region70: #{_lambda_.25} parent=58 // pred_region
          %v1415 = vld [vmem:[#allocation2] sm:$0xff]
          %v1416 = vld [vmem:[#allocation2 + $0x8] sm:$0xff]
          %v1417 = vld [vmem:[#allocation2 + $0x10] sm:$0xff]
          %v1418 = vld [vmem:[#allocation2 + $0x18] sm:$0xff]
          %v1419 = vld [vmem:[#allocation2 + $0x20] sm:$0xff]
          %v1420 = vld [vmem:[#allocation2 + $0x28] sm:$0xff]
          %v1421 = vld [vmem:[#allocation2 + $0x30] sm:$0xff]
          %v1422 = vld [vmem:[#allocation2 + $0x38] sm:$0xff]
          %v1423 = vld [vmem:[%s380] sm:$0xf]
          %v1425 = vlaneseq
          %v1426 = vshrl.u32 %v1425, 7
          %v1427 = vsub.s32 0, %v1426
          %v1428 = vrot.slane %v1423, %v1427
          %v1429 = vlaneseq
          %v1430 = vshrl.u32 %v1429, 7
          %v1431 = vsub.s32 1, %v1430
          %v1432 = vrot.slane %v1423, %v1431
          %v1433 = vlaneseq
          %v1434 = vshrl.u32 %v1433, 7
          %v1435 = vsub.s32 2, %v1434
          %v1436 = vrot.slane %v1423, %v1435
          %v1437 = vlaneseq
          %v1438 = vshrl.u32 %v1437, 7
          %v1439 = vsub.s32 3, %v1438
          %v1440 = vrot.slane %v1423, %v1439
          %v1445 = vmul.f32 %v1415, %v1428
          %v1446 = vmul.f32 %v1416, %v1432
          %v1447 = vmul.f32 %v1417, %v1436
          %v1448 = vmul.f32 %v1418, %v1440
          %v1449 = vmul.f32 %v1419, %v1428
          %v1450 = vmul.f32 %v1420, %v1432
          %v1451 = vmul.f32 %v1421, %v1436
          %v1452 = vmul.f32 %v1422, %v1440
          %v1453 = vld [vmem:[%s385] sm:$0xf]
          %v1455 = vlaneseq
          %v1456 = vshrl.u32 %v1455, 7
          %v1457 = vsub.s32 0, %v1456
          %v1458 = vrot.slane %v1453, %v1457
          %v1459 = vlaneseq
          %v1460 = vshrl.u32 %v1459, 7
          %v1461 = vsub.s32 1, %v1460
          %v1462 = vrot.slane %v1453, %v1461
          %v1463 = vlaneseq
          %v1464 = vshrl.u32 %v1463, 7
          %v1465 = vsub.s32 2, %v1464
          %v1466 = vrot.slane %v1453, %v1465
          %v1467 = vlaneseq
          %v1468 = vshrl.u32 %v1467, 7
          %v1469 = vsub.s32 3, %v1468
          %v1470 = vrot.slane %v1453, %v1469
          %v1475 = vadd.f32 %v1445, %v1458
          %v1476 = vadd.f32 %v1446, %v1462
          %v1477 = vadd.f32 %v1447, %v1466
          %v1478 = vadd.f32 %v1448, %v1470
          %v1479 = vadd.f32 %v1449, %v1458
          %v1480 = vadd.f32 %v1450, %v1462
          %v1481 = vadd.f32 %v1451, %v1466
          %v1482 = vadd.f32 %v1452, %v1470
          %v1483 = vld [vmem:[%s396] sm:$0xff]
          %v1484 = vld [vmem:[%s396 + $0x8] sm:$0xff]
          %v1485 = vld [vmem:[%s396 + $0x10] sm:$0xff]
          %v1486 = vld [vmem:[%s396 + $0x18] sm:$0xff]
          %v1487 = vunpack.c.l.bf16 %v1483
          %v1488 = vunpack.c.h.bf16 %v1483
          %v1489 = vunpack.c.l.bf16 %v1484
          %v1490 = vunpack.c.h.bf16 %v1484
          %v1491 = vunpack.c.l.bf16 %v1485
          %v1492 = vunpack.c.h.bf16 %v1485
          %v1493 = vunpack.c.l.bf16 %v1486
          %v1494 = vunpack.c.h.bf16 %v1486
          %v1495 = vadd.f32 %v1475, %v1487
          %v1496 = vadd.f32 %v1476, %v1488
          %v1497 = vadd.f32 %v1477, %v1489
          %v1498 = vadd.f32 %v1478, %v1490
          %v1499 = vadd.f32 %v1479, %v1491
          %v1500 = vadd.f32 %v1480, %v1492
          %v1501 = vadd.f32 %v1481, %v1493
          %v1502 = vadd.f32 %v1482, %v1494
          %v1503 = vmax.f32 %v1495, 0.0
          %v1504 = vmax.f32 %v1496, 0.0
          %v1505 = vmax.f32 %v1497, 0.0
          %v1506 = vmax.f32 %v1498, 0.0
          %v1507 = vmax.f32 %v1499, 0.0
          %v1508 = vmax.f32 %v1500, 0.0
          %v1509 = vmax.f32 %v1501, 0.0
          %v1510 = vmax.f32 %v1502, 0.0
          %v1511 = vpack.c.bf16 %v1507, %v1503
          %v1512 = vpack.c.bf16 %v1508, %v1504
          %v1513 = vpack.c.bf16 %v1509, %v1505
          %v1514 = vpack.c.bf16 %v1510, %v1506
          %v1519 = vunpack.c.l.b16 %v1511
          %v1520 = vunpack.c.l.b16 %v1512
          %v1521 = vunpack.c.l.b16 %v1513
          %v1522 = vunpack.c.l.b16 %v1514
          %v1523 = vunpack.c.h.b16 %v1511
          %v1524 = vunpack.c.h.b16 %v1512
          %v1525 = vunpack.c.h.b16 %v1513
          %v1526 = vunpack.c.h.b16 %v1514
          %v1527 = vpack.c.b16 %v1520, %v1519
          %v1528 = vpack.c.b16 %v1522, %v1521
          %v1529 = vpack.c.b16 %v1524, %v1523
          %v1530 = vpack.c.b16 %v1526, %v1525
          %1535 = vst [vmem:[%s408] sm:$0xff] %v1527
          %1536 = vst [vmem:[%s408 + $0x8] sm:$0xff] %v1528
          %1537 = vst [vmem:[%s408 + $0x10] sm:$0xff] %v1529
          %1538 = vst [vmem:[%s408 + $0x18] sm:$0xff] %v1530
        $region71: #{_lambda_.25} parent=58 // pred_fallthru
          _
        %s1539 = smul.u32 2, %s21
        %s1540 = smul.u32 4, %s22
        %p1541 = scmp.lt.s32.totalorder %s1539, 1
        %s1542 = scalar_select %p1541, %s1539, 1
        %p1543 = scmp.lt.s32.totalorder %s1540, 3
        %s1544 = scalar_select %p1543, %s1540, 3
        %s1545 = smul.addr %s1542, 4
        %s1546 = sadd.s32 %s1544, %s1545
        %s1547 = smul.addr %s1546, 4
        %s1548 = scalar_lea.vmem %s5, %s1547
        // Predicated region
        $region72: #{_lambda_.25} parent=58 // pred_check
          %p1549 = pneg %p191
        $region73: #{_lambda_.25} parent=58 // pred_check_branch
          %1551 = sbr.rel (%p1549) target = $region75
        $region74: #{_lambda_.25} parent=58 // pred_region
          %s1552 = smul.u32 2, %s21
          %s1553 = smul.u32 4, %s22
        $region75: #{_lambda_.25} parent=58 // pred_fallthru
          _
        // Predicated region
        $region76: #{_lambda_.25} parent=58 // pred_check
          %p1554 = pneg %p191
        $region77: #{_lambda_.25} parent=58 // pred_check_branch
          %1556 = sbr.rel (%p1554) target = $region79
        $region78: #{_lambda_.25} parent=58 // pred_region
          %s1557 = smul.u32 2, %s21
          %s1558 = smul.u32 4, %s22
          %p1559 = scmp.lt.s32.totalorder %s1557, 1
          %s1560 = scalar_select %p1559, %s1557, 1
          %p1561 = scmp.lt.s32.totalorder %s1558, 3
          %s1562 = scalar_select %p1561, %s1558, 3
          %s1563 = smul.addr %s1560, 4
          %s1564 = sadd.s32 %s1562, %s1563
          %s1565 = smul.addr %s1564, 4
          %s1566 = scalar_lea.vmem %s5, %s1565
        $region79: #{_lambda_.25} parent=58 // pred_fallthru
          _
      $region59: #{_lambda_.25} parent=5 // pred_fallthru
        _
      %p1567 = scmp.le.s32.totalorder 2, %s11
      // Predicated region
      $region80: #{_lambda_.25} parent=5 // pred_check
        %p1568 = pneg %p1567
      $region81: #{_lambda_.25} parent=5 // pred_check_branch
        %1570 = sbr.rel (%p1568) target = $region83
      $region82: #{_lambda_.25} parent=5 // pred_region
        %s1571 = ssub.s32 %s11, 2
      $region83: #{_lambda_.25} parent=5 // pred_fallthru
        _
    $region6: #{_lambda_.25} parent=1 // loop_footer
      %s15 = sadd.s32 1, %s11
    $region7: #{_lambda_.25} parent=1 // loop_footer_branch
      %10 = sbr.rel target = $region3
    $region8: #{_lambda_.25} parent=1 // loop_exit
      _

</llo_original>
